<compile_context>
chip_gen: v7x
topology: tpu7x:2x2x1
jax: 0.10.0
libtpu: 0.0.40
codegen_flags: <defaults>
</compile_context>

<pallas_src>
import functools

import jax
import jax.numpy as jnp
from jax.experimental import pallas as pl
from jax.experimental.pallas import tpu as pltpu


# ----------------------------------------------------------------------------
# Pallas kernels
# ----------------------------------------------------------------------------
def conv3x3s2_bn_relu_kernel(x_ref, w_ref, shift_ref, o_ref):
    """Fused 3x3 stride-2 conv + folded-BN + ReLU for one image.

    The stride-2 conv is expressed as a 2x2 *stride-1* conv over a
    space-to-depth(2x2) rearranged input, so every tap read is a contiguous
    (OW, 4*Cin) VMEM slice: no strided loads and no im2col patch matrix in HBM.

    x_ref:     (1, OH+1, OW+1, C4)  s2d input tile (C4 = 4*Cin)
    w_ref:     (4, C4, Np)          per-s2d-tap weight, BN scale folded in,
                                    Cout zero-padded to Np (lane-dense, 128)
    shift_ref: (1, Np)              folded BN shift (zero in padded lanes)
    o_ref:     (1, OH, OW, Np)      NHWC output tile (padded channels == 0)
    """
    OH, OW, Np = o_ref.shape[1], o_ref.shape[2], o_ref.shape[3]
    sh = shift_ref[...]
    # TODO(synk): for large OH, replace the static unroll with an output-row
    # grid axis (also gives megacore parallelism when B == 1).
    for oh in range(OH):
        acc = jnp.zeros((OW, Np), jnp.float32)
        for di in range(2):
            for dj in range(2):
                lhs = x_ref[0, oh + di, pl.ds(dj, OW), :]        # (OW, C4)
                acc = acc + jnp.dot(lhs, w_ref[2 * di + dj],
                                    preferred_element_type=jnp.float32)
        o_ref[0, oh] = jnp.maximum(acc + sh, 0.0).astype(o_ref.dtype)


def conv3x3s2_bn_relu_gap_fc_kernel(x_ref, w_ref, shift_ref, wfc_ref, bfc_ref,
                                    o_ref):
    """Stage-2 conv + BN + ReLU fused with global-average-pool and the FC head.

    Only a (1, NCp) logits row per image leaves VMEM; the stage-2 feature map,
    the pooled vector, and any S-times-tiled FC weight never touch HBM.

    x_ref:     (1, OH+1, OW+1, C4)
    w_ref:     (4, C4, Cp)
    shift_ref: (1, Cp)
    wfc_ref:   (Cp, NCp)   classifier weight (zero rows for padded channels)
    bfc_ref:   (1, NCp)    classifier bias (zero in padded lanes)
    o_ref:     (1, 1, NCp) logits
    """
    OH = x_ref.shape[1] - 1
    OW = x_ref.shape[2] - 1
    Cp = w_ref.shape[2]
    sh = shift_ref[...]
    pooled = jnp.zeros((1, Cp), jnp.float32)
    for oh in range(OH):
        acc = jnp.zeros((OW, Cp), jnp.float32)
        for di in range(2):
            for dj in range(2):
                lhs = x_ref[0, oh + di, pl.ds(dj, OW), :]        # (OW, C4)
                acc = acc + jnp.dot(lhs, w_ref[2 * di + dj],
                                    preferred_element_type=jnp.float32)
        row = jnp.maximum(acc + sh, 0.0)                         # (OW, Cp)
        pooled = pooled + jnp.sum(row, axis=0, keepdims=True)
    pooled = pooled * (1.0 / (OH * OW))                          # global avg pool
    logits = jnp.dot(pooled.astype(wfc_ref.dtype), wfc_ref[...],
                     preferred_element_type=jnp.float32)
    o_ref[0] = (logits + bfc_ref[...]).astype(o_ref.dtype)


# ----------------------------------------------------------------------------
# XLA-side glue: space-to-depth, BN folding, weight packing
# ----------------------------------------------------------------------------
def _round_up(x, m):
    return (x + m - 1) // m * m


def _space_to_depth2(x_nhwc):
    """(B, H, W, C) with H, W even -> (B, H//2, W//2, 4*C).  Non-inflating."""
    B, H, W, C = x_nhwc.shape
    x = x_nhwc.reshape(B, H // 2, 2, W // 2, 2, C)
    x = x.transpose(0, 1, 3, 2, 4, 5)
    return x.reshape(B, H // 2, W // 2, 4 * C)


def _fold_bn(gamma, beta, running_mean, running_var, eps=1e-5):
    scale = gamma / jnp.sqrt(running_var + eps)
    shift = beta - running_mean * scale
    return scale, shift


def _s2d_conv_weight(w_oihw, scale, cin_eff, cout_pad):
    """(Cout, Cin, 3, 3) OIHW -> (4, 4*cin_eff, cout_pad), BN scale folded in.

    Original tap (i, j) lands at s2d tap (i//2)*2 + (j//2), channel block
    ((i%2)*2 + (j%2)) * cin_eff.  cin_eff >= Cin lets the previous stage keep
    its lane-padded zero channels (their weight rows are zero).
    """
    cout, cin = w_oihw.shape[0], w_oihw.shape[1]
    w = (w_oihw * scale[:, None, None, None]).astype(jnp.float32)
    w4 = jnp.zeros((2, 2, 2, 2, cin_eff, cout_pad), jnp.float32)
    for i in range(3):
        for j in range(3):
            di, pi = i // 2, i % 2
            dj, pj = j // 2, j % 2
            w4 = w4.at[di, dj, pi, pj, :cin, :cout].set(w[:, :, i, j].T)
    return w4.reshape(4, 4 * cin_eff, cout_pad)


# ----------------------------------------------------------------------------
# Wrappers around pallas_call
# ----------------------------------------------------------------------------
def _conv_bn_relu_pallas(x_nhwc, w4, shift_pad, *, cin_true, cout_true,
                         compute_dtype=jnp.float32):
    """Fused conv3x3/s2 + BN + ReLU: (B,H,W,C) NHWC -> (B,H//2,W//2,Np) NHWC."""
    B, H, W, C = x_nhwc.shape
    assert H % 2 == 0 and W % 2 == 0, "even spatial dims required"
    C4, Np = w4.shape[1], w4.shape[2]
    assert C4 == 4 * C
    OH, OW = H // 2, W // 2
    HB, WB = OH + 1, OW + 1

    xp = jnp.pad(x_nhwc, ((0, 0), (1, 1), (1, 1), (0, 0)))      # halo pad only
    xs = _space_to_depth2(xp).astype(compute_dtype)             # (B, HB, WB, C4)
    w4c = w4.astype(compute_dtype)
    sh = shift_pad.reshape(1, Np).astype(jnp.float32)

    itm = jnp.dtype(compute_dtype).itemsize
    cost = pl.CostEstimate(
        flops=2 * B * OH * OW * 9 * cin_true * cout_true,       # true conv flops
        transcendentals=0,
        bytes_accessed=(xs.size * itm + w4c.size * itm + sh.size * 4
                        + B * OH * OW * Np * itm),
    )

    return pl.pallas_call(
        conv3x3s2_bn_relu_kernel,
        out_shape=jax.ShapeDtypeStruct((B, OH, OW, Np), compute_dtype),
        grid=(B,),
        in_specs=[
            pl.BlockSpec((1, HB, WB, C4), lambda b: (b, 0, 0, 0)),  # per-image tile
            pl.BlockSpec((4, C4, Np), lambda b: (0, 0, 0)),         # resident weight
            pl.BlockSpec((1, Np), lambda b: (0, 0)),                # resident shift
        ],
        out_specs=pl.BlockSpec((1, OH, OW, Np), lambda b: (b, 0, 0, 0)),
        compiler_params=pltpu.CompilerParams(
            dimension_semantics=("parallel",)),       # megacore over batch (v7x)
        cost_estimate=cost,
    )(xs, w4c, sh)


def _conv_bn_relu_gap_fc_pallas(x_nhwc, w4, shift_pad, wfc_pad, bfc_pad, *,
                                cin_true, cout_true, nc_true,
                                compute_dtype=jnp.float32):
    """Fused conv3x3/s2 + BN + ReLU + GAP + FC head -> (B, NCp) logits."""
    B, H, W, C = x_nhwc.shape
    assert H % 2 == 0 and W % 2 == 0
    C4, Np = w4.shape[1], w4.shape[2]
    assert C4 == 4 * C
    NCp = wfc_pad.shape[1]
    OH, OW = H // 2, W // 2
    HB, WB = OH + 1, OW + 1

    xp = jnp.pad(x_nhwc, ((0, 0), (1, 1), (1, 1), (0, 0)))
    xs = _space_to_depth2(xp).astype(compute_dtype)
    w4c = w4.astype(compute_dtype)
    sh = shift_pad.reshape(1, Np).astype(jnp.float32)
    wfc = wfc_pad.astype(compute_dtype)
    bfc = bfc_pad.reshape(1, NCp).astype(jnp.float32)

    itm = jnp.dtype(compute_dtype).itemsize
    cost = pl.CostEstimate(
        flops=(2 * B * OH * OW * 9 * cin_true * cout_true       # conv
               + B * OH * OW * cout_true                        # pooling adds
               + 2 * B * cout_true * nc_true),                  # FC head
        transcendentals=0,
        bytes_accessed=(xs.size * itm + w4c.size * itm + sh.size * 4
                        + wfc.size * itm + bfc.size * 4 + B * NCp * 4),
    )

    out = pl.pallas_call(
        conv3x3s2_bn_relu_gap_fc_kernel,
        out_shape=jax.ShapeDtypeStruct((B, 1, NCp), jnp.float32),
        grid=(B,),
        in_specs=[
            pl.BlockSpec((1, HB, WB, C4), lambda b: (b, 0, 0, 0)),
            pl.BlockSpec((4, C4, Np), lambda b: (0, 0, 0)),
            pl.BlockSpec((1, Np), lambda b: (0, 0)),
            pl.BlockSpec((Np, NCp), lambda b: (0, 0)),
            pl.BlockSpec((1, NCp), lambda b: (0, 0)),
        ],
        out_specs=pl.BlockSpec((1, 1, NCp), lambda b: (b, 0, 0)),
        compiler_params=pltpu.CompilerParams(
            dimension_semantics=("parallel",)),
        cost_estimate=cost,
    )(xs, w4c, sh, wfc, bfc)
    return out.reshape(B, NCp)


# ----------------------------------------------------------------------------
# Parameters & forward
# ----------------------------------------------------------------------------
def init_params(key, in_ch=3, c1=32, c2=64, num_classes=10):
    ks = jax.random.split(key, 6)
    p = {}
    p["w1"] = jax.random.normal(ks[0], (c1, in_ch, 3, 3), jnp.float32) * 0.1
    p["bn1_gamma"] = jnp.ones((c1,), jnp.float32)
    p["bn1_beta"] = jax.random.normal(ks[1], (c1,), jnp.float32) * 0.01
    p["bn1_mean"] = jnp.zeros((c1,), jnp.float32)
    p["bn1_var"] = jnp.ones((c1,), jnp.float32)
    p["w2"] = jax.random.normal(ks[2], (c2, c1, 3, 3), jnp.float32) * 0.05
    p["bn2_gamma"] = jnp.ones((c2,), jnp.float32)
    p["bn2_beta"] = jax.random.normal(ks[3], (c2,), jnp.float32) * 0.01
    p["bn2_mean"] = jnp.zeros((c2,), jnp.float32)
    p["bn2_var"] = jnp.ones((c2,), jnp.float32)
    p["w_fc"] = jax.random.normal(ks[4], (c2, num_classes), jnp.float32) * 0.1
    p["b_fc"] = jax.random.normal(ks[5], (num_classes,), jnp.float32) * 0.01
    return p


@functools.partial(jax.jit, static_argnames=("compute_dtype",))
def backbone_forward(params, imgs_nchw, compute_dtype=jnp.float32):
    """Forward: imgs (B, 3, H, W) float32 -> logits (B, num_classes) float32."""
    c1 = params["w1"].shape[0]
    c2 = params["w2"].shape[0]
    nc = params["w_fc"].shape[1]
    C1p = _round_up(c1, 128)        # lane-dense Cout; padded channels stay zero
    C2p = _round_up(c2, 128)
    NCp = _round_up(nc, 128)

    x = jnp.transpose(imgs_nchw, (0, 2, 3, 1))   # single NCHW->NHWC at boundary

    # --- stage 1: conv3x3/s2 + BN + ReLU (fused; no im2col, no post-slice) ---
    s1, sh1 = _fold_bn(params["bn1_gamma"], params["bn1_beta"],
                       params["bn1_mean"], params["bn1_var"])
    w1_4 = _s2d_conv_weight(params["w1"], s1,
                            cin_eff=params["w1"].shape[1], cout_pad=C1p)
    sh1p = jnp.pad(sh1, (0, C1p - c1))
    f1 = _conv_bn_relu_pallas(x, w1_4, sh1p,
                              cin_true=params["w1"].shape[1], cout_true=c1,
                              compute_dtype=compute_dtype)
    # f1: (B, H/2, W/2, 128) NHWC; channels >= c1 are exact zeros.

    # --- stage 2 + GAP + FC head: one fully fused kernel ---------------------
    s2, sh2 = _fold_bn(params["bn2_gamma"], params["bn2_beta"],
                       params["bn2_mean"], params["bn2_var"])
    w2_4 = _s2d_conv_weight(params["w2"], s2, cin_eff=C1p, cout_pad=C2p)
    sh2p = jnp.pad(sh2, (0, C2p - c2))
    wfc_pad = jnp.pad(params["w_fc"], ((0, C2p - c2), (0, NCp - nc)))
    bfc_pad = jnp.pad(params["b_fc"], (0, NCp - nc))
    logits_pad = _conv_bn_relu_gap_fc_pallas(
        f1, w2_4, sh2p, wfc_pad, bfc_pad,
        cin_true=c1, cout_true=c2, nc_true=nc, compute_dtype=compute_dtype)
    return logits_pad[:, :nc]                   # tiny (B,128)->(B,nc) slice


# ----------------------------------------------------------------------------
# Reference (pure JAX) for sanity checks
# ----------------------------------------------------------------------------
def _reference_forward(params, imgs_nchw):
    def conv(x, w):
        return jax.lax.conv_general_dilated(
            x, w, window_strides=(2, 2), padding=((1, 1), (1, 1)),
            dimension_numbers=("NCHW", "OIHW", "NCHW"),
        )

    def bn_relu(x, g, b, m, v):
        sc = g / jnp.sqrt(v + 1e-5)
        sh = b - m * sc
        return jnp.maximum(x * sc[None, :, None, None] + sh[None, :, None, None], 0.0)

    x = bn_relu(conv(imgs_nchw, params["w1"]), params["bn1_gamma"],
                params["bn1_beta"], params["bn1_mean"], params["bn1_var"])
    x = bn_relu(conv(x, params["w2"]), params["bn2_gamma"],
                params["bn2_beta"], params["bn2_mean"], params["bn2_var"])
    pooled = jnp.mean(x, axis=(2, 3))
    return pooled @ params["w_fc"] + params["b_fc"]


if __name__ == "__main__":
    key = jax.random.PRNGKey(0)
    k_params, k_imgs = jax.random.split(key)

    B, C, H, W = 2, 3, 16, 16
    num_classes = 10

    params = init_params(k_params, in_ch=C, c1=32, c2=64, num_classes=num_classes)
    imgs = jax.random.normal(k_imgs, (B, C, H, W), jnp.float32)

    ref = _reference_forward(params, imgs)

    # f32 path: strict structural/numerical check.
    logits_f32 = jax.block_until_ready(
        backbone_forward(params, imgs, compute_dtype=jnp.float32))
    assert logits_f32.shape == (B, num_classes), logits_f32.shape
    assert jnp.allclose(logits_f32, ref, atol=1e-4, rtol=1e-4), (
        float(jnp.max(jnp.abs(logits_f32 - ref))))

    # bf16-activation / f32-accumulate path (v6e/v7x MXU fast path): loose check.
    logits_bf16 = jax.block_until_ready(
        backbone_forward(params, imgs, compute_dtype=jnp.bfloat16))
    assert logits_bf16.shape == (B, num_classes), logits_bf16.shape
    assert jnp.allclose(logits_bf16, ref, atol=1e-1, rtol=1e-1), (
        float(jnp.max(jnp.abs(logits_bf16 - ref))))

    # TODO(synk): timm.create_model(pretrained=True) checkpoint loading has no
    # Pallas equivalent; weights are synthetic deterministic initializations.
    print("KERNEL_OK")
</pallas_src>

<mosaic_0001>
module attributes {stable_mosaic.version = 11 : i64} {
  func.func @conv3x3s2_bn_relu_kernel(%arg0: i32, %arg1: memref<1x9x9x12xf32, #tpu.memory_space<vmem>>, %arg2: memref<4x12x128xf32, #tpu.memory_space<vmem>>, %arg3: memref<1x128xf32, #tpu.memory_space<vmem>>, %arg4: memref<1x8x8x128xf32, #tpu.memory_space<vmem>>) attributes {dimension_semantics = [#tpu.dimension_semantics<parallel>], iteration_bounds = array<i64: 2>, scalar_prefetch = 0 : i64, scratch_operands = 0 : i64, tpu.core_type = #tpu.core_type<tc>, window_params = [{transform_indices = @transform_0, window_bounds = array<i64: 1, 9, 9, 12>}, {pipeline_mode = #tpu.pipeline_mode<synchronous>, transform_indices = @transform_1, window_bounds = array<i64: 4, 12, 128>}, {pipeline_mode = #tpu.pipeline_mode<synchronous>, transform_indices = @transform_2, window_bounds = array<i64: 1, 128>}, {transform_indices = @transform_3, window_bounds = array<i64: 1, 8, 8, 128>}]} {
    %c0 = arith.constant 0 : index
    %c0_0 = arith.constant 0 : index
    %0 = vector.load %arg3[%c0, %c0_0] : memref<1x128xf32, #tpu.memory_space<vmem>>, vector<1x128xf32>
    %cst = arith.constant 0.000000e+00 : f32
    %1 = vector.broadcast %cst : f32 to vector<8x128xf32>
    %c0_1 = arith.constant 0 : index
    %c0_2 = arith.constant 0 : index
    %c0_3 = arith.constant 0 : index
    %c0_4 = arith.constant 0 : index
    %2 = vector.load %arg1[%c0_1, %c0_2, %c0_3, %c0_4] : memref<1x9x9x12xf32, #tpu.memory_space<vmem>>, vector<1x1x8x12xf32>
    %3 = vector.shape_cast %2 : vector<1x1x8x12xf32> to vector<8x12xf32>
    %c0_5 = arith.constant 0 : index
    %c0_6 = arith.constant 0 : index
    %c0_7 = arith.constant 0 : index
    %4 = vector.load %arg2[%c0_5, %c0_6, %c0_7] : memref<4x12x128xf32, #tpu.memory_space<vmem>>, vector<1x12x128xf32>
    %5 = vector.shape_cast %4 : vector<1x12x128xf32> to vector<12x128xf32>
    %cst_8 = arith.constant dense<0.000000e+00> : vector<8x128xf32>
    %6 = tpu.matmul %3, %5, %cst_8 {dimension_numbers = #tpu.dot_dimension_numbers<[1], [0], [0], [1], [0, 0, 1, 1], [], []>} : vector<8x12xf32>, vector<12x128xf32>, vector<8x128xf32> -> vector<8x128xf32>
    %7 = arith.addf %1, %6 : vector<8x128xf32>
    %c0_9 = arith.constant 0 : index
    %c0_10 = arith.constant 0 : index
    %c1 = arith.constant 1 : index
    %c0_11 = arith.constant 0 : index
    %8 = vector.load %arg1[%c0_9, %c0_10, %c1, %c0_11] : memref<1x9x9x12xf32, #tpu.memory_space<vmem>>, vector<1x1x8x12xf32>
    %9 = vector.shape_cast %8 : vector<1x1x8x12xf32> to vector<8x12xf32>
    %c1_12 = arith.constant 1 : index
    %c0_13 = arith.constant 0 : index
    %c0_14 = arith.constant 0 : index
    %10 = vector.load %arg2[%c1_12, %c0_13, %c0_14] : memref<4x12x128xf32, #tpu.memory_space<vmem>>, vector<1x12x128xf32>
    %11 = vector.shape_cast %10 : vector<1x12x128xf32> to vector<12x128xf32>
    %cst_15 = arith.constant dense<0.000000e+00> : vector<8x128xf32>
    %12 = tpu.matmul %9, %11, %cst_15 {dimension_numbers = #tpu.dot_dimension_numbers<[1], [0], [0], [1], [0, 0, 1, 1], [], []>} : vector<8x12xf32>, vector<12x128xf32>, vector<8x128xf32> -> vector<8x128xf32>
    %13 = arith.addf %7, %12 : vector<8x128xf32>
    %c0_16 = arith.constant 0 : index
    %c1_17 = arith.constant 1 : index
    %c0_18 = arith.constant 0 : index
    %c0_19 = arith.constant 0 : index
    %14 = vector.load %arg1[%c0_16, %c1_17, %c0_18, %c0_19] : memref<1x9x9x12xf32, #tpu.memory_space<vmem>>, vector<1x1x8x12xf32>
    %15 = vector.shape_cast %14 : vector<1x1x8x12xf32> to vector<8x12xf32>
    %c2 = arith.constant 2 : index
    %c0_20 = arith.constant 0 : index
    %c0_21 = arith.constant 0 : index
    %16 = vector.load %arg2[%c2, %c0_20, %c0_21] : memref<4x12x128xf32, #tpu.memory_space<vmem>>, vector<1x12x128xf32>
    %17 = vector.shape_cast %16 : vector<1x12x128xf32> to vector<12x128xf32>
    %cst_22 = arith.constant dense<0.000000e+00> : vector<8x128xf32>
    %18 = tpu.matmul %15, %17, %cst_22 {dimension_numbers = #tpu.dot_dimension_numbers<[1], [0], [0], [1], [0, 0, 1, 1], [], []>} : vector<8x12xf32>, vector<12x128xf32>, vector<8x128xf32> -> vector<8x128xf32>
    %19 = arith.addf %13, %18 : vector<8x128xf32>
    %c0_23 = arith.constant 0 : index
    %c1_24 = arith.constant 1 : index
    %c1_25 = arith.constant 1 : index
    %c0_26 = arith.constant 0 : index
    %20 = vector.load %arg1[%c0_23, %c1_24, %c1_25, %c0_26] : memref<1x9x9x12xf32, #tpu.memory_space<vmem>>, vector<1x1x8x12xf32>
    %21 = vector.shape_cast %20 : vector<1x1x8x12xf32> to vector<8x12xf32>
    %c3 = arith.constant 3 : index
    %c0_27 = arith.constant 0 : index
    %c0_28 = arith.constant 0 : index
    %22 = vector.load %arg2[%c3, %c0_27, %c0_28] : memref<4x12x128xf32, #tpu.memory_space<vmem>>, vector<1x12x128xf32>
    %23 = vector.shape_cast %22 : vector<1x12x128xf32> to vector<12x128xf32>
    %cst_29 = arith.constant dense<0.000000e+00> : vector<8x128xf32>
    %24 = tpu.matmul %21, %23, %cst_29 {dimension_numbers = #tpu.dot_dimension_numbers<[1], [0], [0], [1], [0, 0, 1, 1], [], []>} : vector<8x12xf32>, vector<12x128xf32>, vector<8x128xf32> -> vector<8x128xf32>
    %25 = arith.addf %19, %24 : vector<8x128xf32>
    %26 = vector.broadcast %0 : vector<1x128xf32> to vector<8x128xf32>
    %27 = arith.addf %25, %26 : vector<8x128xf32>
    %cst_30 = arith.constant 0.000000e+00 : f32
    %28 = vector.broadcast %cst_30 : f32 to vector<8x128xf32>
    %29 = arith.maximumf %27, %28 : vector<8x128xf32>
    %c0_31 = arith.constant 0 : index
    %c0_32 = arith.constant 0 : index
    %c0_33 = arith.constant 0 : index
    %c0_34 = arith.constant 0 : index
    %30 = vector.load %arg4[%c0_31, %c0_32, %c0_33, %c0_34] : memref<1x8x8x128xf32, #tpu.memory_space<vmem>>, vector<1x1x8x128xf32>
    %31 = vector.shape_cast %30 : vector<1x1x8x128xf32> to vector<8x128xf32>
    %32 = vector.shape_cast %29 : vector<8x128xf32> to vector<1x1x8x128xf32>
    tpu.vector_store %arg4[%c0_31, %c0_32, %c0_33, %c0_34], %32 {strides = array<i32>} : memref<1x8x8x128xf32, #tpu.memory_space<vmem>>, vector<1x1x8x128xf32>,
    %cst_35 = arith.constant 0.000000e+00 : f32
    %33 = vector.broadcast %cst_35 : f32 to vector<8x128xf32>
    %c0_36 = arith.constant 0 : index
    %c1_37 = arith.constant 1 : index
    %c0_38 = arith.constant 0 : index
    %c0_39 = arith.constant 0 : index
    %34 = vector.load %arg1[%c0_36, %c1_37, %c0_38, %c0_39] : memref<1x9x9x12xf32, #tpu.memory_space<vmem>>, vector<1x1x8x12xf32>
    %35 = vector.shape_cast %34 : vector<1x1x8x12xf32> to vector<8x12xf32>
    %c0_40 = arith.constant 0 : index
    %c0_41 = arith.constant 0 : index
    %c0_42 = arith.constant 0 : index
    %36 = vector.load %arg2[%c0_40, %c0_41, %c0_42] : memref<4x12x128xf32, #tpu.memory_space<vmem>>, vector<1x12x128xf32>
    %37 = vector.shape_cast %36 : vector<1x12x128xf32> to vector<12x128xf32>
    %cst_43 = arith.constant dense<0.000000e+00> : vector<8x128xf32>
    %38 = tpu.matmul %35, %37, %cst_43 {dimension_numbers = #tpu.dot_dimension_numbers<[1], [0], [0], [1], [0, 0, 1, 1], [], []>} : vector<8x12xf32>, vector<12x128xf32>, vector<8x128xf32> -> vector<8x128xf32>
    %39 = arith.addf %33, %38 : vector<8x128xf32>
    %c0_44 = arith.constant 0 : index
    %c1_45 = arith.constant 1 : index
    %c1_46 = arith.constant 1 : index
    %c0_47 = arith.constant 0 : index
    %40 = vector.load %arg1[%c0_44, %c1_45, %c1_46, %c0_47] : memref<1x9x9x12xf32, #tpu.memory_space<vmem>>, vector<1x1x8x12xf32>
    %41 = vector.shape_cast %40 : vector<1x1x8x12xf32> to vector<8x12xf32>
    %c1_48 = arith.constant 1 : index
    %c0_49 = arith.constant 0 : index
    %c0_50 = arith.constant 0 : index
    %42 = vector.load %arg2[%c1_48, %c0_49, %c0_50] : memref<4x12x128xf32, #tpu.memory_space<vmem>>, vector<1x12x128xf32>
    %43 = vector.shape_cast %42 : vector<1x12x128xf32> to vector<12x128xf32>
    %cst_51 = arith.constant dense<0.000000e+00> : vector<8x128xf32>
    %44 = tpu.matmul %41, %43, %cst_51 {dimension_numbers = #tpu.dot_dimension_numbers<[1], [0], [0], [1], [0, 0, 1, 1], [], []>} : vector<8x12xf32>, vector<12x128xf32>, vector<8x128xf32> -> vector<8x128xf32>
    %45 = arith.addf %39, %44 : vector<8x128xf32>
    %c0_52 = arith.constant 0 : index
    %c2_53 = arith.constant 2 : index
    %c0_54 = arith.constant 0 : index
    %c0_55 = arith.constant 0 : index
    %46 = vector.load %arg1[%c0_52, %c2_53, %c0_54, %c0_55] : memref<1x9x9x12xf32, #tpu.memory_space<vmem>>, vector<1x1x8x12xf32>
    %47 = vector.shape_cast %46 : vector<1x1x8x12xf32> to vector<8x12xf32>
    %c2_56 = arith.constant 2 : index
    %c0_57 = arith.constant 0 : index
    %c0_58 = arith.constant 0 : index
    %48 = vector.load %arg2[%c2_56, %c0_57, %c0_58] : memref<4x12x128xf32, #tpu.memory_space<vmem>>, vector<1x12x128xf32>
    %49 = vector.shape_cast %48 : vector<1x12x128xf32> to vector<12x128xf32>
    %cst_59 = arith.constant dense<0.000000e+00> : vector<8x128xf32>
    %50 = tpu.matmul %47, %49, %cst_59 {dimension_numbers = #tpu.dot_dimension_numbers<[1], [0], [0], [1], [0, 0, 1, 1], [], []>} : vector<8x12xf32>, vector<12x128xf32>, vector<8x128xf32> -> vector<8x128xf32>
    %51 = arith.addf %45, %50 : vector<8x128xf32>
    %c0_60 = arith.constant 0 : index
    %c2_61 = arith.constant 2 : index
    %c1_62 = arith.constant 1 : index
    %c0_63 = arith.constant 0 : index
    %52 = vector.load %arg1[%c0_60, %c2_61, %c1_62, %c0_63] : memref<1x9x9x12xf32, #tpu.memory_space<vmem>>, vector<1x1x8x12xf32>
    %53 = vector.shape_cast %52 : vector<1x1x8x12xf32> to vector<8x12xf32>
    %c3_64 = arith.constant 3 : index
    %c0_65 = arith.constant 0 : index
    %c0_66 = arith.constant 0 : index
    %54 = vector.load %arg2[%c3_64, %c0_65, %c0_66] : memref<4x12x128xf32, #tpu.memory_space<vmem>>, vector<1x12x128xf32>
    %55 = vector.shape_cast %54 : vector<1x12x128xf32> to vector<12x128xf32>
    %cst_67 = arith.constant dense<0.000000e+00> : vector<8x128xf32>
    %56 = tpu.matmul %53, %55, %cst_67 {dimension_numbers = #tpu.dot_dimension_numbers<[1], [0], [0], [1], [0, 0, 1, 1], [], []>} : vector<8x12xf32>, vector<12x128xf32>, vector<8x128xf32> -> vector<8x128xf32>
    %57 = arith.addf %51, %56 : vector<8x128xf32>
    %58 = vector.broadcast %0 : vector<1x128xf32> to vector<8x128xf32>
    %59 = arith.addf %57, %58 : vector<8x128xf32>
    %cst_68 = arith.constant 0.000000e+00 : f32
    %60 = vector.broadcast %cst_68 : f32 to vector<8x128xf32>
    %61 = arith.maximumf %59, %60 : vector<8x128xf32>
    %c0_69 = arith.constant 0 : index
    %c1_70 = arith.constant 1 : index
    %c0_71 = arith.constant 0 : index
    %c0_72 = arith.constant 0 : index
    %62 = vector.load %arg4[%c0_69, %c1_70, %c0_71, %c0_72] : memref<1x8x8x128xf32, #tpu.memory_space<vmem>>, vector<1x1x8x128xf32>
    %63 = vector.shape_cast %62 : vector<1x1x8x128xf32> to vector<8x128xf32>
    %64 = vector.shape_cast %61 : vector<8x128xf32> to vector<1x1x8x128xf32>
    tpu.vector_store %arg4[%c0_69, %c1_70, %c0_71, %c0_72], %64 {strides = array<i32>} : memref<1x8x8x128xf32, #tpu.memory_space<vmem>>, vector<1x1x8x128xf32>,
    %cst_73 = arith.constant 0.000000e+00 : f32
    %65 = vector.broadcast %cst_73 : f32 to vector<8x128xf32>
    %c0_74 = arith.constant 0 : index
    %c2_75 = arith.constant 2 : index
    %c0_76 = arith.constant 0 : index
    %c0_77 = arith.constant 0 : index
    %66 = vector.load %arg1[%c0_74, %c2_75, %c0_76, %c0_77] : memref<1x9x9x12xf32, #tpu.memory_space<vmem>>, vector<1x1x8x12xf32>
    %67 = vector.shape_cast %66 : vector<1x1x8x12xf32> to vector<8x12xf32>
    %c0_78 = arith.constant 0 : index
    %c0_79 = arith.constant 0 : index
    %c0_80 = arith.constant 0 : index
    %68 = vector.load %arg2[%c0_78, %c0_79, %c0_80] : memref<4x12x128xf32, #tpu.memory_space<vmem>>, vector<1x12x128xf32>
    %69 = vector.shape_cast %68 : vector<1x12x128xf32> to vector<12x128xf32>
    %cst_81 = arith.constant dense<0.000000e+00> : vector<8x128xf32>
    %70 = tpu.matmul %67, %69, %cst_81 {dimension_numbers = #tpu.dot_dimension_numbers<[1], [0], [0], [1], [0, 0, 1, 1], [], []>} : vector<8x12xf32>, vector<12x128xf32>, vector<8x128xf32> -> vector<8x128xf32>
    %71 = arith.addf %65, %70 : vector<8x128xf32>
    %c0_82 = arith.constant 0 : index
    %c2_83 = arith.constant 2 : index
    %c1_84 = arith.constant 1 : index
    %c0_85 = arith.constant 0 : index
    %72 = vector.load %arg1[%c0_82, %c2_83, %c1_84, %c0_85] : memref<1x9x9x12xf32, #tpu.memory_space<vmem>>, vector<1x1x8x12xf32>
    %73 = vector.shape_cast %72 : vector<1x1x8x12xf32> to vector<8x12xf32>
    %c1_86 = arith.constant 1 : index
    %c0_87 = arith.constant 0 : index
    %c0_88 = arith.constant 0 : index
    %74 = vector.load %arg2[%c1_86, %c0_87, %c0_88] : memref<4x12x128xf32, #tpu.memory_space<vmem>>, vector<1x12x128xf32>
    %75 = vector.shape_cast %74 : vector<1x12x128xf32> to vector<12x128xf32>
    %cst_89 = arith.constant dense<0.000000e+00> : vector<8x128xf32>
    %76 = tpu.matmul %73, %75, %cst_89 {dimension_numbers = #tpu.dot_dimension_numbers<[1], [0], [0], [1], [0, 0, 1, 1], [], []>} : vector<8x12xf32>, vector<12x128xf32>, vector<8x128xf32> -> vector<8x128xf32>
    %77 = arith.addf %71, %76 : vector<8x128xf32>
    %c0_90 = arith.constant 0 : index
    %c3_91 = arith.constant 3 : index
    %c0_92 = arith.constant 0 : index
    %c0_93 = arith.constant 0 : index
    %78 = vector.load %arg1[%c0_90, %c3_91, %c0_92, %c0_93] : memref<1x9x9x12xf32, #tpu.memory_space<vmem>>, vector<1x1x8x12xf32>
    %79 = vector.shape_cast %78 : vector<1x1x8x12xf32> to vector<8x12xf32>
    %c2_94 = arith.constant 2 : index
    %c0_95 = arith.constant 0 : index
    %c0_96 = arith.constant 0 : index
    %80 = vector.load %arg2[%c2_94, %c0_95, %c0_96] : memref<4x12x128xf32, #tpu.memory_space<vmem>>, vector<1x12x128xf32>
    %81 = vector.shape_cast %80 : vector<1x12x128xf32> to vector<12x128xf32>
    %cst_97 = arith.constant dense<0.000000e+00> : vector<8x128xf32>
    %82 = tpu.matmul %79, %81, %cst_97 {dimension_numbers = #tpu.dot_dimension_numbers<[1], [0], [0], [1], [0, 0, 1, 1], [], []>} : vector<8x12xf32>, vector<12x128xf32>, vector<8x128xf32> -> vector<8x128xf32>
    %83 = arith.addf %77, %82 : vector<8x128xf32>
    %c0_98 = arith.constant 0 : index
    %c3_99 = arith.constant 3 : index
    %c1_100 = arith.constant 1 : index
    %c0_101 = arith.constant 0 : index
    %84 = vector.load %arg1[%c0_98, %c3_99, %c1_100, %c0_101] : memref<1x9x9x12xf32, #tpu.memory_space<vmem>>, vector<1x1x8x12xf32>
    %85 = vector.shape_cast %84 : vector<1x1x8x12xf32> to vector<8x12xf32>
    %c3_102 = arith.constant 3 : index
    %c0_103 = arith.constant 0 : index
    %c0_104 = arith.constant 0 : index
    %86 = vector.load %arg2[%c3_102, %c0_103, %c0_104] : memref<4x12x128xf32, #tpu.memory_space<vmem>>, vector<1x12x128xf32>
    %87 = vector.shape_cast %86 : vector<1x12x128xf32> to vector<12x128xf32>
    %cst_105 = arith.constant dense<0.000000e+00> : vector<8x128xf32>
    %88 = tpu.matmul %85, %87, %cst_105 {dimension_numbers = #tpu.dot_dimension_numbers<[1], [0], [0], [1], [0, 0, 1, 1], [], []>} : vector<8x12xf32>, vector<12x128xf32>, vector<8x128xf32> -> vector<8x128xf32>
    %89 = arith.addf %83, %88 : vector<8x128xf32>
    %90 = vector.broadcast %0 : vector<1x128xf32> to vector<8x128xf32>
    %91 = arith.addf %89, %90 : vector<8x128xf32>
    %cst_106 = arith.constant 0.000000e+00 : f32
    %92 = vector.broadcast %cst_106 : f32 to vector<8x128xf32>
    %93 = arith.maximumf %91, %92 : vector<8x128xf32>
    %c0_107 = arith.constant 0 : index
    %c2_108 = arith.constant 2 : index
    %c0_109 = arith.constant 0 : index
    %c0_110 = arith.constant 0 : index
    %94 = vector.load %arg4[%c0_107, %c2_108, %c0_109, %c0_110] : memref<1x8x8x128xf32, #tpu.memory_space<vmem>>, vector<1x1x8x128xf32>
    %95 = vector.shape_cast %94 : vector<1x1x8x128xf32> to vector<8x128xf32>
    %96 = vector.shape_cast %93 : vector<8x128xf32> to vector<1x1x8x128xf32>
    tpu.vector_store %arg4[%c0_107, %c2_108, %c0_109, %c0_110], %96 {strides = array<i32>} : memref<1x8x8x128xf32, #tpu.memory_space<vmem>>, vector<1x1x8x128xf32>,
    %cst_111 = arith.constant 0.000000e+00 : f32
    %97 = vector.broadcast %cst_111 : f32 to vector<8x128xf32>
    %c0_112 = arith.constant 0 : index
    %c3_113 = arith.constant 3 : index
    %c0_114 = arith.constant 0 : index
    %c0_115 = arith.constant 0 : index
    %98 = vector.load %arg1[%c0_112, %c3_113, %c0_114, %c0_115] : memref<1x9x9x12xf32, #tpu.memory_space<vmem>>, vector<1x1x8x12xf32>
    %99 = vector.shape_cast %98 : vector<1x1x8x12xf32> to vector<8x12xf32>
    %c0_116 = arith.constant 0 : index
    %c0_117 = arith.constant 0 : index
    %c0_118 = arith.constant 0 : index
    %100 = vector.load %arg2[%c0_116, %c0_117, %c0_118] : memref<4x12x128xf32, #tpu.memory_space<vmem>>, vector<1x12x128xf32>
    %101 = vector.shape_cast %100 : vector<1x12x128xf32> to vector<12x128xf32>
    %cst_119 = arith.constant dense<0.000000e+00> : vector<8x128xf32>
    %102 = tpu.matmul %99, %101, %cst_119 {dimension_numbers = #tpu.dot_dimension_numbers<[1], [0], [0], [1], [0, 0, 1, 1], [], []>} : vector<8x12xf32>, vector<12x128xf32>, vector<8x128xf32> -> vector<8x128xf32>
    %103 = arith.addf %97, %102 : vector<8x128xf32>
    %c0_120 = arith.constant 0 : index
    %c3_121 = arith.constant 3 : index
    %c1_122 = arith.constant 1 : index
    %c0_123 = arith.constant 0 : index
    %104 = vector.load %arg1[%c0_120, %c3_121, %c1_122, %c0_123] : memref<1x9x9x12xf32, #tpu.memory_space<vmem>>, vector<1x1x8x12xf32>
    %105 = vector.shape_cast %104 : vector<1x1x8x12xf32> to vector<8x12xf32>
    %c1_124 = arith.constant 1 : index
    %c0_125 = arith.constant 0 : index
    %c0_126 = arith.constant 0 : index
    %106 = vector.load %arg2[%c1_124, %c0_125, %c0_126] : memref<4x12x128xf32, #tpu.memory_space<vmem>>, vector<1x12x128xf32>
    %107 = vector.shape_cast %106 : vector<1x12x128xf32> to vector<12x128xf32>
    %cst_127 = arith.constant dense<0.000000e+00> : vector<8x128xf32>
    %108 = tpu.matmul %105, %107, %cst_127 {dimension_numbers = #tpu.dot_dimension_numbers<[1], [0], [0], [1], [0, 0, 1, 1], [], []>} : vector<8x12xf32>, vector<12x128xf32>, vector<8x128xf32> -> vector<8x128xf32>
    %109 = arith.addf %103, %108 : vector<8x128xf32>
    %c0_128 = arith.constant 0 : index
    %c4 = arith.constant 4 : index
    %c0_129 = arith.constant 0 : index
    %c0_130 = arith.constant 0 : index
    %110 = vector.load %arg1[%c0_128, %c4, %c0_129, %c0_130] : memref<1x9x9x12xf32, #tpu.memory_space<vmem>>, vector<1x1x8x12xf32>
    %111 = vector.shape_cast %110 : vector<1x1x8x12xf32> to vector<8x12xf32>
    %c2_131 = arith.constant 2 : index
    %c0_132 = arith.constant 0 : index
    %c0_133 = arith.constant 0 : index
    %112 = vector.load %arg2[%c2_131, %c0_132, %c0_133] : memref<4x12x128xf32, #tpu.memory_space<vmem>>, vector<1x12x128xf32>
    %113 = vector.shape_cast %112 : vector<1x12x128xf32> to vector<12x128xf32>
    %cst_134 = arith.constant dense<0.000000e+00> : vector<8x128xf32>
    %114 = tpu.matmul %111, %113, %cst_134 {dimension_numbers = #tpu.dot_dimension_numbers<[1], [0], [0], [1], [0, 0, 1, 1], [], []>} : vector<8x12xf32>, vector<12x128xf32>, vector<8x128xf32> -> vector<8x128xf32>
    %115 = arith.addf %109, %114 : vector<8x128xf32>
    %c0_135 = arith.constant 0 : index
    %c4_136 = arith.constant 4 : index
    %c1_137 = arith.constant 1 : index
    %c0_138 = arith.constant 0 : index
    %116 = vector.load %arg1[%c0_135, %c4_136, %c1_137, %c0_138] : memref<1x9x9x12xf32, #tpu.memory_space<vmem>>, vector<1x1x8x12xf32>
    %117 = vector.shape_cast %116 : vector<1x1x8x12xf32> to vector<8x12xf32>
    %c3_139 = arith.constant 3 : index
    %c0_140 = arith.constant 0 : index
    %c0_141 = arith.constant 0 : index
    %118 = vector.load %arg2[%c3_139, %c0_140, %c0_141] : memref<4x12x128xf32, #tpu.memory_space<vmem>>, vector<1x12x128xf32>
    %119 = vector.shape_cast %118 : vector<1x12x128xf32> to vector<12x128xf32>
    %cst_142 = arith.constant dense<0.000000e+00> : vector<8x128xf32>
    %120 = tpu.matmul %117, %119, %cst_142 {dimension_numbers = #tpu.dot_dimension_numbers<[1], [0], [0], [1], [0, 0, 1, 1], [], []>} : vector<8x12xf32>, vector<12x128xf32>, vector<8x128xf32> -> vector<8x128xf32>
    %121 = arith.addf %115, %120 : vector<8x128xf32>
    %122 = vector.broadcast %0 : vector<1x128xf32> to vector<8x128xf32>
    %123 = arith.addf %121, %122 : vector<8x128xf32>
    %cst_143 = arith.constant 0.000000e+00 : f32
    %124 = vector.broadcast %cst_143 : f32 to vector<8x128xf32>
    %125 = arith.maximumf %123, %124 : vector<8x128xf32>
    %c0_144 = arith.constant 0 : index
    %c3_145 = arith.constant 3 : index
    %c0_146 = arith.constant 0 : index
    %c0_147 = arith.constant 0 : index
    %126 = vector.load %arg4[%c0_144, %c3_145, %c0_146, %c0_147] : memref<1x8x8x128xf32, #tpu.memory_space<vmem>>, vector<1x1x8x128xf32>
    %127 = vector.shape_cast %126 : vector<1x1x8x128xf32> to vector<8x128xf32>
    %128 = vector.shape_cast %125 : vector<8x128xf32> to vector<1x1x8x128xf32>
    tpu.vector_store %arg4[%c0_144, %c3_145, %c0_146, %c0_147], %128 {strides = array<i32>} : memref<1x8x8x128xf32, #tpu.memory_space<vmem>>, vector<1x1x8x128xf32>,
    %cst_148 = arith.constant 0.000000e+00 : f32
    %129 = vector.broadcast %cst_148 : f32 to vector<8x128xf32>
    %c0_149 = arith.constant 0 : index
    %c4_150 = arith.constant 4 : index
    %c0_151 = arith.constant 0 : index
    %c0_152 = arith.constant 0 : index
    %130 = vector.load %arg1[%c0_149, %c4_150, %c0_151, %c0_152] : memref<1x9x9x12xf32, #tpu.memory_space<vmem>>, vector<1x1x8x12xf32>
    %131 = vector.shape_cast %130 : vector<1x1x8x12xf32> to vector<8x12xf32>
    %c0_153 = arith.constant 0 : index
    %c0_154 = arith.constant 0 : index
    %c0_155 = arith.constant 0 : index
    %132 = vector.load %arg2[%c0_153, %c0_154, %c0_155] : memref<4x12x128xf32, #tpu.memory_space<vmem>>, vector<1x12x128xf32>
    %133 = vector.shape_cast %132 : vector<1x12x128xf32> to vector<12x128xf32>
    %cst_156 = arith.constant dense<0.000000e+00> : vector<8x128xf32>
    %134 = tpu.matmul %131, %133, %cst_156 {dimension_numbers = #tpu.dot_dimension_numbers<[1], [0], [0], [1], [0, 0, 1, 1], [], []>} : vector<8x12xf32>, vector<12x128xf32>, vector<8x128xf32> -> vector<8x128xf32>
    %135 = arith.addf %129, %134 : vector<8x128xf32>
    %c0_157 = arith.constant 0 : index
    %c4_158 = arith.constant 4 : index
    %c1_159 = arith.constant 1 : index
    %c0_160 = arith.constant 0 : index
    %136 = vector.load %arg1[%c0_157, %c4_158, %c1_159, %c0_160] : memref<1x9x9x12xf32, #tpu.memory_space<vmem>>, vector<1x1x8x12xf32>
    %137 = vector.shape_cast %136 : vector<1x1x8x12xf32> to vector<8x12xf32>
    %c1_161 = arith.constant 1 : index
    %c0_162 = arith.constant 0 : index
    %c0_163 = arith.constant 0 : index
    %138 = vector.load %arg2[%c1_161, %c0_162, %c0_163] : memref<4x12x128xf32, #tpu.memory_space<vmem>>, vector<1x12x128xf32>
    %139 = vector.shape_cast %138 : vector<1x12x128xf32> to vector<12x128xf32>
    %cst_164 = arith.constant dense<0.000000e+00> : vector<8x128xf32>
    %140 = tpu.matmul %137, %139, %cst_164 {dimension_numbers = #tpu.dot_dimension_numbers<[1], [0], [0], [1], [0, 0, 1, 1], [], []>} : vector<8x12xf32>, vector<12x128xf32>, vector<8x128xf32> -> vector<8x128xf32>
    %141 = arith.addf %135, %140 : vector<8x128xf32>
    %c0_165 = arith.constant 0 : index
    %c5 = arith.constant 5 : index
    %c0_166 = arith.constant 0 : index
    %c0_167 = arith.constant 0 : index
    %142 = vector.load %arg1[%c0_165, %c5, %c0_166, %c0_167] : memref<1x9x9x12xf32, #tpu.memory_space<vmem>>, vector<1x1x8x12xf32>
    %143 = vector.shape_cast %142 : vector<1x1x8x12xf32> to vector<8x12xf32>
    %c2_168 = arith.constant 2 : index
    %c0_169 = arith.constant 0 : index
    %c0_170 = arith.constant 0 : index
    %144 = vector.load %arg2[%c2_168, %c0_169, %c0_170] : memref<4x12x128xf32, #tpu.memory_space<vmem>>, vector<1x12x128xf32>
    %145 = vector.shape_cast %144 : vector<1x12x128xf32> to vector<12x128xf32>
    %cst_171 = arith.constant dense<0.000000e+00> : vector<8x128xf32>
    %146 = tpu.matmul %143, %145, %cst_171 {dimension_numbers = #tpu.dot_dimension_numbers<[1], [0], [0], [1], [0, 0, 1, 1], [], []>} : vector<8x12xf32>, vector<12x128xf32>, vector<8x128xf32> -> vector<8x128xf32>
    %147 = arith.addf %141, %146 : vector<8x128xf32>
    %c0_172 = arith.constant 0 : index
    %c5_173 = arith.constant 5 : index
    %c1_174 = arith.constant 1 : index
    %c0_175 = arith.constant 0 : index
    %148 = vector.load %arg1[%c0_172, %c5_173, %c1_174, %c0_175] : memref<1x9x9x12xf32, #tpu.memory_space<vmem>>, vector<1x1x8x12xf32>
    %149 = vector.shape_cast %148 : vector<1x1x8x12xf32> to vector<8x12xf32>
    %c3_176 = arith.constant 3 : index
    %c0_177 = arith.constant 0 : index
    %c0_178 = arith.constant 0 : index
    %150 = vector.load %arg2[%c3_176, %c0_177, %c0_178] : memref<4x12x128xf32, #tpu.memory_space<vmem>>, vector<1x12x128xf32>
    %151 = vector.shape_cast %150 : vector<1x12x128xf32> to vector<12x128xf32>
    %cst_179 = arith.constant dense<0.000000e+00> : vector<8x128xf32>
    %152 = tpu.matmul %149, %151, %cst_179 {dimension_numbers = #tpu.dot_dimension_numbers<[1], [0], [0], [1], [0, 0, 1, 1], [], []>} : vector<8x12xf32>, vector<12x128xf32>, vector<8x128xf32> -> vector<8x128xf32>
    %153 = arith.addf %147, %152 : vector<8x128xf32>
    %154 = vector.broadcast %0 : vector<1x128xf32> to vector<8x128xf32>
    %155 = arith.addf %153, %154 : vector<8x128xf32>
    %cst_180 = arith.constant 0.000000e+00 : f32
    %156 = vector.broadcast %cst_180 : f32 to vector<8x128xf32>
    %157 = arith.maximumf %155, %156 : vector<8x128xf32>
    %c0_181 = arith.constant 0 : index
    %c4_182 = arith.constant 4 : index
    %c0_183 = arith.constant 0 : index
    %c0_184 = arith.constant 0 : index
    %158 = vector.load %arg4[%c0_181, %c4_182, %c0_183, %c0_184] : memref<1x8x8x128xf32, #tpu.memory_space<vmem>>, vector<1x1x8x128xf32>
    %159 = vector.shape_cast %158 : vector<1x1x8x128xf32> to vector<8x128xf32>
    %160 = vector.shape_cast %157 : vector<8x128xf32> to vector<1x1x8x128xf32>
    tpu.vector_store %arg4[%c0_181, %c4_182, %c0_183, %c0_184], %160 {strides = array<i32>} : memref<1x8x8x128xf32, #tpu.memory_space<vmem>>, vector<1x1x8x128xf32>,
    %cst_185 = arith.constant 0.000000e+00 : f32
    %161 = vector.broadcast %cst_185 : f32 to vector<8x128xf32>
    %c0_186 = arith.constant 0 : index
    %c5_187 = arith.constant 5 : index
    %c0_188 = arith.constant 0 : index
    %c0_189 = arith.constant 0 : index
    %162 = vector.load %arg1[%c0_186, %c5_187, %c0_188, %c0_189] : memref<1x9x9x12xf32, #tpu.memory_space<vmem>>, vector<1x1x8x12xf32>
    %163 = vector.shape_cast %162 : vector<1x1x8x12xf32> to vector<8x12xf32>
    %c0_190 = arith.constant 0 : index
    %c0_191 = arith.constant 0 : index
    %c0_192 = arith.constant 0 : index
    %164 = vector.load %arg2[%c0_190, %c0_191, %c0_192] : memref<4x12x128xf32, #tpu.memory_space<vmem>>, vector<1x12x128xf32>
    %165 = vector.shape_cast %164 : vector<1x12x128xf32> to vector<12x128xf32>
    %cst_193 = arith.constant dense<0.000000e+00> : vector<8x128xf32>
    %166 = tpu.matmul %163, %165, %cst_193 {dimension_numbers = #tpu.dot_dimension_numbers<[1], [0], [0], [1], [0, 0, 1, 1], [], []>} : vector<8x12xf32>, vector<12x128xf32>, vector<8x128xf32> -> vector<8x128xf32>
    %167 = arith.addf %161, %166 : vector<8x128xf32>
    %c0_194 = arith.constant 0 : index
    %c5_195 = arith.constant 5 : index
    %c1_196 = arith.constant 1 : index
    %c0_197 = arith.constant 0 : index
    %168 = vector.load %arg1[%c0_194, %c5_195, %c1_196, %c0_197] : memref<1x9x9x12xf32, #tpu.memory_space<vmem>>, vector<1x1x8x12xf32>
    %169 = vector.shape_cast %168 : vector<1x1x8x12xf32> to vector<8x12xf32>
    %c1_198 = arith.constant 1 : index
    %c0_199 = arith.constant 0 : index
    %c0_200 = arith.constant 0 : index
    %170 = vector.load %arg2[%c1_198, %c0_199, %c0_200] : memref<4x12x128xf32, #tpu.memory_space<vmem>>, vector<1x12x128xf32>
    %171 = vector.shape_cast %170 : vector<1x12x128xf32> to vector<12x128xf32>
    %cst_201 = arith.constant dense<0.000000e+00> : vector<8x128xf32>
    %172 = tpu.matmul %169, %171, %cst_201 {dimension_numbers = #tpu.dot_dimension_numbers<[1], [0], [0], [1], [0, 0, 1, 1], [], []>} : vector<8x12xf32>, vector<12x128xf32>, vector<8x128xf32> -> vector<8x128xf32>
    %173 = arith.addf %167, %172 : vector<8x128xf32>
    %c0_202 = arith.constant 0 : index
    %c6 = arith.constant 6 : index
    %c0_203 = arith.constant 0 : index
    %c0_204 = arith.constant 0 : index
    %174 = vector.load %arg1[%c0_202, %c6, %c0_203, %c0_204] : memref<1x9x9x12xf32, #tpu.memory_space<vmem>>, vector<1x1x8x12xf32>
    %175 = vector.shape_cast %174 : vector<1x1x8x12xf32> to vector<8x12xf32>
    %c2_205 = arith.constant 2 : index
    %c0_206 = arith.constant 0 : index
    %c0_207 = arith.constant 0 : index
    %176 = vector.load %arg2[%c2_205, %c0_206, %c0_207] : memref<4x12x128xf32, #tpu.memory_space<vmem>>, vector<1x12x128xf32>
    %177 = vector.shape_cast %176 : vector<1x12x128xf32> to vector<12x128xf32>
    %cst_208 = arith.constant dense<0.000000e+00> : vector<8x128xf32>
    %178 = tpu.matmul %175, %177, %cst_208 {dimension_numbers = #tpu.dot_dimension_numbers<[1], [0], [0], [1], [0, 0, 1, 1], [], []>} : vector<8x12xf32>, vector<12x128xf32>, vector<8x128xf32> -> vector<8x128xf32>
    %179 = arith.addf %173, %178 : vector<8x128xf32>
    %c0_209 = arith.constant 0 : index
    %c6_210 = arith.constant 6 : index
    %c1_211 = arith.constant 1 : index
    %c0_212 = arith.constant 0 : index
    %180 = vector.load %arg1[%c0_209, %c6_210, %c1_211, %c0_212] : memref<1x9x9x12xf32, #tpu.memory_space<vmem>>, vector<1x1x8x12xf32>
    %181 = vector.shape_cast %180 : vector<1x1x8x12xf32> to vector<8x12xf32>
    %c3_213 = arith.constant 3 : index
    %c0_214 = arith.constant 0 : index
    %c0_215 = arith.constant 0 : index
    %182 = vector.load %arg2[%c3_213, %c0_214, %c0_215] : memref<4x12x128xf32, #tpu.memory_space<vmem>>, vector<1x12x128xf32>
    %183 = vector.shape_cast %182 : vector<1x12x128xf32> to vector<12x128xf32>
    %cst_216 = arith.constant dense<0.000000e+00> : vector<8x128xf32>
    %184 = tpu.matmul %181, %183, %cst_216 {dimension_numbers = #tpu.dot_dimension_numbers<[1], [0], [0], [1], [0, 0, 1, 1], [], []>} : vector<8x12xf32>, vector<12x128xf32>, vector<8x128xf32> -> vector<8x128xf32>
    %185 = arith.addf %179, %184 : vector<8x128xf32>
    %186 = vector.broadcast %0 : vector<1x128xf32> to vector<8x128xf32>
    %187 = arith.addf %185, %186 : vector<8x128xf32>
    %cst_217 = arith.constant 0.000000e+00 : f32
    %188 = vector.broadcast %cst_217 : f32 to vector<8x128xf32>
    %189 = arith.maximumf %187, %188 : vector<8x128xf32>
    %c0_218 = arith.constant 0 : index
    %c5_219 = arith.constant 5 : index
    %c0_220 = arith.constant 0 : index
    %c0_221 = arith.constant 0 : index
    %190 = vector.load %arg4[%c0_218, %c5_219, %c0_220, %c0_221] : memref<1x8x8x128xf32, #tpu.memory_space<vmem>>, vector<1x1x8x128xf32>
    %191 = vector.shape_cast %190 : vector<1x1x8x128xf32> to vector<8x128xf32>
    %192 = vector.shape_cast %189 : vector<8x128xf32> to vector<1x1x8x128xf32>
    tpu.vector_store %arg4[%c0_218, %c5_219, %c0_220, %c0_221], %192 {strides = array<i32>} : memref<1x8x8x128xf32, #tpu.memory_space<vmem>>, vector<1x1x8x128xf32>,
    %cst_222 = arith.constant 0.000000e+00 : f32
    %193 = vector.broadcast %cst_222 : f32 to vector<8x128xf32>
    %c0_223 = arith.constant 0 : index
    %c6_224 = arith.constant 6 : index
    %c0_225 = arith.constant 0 : index
    %c0_226 = arith.constant 0 : index
    %194 = vector.load %arg1[%c0_223, %c6_224, %c0_225, %c0_226] : memref<1x9x9x12xf32, #tpu.memory_space<vmem>>, vector<1x1x8x12xf32>
    %195 = vector.shape_cast %194 : vector<1x1x8x12xf32> to vector<8x12xf32>
    %c0_227 = arith.constant 0 : index
    %c0_228 = arith.constant 0 : index
    %c0_229 = arith.constant 0 : index
    %196 = vector.load %arg2[%c0_227, %c0_228, %c0_229] : memref<4x12x128xf32, #tpu.memory_space<vmem>>, vector<1x12x128xf32>
    %197 = vector.shape_cast %196 : vector<1x12x128xf32> to vector<12x128xf32>
    %cst_230 = arith.constant dense<0.000000e+00> : vector<8x128xf32>
    %198 = tpu.matmul %195, %197, %cst_230 {dimension_numbers = #tpu.dot_dimension_numbers<[1], [0], [0], [1], [0, 0, 1, 1], [], []>} : vector<8x12xf32>, vector<12x128xf32>, vector<8x128xf32> -> vector<8x128xf32>
    %199 = arith.addf %193, %198 : vector<8x128xf32>
    %c0_231 = arith.constant 0 : index
    %c6_232 = arith.constant 6 : index
    %c1_233 = arith.constant 1 : index
    %c0_234 = arith.constant 0 : index
    %200 = vector.load %arg1[%c0_231, %c6_232, %c1_233, %c0_234] : memref<1x9x9x12xf32, #tpu.memory_space<vmem>>, vector<1x1x8x12xf32>
    %201 = vector.shape_cast %200 : vector<1x1x8x12xf32> to vector<8x12xf32>
    %c1_235 = arith.constant 1 : index
    %c0_236 = arith.constant 0 : index
    %c0_237 = arith.constant 0 : index
    %202 = vector.load %arg2[%c1_235, %c0_236, %c0_237] : memref<4x12x128xf32, #tpu.memory_space<vmem>>, vector<1x12x128xf32>
    %203 = vector.shape_cast %202 : vector<1x12x128xf32> to vector<12x128xf32>
    %cst_238 = arith.constant dense<0.000000e+00> : vector<8x128xf32>
    %204 = tpu.matmul %201, %203, %cst_238 {dimension_numbers = #tpu.dot_dimension_numbers<[1], [0], [0], [1], [0, 0, 1, 1], [], []>} : vector<8x12xf32>, vector<12x128xf32>, vector<8x128xf32> -> vector<8x128xf32>
    %205 = arith.addf %199, %204 : vector<8x128xf32>
    %c0_239 = arith.constant 0 : index
    %c7 = arith.constant 7 : index
    %c0_240 = arith.constant 0 : index
    %c0_241 = arith.constant 0 : index
    %206 = vector.load %arg1[%c0_239, %c7, %c0_240, %c0_241] : memref<1x9x9x12xf32, #tpu.memory_space<vmem>>, vector<1x1x8x12xf32>
    %207 = vector.shape_cast %206 : vector<1x1x8x12xf32> to vector<8x12xf32>
    %c2_242 = arith.constant 2 : index
    %c0_243 = arith.constant 0 : index
    %c0_244 = arith.constant 0 : index
    %208 = vector.load %arg2[%c2_242, %c0_243, %c0_244] : memref<4x12x128xf32, #tpu.memory_space<vmem>>, vector<1x12x128xf32>
    %209 = vector.shape_cast %208 : vector<1x12x128xf32> to vector<12x128xf32>
    %cst_245 = arith.constant dense<0.000000e+00> : vector<8x128xf32>
    %210 = tpu.matmul %207, %209, %cst_245 {dimension_numbers = #tpu.dot_dimension_numbers<[1], [0], [0], [1], [0, 0, 1, 1], [], []>} : vector<8x12xf32>, vector<12x128xf32>, vector<8x128xf32> -> vector<8x128xf32>
    %211 = arith.addf %205, %210 : vector<8x128xf32>
    %c0_246 = arith.constant 0 : index
    %c7_247 = arith.constant 7 : index
    %c1_248 = arith.constant 1 : index
    %c0_249 = arith.constant 0 : index
    %212 = vector.load %arg1[%c0_246, %c7_247, %c1_248, %c0_249] : memref<1x9x9x12xf32, #tpu.memory_space<vmem>>, vector<1x1x8x12xf32>
    %213 = vector.shape_cast %212 : vector<1x1x8x12xf32> to vector<8x12xf32>
    %c3_250 = arith.constant 3 : index
    %c0_251 = arith.constant 0 : index
    %c0_252 = arith.constant 0 : index
    %214 = vector.load %arg2[%c3_250, %c0_251, %c0_252] : memref<4x12x128xf32, #tpu.memory_space<vmem>>, vector<1x12x128xf32>
    %215 = vector.shape_cast %214 : vector<1x12x128xf32> to vector<12x128xf32>
    %cst_253 = arith.constant dense<0.000000e+00> : vector<8x128xf32>
    %216 = tpu.matmul %213, %215, %cst_253 {dimension_numbers = #tpu.dot_dimension_numbers<[1], [0], [0], [1], [0, 0, 1, 1], [], []>} : vector<8x12xf32>, vector<12x128xf32>, vector<8x128xf32> -> vector<8x128xf32>
    %217 = arith.addf %211, %216 : vector<8x128xf32>
    %218 = vector.broadcast %0 : vector<1x128xf32> to vector<8x128xf32>
    %219 = arith.addf %217, %218 : vector<8x128xf32>
    %cst_254 = arith.constant 0.000000e+00 : f32
    %220 = vector.broadcast %cst_254 : f32 to vector<8x128xf32>
    %221 = arith.maximumf %219, %220 : vector<8x128xf32>
    %c0_255 = arith.constant 0 : index
    %c6_256 = arith.constant 6 : index
    %c0_257 = arith.constant 0 : index
    %c0_258 = arith.constant 0 : index
    %222 = vector.load %arg4[%c0_255, %c6_256, %c0_257, %c0_258] : memref<1x8x8x128xf32, #tpu.memory_space<vmem>>, vector<1x1x8x128xf32>
    %223 = vector.shape_cast %222 : vector<1x1x8x128xf32> to vector<8x128xf32>
    %224 = vector.shape_cast %221 : vector<8x128xf32> to vector<1x1x8x128xf32>
    tpu.vector_store %arg4[%c0_255, %c6_256, %c0_257, %c0_258], %224 {strides = array<i32>} : memref<1x8x8x128xf32, #tpu.memory_space<vmem>>, vector<1x1x8x128xf32>,
    %cst_259 = arith.constant 0.000000e+00 : f32
    %225 = vector.broadcast %cst_259 : f32 to vector<8x128xf32>
    %c0_260 = arith.constant 0 : index
    %c7_261 = arith.constant 7 : index
    %c0_262 = arith.constant 0 : index
    %c0_263 = arith.constant 0 : index
    %226 = vector.load %arg1[%c0_260, %c7_261, %c0_262, %c0_263] : memref<1x9x9x12xf32, #tpu.memory_space<vmem>>, vector<1x1x8x12xf32>
    %227 = vector.shape_cast %226 : vector<1x1x8x12xf32> to vector<8x12xf32>
    %c0_264 = arith.constant 0 : index
    %c0_265 = arith.constant 0 : index
    %c0_266 = arith.constant 0 : index
    %228 = vector.load %arg2[%c0_264, %c0_265, %c0_266] : memref<4x12x128xf32, #tpu.memory_space<vmem>>, vector<1x12x128xf32>
    %229 = vector.shape_cast %228 : vector<1x12x128xf32> to vector<12x128xf32>
    %cst_267 = arith.constant dense<0.000000e+00> : vector<8x128xf32>
    %230 = tpu.matmul %227, %229, %cst_267 {dimension_numbers = #tpu.dot_dimension_numbers<[1], [0], [0], [1], [0, 0, 1, 1], [], []>} : vector<8x12xf32>, vector<12x128xf32>, vector<8x128xf32> -> vector<8x128xf32>
    %231 = arith.addf %225, %230 : vector<8x128xf32>
    %c0_268 = arith.constant 0 : index
    %c7_269 = arith.constant 7 : index
    %c1_270 = arith.constant 1 : index
    %c0_271 = arith.constant 0 : index
    %232 = vector.load %arg1[%c0_268, %c7_269, %c1_270, %c0_271] : memref<1x9x9x12xf32, #tpu.memory_space<vmem>>, vector<1x1x8x12xf32>
    %233 = vector.shape_cast %232 : vector<1x1x8x12xf32> to vector<8x12xf32>
    %c1_272 = arith.constant 1 : index
    %c0_273 = arith.constant 0 : index
    %c0_274 = arith.constant 0 : index
    %234 = vector.load %arg2[%c1_272, %c0_273, %c0_274] : memref<4x12x128xf32, #tpu.memory_space<vmem>>, vector<1x12x128xf32>
    %235 = vector.shape_cast %234 : vector<1x12x128xf32> to vector<12x128xf32>
    %cst_275 = arith.constant dense<0.000000e+00> : vector<8x128xf32>
    %236 = tpu.matmul %233, %235, %cst_275 {dimension_numbers = #tpu.dot_dimension_numbers<[1], [0], [0], [1], [0, 0, 1, 1], [], []>} : vector<8x12xf32>, vector<12x128xf32>, vector<8x128xf32> -> vector<8x128xf32>
    %237 = arith.addf %231, %236 : vector<8x128xf32>
    %c0_276 = arith.constant 0 : index
    %c8 = arith.constant 8 : index
    %c0_277 = arith.constant 0 : index
    %c0_278 = arith.constant 0 : index
    %238 = vector.load %arg1[%c0_276, %c8, %c0_277, %c0_278] : memref<1x9x9x12xf32, #tpu.memory_space<vmem>>, vector<1x1x8x12xf32>
    %239 = vector.shape_cast %238 : vector<1x1x8x12xf32> to vector<8x12xf32>
    %c2_279 = arith.constant 2 : index
    %c0_280 = arith.constant 0 : index
    %c0_281 = arith.constant 0 : index
    %240 = vector.load %arg2[%c2_279, %c0_280, %c0_281] : memref<4x12x128xf32, #tpu.memory_space<vmem>>, vector<1x12x128xf32>
    %241 = vector.shape_cast %240 : vector<1x12x128xf32> to vector<12x128xf32>
    %cst_282 = arith.constant dense<0.000000e+00> : vector<8x128xf32>
    %242 = tpu.matmul %239, %241, %cst_282 {dimension_numbers = #tpu.dot_dimension_numbers<[1], [0], [0], [1], [0, 0, 1, 1], [], []>} : vector<8x12xf32>, vector<12x128xf32>, vector<8x128xf32> -> vector<8x128xf32>
    %243 = arith.addf %237, %242 : vector<8x128xf32>
    %c0_283 = arith.constant 0 : index
    %c8_284 = arith.constant 8 : index
    %c1_285 = arith.constant 1 : index
    %c0_286 = arith.constant 0 : index
    %244 = vector.load %arg1[%c0_283, %c8_284, %c1_285, %c0_286] : memref<1x9x9x12xf32, #tpu.memory_space<vmem>>, vector<1x1x8x12xf32>
    %245 = vector.shape_cast %244 : vector<1x1x8x12xf32> to vector<8x12xf32>
    %c3_287 = arith.constant 3 : index
    %c0_288 = arith.constant 0 : index
    %c0_289 = arith.constant 0 : index
    %246 = vector.load %arg2[%c3_287, %c0_288, %c0_289] : memref<4x12x128xf32, #tpu.memory_space<vmem>>, vector<1x12x128xf32>
    %247 = vector.shape_cast %246 : vector<1x12x128xf32> to vector<12x128xf32>
    %cst_290 = arith.constant dense<0.000000e+00> : vector<8x128xf32>
    %248 = tpu.matmul %245, %247, %cst_290 {dimension_numbers = #tpu.dot_dimension_numbers<[1], [0], [0], [1], [0, 0, 1, 1], [], []>} : vector<8x12xf32>, vector<12x128xf32>, vector<8x128xf32> -> vector<8x128xf32>
    %249 = arith.addf %243, %248 : vector<8x128xf32>
    %250 = vector.broadcast %0 : vector<1x128xf32> to vector<8x128xf32>
    %251 = arith.addf %249, %250 : vector<8x128xf32>
    %cst_291 = arith.constant 0.000000e+00 : f32
    %252 = vector.broadcast %cst_291 : f32 to vector<8x128xf32>
    %253 = arith.maximumf %251, %252 : vector<8x128xf32>
    %c0_292 = arith.constant 0 : index
    %c7_293 = arith.constant 7 : index
    %c0_294 = arith.constant 0 : index
    %c0_295 = arith.constant 0 : index
    %254 = vector.load %arg4[%c0_292, %c7_293, %c0_294, %c0_295] : memref<1x8x8x128xf32, #tpu.memory_space<vmem>>, vector<1x1x8x128xf32>
    %255 = vector.shape_cast %254 : vector<1x1x8x128xf32> to vector<8x128xf32>
    %256 = vector.shape_cast %253 : vector<8x128xf32> to vector<1x1x8x128xf32>
    tpu.vector_store %arg4[%c0_292, %c7_293, %c0_294, %c0_295], %256 {strides = array<i32>} : memref<1x8x8x128xf32, #tpu.memory_space<vmem>>, vector<1x1x8x128xf32>,
    return
  }
  func.func @transform_0(%arg0: i32) -> (i32, i32, i32, i32) {
    %c0_i32 = arith.constant 0 : i32
    %c0_i32_0 = arith.constant 0 : i32
    %c0_i32_1 = arith.constant 0 : i32
    %c0_i32_2 = arith.constant 0 : i32
    return %arg0, %c0_i32, %c0_i32_0, %c0_i32_1 : i32, i32, i32, i32
  }
  func.func @transform_1(%arg0: i32) -> (i32, i32, i32) {
    %c0_i32 = arith.constant 0 : i32
    %c0_i32_0 = arith.constant 0 : i32
    %c0_i32_1 = arith.constant 0 : i32
    %c0_i32_2 = arith.constant 0 : i32
    return %c0_i32, %c0_i32_0, %c0_i32_1 : i32, i32, i32
  }
  func.func @transform_2(%arg0: i32) -> (i32, i32) {
    %c0_i32 = arith.constant 0 : i32
    %c0_i32_0 = arith.constant 0 : i32
    %c0_i32_1 = arith.constant 0 : i32
    return %c0_i32, %c0_i32_0 : i32, i32
  }
  func.func @transform_3(%arg0: i32) -> (i32, i32, i32, i32) {
    %c0_i32 = arith.constant 0 : i32
    %c0_i32_0 = arith.constant 0 : i32
    %c0_i32_1 = arith.constant 0 : i32
    %c0_i32_2 = arith.constant 0 : i32
    return %arg0, %c0_i32, %c0_i32_0, %c0_i32_1 : i32, i32, i32, i32
  }
}

module attributes {stable_mosaic.version = 11 : i64} {
  func.func @conv3x3s2_bn_relu_gap_fc_kernel(%arg0: i32, %arg1: memref<1x5x5x512xf32, #tpu.memory_space<vmem>>, %arg2: memref<4x512x128xf32, #tpu.memory_space<vmem>>, %arg3: memref<1x128xf32, #tpu.memory_space<vmem>>, %arg4: memref<128x128xf32, #tpu.memory_space<vmem>>, %arg5: memref<1x128xf32, #tpu.memory_space<vmem>>, %arg6: memref<1x1x128xf32, #tpu.memory_space<vmem>>) attributes {dimension_semantics = [#tpu.dimension_semantics<parallel>], iteration_bounds = array<i64: 2>, scalar_prefetch = 0 : i64, scratch_operands = 0 : i64, tpu.core_type = #tpu.core_type<tc>, window_params = [{transform_indices = @transform_0, window_bounds = array<i64: 1, 5, 5, 512>}, {pipeline_mode = #tpu.pipeline_mode<synchronous>, transform_indices = @transform_1, window_bounds = array<i64: 4, 512, 128>}, {pipeline_mode = #tpu.pipeline_mode<synchronous>, transform_indices = @transform_2, window_bounds = array<i64: 1, 128>}, {pipeline_mode = #tpu.pipeline_mode<synchronous>, transform_indices = @transform_3, window_bounds = array<i64: 128, 128>}, {pipeline_mode = #tpu.pipeline_mode<synchronous>, transform_indices = @transform_4, window_bounds = array<i64: 1, 128>}, {transform_indices = @transform_5, window_bounds = array<i64: 1, 1, 128>}]} {
    %c0 = arith.constant 0 : index
    %c0_0 = arith.constant 0 : index
    %0 = vector.load %arg3[%c0, %c0_0] : memref<1x128xf32, #tpu.memory_space<vmem>>, vector<1x128xf32>
    %cst = arith.constant 0.000000e+00 : f32
    %1 = vector.broadcast %cst : f32 to vector<1x128xf32>
    %cst_1 = arith.constant 0.000000e+00 : f32
    %2 = vector.broadcast %cst_1 : f32 to vector<4x128xf32>
    %c0_2 = arith.constant 0 : index
    %c0_3 = arith.constant 0 : index
    %c0_4 = arith.constant 0 : index
    %c0_5 = arith.constant 0 : index
    %3 = vector.load %arg1[%c0_2, %c0_3, %c0_4, %c0_5] : memref<1x5x5x512xf32, #tpu.memory_space<vmem>>, vector<1x1x4x512xf32>
    %4 = vector.shape_cast %3 : vector<1x1x4x512xf32> to vector<4x512xf32>
    %c0_6 = arith.constant 0 : index
    %c0_7 = arith.constant 0 : index
    %c0_8 = arith.constant 0 : index
    %5 = vector.load %arg2[%c0_6, %c0_7, %c0_8] : memref<4x512x128xf32, #tpu.memory_space<vmem>>, vector<1x512x128xf32>
    %6 = vector.shape_cast %5 : vector<1x512x128xf32> to vector<512x128xf32>
    %cst_9 = arith.constant dense<0.000000e+00> : vector<4x128xf32>
    %7 = tpu.matmul %4, %6, %cst_9 {dimension_numbers = #tpu.dot_dimension_numbers<[1], [0], [0], [1], [0, 0, 1, 1], [], []>} : vector<4x512xf32>, vector<512x128xf32>, vector<4x128xf32> -> vector<4x128xf32>
    %8 = arith.addf %2, %7 : vector<4x128xf32>
    %c0_10 = arith.constant 0 : index
    %c0_11 = arith.constant 0 : index
    %c1 = arith.constant 1 : index
    %c0_12 = arith.constant 0 : index
    %9 = vector.load %arg1[%c0_10, %c0_11, %c1, %c0_12] : memref<1x5x5x512xf32, #tpu.memory_space<vmem>>, vector<1x1x4x512xf32>
    %10 = vector.shape_cast %9 : vector<1x1x4x512xf32> to vector<4x512xf32>
    %c1_13 = arith.constant 1 : index
    %c0_14 = arith.constant 0 : index
    %c0_15 = arith.constant 0 : index
    %11 = vector.load %arg2[%c1_13, %c0_14, %c0_15] : memref<4x512x128xf32, #tpu.memory_space<vmem>>, vector<1x512x128xf32>
    %12 = vector.shape_cast %11 : vector<1x512x128xf32> to vector<512x128xf32>
    %cst_16 = arith.constant dense<0.000000e+00> : vector<4x128xf32>
    %13 = tpu.matmul %10, %12, %cst_16 {dimension_numbers = #tpu.dot_dimension_numbers<[1], [0], [0], [1], [0, 0, 1, 1], [], []>} : vector<4x512xf32>, vector<512x128xf32>, vector<4x128xf32> -> vector<4x128xf32>
    %14 = arith.addf %8, %13 : vector<4x128xf32>
    %c0_17 = arith.constant 0 : index
    %c1_18 = arith.constant 1 : index
    %c0_19 = arith.constant 0 : index
    %c0_20 = arith.constant 0 : index
    %15 = vector.load %arg1[%c0_17, %c1_18, %c0_19, %c0_20] : memref<1x5x5x512xf32, #tpu.memory_space<vmem>>, vector<1x1x4x512xf32>
    %16 = vector.shape_cast %15 : vector<1x1x4x512xf32> to vector<4x512xf32>
    %c2 = arith.constant 2 : index
    %c0_21 = arith.constant 0 : index
    %c0_22 = arith.constant 0 : index
    %17 = vector.load %arg2[%c2, %c0_21, %c0_22] : memref<4x512x128xf32, #tpu.memory_space<vmem>>, vector<1x512x128xf32>
    %18 = vector.shape_cast %17 : vector<1x512x128xf32> to vector<512x128xf32>
    %cst_23 = arith.constant dense<0.000000e+00> : vector<4x128xf32>
    %19 = tpu.matmul %16, %18, %cst_23 {dimension_numbers = #tpu.dot_dimension_numbers<[1], [0], [0], [1], [0, 0, 1, 1], [], []>} : vector<4x512xf32>, vector<512x128xf32>, vector<4x128xf32> -> vector<4x128xf32>
    %20 = arith.addf %14, %19 : vector<4x128xf32>
    %c0_24 = arith.constant 0 : index
    %c1_25 = arith.constant 1 : index
    %c1_26 = arith.constant 1 : index
    %c0_27 = arith.constant 0 : index
    %21 = vector.load %arg1[%c0_24, %c1_25, %c1_26, %c0_27] : memref<1x5x5x512xf32, #tpu.memory_space<vmem>>, vector<1x1x4x512xf32>
    %22 = vector.shape_cast %21 : vector<1x1x4x512xf32> to vector<4x512xf32>
    %c3 = arith.constant 3 : index
    %c0_28 = arith.constant 0 : index
    %c0_29 = arith.constant 0 : index
    %23 = vector.load %arg2[%c3, %c0_28, %c0_29] : memref<4x512x128xf32, #tpu.memory_space<vmem>>, vector<1x512x128xf32>
    %24 = vector.shape_cast %23 : vector<1x512x128xf32> to vector<512x128xf32>
    %cst_30 = arith.constant dense<0.000000e+00> : vector<4x128xf32>
    %25 = tpu.matmul %22, %24, %cst_30 {dimension_numbers = #tpu.dot_dimension_numbers<[1], [0], [0], [1], [0, 0, 1, 1], [], []>} : vector<4x512xf32>, vector<512x128xf32>, vector<4x128xf32> -> vector<4x128xf32>
    %26 = arith.addf %20, %25 : vector<4x128xf32>
    %27 = vector.broadcast %0 : vector<1x128xf32> to vector<4x128xf32>
    %28 = arith.addf %26, %27 : vector<4x128xf32>
    %cst_31 = arith.constant 0.000000e+00 : f32
    %29 = vector.broadcast %cst_31 : f32 to vector<4x128xf32>
    %30 = arith.maximumf %28, %29 : vector<4x128xf32>
    %cst_32 = arith.constant dense<0.000000e+00> : vector<128xf32>
    %31 = vector.multi_reduction <add>, %30, %cst_32 [0] : vector<4x128xf32> to vector<128xf32>
    %32 = vector.shape_cast %31 : vector<128xf32> to vector<1x128xf32>
    %33 = arith.addf %1, %32 : vector<1x128xf32>
    %cst_33 = arith.constant 0.000000e+00 : f32
    %34 = vector.broadcast %cst_33 : f32 to vector<4x128xf32>
    %c0_34 = arith.constant 0 : index
    %c1_35 = arith.constant 1 : index
    %c0_36 = arith.constant 0 : index
    %c0_37 = arith.constant 0 : index
    %35 = vector.load %arg1[%c0_34, %c1_35, %c0_36, %c0_37] : memref<1x5x5x512xf32, #tpu.memory_space<vmem>>, vector<1x1x4x512xf32>
    %36 = vector.shape_cast %35 : vector<1x1x4x512xf32> to vector<4x512xf32>
    %c0_38 = arith.constant 0 : index
    %c0_39 = arith.constant 0 : index
    %c0_40 = arith.constant 0 : index
    %37 = vector.load %arg2[%c0_38, %c0_39, %c0_40] : memref<4x512x128xf32, #tpu.memory_space<vmem>>, vector<1x512x128xf32>
    %38 = vector.shape_cast %37 : vector<1x512x128xf32> to vector<512x128xf32>
    %cst_41 = arith.constant dense<0.000000e+00> : vector<4x128xf32>
    %39 = tpu.matmul %36, %38, %cst_41 {dimension_numbers = #tpu.dot_dimension_numbers<[1], [0], [0], [1], [0, 0, 1, 1], [], []>} : vector<4x512xf32>, vector<512x128xf32>, vector<4x128xf32> -> vector<4x128xf32>
    %40 = arith.addf %34, %39 : vector<4x128xf32>
    %c0_42 = arith.constant 0 : index
    %c1_43 = arith.constant 1 : index
    %c1_44 = arith.constant 1 : index
    %c0_45 = arith.constant 0 : index
    %41 = vector.load %arg1[%c0_42, %c1_43, %c1_44, %c0_45] : memref<1x5x5x512xf32, #tpu.memory_space<vmem>>, vector<1x1x4x512xf32>
    %42 = vector.shape_cast %41 : vector<1x1x4x512xf32> to vector<4x512xf32>
    %c1_46 = arith.constant 1 : index
    %c0_47 = arith.constant 0 : index
    %c0_48 = arith.constant 0 : index
    %43 = vector.load %arg2[%c1_46, %c0_47, %c0_48] : memref<4x512x128xf32, #tpu.memory_space<vmem>>, vector<1x512x128xf32>
    %44 = vector.shape_cast %43 : vector<1x512x128xf32> to vector<512x128xf32>
    %cst_49 = arith.constant dense<0.000000e+00> : vector<4x128xf32>
    %45 = tpu.matmul %42, %44, %cst_49 {dimension_numbers = #tpu.dot_dimension_numbers<[1], [0], [0], [1], [0, 0, 1, 1], [], []>} : vector<4x512xf32>, vector<512x128xf32>, vector<4x128xf32> -> vector<4x128xf32>
    %46 = arith.addf %40, %45 : vector<4x128xf32>
    %c0_50 = arith.constant 0 : index
    %c2_51 = arith.constant 2 : index
    %c0_52 = arith.constant 0 : index
    %c0_53 = arith.constant 0 : index
    %47 = vector.load %arg1[%c0_50, %c2_51, %c0_52, %c0_53] : memref<1x5x5x512xf32, #tpu.memory_space<vmem>>, vector<1x1x4x512xf32>
    %48 = vector.shape_cast %47 : vector<1x1x4x512xf32> to vector<4x512xf32>
    %c2_54 = arith.constant 2 : index
    %c0_55 = arith.constant 0 : index
    %c0_56 = arith.constant 0 : index
    %49 = vector.load %arg2[%c2_54, %c0_55, %c0_56] : memref<4x512x128xf32, #tpu.memory_space<vmem>>, vector<1x512x128xf32>
    %50 = vector.shape_cast %49 : vector<1x512x128xf32> to vector<512x128xf32>
    %cst_57 = arith.constant dense<0.000000e+00> : vector<4x128xf32>
    %51 = tpu.matmul %48, %50, %cst_57 {dimension_numbers = #tpu.dot_dimension_numbers<[1], [0], [0], [1], [0, 0, 1, 1], [], []>} : vector<4x512xf32>, vector<512x128xf32>, vector<4x128xf32> -> vector<4x128xf32>
    %52 = arith.addf %46, %51 : vector<4x128xf32>
    %c0_58 = arith.constant 0 : index
    %c2_59 = arith.constant 2 : index
    %c1_60 = arith.constant 1 : index
    %c0_61 = arith.constant 0 : index
    %53 = vector.load %arg1[%c0_58, %c2_59, %c1_60, %c0_61] : memref<1x5x5x512xf32, #tpu.memory_space<vmem>>, vector<1x1x4x512xf32>
    %54 = vector.shape_cast %53 : vector<1x1x4x512xf32> to vector<4x512xf32>
    %c3_62 = arith.constant 3 : index
    %c0_63 = arith.constant 0 : index
    %c0_64 = arith.constant 0 : index
    %55 = vector.load %arg2[%c3_62, %c0_63, %c0_64] : memref<4x512x128xf32, #tpu.memory_space<vmem>>, vector<1x512x128xf32>
    %56 = vector.shape_cast %55 : vector<1x512x128xf32> to vector<512x128xf32>
    %cst_65 = arith.constant dense<0.000000e+00> : vector<4x128xf32>
    %57 = tpu.matmul %54, %56, %cst_65 {dimension_numbers = #tpu.dot_dimension_numbers<[1], [0], [0], [1], [0, 0, 1, 1], [], []>} : vector<4x512xf32>, vector<512x128xf32>, vector<4x128xf32> -> vector<4x128xf32>
    %58 = arith.addf %52, %57 : vector<4x128xf32>
    %59 = vector.broadcast %0 : vector<1x128xf32> to vector<4x128xf32>
    %60 = arith.addf %58, %59 : vector<4x128xf32>
    %cst_66 = arith.constant 0.000000e+00 : f32
    %61 = vector.broadcast %cst_66 : f32 to vector<4x128xf32>
    %62 = arith.maximumf %60, %61 : vector<4x128xf32>
    %cst_67 = arith.constant dense<0.000000e+00> : vector<128xf32>
    %63 = vector.multi_reduction <add>, %62, %cst_67 [0] : vector<4x128xf32> to vector<128xf32>
    %64 = vector.shape_cast %63 : vector<128xf32> to vector<1x128xf32>
    %65 = arith.addf %33, %64 : vector<1x128xf32>
    %cst_68 = arith.constant 0.000000e+00 : f32
    %66 = vector.broadcast %cst_68 : f32 to vector<4x128xf32>
    %c0_69 = arith.constant 0 : index
    %c2_70 = arith.constant 2 : index
    %c0_71 = arith.constant 0 : index
    %c0_72 = arith.constant 0 : index
    %67 = vector.load %arg1[%c0_69, %c2_70, %c0_71, %c0_72] : memref<1x5x5x512xf32, #tpu.memory_space<vmem>>, vector<1x1x4x512xf32>
    %68 = vector.shape_cast %67 : vector<1x1x4x512xf32> to vector<4x512xf32>
    %c0_73 = arith.constant 0 : index
    %c0_74 = arith.constant 0 : index
    %c0_75 = arith.constant 0 : index
    %69 = vector.load %arg2[%c0_73, %c0_74, %c0_75] : memref<4x512x128xf32, #tpu.memory_space<vmem>>, vector<1x512x128xf32>
    %70 = vector.shape_cast %69 : vector<1x512x128xf32> to vector<512x128xf32>
    %cst_76 = arith.constant dense<0.000000e+00> : vector<4x128xf32>
    %71 = tpu.matmul %68, %70, %cst_76 {dimension_numbers = #tpu.dot_dimension_numbers<[1], [0], [0], [1], [0, 0, 1, 1], [], []>} : vector<4x512xf32>, vector<512x128xf32>, vector<4x128xf32> -> vector<4x128xf32>
    %72 = arith.addf %66, %71 : vector<4x128xf32>
    %c0_77 = arith.constant 0 : index
    %c2_78 = arith.constant 2 : index
    %c1_79 = arith.constant 1 : index
    %c0_80 = arith.constant 0 : index
    %73 = vector.load %arg1[%c0_77, %c2_78, %c1_79, %c0_80] : memref<1x5x5x512xf32, #tpu.memory_space<vmem>>, vector<1x1x4x512xf32>
    %74 = vector.shape_cast %73 : vector<1x1x4x512xf32> to vector<4x512xf32>
    %c1_81 = arith.constant 1 : index
    %c0_82 = arith.constant 0 : index
    %c0_83 = arith.constant 0 : index
    %75 = vector.load %arg2[%c1_81, %c0_82, %c0_83] : memref<4x512x128xf32, #tpu.memory_space<vmem>>, vector<1x512x128xf32>
    %76 = vector.shape_cast %75 : vector<1x512x128xf32> to vector<512x128xf32>
    %cst_84 = arith.constant dense<0.000000e+00> : vector<4x128xf32>
    %77 = tpu.matmul %74, %76, %cst_84 {dimension_numbers = #tpu.dot_dimension_numbers<[1], [0], [0], [1], [0, 0, 1, 1], [], []>} : vector<4x512xf32>, vector<512x128xf32>, vector<4x128xf32> -> vector<4x128xf32>
    %78 = arith.addf %72, %77 : vector<4x128xf32>
    %c0_85 = arith.constant 0 : index
    %c3_86 = arith.constant 3 : index
    %c0_87 = arith.constant 0 : index
    %c0_88 = arith.constant 0 : index
    %79 = vector.load %arg1[%c0_85, %c3_86, %c0_87, %c0_88] : memref<1x5x5x512xf32, #tpu.memory_space<vmem>>, vector<1x1x4x512xf32>
    %80 = vector.shape_cast %79 : vector<1x1x4x512xf32> to vector<4x512xf32>
    %c2_89 = arith.constant 2 : index
    %c0_90 = arith.constant 0 : index
    %c0_91 = arith.constant 0 : index
    %81 = vector.load %arg2[%c2_89, %c0_90, %c0_91] : memref<4x512x128xf32, #tpu.memory_space<vmem>>, vector<1x512x128xf32>
    %82 = vector.shape_cast %81 : vector<1x512x128xf32> to vector<512x128xf32>
    %cst_92 = arith.constant dense<0.000000e+00> : vector<4x128xf32>
    %83 = tpu.matmul %80, %82, %cst_92 {dimension_numbers = #tpu.dot_dimension_numbers<[1], [0], [0], [1], [0, 0, 1, 1], [], []>} : vector<4x512xf32>, vector<512x128xf32>, vector<4x128xf32> -> vector<4x128xf32>
    %84 = arith.addf %78, %83 : vector<4x128xf32>
    %c0_93 = arith.constant 0 : index
    %c3_94 = arith.constant 3 : index
    %c1_95 = arith.constant 1 : index
    %c0_96 = arith.constant 0 : index
    %85 = vector.load %arg1[%c0_93, %c3_94, %c1_95, %c0_96] : memref<1x5x5x512xf32, #tpu.memory_space<vmem>>, vector<1x1x4x512xf32>
    %86 = vector.shape_cast %85 : vector<1x1x4x512xf32> to vector<4x512xf32>
    %c3_97 = arith.constant 3 : index
    %c0_98 = arith.constant 0 : index
    %c0_99 = arith.constant 0 : index
    %87 = vector.load %arg2[%c3_97, %c0_98, %c0_99] : memref<4x512x128xf32, #tpu.memory_space<vmem>>, vector<1x512x128xf32>
    %88 = vector.shape_cast %87 : vector<1x512x128xf32> to vector<512x128xf32>
    %cst_100 = arith.constant dense<0.000000e+00> : vector<4x128xf32>
    %89 = tpu.matmul %86, %88, %cst_100 {dimension_numbers = #tpu.dot_dimension_numbers<[1], [0], [0], [1], [0, 0, 1, 1], [], []>} : vector<4x512xf32>, vector<512x128xf32>, vector<4x128xf32> -> vector<4x128xf32>
    %90 = arith.addf %84, %89 : vector<4x128xf32>
    %91 = vector.broadcast %0 : vector<1x128xf32> to vector<4x128xf32>
    %92 = arith.addf %90, %91 : vector<4x128xf32>
    %cst_101 = arith.constant 0.000000e+00 : f32
    %93 = vector.broadcast %cst_101 : f32 to vector<4x128xf32>
    %94 = arith.maximumf %92, %93 : vector<4x128xf32>
    %cst_102 = arith.constant dense<0.000000e+00> : vector<128xf32>
    %95 = vector.multi_reduction <add>, %94, %cst_102 [0] : vector<4x128xf32> to vector<128xf32>
    %96 = vector.shape_cast %95 : vector<128xf32> to vector<1x128xf32>
    %97 = arith.addf %65, %96 : vector<1x128xf32>
    %cst_103 = arith.constant 0.000000e+00 : f32
    %98 = vector.broadcast %cst_103 : f32 to vector<4x128xf32>
    %c0_104 = arith.constant 0 : index
    %c3_105 = arith.constant 3 : index
    %c0_106 = arith.constant 0 : index
    %c0_107 = arith.constant 0 : index
    %99 = vector.load %arg1[%c0_104, %c3_105, %c0_106, %c0_107] : memref<1x5x5x512xf32, #tpu.memory_space<vmem>>, vector<1x1x4x512xf32>
    %100 = vector.shape_cast %99 : vector<1x1x4x512xf32> to vector<4x512xf32>
    %c0_108 = arith.constant 0 : index
    %c0_109 = arith.constant 0 : index
    %c0_110 = arith.constant 0 : index
    %101 = vector.load %arg2[%c0_108, %c0_109, %c0_110] : memref<4x512x128xf32, #tpu.memory_space<vmem>>, vector<1x512x128xf32>
    %102 = vector.shape_cast %101 : vector<1x512x128xf32> to vector<512x128xf32>
    %cst_111 = arith.constant dense<0.000000e+00> : vector<4x128xf32>
    %103 = tpu.matmul %100, %102, %cst_111 {dimension_numbers = #tpu.dot_dimension_numbers<[1], [0], [0], [1], [0, 0, 1, 1], [], []>} : vector<4x512xf32>, vector<512x128xf32>, vector<4x128xf32> -> vector<4x128xf32>
    %104 = arith.addf %98, %103 : vector<4x128xf32>
    %c0_112 = arith.constant 0 : index
    %c3_113 = arith.constant 3 : index
    %c1_114 = arith.constant 1 : index
    %c0_115 = arith.constant 0 : index
    %105 = vector.load %arg1[%c0_112, %c3_113, %c1_114, %c0_115] : memref<1x5x5x512xf32, #tpu.memory_space<vmem>>, vector<1x1x4x512xf32>
    %106 = vector.shape_cast %105 : vector<1x1x4x512xf32> to vector<4x512xf32>
    %c1_116 = arith.constant 1 : index
    %c0_117 = arith.constant 0 : index
    %c0_118 = arith.constant 0 : index
    %107 = vector.load %arg2[%c1_116, %c0_117, %c0_118] : memref<4x512x128xf32, #tpu.memory_space<vmem>>, vector<1x512x128xf32>
    %108 = vector.shape_cast %107 : vector<1x512x128xf32> to vector<512x128xf32>
    %cst_119 = arith.constant dense<0.000000e+00> : vector<4x128xf32>
    %109 = tpu.matmul %106, %108, %cst_119 {dimension_numbers = #tpu.dot_dimension_numbers<[1], [0], [0], [1], [0, 0, 1, 1], [], []>} : vector<4x512xf32>, vector<512x128xf32>, vector<4x128xf32> -> vector<4x128xf32>
    %110 = arith.addf %104, %109 : vector<4x128xf32>
    %c0_120 = arith.constant 0 : index
    %c4 = arith.constant 4 : index
    %c0_121 = arith.constant 0 : index
    %c0_122 = arith.constant 0 : index
    %111 = vector.load %arg1[%c0_120, %c4, %c0_121, %c0_122] : memref<1x5x5x512xf32, #tpu.memory_space<vmem>>, vector<1x1x4x512xf32>
    %112 = vector.shape_cast %111 : vector<1x1x4x512xf32> to vector<4x512xf32>
    %c2_123 = arith.constant 2 : index
    %c0_124 = arith.constant 0 : index
    %c0_125 = arith.constant 0 : index
    %113 = vector.load %arg2[%c2_123, %c0_124, %c0_125] : memref<4x512x128xf32, #tpu.memory_space<vmem>>, vector<1x512x128xf32>
    %114 = vector.shape_cast %113 : vector<1x512x128xf32> to vector<512x128xf32>
    %cst_126 = arith.constant dense<0.000000e+00> : vector<4x128xf32>
    %115 = tpu.matmul %112, %114, %cst_126 {dimension_numbers = #tpu.dot_dimension_numbers<[1], [0], [0], [1], [0, 0, 1, 1], [], []>} : vector<4x512xf32>, vector<512x128xf32>, vector<4x128xf32> -> vector<4x128xf32>
    %116 = arith.addf %110, %115 : vector<4x128xf32>
    %c0_127 = arith.constant 0 : index
    %c4_128 = arith.constant 4 : index
    %c1_129 = arith.constant 1 : index
    %c0_130 = arith.constant 0 : index
    %117 = vector.load %arg1[%c0_127, %c4_128, %c1_129, %c0_130] : memref<1x5x5x512xf32, #tpu.memory_space<vmem>>, vector<1x1x4x512xf32>
    %118 = vector.shape_cast %117 : vector<1x1x4x512xf32> to vector<4x512xf32>
    %c3_131 = arith.constant 3 : index
    %c0_132 = arith.constant 0 : index
    %c0_133 = arith.constant 0 : index
    %119 = vector.load %arg2[%c3_131, %c0_132, %c0_133] : memref<4x512x128xf32, #tpu.memory_space<vmem>>, vector<1x512x128xf32>
    %120 = vector.shape_cast %119 : vector<1x512x128xf32> to vector<512x128xf32>
    %cst_134 = arith.constant dense<0.000000e+00> : vector<4x128xf32>
    %121 = tpu.matmul %118, %120, %cst_134 {dimension_numbers = #tpu.dot_dimension_numbers<[1], [0], [0], [1], [0, 0, 1, 1], [], []>} : vector<4x512xf32>, vector<512x128xf32>, vector<4x128xf32> -> vector<4x128xf32>
    %122 = arith.addf %116, %121 : vector<4x128xf32>
    %123 = vector.broadcast %0 : vector<1x128xf32> to vector<4x128xf32>
    %124 = arith.addf %122, %123 : vector<4x128xf32>
    %cst_135 = arith.constant 0.000000e+00 : f32
    %125 = vector.broadcast %cst_135 : f32 to vector<4x128xf32>
    %126 = arith.maximumf %124, %125 : vector<4x128xf32>
    %cst_136 = arith.constant dense<0.000000e+00> : vector<128xf32>
    %127 = vector.multi_reduction <add>, %126, %cst_136 [0] : vector<4x128xf32> to vector<128xf32>
    %128 = vector.shape_cast %127 : vector<128xf32> to vector<1x128xf32>
    %129 = arith.addf %97, %128 : vector<1x128xf32>
    %cst_137 = arith.constant 6.250000e-02 : f32
    %130 = vector.broadcast %cst_137 : f32 to vector<1x128xf32>
    %131 = arith.mulf %129, %130 : vector<1x128xf32>
    %c0_138 = arith.constant 0 : index
    %c0_139 = arith.constant 0 : index
    %132 = vector.load %arg4[%c0_138, %c0_139] : memref<128x128xf32, #tpu.memory_space<vmem>>, vector<128x128xf32>
    %cst_140 = arith.constant dense<0.000000e+00> : vector<1x128xf32>
    %133 = tpu.matmul %131, %132, %cst_140 {dimension_numbers = #tpu.dot_dimension_numbers<[1], [0], [0], [1], [0, 0, 1, 1], [], []>} : vector<1x128xf32>, vector<128x128xf32>, vector<1x128xf32> -> vector<1x128xf32>
    %c0_141 = arith.constant 0 : index
    %c0_142 = arith.constant 0 : index
    %134 = vector.load %arg5[%c0_141, %c0_142] : memref<1x128xf32, #tpu.memory_space<vmem>>, vector<1x128xf32>
    %135 = arith.addf %133, %134 : vector<1x128xf32>
    %c0_143 = arith.constant 0 : index
    %c0_144 = arith.constant 0 : index
    %c0_145 = arith.constant 0 : index
    %136 = vector.load %arg6[%c0_143, %c0_144, %c0_145] : memref<1x1x128xf32, #tpu.memory_space<vmem>>, vector<1x1x128xf32>
    %137 = vector.shape_cast %136 : vector<1x1x128xf32> to vector<1x128xf32>
    %138 = vector.shape_cast %135 : vector<1x128xf32> to vector<1x1x128xf32>
    tpu.vector_store %arg6[%c0_143, %c0_144, %c0_145], %138 {strides = array<i32>} : memref<1x1x128xf32, #tpu.memory_space<vmem>>, vector<1x1x128xf32>,
    return
  }
  func.func @transform_0(%arg0: i32) -> (i32, i32, i32, i32) {
    %c0_i32 = arith.constant 0 : i32
    %c0_i32_0 = arith.constant 0 : i32
    %c0_i32_1 = arith.constant 0 : i32
    %c0_i32_2 = arith.constant 0 : i32
    return %arg0, %c0_i32, %c0_i32_0, %c0_i32_1 : i32, i32, i32, i32
  }
  func.func @transform_1(%arg0: i32) -> (i32, i32, i32) {
    %c0_i32 = arith.constant 0 : i32
    %c0_i32_0 = arith.constant 0 : i32
    %c0_i32_1 = arith.constant 0 : i32
    %c0_i32_2 = arith.constant 0 : i32
    return %c0_i32, %c0_i32_0, %c0_i32_1 : i32, i32, i32
  }
  func.func @transform_2(%arg0: i32) -> (i32, i32) {
    %c0_i32 = arith.constant 0 : i32
    %c0_i32_0 = arith.constant 0 : i32
    %c0_i32_1 = arith.constant 0 : i32
    return %c0_i32, %c0_i32_0 : i32, i32
  }
  func.func @transform_3(%arg0: i32) -> (i32, i32) {
    %c0_i32 = arith.constant 0 : i32
    %c0_i32_0 = arith.constant 0 : i32
    %c0_i32_1 = arith.constant 0 : i32
    return %c0_i32, %c0_i32_0 : i32, i32
  }
  func.func @transform_4(%arg0: i32) -> (i32, i32) {
    %c0_i32 = arith.constant 0 : i32
    %c0_i32_0 = arith.constant 0 : i32
    %c0_i32_1 = arith.constant 0 : i32
    return %c0_i32, %c0_i32_0 : i32, i32
  }
  func.func @transform_5(%arg0: i32) -> (i32, i32, i32) {
    %c0_i32 = arith.constant 0 : i32
    %c0_i32_0 = arith.constant 0 : i32
    %c0_i32_1 = arith.constant 0 : i32
    return %arg0, %c0_i32, %c0_i32_0 : i32, i32, i32
  }
}

</mosaic_0001>

<llo_original>
// kernel: backbone_forward.2
$region0: #{backbone_forward.2}
  #allocation0 [shape = 'u32[]', space=smem, size = 0x4, offset = 0x4, fixed_abs, tag = 'smem constant byte address 0x4 - core index']
  #allocation1 [shape = 'u32[144,128]{1,0:T(1,128)}', space=vmem, size = 0x12000, scoped, tag = 'internal scratch']
  %s0 = inlined_call_operand.vmem [shape: f32[2,9,9,12], index: 0, kind: input, shape index: {}]
  %s1 = inlined_call_operand.vmem [shape: f32[4,12,128], index: 1, kind: input, shape index: {}]
  %s2 = inlined_call_operand.vmem [shape: f32[1,128], index: 2, kind: input, shape index: {}]
  %s3 = inlined_call_operand.vmem [shape: f32[2,8,8,128], index: 3, kind: output, shape index: {}]
  %s4 = sld [smem:[#allocation0]]
  $region45: #{backbone_forward.2} parent=0
    _
  %s6 = ssub.s32 1, %s4
  %s7 = scalar_select 0, %s6, %s4
  loop: start=0, step=1, limit=4
  $region2: #{backbone_forward.2} parent=0 // loop_pre_header
    _
  $region3: #{backbone_forward.2} parent=0 // loop_header
    %s9 = sphi 0, %s13
    %p10 = scmp.ge.s32.totalorder %s9, 4
    %s19 = sphi 0, %s21
    %s22 = sphi 0, %s19
    %s23 = sphi 0, %s22
    %s39 = sphi 0, %s23
    %s43 = sphi 0, %s43
    %s45 = sphi 0, %s43
    %s46 = sphi 0, %s45
    %s60 = sphi 0, %s46
    %s64 = sphi 0, %s64
    %s66 = sphi 0, %s64
    %s67 = sphi 0, %s66
    %s81 = sphi 0, %s67
    %s87 = sphi 0, %s89
    %s90 = sphi 0, %s87
    %s91 = sphi 0, %s90
    %s107 = sphi 0, %s91
  $region4: #{backbone_forward.2} parent=0 // loop_header_branch
    %12 = sbr.rel (%p10) target = $region8
  $region5: #{backbone_forward.2} parent=0 // loop_body
    %s14 = ssub.s32 %s9, 1
    %s15 = ssub.s32 %s9, 2
    %s16 = sadd.s32 %s9, 1
    %s17 = ssub.s32 %s9, %s16
    %p18 = scmp.eq.s32.totalorder %s17, 0
    %s20 = sadd.s32 %s19, 1
    %s21 = scalar_select %p18, %s19, %s20
    %p24 = pneg %p18
    %p25 = scmp.eq.s32.totalorder %s9, 1
    %p26 = por %p24, %p25
    %p27 = scmp.ne.s32.totalorder %s19, %s22
    %p28 = scmp.eq.s32.totalorder %s9, 0
    %p29 = por %p27, %p28
    %p30 = scmp.ne.s32.totalorder %s19, %s22
    %p31 = scmp.eq.s32.totalorder %s14, 1
    %p32 = por %p30, %p31
    %p33 = scmp.ne.s32.totalorder %s22, %s23
    %p34 = scmp.eq.s32.totalorder %s14, 0
    %p35 = por %p33, %p34
    %p36 = scmp.ne.s32.totalorder %s22, %s23
    %p37 = scmp.eq.s32.totalorder %s15, 1
    %p38 = por %p36, %p37
    %p40 = scmp.ne.s32.totalorder %s23, %s39
    %p41 = scmp.eq.s32.totalorder %s15, 0
    %p42 = por %p40, %p41
    %s44 = sadd.s32 %s43, 1
    %p47 = scmp.eq.s32.totalorder %s9, 1
    %p48 = scmp.ne.s32.totalorder %s43, %s45
    %p49 = scmp.eq.s32.totalorder %s9, 0
    %p50 = por %p48, %p49
    %p51 = scmp.ne.s32.totalorder %s43, %s45
    %p52 = scmp.eq.s32.totalorder %s14, 1
    %p53 = por %p51, %p52
    %p54 = scmp.ne.s32.totalorder %s45, %s46
    %p55 = scmp.eq.s32.totalorder %s14, 0
    %p56 = por %p54, %p55
    %p57 = scmp.ne.s32.totalorder %s45, %s46
    %p58 = scmp.eq.s32.totalorder %s15, 1
    %p59 = por %p57, %p58
    %p61 = scmp.ne.s32.totalorder %s46, %s60
    %p62 = scmp.eq.s32.totalorder %s15, 0
    %p63 = por %p61, %p62
    %s65 = sadd.s32 %s64, 1
    %p68 = scmp.eq.s32.totalorder %s9, 1
    %p69 = scmp.ne.s32.totalorder %s64, %s66
    %p70 = scmp.eq.s32.totalorder %s9, 0
    %p71 = por %p69, %p70
    %p72 = scmp.ne.s32.totalorder %s64, %s66
    %p73 = scmp.eq.s32.totalorder %s14, 1
    %p74 = por %p72, %p73
    %p75 = scmp.ne.s32.totalorder %s66, %s67
    %p76 = scmp.eq.s32.totalorder %s14, 0
    %p77 = por %p75, %p76
    %p78 = scmp.ne.s32.totalorder %s66, %s67
    %p79 = scmp.eq.s32.totalorder %s15, 1
    %p80 = por %p78, %p79
    %p82 = scmp.ne.s32.totalorder %s67, %s81
    %p83 = scmp.eq.s32.totalorder %s15, 0
    %p84 = por %p82, %p83
    %s85 = ssub.s32 %s9, %s16
    %p86 = scmp.eq.s32.totalorder %s85, 0
    %s88 = sadd.s32 %s87, 1
    %s89 = scalar_select %p86, %s87, %s88
    %p92 = pneg %p86
    %p93 = scmp.eq.s32.totalorder %s9, 1
    %p94 = por %p92, %p93
    %p95 = scmp.ne.s32.totalorder %s87, %s90
    %p96 = scmp.eq.s32.totalorder %s9, 0
    %p97 = por %p95, %p96
    %p98 = scmp.ne.s32.totalorder %s87, %s90
    %p99 = scmp.eq.s32.totalorder %s14, 1
    %p100 = por %p98, %p99
    %p101 = scmp.ne.s32.totalorder %s90, %s91
    %p102 = scmp.eq.s32.totalorder %s14, 0
    %p103 = por %p101, %p102
    %p104 = scmp.ne.s32.totalorder %s90, %s91
    %p105 = scmp.eq.s32.totalorder %s15, 1
    %p106 = por %p104, %p105
    %p108 = scmp.ne.s32.totalorder %s91, %s107
    %p109 = scmp.eq.s32.totalorder %s15, 0
    %p110 = por %p108, %p109
    %p111 = scmp.le.s32.totalorder 1, %s9
    %p112 = scmp.lt.s32.totalorder %s9, 3
    %p113 = pnand %p111, %p112
    %p114 = pneg %p113
    // Predicated region
    $region9: #{backbone_forward.2} parent=5 // pred_check
      _
    $region10: #{backbone_forward.2} parent=5 // pred_check_branch
      %116 = sbr.rel (%p113) target = $region12
    $region11: #{backbone_forward.2} parent=5 // pred_region
      %s117 = ssub.s32 %s9, 1
      // Predicated region
      $region13: #{backbone_forward.2} parent=11 // pred_check
        %p118 = pneg %p56
      $region14: #{backbone_forward.2} parent=11 // pred_check_branch
        %120 = sbr.rel (%p118) target = $region16
      $region15: #{backbone_forward.2} parent=11 // pred_region
        _
      $region16: #{backbone_forward.2} parent=11 // pred_fallthru
        _
      // Predicated region
      $region17: #{backbone_forward.2} parent=11 // pred_check
        %p121 = pneg %p77
      $region18: #{backbone_forward.2} parent=11 // pred_check_branch
        %123 = sbr.rel (%p121) target = $region20
      $region19: #{backbone_forward.2} parent=11 // pred_region
        _
      $region20: #{backbone_forward.2} parent=11 // pred_fallthru
        _
    $region12: #{backbone_forward.2} parent=5 // pred_fallthru
      _
    %p124 = scmp.lt.s32.totalorder %s9, 2
    // Predicated region
    $region21: #{backbone_forward.2} parent=5 // pred_check
      %p125 = pneg %p124
    $region22: #{backbone_forward.2} parent=5 // pred_check_branch
      %127 = sbr.rel (%p125) target = $region24
    $region23: #{backbone_forward.2} parent=5 // pred_region
      // Predicated region
      $region25: #{backbone_forward.2} parent=23 // pred_check
        %p128 = pneg %p29
      $region26: #{backbone_forward.2} parent=23 // pred_check_branch
        %130 = sbr.rel (%p128) target = $region28
      $region27: #{backbone_forward.2} parent=23 // pred_region
        %p131 = scmp.lt.s32.totalorder %s9, 1
        %s132 = scalar_select %p131, %s9, 1
        %s133 = smul.addr %s132, 18
        %s134 = smul.addr %s133, 8
        %s135 = scalar_lea.vmem %s0, %s134
      $region28: #{backbone_forward.2} parent=23 // pred_fallthru
        _
    $region24: #{backbone_forward.2} parent=5 // pred_fallthru
      _
    %p136 = scmp.le.s32.totalorder 1, %s9
    %p137 = scmp.lt.s32.totalorder %s9, 3
    %p138 = pnand %p136, %p137
    %p139 = pneg %p138
    // Predicated region
    $region29: #{backbone_forward.2} parent=5 // pred_check
      _
    $region30: #{backbone_forward.2} parent=5 // pred_check_branch
      %141 = sbr.rel (%p138) target = $region32
    $region31: #{backbone_forward.2} parent=5 // pred_region
      %s142 = ssub.s32 %s9, 1
      %p143 = scmp.lt.s32.totalorder %s14, 1
      %s144 = scalar_select %p143, %s14, 1
      %s145 = smul.addr %s144, 18
      %s146 = smul.addr %s145, 8
      %s147 = scalar_lea.vmem %s0, %s146
      %p148 = pneg %p35
      %p149 = pneg %p32
      %p150 = pneg %p56
      %p151 = pneg %p53
      %p152 = pneg %p77
      %p153 = pneg %p74
      %p154 = pneg %p103
      %p155 = pneg %p100
      %p156 = scmp.lt.s32.totalorder %s14, 1
      %s157 = scalar_select %p156, %s14, 1
      %s158 = smul.addr %s157, 8
      %s159 = smul.addr %s158, 8
      %s160 = scalar_lea.vmem %s3, %s159
      %p161 = scmp.lt.s32.totalorder %s14, 1
      %s162 = scalar_select %p161, %s14, 1
      %s163 = smul.addr %s162, 18
      %s164 = smul.addr %s163, 8
      %s165 = scalar_lea.vmem %s0, %s164
      %p166 = scmp.lt.s32.totalorder %s14, 1
      %s167 = scalar_select %p166, %s14, 1
      %s168 = smul.addr %s167, 8
      %s169 = smul.addr %s168, 8
      %s170 = scalar_lea.vmem %s3, %s169
      %v171 = vld [vmem:[%s2] sm:$0x1]
      %v172 = vld [vmem:[%s165] sm:$0xff]
      %v173 = vld [vmem:[%s1] sm:$0xff]
      %v174 = vld [vmem:[%s1 + $0x8] sm:$0xf]
      %v175 = vld [vmem:[%s165 + $0x1] sm:$0xff]
      %s176 = scalar_lea.vmem %s1, 16
      %v177 = vld [vmem:[%s176] sm:$0xff]
      %v178 = vld [vmem:[%s176 + $0x8] sm:$0xf]
      %vm179 = vcmask 97280
      %v181 = vsel %vm179, %v175, 0
      %vm183 = vcmask 1043456
      %v185 = vsel %vm183, %v178, 0
      %187 = vmatprep.subr.mxu0 0.0
      %188 = vmatpush1.msra.mxu0 %v177
      %189 = vmatprep.subr.mxu0 0.0
      %190 = vmatpush1.msra.mxu0 %v185
      %191 = vmatprep.subr.mxu0 0.0
      %192 = vmatpush1.msra.mxu0 0.0
      %193 = vmatprep.subr.mxu0 0.0
      %194 = vmatpush1.msra.mxu0 0.0
      %195 = vmatprep.subr.mxu0 0.0
      %196 = vmatpush1.msra.mxu0 0.0
      %197 = vmatprep.subr.mxu0 0.0
      %198 = vmatpush1.msra.mxu0 0.0
      %199 = vmatprep.subr.mxu0 0.0
      %200 = vmatpush1.msra.mxu0 0.0
      %201 = vmatprep.subr.mxu0 0.0
      %202 = vmatpush1.msra.mxu0 0.0
      %203 = vmatprep.subr.mxu0 0.0
      %204 = vmatpush1.msra.mxu0 0.0
      %205 = vmatprep.subr.mxu0 0.0
      %206 = vmatpush1.msra.mxu0 0.0
      %207 = vmatprep.subr.mxu0 0.0
      %208 = vmatpush1.msra.mxu0 0.0
      %209 = vmatprep.subr.mxu0 0.0
      %210 = vmatpush1.msra.mxu0 0.0
      %211 = vmatprep.subr.mxu0 0.0
      %212 = vmatpush1.msra.mxu0 0.0
      %213 = vmatprep.subr.mxu0 0.0
      %214 = vmatpush1.msra.mxu0 0.0
      %215 = vmatprep.subr.mxu0 0.0
      %216 = vmatpush1.msra.mxu0 0.0
      %217 = vmatprep.subr.mxu0 0.0
      %218 = vmatpush1.msra.mxu0 0.0
      %219 = vmatprep.subr.mxu0 0.0
      %220 = vmatpush1.msra.mxu0 0.0
      %221 = vmatprep.subr.mxu0 0.0
      %222 = vmatpush1.msra.mxu0 0.0
      %223 = vmatprep.subr.mxu0 0.0
      %224 = vmatpush1.msra.mxu0 0.0
      %225 = vmatprep.subr.mxu0 0.0
      %226 = vmatpush1.msra.mxu0 0.0
      %227 = vmatprep.subr.mxu0 0.0
      %228 = vmatpush1.msra.mxu0 0.0
      %229 = vmatprep.subr.mxu0 0.0
      %230 = vmatpush1.msra.mxu0 0.0
      %231 = vmatprep.subr.mxu0 0.0
      %232 = vmatpush1.msra.mxu0 0.0
      %233 = vmatprep.subr.mxu0 0.0
      %234 = vmatpush1.msra.mxu0 0.0
      %235 = vmatprep.subr.mxu0 0.0
      %236 = vmatpush1.msra.mxu0 0.0
      %237 = vmatprep.subr.mxu0 0.0
      %238 = vmatpush1.msra.mxu0 0.0
      %239 = vmatprep.subr.mxu0 0.0
      %240 = vmatpush1.msra.mxu0 0.0
      %241 = vmatprep.subr.mxu0 0.0
      %242 = vmatpush1.msra.mxu0 0.0
      %243 = vmatprep.subr.mxu0 0.0
      %244 = vmatpush1.msra.mxu0 0.0
      %245 = vmatprep.subr.mxu0 0.0
      %246 = vmatpush1.msra.mxu0 0.0
      %247 = vmatprep.subr.mxu0 0.0
      %248 = vmatpush1.msra.mxu0 0.0
      %249 = vmatprep.subr.mxu0 0.0
      %250 = vmatpush1.msra.mxu0 0.0
      %251 = vmatprep.mubr.f32.mxu0 0.0
      %252 = vmatmul.mubr.f32.gmra.mrb[0].mxu0 %v181
      %v253 = vpop.f32.mrb[0].mxu0
      %v254 = vadd.f32 0.0, %v253
      %v255 = vpop.f32.mrb[0].mxu0
      %256 = vdwg.mxu0
      %v258 = vsel %vm179, %v172, 0
      %v261 = vsel %vm183, %v174, 0
      %263 = vmatprep.subr.mxu0 0.0
      %264 = vmatpush1.msra.mxu0 %v173
      %265 = vmatprep.subr.mxu0 0.0
      %266 = vmatpush1.msra.mxu0 %v261
      %267 = vmatprep.subr.mxu0 0.0
      %268 = vmatpush1.msra.mxu0 0.0
      %269 = vmatprep.subr.mxu0 0.0
      %270 = vmatpush1.msra.mxu0 0.0
      %271 = vmatprep.subr.mxu0 0.0
      %272 = vmatpush1.msra.mxu0 0.0
      %273 = vmatprep.subr.mxu0 0.0
      %274 = vmatpush1.msra.mxu0 0.0
      %275 = vmatprep.subr.mxu0 0.0
      %276 = vmatpush1.msra.mxu0 0.0
      %277 = vmatprep.subr.mxu0 0.0
      %278 = vmatpush1.msra.mxu0 0.0
      %279 = vmatprep.subr.mxu0 0.0
      %280 = vmatpush1.msra.mxu0 0.0
      %281 = vmatprep.subr.mxu0 0.0
      %282 = vmatpush1.msra.mxu0 0.0
      %283 = vmatprep.subr.mxu0 0.0
      %284 = vmatpush1.msra.mxu0 0.0
      %285 = vmatprep.subr.mxu0 0.0
      %286 = vmatpush1.msra.mxu0 0.0
      %287 = vmatprep.subr.mxu0 0.0
      %288 = vmatpush1.msra.mxu0 0.0
      %289 = vmatprep.subr.mxu0 0.0
      %290 = vmatpush1.msra.mxu0 0.0
      %291 = vmatprep.subr.mxu0 0.0
      %292 = vmatpush1.msra.mxu0 0.0
      %293 = vmatprep.subr.mxu0 0.0
      %294 = vmatpush1.msra.mxu0 0.0
      %295 = vmatprep.subr.mxu0 0.0
      %296 = vmatpush1.msra.mxu0 0.0
      %297 = vmatprep.subr.mxu0 0.0
      %298 = vmatpush1.msra.mxu0 0.0
      %299 = vmatprep.subr.mxu0 0.0
      %300 = vmatpush1.msra.mxu0 0.0
      %301 = vmatprep.subr.mxu0 0.0
      %302 = vmatpush1.msra.mxu0 0.0
      %303 = vmatprep.subr.mxu0 0.0
      %304 = vmatpush1.msra.mxu0 0.0
      %305 = vmatprep.subr.mxu0 0.0
      %306 = vmatpush1.msra.mxu0 0.0
      %307 = vmatprep.subr.mxu0 0.0
      %308 = vmatpush1.msra.mxu0 0.0
      %309 = vmatprep.subr.mxu0 0.0
      %310 = vmatpush1.msra.mxu0 0.0
      %311 = vmatprep.subr.mxu0 0.0
      %312 = vmatpush1.msra.mxu0 0.0
      %313 = vmatprep.subr.mxu0 0.0
      %314 = vmatpush1.msra.mxu0 0.0
      %315 = vmatprep.subr.mxu0 0.0
      %316 = vmatpush1.msra.mxu0 0.0
      %317 = vmatprep.subr.mxu0 0.0
      %318 = vmatpush1.msra.mxu0 0.0
      %319 = vmatprep.subr.mxu0 0.0
      %320 = vmatpush1.msra.mxu0 0.0
      %321 = vmatprep.subr.mxu0 0.0
      %322 = vmatpush1.msra.mxu0 0.0
      %323 = vmatprep.subr.mxu0 0.0
      %324 = vmatpush1.msra.mxu0 0.0
      %325 = vmatprep.subr.mxu0 0.0
      %326 = vmatpush1.msra.mxu0 0.0
      %327 = vmatprep.mubr.f32.mxu0 0.0
      %328 = vmatmul.mubr.f32.gmra.mrb[0].mxu0 %v258
      %v329 = vpop.f32.mrb[0].mxu0
      %v330 = vadd.f32 %v254, %v329
      %v331 = vpop.f32.mrb[0].mxu0
      %332 = vdwg.mxu0
      %s333 = scalar_lea.vmem %s165, 16
      %v334 = vld [vmem:[%s333] sm:$0xff]
      %s335 = scalar_lea.vmem %s1, 32
      %v336 = vld [vmem:[%s335] sm:$0xff]
      %v337 = vld [vmem:[%s335 + $0x8] sm:$0xf]
      %v339 = vsel %vm179, %v334, 0
      %v342 = vsel %vm183, %v337, 0
      %344 = vmatprep.subr.mxu0 0.0
      %345 = vmatpush1.msra.mxu0 %v336
      %346 = vmatprep.subr.mxu0 0.0
      %347 = vmatpush1.msra.mxu0 %v342
      %348 = vmatprep.subr.mxu0 0.0
      %349 = vmatpush1.msra.mxu0 0.0
      %350 = vmatprep.subr.mxu0 0.0
      %351 = vmatpush1.msra.mxu0 0.0
      %352 = vmatprep.subr.mxu0 0.0
      %353 = vmatpush1.msra.mxu0 0.0
      %354 = vmatprep.subr.mxu0 0.0
      %355 = vmatpush1.msra.mxu0 0.0
      %356 = vmatprep.subr.mxu0 0.0
      %357 = vmatpush1.msra.mxu0 0.0
      %358 = vmatprep.subr.mxu0 0.0
      %359 = vmatpush1.msra.mxu0 0.0
      %360 = vmatprep.subr.mxu0 0.0
      %361 = vmatpush1.msra.mxu0 0.0
      %362 = vmatprep.subr.mxu0 0.0
      %363 = vmatpush1.msra.mxu0 0.0
      %364 = vmatprep.subr.mxu0 0.0
      %365 = vmatpush1.msra.mxu0 0.0
      %366 = vmatprep.subr.mxu0 0.0
      %367 = vmatpush1.msra.mxu0 0.0
      %368 = vmatprep.subr.mxu0 0.0
      %369 = vmatpush1.msra.mxu0 0.0
      %370 = vmatprep.subr.mxu0 0.0
      %371 = vmatpush1.msra.mxu0 0.0
      %372 = vmatprep.subr.mxu0 0.0
      %373 = vmatpush1.msra.mxu0 0.0
      %374 = vmatprep.subr.mxu0 0.0
      %375 = vmatpush1.msra.mxu0 0.0
      %376 = vmatprep.subr.mxu0 0.0
      %377 = vmatpush1.msra.mxu0 0.0
      %378 = vmatprep.subr.mxu0 0.0
      %379 = vmatpush1.msra.mxu0 0.0
      %380 = vmatprep.subr.mxu0 0.0
      %381 = vmatpush1.msra.mxu0 0.0
      %382 = vmatprep.subr.mxu0 0.0
      %383 = vmatpush1.msra.mxu0 0.0
      %384 = vmatprep.subr.mxu0 0.0
      %385 = vmatpush1.msra.mxu0 0.0
      %386 = vmatprep.subr.mxu0 0.0
      %387 = vmatpush1.msra.mxu0 0.0
      %388 = vmatprep.subr.mxu0 0.0
      %389 = vmatpush1.msra.mxu0 0.0
      %390 = vmatprep.subr.mxu0 0.0
      %391 = vmatpush1.msra.mxu0 0.0
      %392 = vmatprep.subr.mxu0 0.0
      %393 = vmatpush1.msra.mxu0 0.0
      %394 = vmatprep.subr.mxu0 0.0
      %395 = vmatpush1.msra.mxu0 0.0
      %396 = vmatprep.subr.mxu0 0.0
      %397 = vmatpush1.msra.mxu0 0.0
      %398 = vmatprep.subr.mxu0 0.0
      %399 = vmatpush1.msra.mxu0 0.0
      %400 = vmatprep.subr.mxu0 0.0
      %401 = vmatpush1.msra.mxu0 0.0
      %402 = vmatprep.subr.mxu0 0.0
      %403 = vmatpush1.msra.mxu0 0.0
      %404 = vmatprep.subr.mxu0 0.0
      %405 = vmatpush1.msra.mxu0 0.0
      %406 = vmatprep.subr.mxu0 0.0
      %407 = vmatpush1.msra.mxu0 0.0
      %408 = vmatprep.mubr.f32.mxu0 0.0
      %409 = vmatmul.mubr.f32.gmra.mrb[0].mxu0 %v339
      %v410 = vpop.f32.mrb[0].mxu0
      %v411 = vadd.f32 0.0, %v410
      %v412 = vpop.f32.mrb[0].mxu0
      %413 = vdwg.mxu0
      %v414 = vadd.f32 %v330, %v411
      %v415 = vld [vmem:[%s333 + $0x1] sm:$0xff]
      %s416 = scalar_lea.vmem %s1, 48
      %v417 = vld [vmem:[%s416] sm:$0xff]
      %v418 = vld [vmem:[%s416 + $0x8] sm:$0xf]
      %v420 = vsel %vm179, %v415, 0
      %v423 = vsel %vm183, %v418, 0
      %425 = vmatprep.subr.mxu0 0.0
      %426 = vmatpush1.msra.mxu0 %v417
      %427 = vmatprep.subr.mxu0 0.0
      %428 = vmatpush1.msra.mxu0 %v423
      %429 = vmatprep.subr.mxu0 0.0
      %430 = vmatpush1.msra.mxu0 0.0
      %431 = vmatprep.subr.mxu0 0.0
      %432 = vmatpush1.msra.mxu0 0.0
      %433 = vmatprep.subr.mxu0 0.0
      %434 = vmatpush1.msra.mxu0 0.0
      %435 = vmatprep.subr.mxu0 0.0
      %436 = vmatpush1.msra.mxu0 0.0
      %437 = vmatprep.subr.mxu0 0.0
      %438 = vmatpush1.msra.mxu0 0.0
      %439 = vmatprep.subr.mxu0 0.0
      %440 = vmatpush1.msra.mxu0 0.0
      %441 = vmatprep.subr.mxu0 0.0
      %442 = vmatpush1.msra.mxu0 0.0
      %443 = vmatprep.subr.mxu0 0.0
      %444 = vmatpush1.msra.mxu0 0.0
      %445 = vmatprep.subr.mxu0 0.0
      %446 = vmatpush1.msra.mxu0 0.0
      %447 = vmatprep.subr.mxu0 0.0
      %448 = vmatpush1.msra.mxu0 0.0
      %449 = vmatprep.subr.mxu0 0.0
      %450 = vmatpush1.msra.mxu0 0.0
      %451 = vmatprep.subr.mxu0 0.0
      %452 = vmatpush1.msra.mxu0 0.0
      %453 = vmatprep.subr.mxu0 0.0
      %454 = vmatpush1.msra.mxu0 0.0
      %455 = vmatprep.subr.mxu0 0.0
      %456 = vmatpush1.msra.mxu0 0.0
      %457 = vmatprep.subr.mxu0 0.0
      %458 = vmatpush1.msra.mxu0 0.0
      %459 = vmatprep.subr.mxu0 0.0
      %460 = vmatpush1.msra.mxu0 0.0
      %461 = vmatprep.subr.mxu0 0.0
      %462 = vmatpush1.msra.mxu0 0.0
      %463 = vmatprep.subr.mxu0 0.0
      %464 = vmatpush1.msra.mxu0 0.0
      %465 = vmatprep.subr.mxu0 0.0
      %466 = vmatpush1.msra.mxu0 0.0
      %467 = vmatprep.subr.mxu0 0.0
      %468 = vmatpush1.msra.mxu0 0.0
      %469 = vmatprep.subr.mxu0 0.0
      %470 = vmatpush1.msra.mxu0 0.0
      %471 = vmatprep.subr.mxu0 0.0
      %472 = vmatpush1.msra.mxu0 0.0
      %473 = vmatprep.subr.mxu0 0.0
      %474 = vmatpush1.msra.mxu0 0.0
      %475 = vmatprep.subr.mxu0 0.0
      %476 = vmatpush1.msra.mxu0 0.0
      %477 = vmatprep.subr.mxu0 0.0
      %478 = vmatpush1.msra.mxu0 0.0
      %479 = vmatprep.subr.mxu0 0.0
      %480 = vmatpush1.msra.mxu0 0.0
      %481 = vmatprep.subr.mxu0 0.0
      %482 = vmatpush1.msra.mxu0 0.0
      %483 = vmatprep.subr.mxu0 0.0
      %484 = vmatpush1.msra.mxu0 0.0
      %485 = vmatprep.subr.mxu0 0.0
      %486 = vmatpush1.msra.mxu0 0.0
      %487 = vmatprep.subr.mxu0 0.0
      %488 = vmatpush1.msra.mxu0 0.0
      %489 = vmatprep.mubr.f32.mxu0 0.0
      %490 = vmatmul.mubr.f32.gmra.mrb[0].mxu0 %v420
      %v491 = vpop.f32.mrb[0].mxu0
      %v492 = vadd.f32 0.0, %v491
      %v493 = vpop.f32.mrb[0].mxu0
      %494 = vdwg.mxu0
      %v495 = vadd.f32 %v414, %v492
      %v497 = vlaneseq
      %v498 = vshrl.u32 %v497, 7
      %v499 = vsub.s32 0, %v498
      %v500 = vrot.slane %v171, %v499
      %v502 = vadd.f32 %v495, %v500
      %v503 = vmax.f32 %v502, 0.0
      %504 = vst [vmem:[%s170] sm:$0xff] %v503
      %v505 = vld [vmem:[%s333] sm:$0xff]
      %v506 = vld [vmem:[%s1] sm:$0xff]
      %v507 = vld [vmem:[%s1 + $0x8] sm:$0xf]
      %v508 = vld [vmem:[%s333 + $0x1] sm:$0xff]
      %v509 = vld [vmem:[%s176] sm:$0xff]
      %v510 = vld [vmem:[%s176 + $0x8] sm:$0xf]
      %v512 = vsel %vm179, %v508, 0
      %v515 = vsel %vm183, %v510, 0
      %517 = vmatprep.subr.mxu0 0.0
      %518 = vmatpush1.msra.mxu0 %v509
      %519 = vmatprep.subr.mxu0 0.0
      %520 = vmatpush1.msra.mxu0 %v515
      %521 = vmatprep.subr.mxu0 0.0
      %522 = vmatpush1.msra.mxu0 0.0
      %523 = vmatprep.subr.mxu0 0.0
      %524 = vmatpush1.msra.mxu0 0.0
      %525 = vmatprep.subr.mxu0 0.0
      %526 = vmatpush1.msra.mxu0 0.0
      %527 = vmatprep.subr.mxu0 0.0
      %528 = vmatpush1.msra.mxu0 0.0
      %529 = vmatprep.subr.mxu0 0.0
      %530 = vmatpush1.msra.mxu0 0.0
      %531 = vmatprep.subr.mxu0 0.0
      %532 = vmatpush1.msra.mxu0 0.0
      %533 = vmatprep.subr.mxu0 0.0
      %534 = vmatpush1.msra.mxu0 0.0
      %535 = vmatprep.subr.mxu0 0.0
      %536 = vmatpush1.msra.mxu0 0.0
      %537 = vmatprep.subr.mxu0 0.0
      %538 = vmatpush1.msra.mxu0 0.0
      %539 = vmatprep.subr.mxu0 0.0
      %540 = vmatpush1.msra.mxu0 0.0
      %541 = vmatprep.subr.mxu0 0.0
      %542 = vmatpush1.msra.mxu0 0.0
      %543 = vmatprep.subr.mxu0 0.0
      %544 = vmatpush1.msra.mxu0 0.0
      %545 = vmatprep.subr.mxu0 0.0
      %546 = vmatpush1.msra.mxu0 0.0
      %547 = vmatprep.subr.mxu0 0.0
      %548 = vmatpush1.msra.mxu0 0.0
      %549 = vmatprep.subr.mxu0 0.0
      %550 = vmatpush1.msra.mxu0 0.0
      %551 = vmatprep.subr.mxu0 0.0
      %552 = vmatpush1.msra.mxu0 0.0
      %553 = vmatprep.subr.mxu0 0.0
      %554 = vmatpush1.msra.mxu0 0.0
      %555 = vmatprep.subr.mxu0 0.0
      %556 = vmatpush1.msra.mxu0 0.0
      %557 = vmatprep.subr.mxu0 0.0
      %558 = vmatpush1.msra.mxu0 0.0
      %559 = vmatprep.subr.mxu0 0.0
      %560 = vmatpush1.msra.mxu0 0.0
      %561 = vmatprep.subr.mxu0 0.0
      %562 = vmatpush1.msra.mxu0 0.0
      %563 = vmatprep.subr.mxu0 0.0
      %564 = vmatpush1.msra.mxu0 0.0
      %565 = vmatprep.subr.mxu0 0.0
      %566 = vmatpush1.msra.mxu0 0.0
      %567 = vmatprep.subr.mxu0 0.0
      %568 = vmatpush1.msra.mxu0 0.0
      %569 = vmatprep.subr.mxu0 0.0
      %570 = vmatpush1.msra.mxu0 0.0
      %571 = vmatprep.subr.mxu0 0.0
      %572 = vmatpush1.msra.mxu0 0.0
      %573 = vmatprep.subr.mxu0 0.0
      %574 = vmatpush1.msra.mxu0 0.0
      %575 = vmatprep.subr.mxu0 0.0
      %576 = vmatpush1.msra.mxu0 0.0
      %577 = vmatprep.subr.mxu0 0.0
      %578 = vmatpush1.msra.mxu0 0.0
      %579 = vmatprep.subr.mxu0 0.0
      %580 = vmatpush1.msra.mxu0 0.0
      %581 = vmatprep.mubr.f32.mxu0 0.0
      %582 = vmatmul.mubr.f32.gmra.mrb[0].mxu0 %v512
      %v583 = vpop.f32.mrb[0].mxu0
      %v584 = vadd.f32 0.0, %v583
      %v585 = vpop.f32.mrb[0].mxu0
      %586 = vdwg.mxu0
      %v588 = vsel %vm179, %v505, 0
      %v591 = vsel %vm183, %v507, 0
      %593 = vmatprep.subr.mxu0 0.0
      %594 = vmatpush1.msra.mxu0 %v506
      %595 = vmatprep.subr.mxu0 0.0
      %596 = vmatpush1.msra.mxu0 %v591
      %597 = vmatprep.subr.mxu0 0.0
      %598 = vmatpush1.msra.mxu0 0.0
      %599 = vmatprep.subr.mxu0 0.0
      %600 = vmatpush1.msra.mxu0 0.0
      %601 = vmatprep.subr.mxu0 0.0
      %602 = vmatpush1.msra.mxu0 0.0
      %603 = vmatprep.subr.mxu0 0.0
      %604 = vmatpush1.msra.mxu0 0.0
      %605 = vmatprep.subr.mxu0 0.0
      %606 = vmatpush1.msra.mxu0 0.0
      %607 = vmatprep.subr.mxu0 0.0
      %608 = vmatpush1.msra.mxu0 0.0
      %609 = vmatprep.subr.mxu0 0.0
      %610 = vmatpush1.msra.mxu0 0.0
      %611 = vmatprep.subr.mxu0 0.0
      %612 = vmatpush1.msra.mxu0 0.0
      %613 = vmatprep.subr.mxu0 0.0
      %614 = vmatpush1.msra.mxu0 0.0
      %615 = vmatprep.subr.mxu0 0.0
      %616 = vmatpush1.msra.mxu0 0.0
      %617 = vmatprep.subr.mxu0 0.0
      %618 = vmatpush1.msra.mxu0 0.0
      %619 = vmatprep.subr.mxu0 0.0
      %620 = vmatpush1.msra.mxu0 0.0
      %621 = vmatprep.subr.mxu0 0.0
      %622 = vmatpush1.msra.mxu0 0.0
      %623 = vmatprep.subr.mxu0 0.0
      %624 = vmatpush1.msra.mxu0 0.0
      %625 = vmatprep.subr.mxu0 0.0
      %626 = vmatpush1.msra.mxu0 0.0
      %627 = vmatprep.subr.mxu0 0.0
      %628 = vmatpush1.msra.mxu0 0.0
      %629 = vmatprep.subr.mxu0 0.0
      %630 = vmatpush1.msra.mxu0 0.0
      %631 = vmatprep.subr.mxu0 0.0
      %632 = vmatpush1.msra.mxu0 0.0
      %633 = vmatprep.subr.mxu0 0.0
      %634 = vmatpush1.msra.mxu0 0.0
      %635 = vmatprep.subr.mxu0 0.0
      %636 = vmatpush1.msra.mxu0 0.0
      %637 = vmatprep.subr.mxu0 0.0
      %638 = vmatpush1.msra.mxu0 0.0
      %639 = vmatprep.subr.mxu0 0.0
      %640 = vmatpush1.msra.mxu0 0.0
      %641 = vmatprep.subr.mxu0 0.0
      %642 = vmatpush1.msra.mxu0 0.0
      %643 = vmatprep.subr.mxu0 0.0
      %644 = vmatpush1.msra.mxu0 0.0
      %645 = vmatprep.subr.mxu0 0.0
      %646 = vmatpush1.msra.mxu0 0.0
      %647 = vmatprep.subr.mxu0 0.0
      %648 = vmatpush1.msra.mxu0 0.0
      %649 = vmatprep.subr.mxu0 0.0
      %650 = vmatpush1.msra.mxu0 0.0
      %651 = vmatprep.subr.mxu0 0.0
      %652 = vmatpush1.msra.mxu0 0.0
      %653 = vmatprep.subr.mxu0 0.0
      %654 = vmatpush1.msra.mxu0 0.0
      %655 = vmatprep.subr.mxu0 0.0
      %656 = vmatpush1.msra.mxu0 0.0
      %657 = vmatprep.mubr.f32.mxu0 0.0
      %658 = vmatmul.mubr.f32.gmra.mrb[0].mxu0 %v588
      %v659 = vpop.f32.mrb[0].mxu0
      %v660 = vadd.f32 %v584, %v659
      %v661 = vpop.f32.mrb[0].mxu0
      %662 = vdwg.mxu0
      %s663 = scalar_lea.vmem %s165, 32
      %v664 = vld [vmem:[%s663] sm:$0xff]
      %v665 = vld [vmem:[%s335] sm:$0xff]
      %v666 = vld [vmem:[%s335 + $0x8] sm:$0xf]
      %v668 = vsel %vm179, %v664, 0
      %v671 = vsel %vm183, %v666, 0
      %673 = vmatprep.subr.mxu0 0.0
      %674 = vmatpush1.msra.mxu0 %v665
      %675 = vmatprep.subr.mxu0 0.0
      %676 = vmatpush1.msra.mxu0 %v671
      %677 = vmatprep.subr.mxu0 0.0
      %678 = vmatpush1.msra.mxu0 0.0
      %679 = vmatprep.subr.mxu0 0.0
      %680 = vmatpush1.msra.mxu0 0.0
      %681 = vmatprep.subr.mxu0 0.0
      %682 = vmatpush1.msra.mxu0 0.0
      %683 = vmatprep.subr.mxu0 0.0
      %684 = vmatpush1.msra.mxu0 0.0
      %685 = vmatprep.subr.mxu0 0.0
      %686 = vmatpush1.msra.mxu0 0.0
      %687 = vmatprep.subr.mxu0 0.0
      %688 = vmatpush1.msra.mxu0 0.0
      %689 = vmatprep.subr.mxu0 0.0
      %690 = vmatpush1.msra.mxu0 0.0
      %691 = vmatprep.subr.mxu0 0.0
      %692 = vmatpush1.msra.mxu0 0.0
      %693 = vmatprep.subr.mxu0 0.0
      %694 = vmatpush1.msra.mxu0 0.0
      %695 = vmatprep.subr.mxu0 0.0
      %696 = vmatpush1.msra.mxu0 0.0
      %697 = vmatprep.subr.mxu0 0.0
      %698 = vmatpush1.msra.mxu0 0.0
      %699 = vmatprep.subr.mxu0 0.0
      %700 = vmatpush1.msra.mxu0 0.0
      %701 = vmatprep.subr.mxu0 0.0
      %702 = vmatpush1.msra.mxu0 0.0
      %703 = vmatprep.subr.mxu0 0.0
      %704 = vmatpush1.msra.mxu0 0.0
      %705 = vmatprep.subr.mxu0 0.0
      %706 = vmatpush1.msra.mxu0 0.0
      %707 = vmatprep.subr.mxu0 0.0
      %708 = vmatpush1.msra.mxu0 0.0
      %709 = vmatprep.subr.mxu0 0.0
      %710 = vmatpush1.msra.mxu0 0.0
      %711 = vmatprep.subr.mxu0 0.0
      %712 = vmatpush1.msra.mxu0 0.0
      %713 = vmatprep.subr.mxu0 0.0
      %714 = vmatpush1.msra.mxu0 0.0
      %715 = vmatprep.subr.mxu0 0.0
      %716 = vmatpush1.msra.mxu0 0.0
      %717 = vmatprep.subr.mxu0 0.0
      %718 = vmatpush1.msra.mxu0 0.0
      %719 = vmatprep.subr.mxu0 0.0
      %720 = vmatpush1.msra.mxu0 0.0
      %721 = vmatprep.subr.mxu0 0.0
      %722 = vmatpush1.msra.mxu0 0.0
      %723 = vmatprep.subr.mxu0 0.0
      %724 = vmatpush1.msra.mxu0 0.0
      %725 = vmatprep.subr.mxu0 0.0
      %726 = vmatpush1.msra.mxu0 0.0
      %727 = vmatprep.subr.mxu0 0.0
      %728 = vmatpush1.msra.mxu0 0.0
      %729 = vmatprep.subr.mxu0 0.0
      %730 = vmatpush1.msra.mxu0 0.0
      %731 = vmatprep.subr.mxu0 0.0
      %732 = vmatpush1.msra.mxu0 0.0
      %733 = vmatprep.subr.mxu0 0.0
      %734 = vmatpush1.msra.mxu0 0.0
      %735 = vmatprep.subr.mxu0 0.0
      %736 = vmatpush1.msra.mxu0 0.0
      %737 = vmatprep.mubr.f32.mxu0 0.0
      %738 = vmatmul.mubr.f32.gmra.mrb[0].mxu0 %v668
      %v739 = vpop.f32.mrb[0].mxu0
      %v740 = vadd.f32 0.0, %v739
      %v741 = vpop.f32.mrb[0].mxu0
      %742 = vdwg.mxu0
      %v743 = vadd.f32 %v660, %v740
      %v744 = vld [vmem:[%s663 + $0x1] sm:$0xff]
      %v745 = vld [vmem:[%s416] sm:$0xff]
      %v746 = vld [vmem:[%s416 + $0x8] sm:$0xf]
      %v748 = vsel %vm179, %v744, 0
      %v751 = vsel %vm183, %v746, 0
      %753 = vmatprep.subr.mxu0 0.0
      %754 = vmatpush1.msra.mxu0 %v745
      %755 = vmatprep.subr.mxu0 0.0
      %756 = vmatpush1.msra.mxu0 %v751
      %757 = vmatprep.subr.mxu0 0.0
      %758 = vmatpush1.msra.mxu0 0.0
      %759 = vmatprep.subr.mxu0 0.0
      %760 = vmatpush1.msra.mxu0 0.0
      %761 = vmatprep.subr.mxu0 0.0
      %762 = vmatpush1.msra.mxu0 0.0
      %763 = vmatprep.subr.mxu0 0.0
      %764 = vmatpush1.msra.mxu0 0.0
      %765 = vmatprep.subr.mxu0 0.0
      %766 = vmatpush1.msra.mxu0 0.0
      %767 = vmatprep.subr.mxu0 0.0
      %768 = vmatpush1.msra.mxu0 0.0
      %769 = vmatprep.subr.mxu0 0.0
      %770 = vmatpush1.msra.mxu0 0.0
      %771 = vmatprep.subr.mxu0 0.0
      %772 = vmatpush1.msra.mxu0 0.0
      %773 = vmatprep.subr.mxu0 0.0
      %774 = vmatpush1.msra.mxu0 0.0
      %775 = vmatprep.subr.mxu0 0.0
      %776 = vmatpush1.msra.mxu0 0.0
      %777 = vmatprep.subr.mxu0 0.0
      %778 = vmatpush1.msra.mxu0 0.0
      %779 = vmatprep.subr.mxu0 0.0
      %780 = vmatpush1.msra.mxu0 0.0
      %781 = vmatprep.subr.mxu0 0.0
      %782 = vmatpush1.msra.mxu0 0.0
      %783 = vmatprep.subr.mxu0 0.0
      %784 = vmatpush1.msra.mxu0 0.0
      %785 = vmatprep.subr.mxu0 0.0
      %786 = vmatpush1.msra.mxu0 0.0
      %787 = vmatprep.subr.mxu0 0.0
      %788 = vmatpush1.msra.mxu0 0.0
      %789 = vmatprep.subr.mxu0 0.0
      %790 = vmatpush1.msra.mxu0 0.0
      %791 = vmatprep.subr.mxu0 0.0
      %792 = vmatpush1.msra.mxu0 0.0
      %793 = vmatprep.subr.mxu0 0.0
      %794 = vmatpush1.msra.mxu0 0.0
      %795 = vmatprep.subr.mxu0 0.0
      %796 = vmatpush1.msra.mxu0 0.0
      %797 = vmatprep.subr.mxu0 0.0
      %798 = vmatpush1.msra.mxu0 0.0
      %799 = vmatprep.subr.mxu0 0.0
      %800 = vmatpush1.msra.mxu0 0.0
      %801 = vmatprep.subr.mxu0 0.0
      %802 = vmatpush1.msra.mxu0 0.0
      %803 = vmatprep.subr.mxu0 0.0
      %804 = vmatpush1.msra.mxu0 0.0
      %805 = vmatprep.subr.mxu0 0.0
      %806 = vmatpush1.msra.mxu0 0.0
      %807 = vmatprep.subr.mxu0 0.0
      %808 = vmatpush1.msra.mxu0 0.0
      %809 = vmatprep.subr.mxu0 0.0
      %810 = vmatpush1.msra.mxu0 0.0
      %811 = vmatprep.subr.mxu0 0.0
      %812 = vmatpush1.msra.mxu0 0.0
      %813 = vmatprep.subr.mxu0 0.0
      %814 = vmatpush1.msra.mxu0 0.0
      %815 = vmatprep.subr.mxu0 0.0
      %816 = vmatpush1.msra.mxu0 0.0
      %817 = vmatprep.mubr.f32.mxu0 0.0
      %818 = vmatmul.mubr.f32.gmra.mrb[0].mxu0 %v748
      %v819 = vpop.f32.mrb[0].mxu0
      %v820 = vadd.f32 0.0, %v819
      %v821 = vpop.f32.mrb[0].mxu0
      %822 = vdwg.mxu0
      %v823 = vadd.f32 %v743, %v820
      %v824 = vadd.f32 %v823, %v500
      %v825 = vmax.f32 %v824, 0.0
      %s826 = scalar_lea.vmem %s170, 8
      %827 = vst [vmem:[%s826] sm:$0xff] %v825
      %v828 = vld [vmem:[%s663] sm:$0xff]
      %v829 = vld [vmem:[%s1] sm:$0xff]
      %v830 = vld [vmem:[%s1 + $0x8] sm:$0xf]
      %v831 = vld [vmem:[%s663 + $0x1] sm:$0xff]
      %v832 = vld [vmem:[%s176] sm:$0xff]
      %v833 = vld [vmem:[%s176 + $0x8] sm:$0xf]
      %v835 = vsel %vm179, %v831, 0
      %v838 = vsel %vm183, %v833, 0
      %840 = vmatprep.subr.mxu0 0.0
      %841 = vmatpush1.msra.mxu0 %v832
      %842 = vmatprep.subr.mxu0 0.0
      %843 = vmatpush1.msra.mxu0 %v838
      %844 = vmatprep.subr.mxu0 0.0
      %845 = vmatpush1.msra.mxu0 0.0
      %846 = vmatprep.subr.mxu0 0.0
      %847 = vmatpush1.msra.mxu0 0.0
      %848 = vmatprep.subr.mxu0 0.0
      %849 = vmatpush1.msra.mxu0 0.0
      %850 = vmatprep.subr.mxu0 0.0
      %851 = vmatpush1.msra.mxu0 0.0
      %852 = vmatprep.subr.mxu0 0.0
      %853 = vmatpush1.msra.mxu0 0.0
      %854 = vmatprep.subr.mxu0 0.0
      %855 = vmatpush1.msra.mxu0 0.0
      %856 = vmatprep.subr.mxu0 0.0
      %857 = vmatpush1.msra.mxu0 0.0
      %858 = vmatprep.subr.mxu0 0.0
      %859 = vmatpush1.msra.mxu0 0.0
      %860 = vmatprep.subr.mxu0 0.0
      %861 = vmatpush1.msra.mxu0 0.0
      %862 = vmatprep.subr.mxu0 0.0
      %863 = vmatpush1.msra.mxu0 0.0
      %864 = vmatprep.subr.mxu0 0.0
      %865 = vmatpush1.msra.mxu0 0.0
      %866 = vmatprep.subr.mxu0 0.0
      %867 = vmatpush1.msra.mxu0 0.0
      %868 = vmatprep.subr.mxu0 0.0
      %869 = vmatpush1.msra.mxu0 0.0
      %870 = vmatprep.subr.mxu0 0.0
      %871 = vmatpush1.msra.mxu0 0.0
      %872 = vmatprep.subr.mxu0 0.0
      %873 = vmatpush1.msra.mxu0 0.0
      %874 = vmatprep.subr.mxu0 0.0
      %875 = vmatpush1.msra.mxu0 0.0
      %876 = vmatprep.subr.mxu0 0.0
      %877 = vmatpush1.msra.mxu0 0.0
      %878 = vmatprep.subr.mxu0 0.0
      %879 = vmatpush1.msra.mxu0 0.0
      %880 = vmatprep.subr.mxu0 0.0
      %881 = vmatpush1.msra.mxu0 0.0
      %882 = vmatprep.subr.mxu0 0.0
      %883 = vmatpush1.msra.mxu0 0.0
      %884 = vmatprep.subr.mxu0 0.0
      %885 = vmatpush1.msra.mxu0 0.0
      %886 = vmatprep.subr.mxu0 0.0
      %887 = vmatpush1.msra.mxu0 0.0
      %888 = vmatprep.subr.mxu0 0.0
      %889 = vmatpush1.msra.mxu0 0.0
      %890 = vmatprep.subr.mxu0 0.0
      %891 = vmatpush1.msra.mxu0 0.0
      %892 = vmatprep.subr.mxu0 0.0
      %893 = vmatpush1.msra.mxu0 0.0
      %894 = vmatprep.subr.mxu0 0.0
      %895 = vmatpush1.msra.mxu0 0.0
      %896 = vmatprep.subr.mxu0 0.0
      %897 = vmatpush1.msra.mxu0 0.0
      %898 = vmatprep.subr.mxu0 0.0
      %899 = vmatpush1.msra.mxu0 0.0
      %900 = vmatprep.subr.mxu0 0.0
      %901 = vmatpush1.msra.mxu0 0.0
      %902 = vmatprep.subr.mxu0 0.0
      %903 = vmatpush1.msra.mxu0 0.0
      %904 = vmatprep.mubr.f32.mxu0 0.0
      %905 = vmatmul.mubr.f32.gmra.mrb[0].mxu0 %v835
      %v906 = vpop.f32.mrb[0].mxu0
      %v907 = vadd.f32 0.0, %v906
      %v908 = vpop.f32.mrb[0].mxu0
      %909 = vdwg.mxu0
      %v911 = vsel %vm179, %v828, 0
      %v914 = vsel %vm183, %v830, 0
      %916 = vmatprep.subr.mxu0 0.0
      %917 = vmatpush1.msra.mxu0 %v829
      %918 = vmatprep.subr.mxu0 0.0
      %919 = vmatpush1.msra.mxu0 %v914
      %920 = vmatprep.subr.mxu0 0.0
      %921 = vmatpush1.msra.mxu0 0.0
      %922 = vmatprep.subr.mxu0 0.0
      %923 = vmatpush1.msra.mxu0 0.0
      %924 = vmatprep.subr.mxu0 0.0
      %925 = vmatpush1.msra.mxu0 0.0
      %926 = vmatprep.subr.mxu0 0.0
      %927 = vmatpush1.msra.mxu0 0.0
      %928 = vmatprep.subr.mxu0 0.0
      %929 = vmatpush1.msra.mxu0 0.0
      %930 = vmatprep.subr.mxu0 0.0
      %931 = vmatpush1.msra.mxu0 0.0
      %932 = vmatprep.subr.mxu0 0.0
      %933 = vmatpush1.msra.mxu0 0.0
      %934 = vmatprep.subr.mxu0 0.0
      %935 = vmatpush1.msra.mxu0 0.0
      %936 = vmatprep.subr.mxu0 0.0
      %937 = vmatpush1.msra.mxu0 0.0
      %938 = vmatprep.subr.mxu0 0.0
      %939 = vmatpush1.msra.mxu0 0.0
      %940 = vmatprep.subr.mxu0 0.0
      %941 = vmatpush1.msra.mxu0 0.0
      %942 = vmatprep.subr.mxu0 0.0
      %943 = vmatpush1.msra.mxu0 0.0
      %944 = vmatprep.subr.mxu0 0.0
      %945 = vmatpush1.msra.mxu0 0.0
      %946 = vmatprep.subr.mxu0 0.0
      %947 = vmatpush1.msra.mxu0 0.0
      %948 = vmatprep.subr.mxu0 0.0
      %949 = vmatpush1.msra.mxu0 0.0
      %950 = vmatprep.subr.mxu0 0.0
      %951 = vmatpush1.msra.mxu0 0.0
      %952 = vmatprep.subr.mxu0 0.0
      %953 = vmatpush1.msra.mxu0 0.0
      %954 = vmatprep.subr.mxu0 0.0
      %955 = vmatpush1.msra.mxu0 0.0
      %956 = vmatprep.subr.mxu0 0.0
      %957 = vmatpush1.msra.mxu0 0.0
      %958 = vmatprep.subr.mxu0 0.0
      %959 = vmatpush1.msra.mxu0 0.0
      %960 = vmatprep.subr.mxu0 0.0
      %961 = vmatpush1.msra.mxu0 0.0
      %962 = vmatprep.subr.mxu0 0.0
      %963 = vmatpush1.msra.mxu0 0.0
      %964 = vmatprep.subr.mxu0 0.0
      %965 = vmatpush1.msra.mxu0 0.0
      %966 = vmatprep.subr.mxu0 0.0
      %967 = vmatpush1.msra.mxu0 0.0
      %968 = vmatprep.subr.mxu0 0.0
      %969 = vmatpush1.msra.mxu0 0.0
      %970 = vmatprep.subr.mxu0 0.0
      %971 = vmatpush1.msra.mxu0 0.0
      %972 = vmatprep.subr.mxu0 0.0
      %973 = vmatpush1.msra.mxu0 0.0
      %974 = vmatprep.subr.mxu0 0.0
      %975 = vmatpush1.msra.mxu0 0.0
      %976 = vmatprep.subr.mxu0 0.0
      %977 = vmatpush1.msra.mxu0 0.0
      %978 = vmatprep.subr.mxu0 0.0
      %979 = vmatpush1.msra.mxu0 0.0
      %980 = vmatprep.mubr.f32.mxu0 0.0
      %981 = vmatmul.mubr.f32.gmra.mrb[0].mxu0 %v911
      %v982 = vpop.f32.mrb[0].mxu0
      %v983 = vadd.f32 %v907, %v982
      %v984 = vpop.f32.mrb[0].mxu0
      %985 = vdwg.mxu0
      %s986 = scalar_lea.vmem %s165, 48
      %v987 = vld [vmem:[%s986] sm:$0xff]
      %v988 = vld [vmem:[%s335] sm:$0xff]
      %v989 = vld [vmem:[%s335 + $0x8] sm:$0xf]
      %v991 = vsel %vm179, %v987, 0
      %v994 = vsel %vm183, %v989, 0
      %996 = vmatprep.subr.mxu0 0.0
      %997 = vmatpush1.msra.mxu0 %v988
      %998 = vmatprep.subr.mxu0 0.0
      %999 = vmatpush1.msra.mxu0 %v994
      %1000 = vmatprep.subr.mxu0 0.0
      %1001 = vmatpush1.msra.mxu0 0.0
      %1002 = vmatprep.subr.mxu0 0.0
      %1003 = vmatpush1.msra.mxu0 0.0
      %1004 = vmatprep.subr.mxu0 0.0
      %1005 = vmatpush1.msra.mxu0 0.0
      %1006 = vmatprep.subr.mxu0 0.0
      %1007 = vmatpush1.msra.mxu0 0.0
      %1008 = vmatprep.subr.mxu0 0.0
      %1009 = vmatpush1.msra.mxu0 0.0
      %1010 = vmatprep.subr.mxu0 0.0
      %1011 = vmatpush1.msra.mxu0 0.0
      %1012 = vmatprep.subr.mxu0 0.0
      %1013 = vmatpush1.msra.mxu0 0.0
      %1014 = vmatprep.subr.mxu0 0.0
      %1015 = vmatpush1.msra.mxu0 0.0
      %1016 = vmatprep.subr.mxu0 0.0
      %1017 = vmatpush1.msra.mxu0 0.0
      %1018 = vmatprep.subr.mxu0 0.0
      %1019 = vmatpush1.msra.mxu0 0.0
      %1020 = vmatprep.subr.mxu0 0.0
      %1021 = vmatpush1.msra.mxu0 0.0
      %1022 = vmatprep.subr.mxu0 0.0
      %1023 = vmatpush1.msra.mxu0 0.0
      %1024 = vmatprep.subr.mxu0 0.0
      %1025 = vmatpush1.msra.mxu0 0.0
      %1026 = vmatprep.subr.mxu0 0.0
      %1027 = vmatpush1.msra.mxu0 0.0
      %1028 = vmatprep.subr.mxu0 0.0
      %1029 = vmatpush1.msra.mxu0 0.0
      %1030 = vmatprep.subr.mxu0 0.0
      %1031 = vmatpush1.msra.mxu0 0.0
      %1032 = vmatprep.subr.mxu0 0.0
      %1033 = vmatpush1.msra.mxu0 0.0
      %1034 = vmatprep.subr.mxu0 0.0
      %1035 = vmatpush1.msra.mxu0 0.0
      %1036 = vmatprep.subr.mxu0 0.0
      %1037 = vmatpush1.msra.mxu0 0.0
      %1038 = vmatprep.subr.mxu0 0.0
      %1039 = vmatpush1.msra.mxu0 0.0
      %1040 = vmatprep.subr.mxu0 0.0
      %1041 = vmatpush1.msra.mxu0 0.0
      %1042 = vmatprep.subr.mxu0 0.0
      %1043 = vmatpush1.msra.mxu0 0.0
      %1044 = vmatprep.subr.mxu0 0.0
      %1045 = vmatpush1.msra.mxu0 0.0
      %1046 = vmatprep.subr.mxu0 0.0
      %1047 = vmatpush1.msra.mxu0 0.0
      %1048 = vmatprep.subr.mxu0 0.0
      %1049 = vmatpush1.msra.mxu0 0.0
      %1050 = vmatprep.subr.mxu0 0.0
      %1051 = vmatpush1.msra.mxu0 0.0
      %1052 = vmatprep.subr.mxu0 0.0
      %1053 = vmatpush1.msra.mxu0 0.0
      %1054 = vmatprep.subr.mxu0 0.0
      %1055 = vmatpush1.msra.mxu0 0.0
      %1056 = vmatprep.subr.mxu0 0.0
      %1057 = vmatpush1.msra.mxu0 0.0
      %1058 = vmatprep.subr.mxu0 0.0
      %1059 = vmatpush1.msra.mxu0 0.0
      %1060 = vmatprep.mubr.f32.mxu0 0.0
      %1061 = vmatmul.mubr.f32.gmra.mrb[0].mxu0 %v991
      %v1062 = vpop.f32.mrb[0].mxu0
      %v1063 = vadd.f32 0.0, %v1062
      %v1064 = vpop.f32.mrb[0].mxu0
      %1065 = vdwg.mxu0
      %v1066 = vadd.f32 %v983, %v1063
      %v1067 = vld [vmem:[%s986 + $0x1] sm:$0xff]
      %v1068 = vld [vmem:[%s416] sm:$0xff]
      %v1069 = vld [vmem:[%s416 + $0x8] sm:$0xf]
      %v1071 = vsel %vm179, %v1067, 0
      %v1074 = vsel %vm183, %v1069, 0
      %1076 = vmatprep.subr.mxu0 0.0
      %1077 = vmatpush1.msra.mxu0 %v1068
      %1078 = vmatprep.subr.mxu0 0.0
      %1079 = vmatpush1.msra.mxu0 %v1074
      %1080 = vmatprep.subr.mxu0 0.0
      %1081 = vmatpush1.msra.mxu0 0.0
      %1082 = vmatprep.subr.mxu0 0.0
      %1083 = vmatpush1.msra.mxu0 0.0
      %1084 = vmatprep.subr.mxu0 0.0
      %1085 = vmatpush1.msra.mxu0 0.0
      %1086 = vmatprep.subr.mxu0 0.0
      %1087 = vmatpush1.msra.mxu0 0.0
      %1088 = vmatprep.subr.mxu0 0.0
      %1089 = vmatpush1.msra.mxu0 0.0
      %1090 = vmatprep.subr.mxu0 0.0
      %1091 = vmatpush1.msra.mxu0 0.0
      %1092 = vmatprep.subr.mxu0 0.0
      %1093 = vmatpush1.msra.mxu0 0.0
      %1094 = vmatprep.subr.mxu0 0.0
      %1095 = vmatpush1.msra.mxu0 0.0
      %1096 = vmatprep.subr.mxu0 0.0
      %1097 = vmatpush1.msra.mxu0 0.0
      %1098 = vmatprep.subr.mxu0 0.0
      %1099 = vmatpush1.msra.mxu0 0.0
      %1100 = vmatprep.subr.mxu0 0.0
      %1101 = vmatpush1.msra.mxu0 0.0
      %1102 = vmatprep.subr.mxu0 0.0
      %1103 = vmatpush1.msra.mxu0 0.0
      %1104 = vmatprep.subr.mxu0 0.0
      %1105 = vmatpush1.msra.mxu0 0.0
      %1106 = vmatprep.subr.mxu0 0.0
      %1107 = vmatpush1.msra.mxu0 0.0
      %1108 = vmatprep.subr.mxu0 0.0
      %1109 = vmatpush1.msra.mxu0 0.0
      %1110 = vmatprep.subr.mxu0 0.0
      %1111 = vmatpush1.msra.mxu0 0.0
      %1112 = vmatprep.subr.mxu0 0.0
      %1113 = vmatpush1.msra.mxu0 0.0
      %1114 = vmatprep.subr.mxu0 0.0
      %1115 = vmatpush1.msra.mxu0 0.0
      %1116 = vmatprep.subr.mxu0 0.0
      %1117 = vmatpush1.msra.mxu0 0.0
      %1118 = vmatprep.subr.mxu0 0.0
      %1119 = vmatpush1.msra.mxu0 0.0
      %1120 = vmatprep.subr.mxu0 0.0
      %1121 = vmatpush1.msra.mxu0 0.0
      %1122 = vmatprep.subr.mxu0 0.0
      %1123 = vmatpush1.msra.mxu0 0.0
      %1124 = vmatprep.subr.mxu0 0.0
      %1125 = vmatpush1.msra.mxu0 0.0
      %1126 = vmatprep.subr.mxu0 0.0
      %1127 = vmatpush1.msra.mxu0 0.0
      %1128 = vmatprep.subr.mxu0 0.0
      %1129 = vmatpush1.msra.mxu0 0.0
      %1130 = vmatprep.subr.mxu0 0.0
      %1131 = vmatpush1.msra.mxu0 0.0
      %1132 = vmatprep.subr.mxu0 0.0
      %1133 = vmatpush1.msra.mxu0 0.0
      %1134 = vmatprep.subr.mxu0 0.0
      %1135 = vmatpush1.msra.mxu0 0.0
      %1136 = vmatprep.subr.mxu0 0.0
      %1137 = vmatpush1.msra.mxu0 0.0
      %1138 = vmatprep.subr.mxu0 0.0
      %1139 = vmatpush1.msra.mxu0 0.0
      %1140 = vmatprep.mubr.f32.mxu0 0.0
      %1141 = vmatmul.mubr.f32.gmra.mrb[0].mxu0 %v1071
      %v1142 = vpop.f32.mrb[0].mxu0
      %v1143 = vadd.f32 0.0, %v1142
      %v1144 = vpop.f32.mrb[0].mxu0
      %1145 = vdwg.mxu0
      %v1146 = vadd.f32 %v1066, %v1143
      %v1147 = vadd.f32 %v1146, %v500
      %v1148 = vmax.f32 %v1147, 0.0
      %s1149 = scalar_lea.vmem %s170, 16
      %1150 = vst [vmem:[%s1149] sm:$0xff] %v1148
      %v1151 = vld [vmem:[%s986] sm:$0xff]
      %v1152 = vld [vmem:[%s1] sm:$0xff]
      %v1153 = vld [vmem:[%s1 + $0x8] sm:$0xf]
      %v1154 = vld [vmem:[%s986 + $0x1] sm:$0xff]
      %v1155 = vld [vmem:[%s176] sm:$0xff]
      %v1156 = vld [vmem:[%s176 + $0x8] sm:$0xf]
      %v1158 = vsel %vm179, %v1154, 0
      %v1161 = vsel %vm183, %v1156, 0
      %1163 = vmatprep.subr.mxu0 0.0
      %1164 = vmatpush1.msra.mxu0 %v1155
      %1165 = vmatprep.subr.mxu0 0.0
      %1166 = vmatpush1.msra.mxu0 %v1161
      %1167 = vmatprep.subr.mxu0 0.0
      %1168 = vmatpush1.msra.mxu0 0.0
      %1169 = vmatprep.subr.mxu0 0.0
      %1170 = vmatpush1.msra.mxu0 0.0
      %1171 = vmatprep.subr.mxu0 0.0
      %1172 = vmatpush1.msra.mxu0 0.0
      %1173 = vmatprep.subr.mxu0 0.0
      %1174 = vmatpush1.msra.mxu0 0.0
      %1175 = vmatprep.subr.mxu0 0.0
      %1176 = vmatpush1.msra.mxu0 0.0
      %1177 = vmatprep.subr.mxu0 0.0
      %1178 = vmatpush1.msra.mxu0 0.0
      %1179 = vmatprep.subr.mxu0 0.0
      %1180 = vmatpush1.msra.mxu0 0.0
      %1181 = vmatprep.subr.mxu0 0.0
      %1182 = vmatpush1.msra.mxu0 0.0
      %1183 = vmatprep.subr.mxu0 0.0
      %1184 = vmatpush1.msra.mxu0 0.0
      %1185 = vmatprep.subr.mxu0 0.0
      %1186 = vmatpush1.msra.mxu0 0.0
      %1187 = vmatprep.subr.mxu0 0.0
      %1188 = vmatpush1.msra.mxu0 0.0
      %1189 = vmatprep.subr.mxu0 0.0
      %1190 = vmatpush1.msra.mxu0 0.0
      %1191 = vmatprep.subr.mxu0 0.0
      %1192 = vmatpush1.msra.mxu0 0.0
      %1193 = vmatprep.subr.mxu0 0.0
      %1194 = vmatpush1.msra.mxu0 0.0
      %1195 = vmatprep.subr.mxu0 0.0
      %1196 = vmatpush1.msra.mxu0 0.0
      %1197 = vmatprep.subr.mxu0 0.0
      %1198 = vmatpush1.msra.mxu0 0.0
      %1199 = vmatprep.subr.mxu0 0.0
      %1200 = vmatpush1.msra.mxu0 0.0
      %1201 = vmatprep.subr.mxu0 0.0
      %1202 = vmatpush1.msra.mxu0 0.0
      %1203 = vmatprep.subr.mxu0 0.0
      %1204 = vmatpush1.msra.mxu0 0.0
      %1205 = vmatprep.subr.mxu0 0.0
      %1206 = vmatpush1.msra.mxu0 0.0
      %1207 = vmatprep.subr.mxu0 0.0
      %1208 = vmatpush1.msra.mxu0 0.0
      %1209 = vmatprep.subr.mxu0 0.0
      %1210 = vmatpush1.msra.mxu0 0.0
      %1211 = vmatprep.subr.mxu0 0.0
      %1212 = vmatpush1.msra.mxu0 0.0
      %1213 = vmatprep.subr.mxu0 0.0
      %1214 = vmatpush1.msra.mxu0 0.0
      %1215 = vmatprep.subr.mxu0 0.0
      %1216 = vmatpush1.msra.mxu0 0.0
      %1217 = vmatprep.subr.mxu0 0.0
      %1218 = vmatpush1.msra.mxu0 0.0
      %1219 = vmatprep.subr.mxu0 0.0
      %1220 = vmatpush1.msra.mxu0 0.0
      %1221 = vmatprep.subr.mxu0 0.0
      %1222 = vmatpush1.msra.mxu0 0.0
      %1223 = vmatprep.subr.mxu0 0.0
      %1224 = vmatpush1.msra.mxu0 0.0
      %1225 = vmatprep.subr.mxu0 0.0
      %1226 = vmatpush1.msra.mxu0 0.0
      %1227 = vmatprep.mubr.f32.mxu0 0.0
      %1228 = vmatmul.mubr.f32.gmra.mrb[0].mxu0 %v1158
      %v1229 = vpop.f32.mrb[0].mxu0
      %v1230 = vadd.f32 0.0, %v1229
      %v1231 = vpop.f32.mrb[0].mxu0
      %1232 = vdwg.mxu0
      %v1234 = vsel %vm179, %v1151, 0
      %v1237 = vsel %vm183, %v1153, 0
      %1239 = vmatprep.subr.mxu0 0.0
      %1240 = vmatpush1.msra.mxu0 %v1152
      %1241 = vmatprep.subr.mxu0 0.0
      %1242 = vmatpush1.msra.mxu0 %v1237
      %1243 = vmatprep.subr.mxu0 0.0
      %1244 = vmatpush1.msra.mxu0 0.0
      %1245 = vmatprep.subr.mxu0 0.0
      %1246 = vmatpush1.msra.mxu0 0.0
      %1247 = vmatprep.subr.mxu0 0.0
      %1248 = vmatpush1.msra.mxu0 0.0
      %1249 = vmatprep.subr.mxu0 0.0
      %1250 = vmatpush1.msra.mxu0 0.0
      %1251 = vmatprep.subr.mxu0 0.0
      %1252 = vmatpush1.msra.mxu0 0.0
      %1253 = vmatprep.subr.mxu0 0.0
      %1254 = vmatpush1.msra.mxu0 0.0
      %1255 = vmatprep.subr.mxu0 0.0
      %1256 = vmatpush1.msra.mxu0 0.0
      %1257 = vmatprep.subr.mxu0 0.0
      %1258 = vmatpush1.msra.mxu0 0.0
      %1259 = vmatprep.subr.mxu0 0.0
      %1260 = vmatpush1.msra.mxu0 0.0
      %1261 = vmatprep.subr.mxu0 0.0
      %1262 = vmatpush1.msra.mxu0 0.0
      %1263 = vmatprep.subr.mxu0 0.0
      %1264 = vmatpush1.msra.mxu0 0.0
      %1265 = vmatprep.subr.mxu0 0.0
      %1266 = vmatpush1.msra.mxu0 0.0
      %1267 = vmatprep.subr.mxu0 0.0
      %1268 = vmatpush1.msra.mxu0 0.0
      %1269 = vmatprep.subr.mxu0 0.0
      %1270 = vmatpush1.msra.mxu0 0.0
      %1271 = vmatprep.subr.mxu0 0.0
      %1272 = vmatpush1.msra.mxu0 0.0
      %1273 = vmatprep.subr.mxu0 0.0
      %1274 = vmatpush1.msra.mxu0 0.0
      %1275 = vmatprep.subr.mxu0 0.0
      %1276 = vmatpush1.msra.mxu0 0.0
      %1277 = vmatprep.subr.mxu0 0.0
      %1278 = vmatpush1.msra.mxu0 0.0
      %1279 = vmatprep.subr.mxu0 0.0
      %1280 = vmatpush1.msra.mxu0 0.0
      %1281 = vmatprep.subr.mxu0 0.0
      %1282 = vmatpush1.msra.mxu0 0.0
      %1283 = vmatprep.subr.mxu0 0.0
      %1284 = vmatpush1.msra.mxu0 0.0
      %1285 = vmatprep.subr.mxu0 0.0
      %1286 = vmatpush1.msra.mxu0 0.0
      %1287 = vmatprep.subr.mxu0 0.0
      %1288 = vmatpush1.msra.mxu0 0.0
      %1289 = vmatprep.subr.mxu0 0.0
      %1290 = vmatpush1.msra.mxu0 0.0
      %1291 = vmatprep.subr.mxu0 0.0
      %1292 = vmatpush1.msra.mxu0 0.0
      %1293 = vmatprep.subr.mxu0 0.0
      %1294 = vmatpush1.msra.mxu0 0.0
      %1295 = vmatprep.subr.mxu0 0.0
      %1296 = vmatpush1.msra.mxu0 0.0
      %1297 = vmatprep.subr.mxu0 0.0
      %1298 = vmatpush1.msra.mxu0 0.0
      %1299 = vmatprep.subr.mxu0 0.0
      %1300 = vmatpush1.msra.mxu0 0.0
      %1301 = vmatprep.subr.mxu0 0.0
      %1302 = vmatpush1.msra.mxu0 0.0
      %1303 = vmatprep.mubr.f32.mxu0 0.0
      %1304 = vmatmul.mubr.f32.gmra.mrb[0].mxu0 %v1234
      %v1305 = vpop.f32.mrb[0].mxu0
      %v1306 = vadd.f32 %v1230, %v1305
      %v1307 = vpop.f32.mrb[0].mxu0
      %1308 = vdwg.mxu0
      %s1309 = scalar_lea.vmem %s165, 64
      %v1310 = vld [vmem:[%s1309] sm:$0xff]
      %v1311 = vld [vmem:[%s335] sm:$0xff]
      %v1312 = vld [vmem:[%s335 + $0x8] sm:$0xf]
      %v1314 = vsel %vm179, %v1310, 0
      %v1317 = vsel %vm183, %v1312, 0
      %1319 = vmatprep.subr.mxu0 0.0
      %1320 = vmatpush1.msra.mxu0 %v1311
      %1321 = vmatprep.subr.mxu0 0.0
      %1322 = vmatpush1.msra.mxu0 %v1317
      %1323 = vmatprep.subr.mxu0 0.0
      %1324 = vmatpush1.msra.mxu0 0.0
      %1325 = vmatprep.subr.mxu0 0.0
      %1326 = vmatpush1.msra.mxu0 0.0
      %1327 = vmatprep.subr.mxu0 0.0
      %1328 = vmatpush1.msra.mxu0 0.0
      %1329 = vmatprep.subr.mxu0 0.0
      %1330 = vmatpush1.msra.mxu0 0.0
      %1331 = vmatprep.subr.mxu0 0.0
      %1332 = vmatpush1.msra.mxu0 0.0
      %1333 = vmatprep.subr.mxu0 0.0
      %1334 = vmatpush1.msra.mxu0 0.0
      %1335 = vmatprep.subr.mxu0 0.0
      %1336 = vmatpush1.msra.mxu0 0.0
      %1337 = vmatprep.subr.mxu0 0.0
      %1338 = vmatpush1.msra.mxu0 0.0
      %1339 = vmatprep.subr.mxu0 0.0
      %1340 = vmatpush1.msra.mxu0 0.0
      %1341 = vmatprep.subr.mxu0 0.0
      %1342 = vmatpush1.msra.mxu0 0.0
      %1343 = vmatprep.subr.mxu0 0.0
      %1344 = vmatpush1.msra.mxu0 0.0
      %1345 = vmatprep.subr.mxu0 0.0
      %1346 = vmatpush1.msra.mxu0 0.0
      %1347 = vmatprep.subr.mxu0 0.0
      %1348 = vmatpush1.msra.mxu0 0.0
      %1349 = vmatprep.subr.mxu0 0.0
      %1350 = vmatpush1.msra.mxu0 0.0
      %1351 = vmatprep.subr.mxu0 0.0
      %1352 = vmatpush1.msra.mxu0 0.0
      %1353 = vmatprep.subr.mxu0 0.0
      %1354 = vmatpush1.msra.mxu0 0.0
      %1355 = vmatprep.subr.mxu0 0.0
      %1356 = vmatpush1.msra.mxu0 0.0
      %1357 = vmatprep.subr.mxu0 0.0
      %1358 = vmatpush1.msra.mxu0 0.0
      %1359 = vmatprep.subr.mxu0 0.0
      %1360 = vmatpush1.msra.mxu0 0.0
      %1361 = vmatprep.subr.mxu0 0.0
      %1362 = vmatpush1.msra.mxu0 0.0
      %1363 = vmatprep.subr.mxu0 0.0
      %1364 = vmatpush1.msra.mxu0 0.0
      %1365 = vmatprep.subr.mxu0 0.0
      %1366 = vmatpush1.msra.mxu0 0.0
      %1367 = vmatprep.subr.mxu0 0.0
      %1368 = vmatpush1.msra.mxu0 0.0
      %1369 = vmatprep.subr.mxu0 0.0
      %1370 = vmatpush1.msra.mxu0 0.0
      %1371 = vmatprep.subr.mxu0 0.0
      %1372 = vmatpush1.msra.mxu0 0.0
      %1373 = vmatprep.subr.mxu0 0.0
      %1374 = vmatpush1.msra.mxu0 0.0
      %1375 = vmatprep.subr.mxu0 0.0
      %1376 = vmatpush1.msra.mxu0 0.0
      %1377 = vmatprep.subr.mxu0 0.0
      %1378 = vmatpush1.msra.mxu0 0.0
      %1379 = vmatprep.subr.mxu0 0.0
      %1380 = vmatpush1.msra.mxu0 0.0
      %1381 = vmatprep.subr.mxu0 0.0
      %1382 = vmatpush1.msra.mxu0 0.0
      %1383 = vmatprep.mubr.f32.mxu0 0.0
      %1384 = vmatmul.mubr.f32.gmra.mrb[0].mxu0 %v1314
      %v1385 = vpop.f32.mrb[0].mxu0
      %v1386 = vadd.f32 0.0, %v1385
      %v1387 = vpop.f32.mrb[0].mxu0
      %1388 = vdwg.mxu0
      %v1389 = vadd.f32 %v1306, %v1386
      %v1390 = vld [vmem:[%s1309 + $0x1] sm:$0xff]
      %v1391 = vld [vmem:[%s416] sm:$0xff]
      %v1392 = vld [vmem:[%s416 + $0x8] sm:$0xf]
      %v1394 = vsel %vm179, %v1390, 0
      %v1397 = vsel %vm183, %v1392, 0
      %1399 = vmatprep.subr.mxu0 0.0
      %1400 = vmatpush1.msra.mxu0 %v1391
      %1401 = vmatprep.subr.mxu0 0.0
      %1402 = vmatpush1.msra.mxu0 %v1397
      %1403 = vmatprep.subr.mxu0 0.0
      %1404 = vmatpush1.msra.mxu0 0.0
      %1405 = vmatprep.subr.mxu0 0.0
      %1406 = vmatpush1.msra.mxu0 0.0
      %1407 = vmatprep.subr.mxu0 0.0
      %1408 = vmatpush1.msra.mxu0 0.0
      %1409 = vmatprep.subr.mxu0 0.0
      %1410 = vmatpush1.msra.mxu0 0.0
      %1411 = vmatprep.subr.mxu0 0.0
      %1412 = vmatpush1.msra.mxu0 0.0
      %1413 = vmatprep.subr.mxu0 0.0
      %1414 = vmatpush1.msra.mxu0 0.0
      %1415 = vmatprep.subr.mxu0 0.0
      %1416 = vmatpush1.msra.mxu0 0.0
      %1417 = vmatprep.subr.mxu0 0.0
      %1418 = vmatpush1.msra.mxu0 0.0
      %1419 = vmatprep.subr.mxu0 0.0
      %1420 = vmatpush1.msra.mxu0 0.0
      %1421 = vmatprep.subr.mxu0 0.0
      %1422 = vmatpush1.msra.mxu0 0.0
      %1423 = vmatprep.subr.mxu0 0.0
      %1424 = vmatpush1.msra.mxu0 0.0
      %1425 = vmatprep.subr.mxu0 0.0
      %1426 = vmatpush1.msra.mxu0 0.0
      %1427 = vmatprep.subr.mxu0 0.0
      %1428 = vmatpush1.msra.mxu0 0.0
      %1429 = vmatprep.subr.mxu0 0.0
      %1430 = vmatpush1.msra.mxu0 0.0
      %1431 = vmatprep.subr.mxu0 0.0
      %1432 = vmatpush1.msra.mxu0 0.0
      %1433 = vmatprep.subr.mxu0 0.0
      %1434 = vmatpush1.msra.mxu0 0.0
      %1435 = vmatprep.subr.mxu0 0.0
      %1436 = vmatpush1.msra.mxu0 0.0
      %1437 = vmatprep.subr.mxu0 0.0
      %1438 = vmatpush1.msra.mxu0 0.0
      %1439 = vmatprep.subr.mxu0 0.0
      %1440 = vmatpush1.msra.mxu0 0.0
      %1441 = vmatprep.subr.mxu0 0.0
      %1442 = vmatpush1.msra.mxu0 0.0
      %1443 = vmatprep.subr.mxu0 0.0
      %1444 = vmatpush1.msra.mxu0 0.0
      %1445 = vmatprep.subr.mxu0 0.0
      %1446 = vmatpush1.msra.mxu0 0.0
      %1447 = vmatprep.subr.mxu0 0.0
      %1448 = vmatpush1.msra.mxu0 0.0
      %1449 = vmatprep.subr.mxu0 0.0
      %1450 = vmatpush1.msra.mxu0 0.0
      %1451 = vmatprep.subr.mxu0 0.0
      %1452 = vmatpush1.msra.mxu0 0.0
      %1453 = vmatprep.subr.mxu0 0.0
      %1454 = vmatpush1.msra.mxu0 0.0
      %1455 = vmatprep.subr.mxu0 0.0
      %1456 = vmatpush1.msra.mxu0 0.0
      %1457 = vmatprep.subr.mxu0 0.0
      %1458 = vmatpush1.msra.mxu0 0.0
      %1459 = vmatprep.subr.mxu0 0.0
      %1460 = vmatpush1.msra.mxu0 0.0
      %1461 = vmatprep.subr.mxu0 0.0
      %1462 = vmatpush1.msra.mxu0 0.0
      %1463 = vmatprep.mubr.f32.mxu0 0.0
      %1464 = vmatmul.mubr.f32.gmra.mrb[0].mxu0 %v1394
      %v1465 = vpop.f32.mrb[0].mxu0
      %v1466 = vadd.f32 0.0, %v1465
      %v1467 = vpop.f32.mrb[0].mxu0
      %1468 = vdwg.mxu0
      %v1469 = vadd.f32 %v1389, %v1466
      %v1470 = vadd.f32 %v1469, %v500
      %v1471 = vmax.f32 %v1470, 0.0
      %s1472 = scalar_lea.vmem %s170, 24
      %1473 = vst [vmem:[%s1472] sm:$0xff] %v1471
      %v1474 = vld [vmem:[%s1309] sm:$0xff]
      %v1475 = vld [vmem:[%s1] sm:$0xff]
      %v1476 = vld [vmem:[%s1 + $0x8] sm:$0xf]
      %v1477 = vld [vmem:[%s1309 + $0x1] sm:$0xff]
      %v1478 = vld [vmem:[%s176] sm:$0xff]
      %v1479 = vld [vmem:[%s176 + $0x8] sm:$0xf]
      %v1481 = vsel %vm179, %v1477, 0
      %v1484 = vsel %vm183, %v1479, 0
      %1486 = vmatprep.subr.mxu0 0.0
      %1487 = vmatpush1.msra.mxu0 %v1478
      %1488 = vmatprep.subr.mxu0 0.0
      %1489 = vmatpush1.msra.mxu0 %v1484
      %1490 = vmatprep.subr.mxu0 0.0
      %1491 = vmatpush1.msra.mxu0 0.0
      %1492 = vmatprep.subr.mxu0 0.0
      %1493 = vmatpush1.msra.mxu0 0.0
      %1494 = vmatprep.subr.mxu0 0.0
      %1495 = vmatpush1.msra.mxu0 0.0
      %1496 = vmatprep.subr.mxu0 0.0
      %1497 = vmatpush1.msra.mxu0 0.0
      %1498 = vmatprep.subr.mxu0 0.0
      %1499 = vmatpush1.msra.mxu0 0.0
      %1500 = vmatprep.subr.mxu0 0.0
      %1501 = vmatpush1.msra.mxu0 0.0
      %1502 = vmatprep.subr.mxu0 0.0
      %1503 = vmatpush1.msra.mxu0 0.0
      %1504 = vmatprep.subr.mxu0 0.0
      %1505 = vmatpush1.msra.mxu0 0.0
      %1506 = vmatprep.subr.mxu0 0.0
      %1507 = vmatpush1.msra.mxu0 0.0
      %1508 = vmatprep.subr.mxu0 0.0
      %1509 = vmatpush1.msra.mxu0 0.0
      %1510 = vmatprep.subr.mxu0 0.0
      %1511 = vmatpush1.msra.mxu0 0.0
      %1512 = vmatprep.subr.mxu0 0.0
      %1513 = vmatpush1.msra.mxu0 0.0
      %1514 = vmatprep.subr.mxu0 0.0
      %1515 = vmatpush1.msra.mxu0 0.0
      %1516 = vmatprep.subr.mxu0 0.0
      %1517 = vmatpush1.msra.mxu0 0.0
      %1518 = vmatprep.subr.mxu0 0.0
      %1519 = vmatpush1.msra.mxu0 0.0
      %1520 = vmatprep.subr.mxu0 0.0
      %1521 = vmatpush1.msra.mxu0 0.0
      %1522 = vmatprep.subr.mxu0 0.0
      %1523 = vmatpush1.msra.mxu0 0.0
      %1524 = vmatprep.subr.mxu0 0.0
      %1525 = vmatpush1.msra.mxu0 0.0
      %1526 = vmatprep.subr.mxu0 0.0
      %1527 = vmatpush1.msra.mxu0 0.0
      %1528 = vmatprep.subr.mxu0 0.0
      %1529 = vmatpush1.msra.mxu0 0.0
      %1530 = vmatprep.subr.mxu0 0.0
      %1531 = vmatpush1.msra.mxu0 0.0
      %1532 = vmatprep.subr.mxu0 0.0
      %1533 = vmatpush1.msra.mxu0 0.0
      %1534 = vmatprep.subr.mxu0 0.0
      %1535 = vmatpush1.msra.mxu0 0.0
      %1536 = vmatprep.subr.mxu0 0.0
      %1537 = vmatpush1.msra.mxu0 0.0
      %1538 = vmatprep.subr.mxu0 0.0
      %1539 = vmatpush1.msra.mxu0 0.0
      %1540 = vmatprep.subr.mxu0 0.0
      %1541 = vmatpush1.msra.mxu0 0.0
      %1542 = vmatprep.subr.mxu0 0.0
      %1543 = vmatpush1.msra.mxu0 0.0
      %1544 = vmatprep.subr.mxu0 0.0
      %1545 = vmatpush1.msra.mxu0 0.0
      %1546 = vmatprep.subr.mxu0 0.0
      %1547 = vmatpush1.msra.mxu0 0.0
      %1548 = vmatprep.subr.mxu0 0.0
      %1549 = vmatpush1.msra.mxu0 0.0
      %1550 = vmatprep.mubr.f32.mxu0 0.0
      %1551 = vmatmul.mubr.f32.gmra.mrb[0].mxu0 %v1481
      %v1552 = vpop.f32.mrb[0].mxu0
      %v1553 = vadd.f32 0.0, %v1552
      %v1554 = vpop.f32.mrb[0].mxu0
      %1555 = vdwg.mxu0
      %v1557 = vsel %vm179, %v1474, 0
      %v1560 = vsel %vm183, %v1476, 0
      %1562 = vmatprep.subr.mxu0 0.0
      %1563 = vmatpush1.msra.mxu0 %v1475
      %1564 = vmatprep.subr.mxu0 0.0
      %1565 = vmatpush1.msra.mxu0 %v1560
      %1566 = vmatprep.subr.mxu0 0.0
      %1567 = vmatpush1.msra.mxu0 0.0
      %1568 = vmatprep.subr.mxu0 0.0
      %1569 = vmatpush1.msra.mxu0 0.0
      %1570 = vmatprep.subr.mxu0 0.0
      %1571 = vmatpush1.msra.mxu0 0.0
      %1572 = vmatprep.subr.mxu0 0.0
      %1573 = vmatpush1.msra.mxu0 0.0
      %1574 = vmatprep.subr.mxu0 0.0
      %1575 = vmatpush1.msra.mxu0 0.0
      %1576 = vmatprep.subr.mxu0 0.0
      %1577 = vmatpush1.msra.mxu0 0.0
      %1578 = vmatprep.subr.mxu0 0.0
      %1579 = vmatpush1.msra.mxu0 0.0
      %1580 = vmatprep.subr.mxu0 0.0
      %1581 = vmatpush1.msra.mxu0 0.0
      %1582 = vmatprep.subr.mxu0 0.0
      %1583 = vmatpush1.msra.mxu0 0.0
      %1584 = vmatprep.subr.mxu0 0.0
      %1585 = vmatpush1.msra.mxu0 0.0
      %1586 = vmatprep.subr.mxu0 0.0
      %1587 = vmatpush1.msra.mxu0 0.0
      %1588 = vmatprep.subr.mxu0 0.0
      %1589 = vmatpush1.msra.mxu0 0.0
      %1590 = vmatprep.subr.mxu0 0.0
      %1591 = vmatpush1.msra.mxu0 0.0
      %1592 = vmatprep.subr.mxu0 0.0
      %1593 = vmatpush1.msra.mxu0 0.0
      %1594 = vmatprep.subr.mxu0 0.0
      %1595 = vmatpush1.msra.mxu0 0.0
      %1596 = vmatprep.subr.mxu0 0.0
      %1597 = vmatpush1.msra.mxu0 0.0
      %1598 = vmatprep.subr.mxu0 0.0
      %1599 = vmatpush1.msra.mxu0 0.0
      %1600 = vmatprep.subr.mxu0 0.0
      %1601 = vmatpush1.msra.mxu0 0.0
      %1602 = vmatprep.subr.mxu0 0.0
      %1603 = vmatpush1.msra.mxu0 0.0
      %1604 = vmatprep.subr.mxu0 0.0
      %1605 = vmatpush1.msra.mxu0 0.0
      %1606 = vmatprep.subr.mxu0 0.0
      %1607 = vmatpush1.msra.mxu0 0.0
      %1608 = vmatprep.subr.mxu0 0.0
      %1609 = vmatpush1.msra.mxu0 0.0
      %1610 = vmatprep.subr.mxu0 0.0
      %1611 = vmatpush1.msra.mxu0 0.0
      %1612 = vmatprep.subr.mxu0 0.0
      %1613 = vmatpush1.msra.mxu0 0.0
      %1614 = vmatprep.subr.mxu0 0.0
      %1615 = vmatpush1.msra.mxu0 0.0
      %1616 = vmatprep.subr.mxu0 0.0
      %1617 = vmatpush1.msra.mxu0 0.0
      %1618 = vmatprep.subr.mxu0 0.0
      %1619 = vmatpush1.msra.mxu0 0.0
      %1620 = vmatprep.subr.mxu0 0.0
      %1621 = vmatpush1.msra.mxu0 0.0
      %1622 = vmatprep.subr.mxu0 0.0
      %1623 = vmatpush1.msra.mxu0 0.0
      %1624 = vmatprep.subr.mxu0 0.0
      %1625 = vmatpush1.msra.mxu0 0.0
      %1626 = vmatprep.mubr.f32.mxu0 0.0
      %1627 = vmatmul.mubr.f32.gmra.mrb[0].mxu0 %v1557
      %v1628 = vpop.f32.mrb[0].mxu0
      %v1629 = vadd.f32 %v1553, %v1628
      %v1630 = vpop.f32.mrb[0].mxu0
      %1631 = vdwg.mxu0
      %s1632 = scalar_lea.vmem %s165, 80
      %v1633 = vld [vmem:[%s1632] sm:$0xff]
      %v1634 = vld [vmem:[%s335] sm:$0xff]
      %v1635 = vld [vmem:[%s335 + $0x8] sm:$0xf]
      %v1637 = vsel %vm179, %v1633, 0
      %v1640 = vsel %vm183, %v1635, 0
      %1642 = vmatprep.subr.mxu0 0.0
      %1643 = vmatpush1.msra.mxu0 %v1634
      %1644 = vmatprep.subr.mxu0 0.0
      %1645 = vmatpush1.msra.mxu0 %v1640
      %1646 = vmatprep.subr.mxu0 0.0
      %1647 = vmatpush1.msra.mxu0 0.0
      %1648 = vmatprep.subr.mxu0 0.0
      %1649 = vmatpush1.msra.mxu0 0.0
      %1650 = vmatprep.subr.mxu0 0.0
      %1651 = vmatpush1.msra.mxu0 0.0
      %1652 = vmatprep.subr.mxu0 0.0
      %1653 = vmatpush1.msra.mxu0 0.0
      %1654 = vmatprep.subr.mxu0 0.0
      %1655 = vmatpush1.msra.mxu0 0.0
      %1656 = vmatprep.subr.mxu0 0.0
      %1657 = vmatpush1.msra.mxu0 0.0
      %1658 = vmatprep.subr.mxu0 0.0
      %1659 = vmatpush1.msra.mxu0 0.0
      %1660 = vmatprep.subr.mxu0 0.0
      %1661 = vmatpush1.msra.mxu0 0.0
      %1662 = vmatprep.subr.mxu0 0.0
      %1663 = vmatpush1.msra.mxu0 0.0
      %1664 = vmatprep.subr.mxu0 0.0
      %1665 = vmatpush1.msra.mxu0 0.0
      %1666 = vmatprep.subr.mxu0 0.0
      %1667 = vmatpush1.msra.mxu0 0.0
      %1668 = vmatprep.subr.mxu0 0.0
      %1669 = vmatpush1.msra.mxu0 0.0
      %1670 = vmatprep.subr.mxu0 0.0
      %1671 = vmatpush1.msra.mxu0 0.0
      %1672 = vmatprep.subr.mxu0 0.0
      %1673 = vmatpush1.msra.mxu0 0.0
      %1674 = vmatprep.subr.mxu0 0.0
      %1675 = vmatpush1.msra.mxu0 0.0
      %1676 = vmatprep.subr.mxu0 0.0
      %1677 = vmatpush1.msra.mxu0 0.0
      %1678 = vmatprep.subr.mxu0 0.0
      %1679 = vmatpush1.msra.mxu0 0.0
      %1680 = vmatprep.subr.mxu0 0.0
      %1681 = vmatpush1.msra.mxu0 0.0
      %1682 = vmatprep.subr.mxu0 0.0
      %1683 = vmatpush1.msra.mxu0 0.0
      %1684 = vmatprep.subr.mxu0 0.0
      %1685 = vmatpush1.msra.mxu0 0.0
      %1686 = vmatprep.subr.mxu0 0.0
      %1687 = vmatpush1.msra.mxu0 0.0
      %1688 = vmatprep.subr.mxu0 0.0
      %1689 = vmatpush1.msra.mxu0 0.0
      %1690 = vmatprep.subr.mxu0 0.0
      %1691 = vmatpush1.msra.mxu0 0.0
      %1692 = vmatprep.subr.mxu0 0.0
      %1693 = vmatpush1.msra.mxu0 0.0
      %1694 = vmatprep.subr.mxu0 0.0
      %1695 = vmatpush1.msra.mxu0 0.0
      %1696 = vmatprep.subr.mxu0 0.0
      %1697 = vmatpush1.msra.mxu0 0.0
      %1698 = vmatprep.subr.mxu0 0.0
      %1699 = vmatpush1.msra.mxu0 0.0
      %1700 = vmatprep.subr.mxu0 0.0
      %1701 = vmatpush1.msra.mxu0 0.0
      %1702 = vmatprep.subr.mxu0 0.0
      %1703 = vmatpush1.msra.mxu0 0.0
      %1704 = vmatprep.subr.mxu0 0.0
      %1705 = vmatpush1.msra.mxu0 0.0
      %1706 = vmatprep.mubr.f32.mxu0 0.0
      %1707 = vmatmul.mubr.f32.gmra.mrb[0].mxu0 %v1637
      %v1708 = vpop.f32.mrb[0].mxu0
      %v1709 = vadd.f32 0.0, %v1708
      %v1710 = vpop.f32.mrb[0].mxu0
      %1711 = vdwg.mxu0
      %v1712 = vadd.f32 %v1629, %v1709
      %v1713 = vld [vmem:[%s1632 + $0x1] sm:$0xff]
      %v1714 = vld [vmem:[%s416] sm:$0xff]
      %v1715 = vld [vmem:[%s416 + $0x8] sm:$0xf]
      %v1717 = vsel %vm179, %v1713, 0
      %v1720 = vsel %vm183, %v1715, 0
      %1722 = vmatprep.subr.mxu0 0.0
      %1723 = vmatpush1.msra.mxu0 %v1714
      %1724 = vmatprep.subr.mxu0 0.0
      %1725 = vmatpush1.msra.mxu0 %v1720
      %1726 = vmatprep.subr.mxu0 0.0
      %1727 = vmatpush1.msra.mxu0 0.0
      %1728 = vmatprep.subr.mxu0 0.0
      %1729 = vmatpush1.msra.mxu0 0.0
      %1730 = vmatprep.subr.mxu0 0.0
      %1731 = vmatpush1.msra.mxu0 0.0
      %1732 = vmatprep.subr.mxu0 0.0
      %1733 = vmatpush1.msra.mxu0 0.0
      %1734 = vmatprep.subr.mxu0 0.0
      %1735 = vmatpush1.msra.mxu0 0.0
      %1736 = vmatprep.subr.mxu0 0.0
      %1737 = vmatpush1.msra.mxu0 0.0
      %1738 = vmatprep.subr.mxu0 0.0
      %1739 = vmatpush1.msra.mxu0 0.0
      %1740 = vmatprep.subr.mxu0 0.0
      %1741 = vmatpush1.msra.mxu0 0.0
      %1742 = vmatprep.subr.mxu0 0.0
      %1743 = vmatpush1.msra.mxu0 0.0
      %1744 = vmatprep.subr.mxu0 0.0
      %1745 = vmatpush1.msra.mxu0 0.0
      %1746 = vmatprep.subr.mxu0 0.0
      %1747 = vmatpush1.msra.mxu0 0.0
      %1748 = vmatprep.subr.mxu0 0.0
      %1749 = vmatpush1.msra.mxu0 0.0
      %1750 = vmatprep.subr.mxu0 0.0
      %1751 = vmatpush1.msra.mxu0 0.0
      %1752 = vmatprep.subr.mxu0 0.0
      %1753 = vmatpush1.msra.mxu0 0.0
      %1754 = vmatprep.subr.mxu0 0.0
      %1755 = vmatpush1.msra.mxu0 0.0
      %1756 = vmatprep.subr.mxu0 0.0
      %1757 = vmatpush1.msra.mxu0 0.0
      %1758 = vmatprep.subr.mxu0 0.0
      %1759 = vmatpush1.msra.mxu0 0.0
      %1760 = vmatprep.subr.mxu0 0.0
      %1761 = vmatpush1.msra.mxu0 0.0
      %1762 = vmatprep.subr.mxu0 0.0
      %1763 = vmatpush1.msra.mxu0 0.0
      %1764 = vmatprep.subr.mxu0 0.0
      %1765 = vmatpush1.msra.mxu0 0.0
      %1766 = vmatprep.subr.mxu0 0.0
      %1767 = vmatpush1.msra.mxu0 0.0
      %1768 = vmatprep.subr.mxu0 0.0
      %1769 = vmatpush1.msra.mxu0 0.0
      %1770 = vmatprep.subr.mxu0 0.0
      %1771 = vmatpush1.msra.mxu0 0.0
      %1772 = vmatprep.subr.mxu0 0.0
      %1773 = vmatpush1.msra.mxu0 0.0
      %1774 = vmatprep.subr.mxu0 0.0
      %1775 = vmatpush1.msra.mxu0 0.0
      %1776 = vmatprep.subr.mxu0 0.0
      %1777 = vmatpush1.msra.mxu0 0.0
      %1778 = vmatprep.subr.mxu0 0.0
      %1779 = vmatpush1.msra.mxu0 0.0
      %1780 = vmatprep.subr.mxu0 0.0
      %1781 = vmatpush1.msra.mxu0 0.0
      %1782 = vmatprep.subr.mxu0 0.0
      %1783 = vmatpush1.msra.mxu0 0.0
      %1784 = vmatprep.subr.mxu0 0.0
      %1785 = vmatpush1.msra.mxu0 0.0
      %1786 = vmatprep.mubr.f32.mxu0 0.0
      %1787 = vmatmul.mubr.f32.gmra.mrb[0].mxu0 %v1717
      %v1788 = vpop.f32.mrb[0].mxu0
      %v1789 = vadd.f32 0.0, %v1788
      %v1790 = vpop.f32.mrb[0].mxu0
      %1791 = vdwg.mxu0
      %v1792 = vadd.f32 %v1712, %v1789
      %v1793 = vadd.f32 %v1792, %v500
      %v1794 = vmax.f32 %v1793, 0.0
      %s1795 = scalar_lea.vmem %s170, 32
      %1796 = vst [vmem:[%s1795] sm:$0xff] %v1794
      %v1797 = vld [vmem:[%s1632] sm:$0xff]
      %v1798 = vld [vmem:[%s1] sm:$0xff]
      %v1799 = vld [vmem:[%s1 + $0x8] sm:$0xf]
      %v1800 = vld [vmem:[%s1632 + $0x1] sm:$0xff]
      %v1801 = vld [vmem:[%s176] sm:$0xff]
      %v1802 = vld [vmem:[%s176 + $0x8] sm:$0xf]
      %v1804 = vsel %vm179, %v1800, 0
      %v1807 = vsel %vm183, %v1802, 0
      %1809 = vmatprep.subr.mxu0 0.0
      %1810 = vmatpush1.msra.mxu0 %v1801
      %1811 = vmatprep.subr.mxu0 0.0
      %1812 = vmatpush1.msra.mxu0 %v1807
      %1813 = vmatprep.subr.mxu0 0.0
      %1814 = vmatpush1.msra.mxu0 0.0
      %1815 = vmatprep.subr.mxu0 0.0
      %1816 = vmatpush1.msra.mxu0 0.0
      %1817 = vmatprep.subr.mxu0 0.0
      %1818 = vmatpush1.msra.mxu0 0.0
      %1819 = vmatprep.subr.mxu0 0.0
      %1820 = vmatpush1.msra.mxu0 0.0
      %1821 = vmatprep.subr.mxu0 0.0
      %1822 = vmatpush1.msra.mxu0 0.0
      %1823 = vmatprep.subr.mxu0 0.0
      %1824 = vmatpush1.msra.mxu0 0.0
      %1825 = vmatprep.subr.mxu0 0.0
      %1826 = vmatpush1.msra.mxu0 0.0
      %1827 = vmatprep.subr.mxu0 0.0
      %1828 = vmatpush1.msra.mxu0 0.0
      %1829 = vmatprep.subr.mxu0 0.0
      %1830 = vmatpush1.msra.mxu0 0.0
      %1831 = vmatprep.subr.mxu0 0.0
      %1832 = vmatpush1.msra.mxu0 0.0
      %1833 = vmatprep.subr.mxu0 0.0
      %1834 = vmatpush1.msra.mxu0 0.0
      %1835 = vmatprep.subr.mxu0 0.0
      %1836 = vmatpush1.msra.mxu0 0.0
      %1837 = vmatprep.subr.mxu0 0.0
      %1838 = vmatpush1.msra.mxu0 0.0
      %1839 = vmatprep.subr.mxu0 0.0
      %1840 = vmatpush1.msra.mxu0 0.0
      %1841 = vmatprep.subr.mxu0 0.0
      %1842 = vmatpush1.msra.mxu0 0.0
      %1843 = vmatprep.subr.mxu0 0.0
      %1844 = vmatpush1.msra.mxu0 0.0
      %1845 = vmatprep.subr.mxu0 0.0
      %1846 = vmatpush1.msra.mxu0 0.0
      %1847 = vmatprep.subr.mxu0 0.0
      %1848 = vmatpush1.msra.mxu0 0.0
      %1849 = vmatprep.subr.mxu0 0.0
      %1850 = vmatpush1.msra.mxu0 0.0
      %1851 = vmatprep.subr.mxu0 0.0
      %1852 = vmatpush1.msra.mxu0 0.0
      %1853 = vmatprep.subr.mxu0 0.0
      %1854 = vmatpush1.msra.mxu0 0.0
      %1855 = vmatprep.subr.mxu0 0.0
      %1856 = vmatpush1.msra.mxu0 0.0
      %1857 = vmatprep.subr.mxu0 0.0
      %1858 = vmatpush1.msra.mxu0 0.0
      %1859 = vmatprep.subr.mxu0 0.0
      %1860 = vmatpush1.msra.mxu0 0.0
      %1861 = vmatprep.subr.mxu0 0.0
      %1862 = vmatpush1.msra.mxu0 0.0
      %1863 = vmatprep.subr.mxu0 0.0
      %1864 = vmatpush1.msra.mxu0 0.0
      %1865 = vmatprep.subr.mxu0 0.0
      %1866 = vmatpush1.msra.mxu0 0.0
      %1867 = vmatprep.subr.mxu0 0.0
      %1868 = vmatpush1.msra.mxu0 0.0
      %1869 = vmatprep.subr.mxu0 0.0
      %1870 = vmatpush1.msra.mxu0 0.0
      %1871 = vmatprep.subr.mxu0 0.0
      %1872 = vmatpush1.msra.mxu0 0.0
      %1873 = vmatprep.mubr.f32.mxu0 0.0
      %1874 = vmatmul.mubr.f32.gmra.mrb[0].mxu0 %v1804
      %v1875 = vpop.f32.mrb[0].mxu0
      %v1876 = vadd.f32 0.0, %v1875
      %v1877 = vpop.f32.mrb[0].mxu0
      %1878 = vdwg.mxu0
      %v1880 = vsel %vm179, %v1797, 0
      %v1883 = vsel %vm183, %v1799, 0
      %1885 = vmatprep.subr.mxu0 0.0
      %1886 = vmatpush1.msra.mxu0 %v1798
      %1887 = vmatprep.subr.mxu0 0.0
      %1888 = vmatpush1.msra.mxu0 %v1883
      %1889 = vmatprep.subr.mxu0 0.0
      %1890 = vmatpush1.msra.mxu0 0.0
      %1891 = vmatprep.subr.mxu0 0.0
      %1892 = vmatpush1.msra.mxu0 0.0
      %1893 = vmatprep.subr.mxu0 0.0
      %1894 = vmatpush1.msra.mxu0 0.0
      %1895 = vmatprep.subr.mxu0 0.0
      %1896 = vmatpush1.msra.mxu0 0.0
      %1897 = vmatprep.subr.mxu0 0.0
      %1898 = vmatpush1.msra.mxu0 0.0
      %1899 = vmatprep.subr.mxu0 0.0
      %1900 = vmatpush1.msra.mxu0 0.0
      %1901 = vmatprep.subr.mxu0 0.0
      %1902 = vmatpush1.msra.mxu0 0.0
      %1903 = vmatprep.subr.mxu0 0.0
      %1904 = vmatpush1.msra.mxu0 0.0
      %1905 = vmatprep.subr.mxu0 0.0
      %1906 = vmatpush1.msra.mxu0 0.0
      %1907 = vmatprep.subr.mxu0 0.0
      %1908 = vmatpush1.msra.mxu0 0.0
      %1909 = vmatprep.subr.mxu0 0.0
      %1910 = vmatpush1.msra.mxu0 0.0
      %1911 = vmatprep.subr.mxu0 0.0
      %1912 = vmatpush1.msra.mxu0 0.0
      %1913 = vmatprep.subr.mxu0 0.0
      %1914 = vmatpush1.msra.mxu0 0.0
      %1915 = vmatprep.subr.mxu0 0.0
      %1916 = vmatpush1.msra.mxu0 0.0
      %1917 = vmatprep.subr.mxu0 0.0
      %1918 = vmatpush1.msra.mxu0 0.0
      %1919 = vmatprep.subr.mxu0 0.0
      %1920 = vmatpush1.msra.mxu0 0.0
      %1921 = vmatprep.subr.mxu0 0.0
      %1922 = vmatpush1.msra.mxu0 0.0
      %1923 = vmatprep.subr.mxu0 0.0
      %1924 = vmatpush1.msra.mxu0 0.0
      %1925 = vmatprep.subr.mxu0 0.0
      %1926 = vmatpush1.msra.mxu0 0.0
      %1927 = vmatprep.subr.mxu0 0.0
      %1928 = vmatpush1.msra.mxu0 0.0
      %1929 = vmatprep.subr.mxu0 0.0
      %1930 = vmatpush1.msra.mxu0 0.0
      %1931 = vmatprep.subr.mxu0 0.0
      %1932 = vmatpush1.msra.mxu0 0.0
      %1933 = vmatprep.subr.mxu0 0.0
      %1934 = vmatpush1.msra.mxu0 0.0
      %1935 = vmatprep.subr.mxu0 0.0
      %1936 = vmatpush1.msra.mxu0 0.0
      %1937 = vmatprep.subr.mxu0 0.0
      %1938 = vmatpush1.msra.mxu0 0.0
      %1939 = vmatprep.subr.mxu0 0.0
      %1940 = vmatpush1.msra.mxu0 0.0
      %1941 = vmatprep.subr.mxu0 0.0
      %1942 = vmatpush1.msra.mxu0 0.0
      %1943 = vmatprep.subr.mxu0 0.0
      %1944 = vmatpush1.msra.mxu0 0.0
      %1945 = vmatprep.subr.mxu0 0.0
      %1946 = vmatpush1.msra.mxu0 0.0
      %1947 = vmatprep.subr.mxu0 0.0
      %1948 = vmatpush1.msra.mxu0 0.0
      %1949 = vmatprep.mubr.f32.mxu0 0.0
      %1950 = vmatmul.mubr.f32.gmra.mrb[0].mxu0 %v1880
      %v1951 = vpop.f32.mrb[0].mxu0
      %v1952 = vadd.f32 %v1876, %v1951
      %v1953 = vpop.f32.mrb[0].mxu0
      %1954 = vdwg.mxu0
      %s1955 = scalar_lea.vmem %s165, 96
      %v1956 = vld [vmem:[%s1955] sm:$0xff]
      %v1957 = vld [vmem:[%s335] sm:$0xff]
      %v1958 = vld [vmem:[%s335 + $0x8] sm:$0xf]
      %v1960 = vsel %vm179, %v1956, 0
      %v1963 = vsel %vm183, %v1958, 0
      %1965 = vmatprep.subr.mxu0 0.0
      %1966 = vmatpush1.msra.mxu0 %v1957
      %1967 = vmatprep.subr.mxu0 0.0
      %1968 = vmatpush1.msra.mxu0 %v1963
      %1969 = vmatprep.subr.mxu0 0.0
      %1970 = vmatpush1.msra.mxu0 0.0
      %1971 = vmatprep.subr.mxu0 0.0
      %1972 = vmatpush1.msra.mxu0 0.0
      %1973 = vmatprep.subr.mxu0 0.0
      %1974 = vmatpush1.msra.mxu0 0.0
      %1975 = vmatprep.subr.mxu0 0.0
      %1976 = vmatpush1.msra.mxu0 0.0
      %1977 = vmatprep.subr.mxu0 0.0
      %1978 = vmatpush1.msra.mxu0 0.0
      %1979 = vmatprep.subr.mxu0 0.0
      %1980 = vmatpush1.msra.mxu0 0.0
      %1981 = vmatprep.subr.mxu0 0.0
      %1982 = vmatpush1.msra.mxu0 0.0
      %1983 = vmatprep.subr.mxu0 0.0
      %1984 = vmatpush1.msra.mxu0 0.0
      %1985 = vmatprep.subr.mxu0 0.0
      %1986 = vmatpush1.msra.mxu0 0.0
      %1987 = vmatprep.subr.mxu0 0.0
      %1988 = vmatpush1.msra.mxu0 0.0
      %1989 = vmatprep.subr.mxu0 0.0
      %1990 = vmatpush1.msra.mxu0 0.0
      %1991 = vmatprep.subr.mxu0 0.0
      %1992 = vmatpush1.msra.mxu0 0.0
      %1993 = vmatprep.subr.mxu0 0.0
      %1994 = vmatpush1.msra.mxu0 0.0
      %1995 = vmatprep.subr.mxu0 0.0
      %1996 = vmatpush1.msra.mxu0 0.0
      %1997 = vmatprep.subr.mxu0 0.0
      %1998 = vmatpush1.msra.mxu0 0.0
      %1999 = vmatprep.subr.mxu0 0.0
      %2000 = vmatpush1.msra.mxu0 0.0
      %2001 = vmatprep.subr.mxu0 0.0
      %2002 = vmatpush1.msra.mxu0 0.0
      %2003 = vmatprep.subr.mxu0 0.0
      %2004 = vmatpush1.msra.mxu0 0.0
      %2005 = vmatprep.subr.mxu0 0.0
      %2006 = vmatpush1.msra.mxu0 0.0
      %2007 = vmatprep.subr.mxu0 0.0
      %2008 = vmatpush1.msra.mxu0 0.0
      %2009 = vmatprep.subr.mxu0 0.0
      %2010 = vmatpush1.msra.mxu0 0.0
      %2011 = vmatprep.subr.mxu0 0.0
      %2012 = vmatpush1.msra.mxu0 0.0
      %2013 = vmatprep.subr.mxu0 0.0
      %2014 = vmatpush1.msra.mxu0 0.0
      %2015 = vmatprep.subr.mxu0 0.0
      %2016 = vmatpush1.msra.mxu0 0.0
      %2017 = vmatprep.subr.mxu0 0.0
      %2018 = vmatpush1.msra.mxu0 0.0
      %2019 = vmatprep.subr.mxu0 0.0
      %2020 = vmatpush1.msra.mxu0 0.0
      %2021 = vmatprep.subr.mxu0 0.0
      %2022 = vmatpush1.msra.mxu0 0.0
      %2023 = vmatprep.subr.mxu0 0.0
      %2024 = vmatpush1.msra.mxu0 0.0
      %2025 = vmatprep.subr.mxu0 0.0
      %2026 = vmatpush1.msra.mxu0 0.0
      %2027 = vmatprep.subr.mxu0 0.0
      %2028 = vmatpush1.msra.mxu0 0.0
      %2029 = vmatprep.mubr.f32.mxu0 0.0
      %2030 = vmatmul.mubr.f32.gmra.mrb[0].mxu0 %v1960
      %v2031 = vpop.f32.mrb[0].mxu0
      %v2032 = vadd.f32 0.0, %v2031
      %v2033 = vpop.f32.mrb[0].mxu0
      %2034 = vdwg.mxu0
      %v2035 = vadd.f32 %v1952, %v2032
      %v2036 = vld [vmem:[%s1955 + $0x1] sm:$0xff]
      %v2037 = vld [vmem:[%s416] sm:$0xff]
      %v2038 = vld [vmem:[%s416 + $0x8] sm:$0xf]
      %v2040 = vsel %vm179, %v2036, 0
      %v2043 = vsel %vm183, %v2038, 0
      %2045 = vmatprep.subr.mxu0 0.0
      %2046 = vmatpush1.msra.mxu0 %v2037
      %2047 = vmatprep.subr.mxu0 0.0
      %2048 = vmatpush1.msra.mxu0 %v2043
      %2049 = vmatprep.subr.mxu0 0.0
      %2050 = vmatpush1.msra.mxu0 0.0
      %2051 = vmatprep.subr.mxu0 0.0
      %2052 = vmatpush1.msra.mxu0 0.0
      %2053 = vmatprep.subr.mxu0 0.0
      %2054 = vmatpush1.msra.mxu0 0.0
      %2055 = vmatprep.subr.mxu0 0.0
      %2056 = vmatpush1.msra.mxu0 0.0
      %2057 = vmatprep.subr.mxu0 0.0
      %2058 = vmatpush1.msra.mxu0 0.0
      %2059 = vmatprep.subr.mxu0 0.0
      %2060 = vmatpush1.msra.mxu0 0.0
      %2061 = vmatprep.subr.mxu0 0.0
      %2062 = vmatpush1.msra.mxu0 0.0
      %2063 = vmatprep.subr.mxu0 0.0
      %2064 = vmatpush1.msra.mxu0 0.0
      %2065 = vmatprep.subr.mxu0 0.0
      %2066 = vmatpush1.msra.mxu0 0.0
      %2067 = vmatprep.subr.mxu0 0.0
      %2068 = vmatpush1.msra.mxu0 0.0
      %2069 = vmatprep.subr.mxu0 0.0
      %2070 = vmatpush1.msra.mxu0 0.0
      %2071 = vmatprep.subr.mxu0 0.0
      %2072 = vmatpush1.msra.mxu0 0.0
      %2073 = vmatprep.subr.mxu0 0.0
      %2074 = vmatpush1.msra.mxu0 0.0
      %2075 = vmatprep.subr.mxu0 0.0
      %2076 = vmatpush1.msra.mxu0 0.0
      %2077 = vmatprep.subr.mxu0 0.0
      %2078 = vmatpush1.msra.mxu0 0.0
      %2079 = vmatprep.subr.mxu0 0.0
      %2080 = vmatpush1.msra.mxu0 0.0
      %2081 = vmatprep.subr.mxu0 0.0
      %2082 = vmatpush1.msra.mxu0 0.0
      %2083 = vmatprep.subr.mxu0 0.0
      %2084 = vmatpush1.msra.mxu0 0.0
      %2085 = vmatprep.subr.mxu0 0.0
      %2086 = vmatpush1.msra.mxu0 0.0
      %2087 = vmatprep.subr.mxu0 0.0
      %2088 = vmatpush1.msra.mxu0 0.0
      %2089 = vmatprep.subr.mxu0 0.0
      %2090 = vmatpush1.msra.mxu0 0.0
      %2091 = vmatprep.subr.mxu0 0.0
      %2092 = vmatpush1.msra.mxu0 0.0
      %2093 = vmatprep.subr.mxu0 0.0
      %2094 = vmatpush1.msra.mxu0 0.0
      %2095 = vmatprep.subr.mxu0 0.0
      %2096 = vmatpush1.msra.mxu0 0.0
      %2097 = vmatprep.subr.mxu0 0.0
      %2098 = vmatpush1.msra.mxu0 0.0
      %2099 = vmatprep.subr.mxu0 0.0
      %2100 = vmatpush1.msra.mxu0 0.0
      %2101 = vmatprep.subr.mxu0 0.0
      %2102 = vmatpush1.msra.mxu0 0.0
      %2103 = vmatprep.subr.mxu0 0.0
      %2104 = vmatpush1.msra.mxu0 0.0
      %2105 = vmatprep.subr.mxu0 0.0
      %2106 = vmatpush1.msra.mxu0 0.0
      %2107 = vmatprep.subr.mxu0 0.0
      %2108 = vmatpush1.msra.mxu0 0.0
      %2109 = vmatprep.mubr.f32.mxu0 0.0
      %2110 = vmatmul.mubr.f32.gmra.mrb[0].mxu0 %v2040
      %v2111 = vpop.f32.mrb[0].mxu0
      %v2112 = vadd.f32 0.0, %v2111
      %v2113 = vpop.f32.mrb[0].mxu0
      %2114 = vdwg.mxu0
      %v2115 = vadd.f32 %v2035, %v2112
      %v2116 = vadd.f32 %v2115, %v500
      %v2117 = vmax.f32 %v2116, 0.0
      %s2118 = scalar_lea.vmem %s170, 40
      %2119 = vst [vmem:[%s2118] sm:$0xff] %v2117
      %v2120 = vld [vmem:[%s1955] sm:$0xff]
      %v2121 = vld [vmem:[%s1] sm:$0xff]
      %v2122 = vld [vmem:[%s1 + $0x8] sm:$0xf]
      %v2123 = vld [vmem:[%s1955 + $0x1] sm:$0xff]
      %v2124 = vld [vmem:[%s176] sm:$0xff]
      %v2125 = vld [vmem:[%s176 + $0x8] sm:$0xf]
      %v2127 = vsel %vm179, %v2123, 0
      %v2130 = vsel %vm183, %v2125, 0
      %2132 = vmatprep.subr.mxu0 0.0
      %2133 = vmatpush1.msra.mxu0 %v2124
      %2134 = vmatprep.subr.mxu0 0.0
      %2135 = vmatpush1.msra.mxu0 %v2130
      %2136 = vmatprep.subr.mxu0 0.0
      %2137 = vmatpush1.msra.mxu0 0.0
      %2138 = vmatprep.subr.mxu0 0.0
      %2139 = vmatpush1.msra.mxu0 0.0
      %2140 = vmatprep.subr.mxu0 0.0
      %2141 = vmatpush1.msra.mxu0 0.0
      %2142 = vmatprep.subr.mxu0 0.0
      %2143 = vmatpush1.msra.mxu0 0.0
      %2144 = vmatprep.subr.mxu0 0.0
      %2145 = vmatpush1.msra.mxu0 0.0
      %2146 = vmatprep.subr.mxu0 0.0
      %2147 = vmatpush1.msra.mxu0 0.0
      %2148 = vmatprep.subr.mxu0 0.0
      %2149 = vmatpush1.msra.mxu0 0.0
      %2150 = vmatprep.subr.mxu0 0.0
      %2151 = vmatpush1.msra.mxu0 0.0
      %2152 = vmatprep.subr.mxu0 0.0
      %2153 = vmatpush1.msra.mxu0 0.0
      %2154 = vmatprep.subr.mxu0 0.0
      %2155 = vmatpush1.msra.mxu0 0.0
      %2156 = vmatprep.subr.mxu0 0.0
      %2157 = vmatpush1.msra.mxu0 0.0
      %2158 = vmatprep.subr.mxu0 0.0
      %2159 = vmatpush1.msra.mxu0 0.0
      %2160 = vmatprep.subr.mxu0 0.0
      %2161 = vmatpush1.msra.mxu0 0.0
      %2162 = vmatprep.subr.mxu0 0.0
      %2163 = vmatpush1.msra.mxu0 0.0
      %2164 = vmatprep.subr.mxu0 0.0
      %2165 = vmatpush1.msra.mxu0 0.0
      %2166 = vmatprep.subr.mxu0 0.0
      %2167 = vmatpush1.msra.mxu0 0.0
      %2168 = vmatprep.subr.mxu0 0.0
      %2169 = vmatpush1.msra.mxu0 0.0
      %2170 = vmatprep.subr.mxu0 0.0
      %2171 = vmatpush1.msra.mxu0 0.0
      %2172 = vmatprep.subr.mxu0 0.0
      %2173 = vmatpush1.msra.mxu0 0.0
      %2174 = vmatprep.subr.mxu0 0.0
      %2175 = vmatpush1.msra.mxu0 0.0
      %2176 = vmatprep.subr.mxu0 0.0
      %2177 = vmatpush1.msra.mxu0 0.0
      %2178 = vmatprep.subr.mxu0 0.0
      %2179 = vmatpush1.msra.mxu0 0.0
      %2180 = vmatprep.subr.mxu0 0.0
      %2181 = vmatpush1.msra.mxu0 0.0
      %2182 = vmatprep.subr.mxu0 0.0
      %2183 = vmatpush1.msra.mxu0 0.0
      %2184 = vmatprep.subr.mxu0 0.0
      %2185 = vmatpush1.msra.mxu0 0.0
      %2186 = vmatprep.subr.mxu0 0.0
      %2187 = vmatpush1.msra.mxu0 0.0
      %2188 = vmatprep.subr.mxu0 0.0
      %2189 = vmatpush1.msra.mxu0 0.0
      %2190 = vmatprep.subr.mxu0 0.0
      %2191 = vmatpush1.msra.mxu0 0.0
      %2192 = vmatprep.subr.mxu0 0.0
      %2193 = vmatpush1.msra.mxu0 0.0
      %2194 = vmatprep.subr.mxu0 0.0
      %2195 = vmatpush1.msra.mxu0 0.0
      %2196 = vmatprep.mubr.f32.mxu0 0.0
      %2197 = vmatmul.mubr.f32.gmra.mrb[0].mxu0 %v2127
      %v2198 = vpop.f32.mrb[0].mxu0
      %v2199 = vadd.f32 0.0, %v2198
      %v2200 = vpop.f32.mrb[0].mxu0
      %2201 = vdwg.mxu0
      %v2203 = vsel %vm179, %v2120, 0
      %v2206 = vsel %vm183, %v2122, 0
      %2208 = vmatprep.subr.mxu0 0.0
      %2209 = vmatpush1.msra.mxu0 %v2121
      %2210 = vmatprep.subr.mxu0 0.0
      %2211 = vmatpush1.msra.mxu0 %v2206
      %2212 = vmatprep.subr.mxu0 0.0
      %2213 = vmatpush1.msra.mxu0 0.0
      %2214 = vmatprep.subr.mxu0 0.0
      %2215 = vmatpush1.msra.mxu0 0.0
      %2216 = vmatprep.subr.mxu0 0.0
      %2217 = vmatpush1.msra.mxu0 0.0
      %2218 = vmatprep.subr.mxu0 0.0
      %2219 = vmatpush1.msra.mxu0 0.0
      %2220 = vmatprep.subr.mxu0 0.0
      %2221 = vmatpush1.msra.mxu0 0.0
      %2222 = vmatprep.subr.mxu0 0.0
      %2223 = vmatpush1.msra.mxu0 0.0
      %2224 = vmatprep.subr.mxu0 0.0
      %2225 = vmatpush1.msra.mxu0 0.0
      %2226 = vmatprep.subr.mxu0 0.0
      %2227 = vmatpush1.msra.mxu0 0.0
      %2228 = vmatprep.subr.mxu0 0.0
      %2229 = vmatpush1.msra.mxu0 0.0
      %2230 = vmatprep.subr.mxu0 0.0
      %2231 = vmatpush1.msra.mxu0 0.0
      %2232 = vmatprep.subr.mxu0 0.0
      %2233 = vmatpush1.msra.mxu0 0.0
      %2234 = vmatprep.subr.mxu0 0.0
      %2235 = vmatpush1.msra.mxu0 0.0
      %2236 = vmatprep.subr.mxu0 0.0
      %2237 = vmatpush1.msra.mxu0 0.0
      %2238 = vmatprep.subr.mxu0 0.0
      %2239 = vmatpush1.msra.mxu0 0.0
      %2240 = vmatprep.subr.mxu0 0.0
      %2241 = vmatpush1.msra.mxu0 0.0
      %2242 = vmatprep.subr.mxu0 0.0
      %2243 = vmatpush1.msra.mxu0 0.0
      %2244 = vmatprep.subr.mxu0 0.0
      %2245 = vmatpush1.msra.mxu0 0.0
      %2246 = vmatprep.subr.mxu0 0.0
      %2247 = vmatpush1.msra.mxu0 0.0
      %2248 = vmatprep.subr.mxu0 0.0
      %2249 = vmatpush1.msra.mxu0 0.0
      %2250 = vmatprep.subr.mxu0 0.0
      %2251 = vmatpush1.msra.mxu0 0.0
      %2252 = vmatprep.subr.mxu0 0.0
      %2253 = vmatpush1.msra.mxu0 0.0
      %2254 = vmatprep.subr.mxu0 0.0
      %2255 = vmatpush1.msra.mxu0 0.0
      %2256 = vmatprep.subr.mxu0 0.0
      %2257 = vmatpush1.msra.mxu0 0.0
      %2258 = vmatprep.subr.mxu0 0.0
      %2259 = vmatpush1.msra.mxu0 0.0
      %2260 = vmatprep.subr.mxu0 0.0
      %2261 = vmatpush1.msra.mxu0 0.0
      %2262 = vmatprep.subr.mxu0 0.0
      %2263 = vmatpush1.msra.mxu0 0.0
      %2264 = vmatprep.subr.mxu0 0.0
      %2265 = vmatpush1.msra.mxu0 0.0
      %2266 = vmatprep.subr.mxu0 0.0
      %2267 = vmatpush1.msra.mxu0 0.0
      %2268 = vmatprep.subr.mxu0 0.0
      %2269 = vmatpush1.msra.mxu0 0.0
      %2270 = vmatprep.subr.mxu0 0.0
      %2271 = vmatpush1.msra.mxu0 0.0
      %2272 = vmatprep.mubr.f32.mxu0 0.0
      %2273 = vmatmul.mubr.f32.gmra.mrb[0].mxu0 %v2203
      %v2274 = vpop.f32.mrb[0].mxu0
      %v2275 = vadd.f32 %v2199, %v2274
      %v2276 = vpop.f32.mrb[0].mxu0
      %2277 = vdwg.mxu0
      %s2278 = scalar_lea.vmem %s165, 112
      %v2279 = vld [vmem:[%s2278] sm:$0xff]
      %v2280 = vld [vmem:[%s335] sm:$0xff]
      %v2281 = vld [vmem:[%s335 + $0x8] sm:$0xf]
      %v2283 = vsel %vm179, %v2279, 0
      %v2286 = vsel %vm183, %v2281, 0
      %2288 = vmatprep.subr.mxu0 0.0
      %2289 = vmatpush1.msra.mxu0 %v2280
      %2290 = vmatprep.subr.mxu0 0.0
      %2291 = vmatpush1.msra.mxu0 %v2286
      %2292 = vmatprep.subr.mxu0 0.0
      %2293 = vmatpush1.msra.mxu0 0.0
      %2294 = vmatprep.subr.mxu0 0.0
      %2295 = vmatpush1.msra.mxu0 0.0
      %2296 = vmatprep.subr.mxu0 0.0
      %2297 = vmatpush1.msra.mxu0 0.0
      %2298 = vmatprep.subr.mxu0 0.0
      %2299 = vmatpush1.msra.mxu0 0.0
      %2300 = vmatprep.subr.mxu0 0.0
      %2301 = vmatpush1.msra.mxu0 0.0
      %2302 = vmatprep.subr.mxu0 0.0
      %2303 = vmatpush1.msra.mxu0 0.0
      %2304 = vmatprep.subr.mxu0 0.0
      %2305 = vmatpush1.msra.mxu0 0.0
      %2306 = vmatprep.subr.mxu0 0.0
      %2307 = vmatpush1.msra.mxu0 0.0
      %2308 = vmatprep.subr.mxu0 0.0
      %2309 = vmatpush1.msra.mxu0 0.0
      %2310 = vmatprep.subr.mxu0 0.0
      %2311 = vmatpush1.msra.mxu0 0.0
      %2312 = vmatprep.subr.mxu0 0.0
      %2313 = vmatpush1.msra.mxu0 0.0
      %2314 = vmatprep.subr.mxu0 0.0
      %2315 = vmatpush1.msra.mxu0 0.0
      %2316 = vmatprep.subr.mxu0 0.0
      %2317 = vmatpush1.msra.mxu0 0.0
      %2318 = vmatprep.subr.mxu0 0.0
      %2319 = vmatpush1.msra.mxu0 0.0
      %2320 = vmatprep.subr.mxu0 0.0
      %2321 = vmatpush1.msra.mxu0 0.0
      %2322 = vmatprep.subr.mxu0 0.0
      %2323 = vmatpush1.msra.mxu0 0.0
      %2324 = vmatprep.subr.mxu0 0.0
      %2325 = vmatpush1.msra.mxu0 0.0
      %2326 = vmatprep.subr.mxu0 0.0
      %2327 = vmatpush1.msra.mxu0 0.0
      %2328 = vmatprep.subr.mxu0 0.0
      %2329 = vmatpush1.msra.mxu0 0.0
      %2330 = vmatprep.subr.mxu0 0.0
      %2331 = vmatpush1.msra.mxu0 0.0
      %2332 = vmatprep.subr.mxu0 0.0
      %2333 = vmatpush1.msra.mxu0 0.0
      %2334 = vmatprep.subr.mxu0 0.0
      %2335 = vmatpush1.msra.mxu0 0.0
      %2336 = vmatprep.subr.mxu0 0.0
      %2337 = vmatpush1.msra.mxu0 0.0
      %2338 = vmatprep.subr.mxu0 0.0
      %2339 = vmatpush1.msra.mxu0 0.0
      %2340 = vmatprep.subr.mxu0 0.0
      %2341 = vmatpush1.msra.mxu0 0.0
      %2342 = vmatprep.subr.mxu0 0.0
      %2343 = vmatpush1.msra.mxu0 0.0
      %2344 = vmatprep.subr.mxu0 0.0
      %2345 = vmatpush1.msra.mxu0 0.0
      %2346 = vmatprep.subr.mxu0 0.0
      %2347 = vmatpush1.msra.mxu0 0.0
      %2348 = vmatprep.subr.mxu0 0.0
      %2349 = vmatpush1.msra.mxu0 0.0
      %2350 = vmatprep.subr.mxu0 0.0
      %2351 = vmatpush1.msra.mxu0 0.0
      %2352 = vmatprep.mubr.f32.mxu0 0.0
      %2353 = vmatmul.mubr.f32.gmra.mrb[0].mxu0 %v2283
      %v2354 = vpop.f32.mrb[0].mxu0
      %v2355 = vadd.f32 0.0, %v2354
      %v2356 = vpop.f32.mrb[0].mxu0
      %2357 = vdwg.mxu0
      %v2358 = vadd.f32 %v2275, %v2355
      %v2359 = vld [vmem:[%s2278 + $0x1] sm:$0xff]
      %v2360 = vld [vmem:[%s416] sm:$0xff]
      %v2361 = vld [vmem:[%s416 + $0x8] sm:$0xf]
      %v2363 = vsel %vm179, %v2359, 0
      %v2366 = vsel %vm183, %v2361, 0
      %2368 = vmatprep.subr.mxu0 0.0
      %2369 = vmatpush1.msra.mxu0 %v2360
      %2370 = vmatprep.subr.mxu0 0.0
      %2371 = vmatpush1.msra.mxu0 %v2366
      %2372 = vmatprep.subr.mxu0 0.0
      %2373 = vmatpush1.msra.mxu0 0.0
      %2374 = vmatprep.subr.mxu0 0.0
      %2375 = vmatpush1.msra.mxu0 0.0
      %2376 = vmatprep.subr.mxu0 0.0
      %2377 = vmatpush1.msra.mxu0 0.0
      %2378 = vmatprep.subr.mxu0 0.0
      %2379 = vmatpush1.msra.mxu0 0.0
      %2380 = vmatprep.subr.mxu0 0.0
      %2381 = vmatpush1.msra.mxu0 0.0
      %2382 = vmatprep.subr.mxu0 0.0
      %2383 = vmatpush1.msra.mxu0 0.0
      %2384 = vmatprep.subr.mxu0 0.0
      %2385 = vmatpush1.msra.mxu0 0.0
      %2386 = vmatprep.subr.mxu0 0.0
      %2387 = vmatpush1.msra.mxu0 0.0
      %2388 = vmatprep.subr.mxu0 0.0
      %2389 = vmatpush1.msra.mxu0 0.0
      %2390 = vmatprep.subr.mxu0 0.0
      %2391 = vmatpush1.msra.mxu0 0.0
      %2392 = vmatprep.subr.mxu0 0.0
      %2393 = vmatpush1.msra.mxu0 0.0
      %2394 = vmatprep.subr.mxu0 0.0
      %2395 = vmatpush1.msra.mxu0 0.0
      %2396 = vmatprep.subr.mxu0 0.0
      %2397 = vmatpush1.msra.mxu0 0.0
      %2398 = vmatprep.subr.mxu0 0.0
      %2399 = vmatpush1.msra.mxu0 0.0
      %2400 = vmatprep.subr.mxu0 0.0
      %2401 = vmatpush1.msra.mxu0 0.0
      %2402 = vmatprep.subr.mxu0 0.0
      %2403 = vmatpush1.msra.mxu0 0.0
      %2404 = vmatprep.subr.mxu0 0.0
      %2405 = vmatpush1.msra.mxu0 0.0
      %2406 = vmatprep.subr.mxu0 0.0
      %2407 = vmatpush1.msra.mxu0 0.0
      %2408 = vmatprep.subr.mxu0 0.0
      %2409 = vmatpush1.msra.mxu0 0.0
      %2410 = vmatprep.subr.mxu0 0.0
      %2411 = vmatpush1.msra.mxu0 0.0
      %2412 = vmatprep.subr.mxu0 0.0
      %2413 = vmatpush1.msra.mxu0 0.0
      %2414 = vmatprep.subr.mxu0 0.0
      %2415 = vmatpush1.msra.mxu0 0.0
      %2416 = vmatprep.subr.mxu0 0.0
      %2417 = vmatpush1.msra.mxu0 0.0
      %2418 = vmatprep.subr.mxu0 0.0
      %2419 = vmatpush1.msra.mxu0 0.0
      %2420 = vmatprep.subr.mxu0 0.0
      %2421 = vmatpush1.msra.mxu0 0.0
      %2422 = vmatprep.subr.mxu0 0.0
      %2423 = vmatpush1.msra.mxu0 0.0
      %2424 = vmatprep.subr.mxu0 0.0
      %2425 = vmatpush1.msra.mxu0 0.0
      %2426 = vmatprep.subr.mxu0 0.0
      %2427 = vmatpush1.msra.mxu0 0.0
      %2428 = vmatprep.subr.mxu0 0.0
      %2429 = vmatpush1.msra.mxu0 0.0
      %2430 = vmatprep.subr.mxu0 0.0
      %2431 = vmatpush1.msra.mxu0 0.0
      %2432 = vmatprep.mubr.f32.mxu0 0.0
      %2433 = vmatmul.mubr.f32.gmra.mrb[0].mxu0 %v2363
      %v2434 = vpop.f32.mrb[0].mxu0
      %v2435 = vadd.f32 0.0, %v2434
      %v2436 = vpop.f32.mrb[0].mxu0
      %2437 = vdwg.mxu0
      %v2438 = vadd.f32 %v2358, %v2435
      %v2439 = vadd.f32 %v2438, %v500
      %v2440 = vmax.f32 %v2439, 0.0
      %s2441 = scalar_lea.vmem %s170, 48
      %2442 = vst [vmem:[%s2441] sm:$0xff] %v2440
      %v2443 = vld [vmem:[%s2278] sm:$0xff]
      %v2444 = vld [vmem:[%s1] sm:$0xff]
      %v2445 = vld [vmem:[%s1 + $0x8] sm:$0xf]
      %v2446 = vld [vmem:[%s2278 + $0x1] sm:$0xff]
      %v2447 = vld [vmem:[%s176] sm:$0xff]
      %v2448 = vld [vmem:[%s176 + $0x8] sm:$0xf]
      %v2450 = vsel %vm179, %v2446, 0
      %v2453 = vsel %vm183, %v2448, 0
      %2455 = vmatprep.subr.mxu0 0.0
      %2456 = vmatpush1.msra.mxu0 %v2447
      %2457 = vmatprep.subr.mxu0 0.0
      %2458 = vmatpush1.msra.mxu0 %v2453
      %2459 = vmatprep.subr.mxu0 0.0
      %2460 = vmatpush1.msra.mxu0 0.0
      %2461 = vmatprep.subr.mxu0 0.0
      %2462 = vmatpush1.msra.mxu0 0.0
      %2463 = vmatprep.subr.mxu0 0.0
      %2464 = vmatpush1.msra.mxu0 0.0
      %2465 = vmatprep.subr.mxu0 0.0
      %2466 = vmatpush1.msra.mxu0 0.0
      %2467 = vmatprep.subr.mxu0 0.0
      %2468 = vmatpush1.msra.mxu0 0.0
      %2469 = vmatprep.subr.mxu0 0.0
      %2470 = vmatpush1.msra.mxu0 0.0
      %2471 = vmatprep.subr.mxu0 0.0
      %2472 = vmatpush1.msra.mxu0 0.0
      %2473 = vmatprep.subr.mxu0 0.0
      %2474 = vmatpush1.msra.mxu0 0.0
      %2475 = vmatprep.subr.mxu0 0.0
      %2476 = vmatpush1.msra.mxu0 0.0
      %2477 = vmatprep.subr.mxu0 0.0
      %2478 = vmatpush1.msra.mxu0 0.0
      %2479 = vmatprep.subr.mxu0 0.0
      %2480 = vmatpush1.msra.mxu0 0.0
      %2481 = vmatprep.subr.mxu0 0.0
      %2482 = vmatpush1.msra.mxu0 0.0
      %2483 = vmatprep.subr.mxu0 0.0
      %2484 = vmatpush1.msra.mxu0 0.0
      %2485 = vmatprep.subr.mxu0 0.0
      %2486 = vmatpush1.msra.mxu0 0.0
      %2487 = vmatprep.subr.mxu0 0.0
      %2488 = vmatpush1.msra.mxu0 0.0
      %2489 = vmatprep.subr.mxu0 0.0
      %2490 = vmatpush1.msra.mxu0 0.0
      %2491 = vmatprep.subr.mxu0 0.0
      %2492 = vmatpush1.msra.mxu0 0.0
      %2493 = vmatprep.subr.mxu0 0.0
      %2494 = vmatpush1.msra.mxu0 0.0
      %2495 = vmatprep.subr.mxu0 0.0
      %2496 = vmatpush1.msra.mxu0 0.0
      %2497 = vmatprep.subr.mxu0 0.0
      %2498 = vmatpush1.msra.mxu0 0.0
      %2499 = vmatprep.subr.mxu0 0.0
      %2500 = vmatpush1.msra.mxu0 0.0
      %2501 = vmatprep.subr.mxu0 0.0
      %2502 = vmatpush1.msra.mxu0 0.0
      %2503 = vmatprep.subr.mxu0 0.0
      %2504 = vmatpush1.msra.mxu0 0.0
      %2505 = vmatprep.subr.mxu0 0.0
      %2506 = vmatpush1.msra.mxu0 0.0
      %2507 = vmatprep.subr.mxu0 0.0
      %2508 = vmatpush1.msra.mxu0 0.0
      %2509 = vmatprep.subr.mxu0 0.0
      %2510 = vmatpush1.msra.mxu0 0.0
      %2511 = vmatprep.subr.mxu0 0.0
      %2512 = vmatpush1.msra.mxu0 0.0
      %2513 = vmatprep.subr.mxu0 0.0
      %2514 = vmatpush1.msra.mxu0 0.0
      %2515 = vmatprep.subr.mxu0 0.0
      %2516 = vmatpush1.msra.mxu0 0.0
      %2517 = vmatprep.subr.mxu0 0.0
      %2518 = vmatpush1.msra.mxu0 0.0
      %2519 = vmatprep.mubr.f32.mxu0 0.0
      %2520 = vmatmul.mubr.f32.gmra.mrb[0].mxu0 %v2450
      %v2521 = vpop.f32.mrb[0].mxu0
      %v2522 = vadd.f32 0.0, %v2521
      %v2523 = vpop.f32.mrb[0].mxu0
      %2524 = vdwg.mxu0
      %v2526 = vsel %vm179, %v2443, 0
      %v2529 = vsel %vm183, %v2445, 0
      %2531 = vmatprep.subr.mxu0 0.0
      %2532 = vmatpush1.msra.mxu0 %v2444
      %2533 = vmatprep.subr.mxu0 0.0
      %2534 = vmatpush1.msra.mxu0 %v2529
      %2535 = vmatprep.subr.mxu0 0.0
      %2536 = vmatpush1.msra.mxu0 0.0
      %2537 = vmatprep.subr.mxu0 0.0
      %2538 = vmatpush1.msra.mxu0 0.0
      %2539 = vmatprep.subr.mxu0 0.0
      %2540 = vmatpush1.msra.mxu0 0.0
      %2541 = vmatprep.subr.mxu0 0.0
      %2542 = vmatpush1.msra.mxu0 0.0
      %2543 = vmatprep.subr.mxu0 0.0
      %2544 = vmatpush1.msra.mxu0 0.0
      %2545 = vmatprep.subr.mxu0 0.0
      %2546 = vmatpush1.msra.mxu0 0.0
      %2547 = vmatprep.subr.mxu0 0.0
      %2548 = vmatpush1.msra.mxu0 0.0
      %2549 = vmatprep.subr.mxu0 0.0
      %2550 = vmatpush1.msra.mxu0 0.0
      %2551 = vmatprep.subr.mxu0 0.0
      %2552 = vmatpush1.msra.mxu0 0.0
      %2553 = vmatprep.subr.mxu0 0.0
      %2554 = vmatpush1.msra.mxu0 0.0
      %2555 = vmatprep.subr.mxu0 0.0
      %2556 = vmatpush1.msra.mxu0 0.0
      %2557 = vmatprep.subr.mxu0 0.0
      %2558 = vmatpush1.msra.mxu0 0.0
      %2559 = vmatprep.subr.mxu0 0.0
      %2560 = vmatpush1.msra.mxu0 0.0
      %2561 = vmatprep.subr.mxu0 0.0
      %2562 = vmatpush1.msra.mxu0 0.0
      %2563 = vmatprep.subr.mxu0 0.0
      %2564 = vmatpush1.msra.mxu0 0.0
      %2565 = vmatprep.subr.mxu0 0.0
      %2566 = vmatpush1.msra.mxu0 0.0
      %2567 = vmatprep.subr.mxu0 0.0
      %2568 = vmatpush1.msra.mxu0 0.0
      %2569 = vmatprep.subr.mxu0 0.0
      %2570 = vmatpush1.msra.mxu0 0.0
      %2571 = vmatprep.subr.mxu0 0.0
      %2572 = vmatpush1.msra.mxu0 0.0
      %2573 = vmatprep.subr.mxu0 0.0
      %2574 = vmatpush1.msra.mxu0 0.0
      %2575 = vmatprep.subr.mxu0 0.0
      %2576 = vmatpush1.msra.mxu0 0.0
      %2577 = vmatprep.subr.mxu0 0.0
      %2578 = vmatpush1.msra.mxu0 0.0
      %2579 = vmatprep.subr.mxu0 0.0
      %2580 = vmatpush1.msra.mxu0 0.0
      %2581 = vmatprep.subr.mxu0 0.0
      %2582 = vmatpush1.msra.mxu0 0.0
      %2583 = vmatprep.subr.mxu0 0.0
      %2584 = vmatpush1.msra.mxu0 0.0
      %2585 = vmatprep.subr.mxu0 0.0
      %2586 = vmatpush1.msra.mxu0 0.0
      %2587 = vmatprep.subr.mxu0 0.0
      %2588 = vmatpush1.msra.mxu0 0.0
      %2589 = vmatprep.subr.mxu0 0.0
      %2590 = vmatpush1.msra.mxu0 0.0
      %2591 = vmatprep.subr.mxu0 0.0
      %2592 = vmatpush1.msra.mxu0 0.0
      %2593 = vmatprep.subr.mxu0 0.0
      %2594 = vmatpush1.msra.mxu0 0.0
      %2595 = vmatprep.mubr.f32.mxu0 0.0
      %2596 = vmatmul.mubr.f32.gmra.mrb[0].mxu0 %v2526
      %v2597 = vpop.f32.mrb[0].mxu0
      %v2598 = vadd.f32 %v2522, %v2597
      %v2599 = vpop.f32.mrb[0].mxu0
      %2600 = vdwg.mxu0
      %s2601 = scalar_lea.vmem %s165, 128
      %v2602 = vld [vmem:[%s2601] sm:$0xff]
      %v2603 = vld [vmem:[%s335] sm:$0xff]
      %v2604 = vld [vmem:[%s335 + $0x8] sm:$0xf]
      %v2606 = vsel %vm179, %v2602, 0
      %v2609 = vsel %vm183, %v2604, 0
      %2611 = vmatprep.subr.mxu0 0.0
      %2612 = vmatpush1.msra.mxu0 %v2603
      %2613 = vmatprep.subr.mxu0 0.0
      %2614 = vmatpush1.msra.mxu0 %v2609
      %2615 = vmatprep.subr.mxu0 0.0
      %2616 = vmatpush1.msra.mxu0 0.0
      %2617 = vmatprep.subr.mxu0 0.0
      %2618 = vmatpush1.msra.mxu0 0.0
      %2619 = vmatprep.subr.mxu0 0.0
      %2620 = vmatpush1.msra.mxu0 0.0
      %2621 = vmatprep.subr.mxu0 0.0
      %2622 = vmatpush1.msra.mxu0 0.0
      %2623 = vmatprep.subr.mxu0 0.0
      %2624 = vmatpush1.msra.mxu0 0.0
      %2625 = vmatprep.subr.mxu0 0.0
      %2626 = vmatpush1.msra.mxu0 0.0
      %2627 = vmatprep.subr.mxu0 0.0
      %2628 = vmatpush1.msra.mxu0 0.0
      %2629 = vmatprep.subr.mxu0 0.0
      %2630 = vmatpush1.msra.mxu0 0.0
      %2631 = vmatprep.subr.mxu0 0.0
      %2632 = vmatpush1.msra.mxu0 0.0
      %2633 = vmatprep.subr.mxu0 0.0
      %2634 = vmatpush1.msra.mxu0 0.0
      %2635 = vmatprep.subr.mxu0 0.0
      %2636 = vmatpush1.msra.mxu0 0.0
      %2637 = vmatprep.subr.mxu0 0.0
      %2638 = vmatpush1.msra.mxu0 0.0
      %2639 = vmatprep.subr.mxu0 0.0
      %2640 = vmatpush1.msra.mxu0 0.0
      %2641 = vmatprep.subr.mxu0 0.0
      %2642 = vmatpush1.msra.mxu0 0.0
      %2643 = vmatprep.subr.mxu0 0.0
      %2644 = vmatpush1.msra.mxu0 0.0
      %2645 = vmatprep.subr.mxu0 0.0
      %2646 = vmatpush1.msra.mxu0 0.0
      %2647 = vmatprep.subr.mxu0 0.0
      %2648 = vmatpush1.msra.mxu0 0.0
      %2649 = vmatprep.subr.mxu0 0.0
      %2650 = vmatpush1.msra.mxu0 0.0
      %2651 = vmatprep.subr.mxu0 0.0
      %2652 = vmatpush1.msra.mxu0 0.0
      %2653 = vmatprep.subr.mxu0 0.0
      %2654 = vmatpush1.msra.mxu0 0.0
      %2655 = vmatprep.subr.mxu0 0.0
      %2656 = vmatpush1.msra.mxu0 0.0
      %2657 = vmatprep.subr.mxu0 0.0
      %2658 = vmatpush1.msra.mxu0 0.0
      %2659 = vmatprep.subr.mxu0 0.0
      %2660 = vmatpush1.msra.mxu0 0.0
      %2661 = vmatprep.subr.mxu0 0.0
      %2662 = vmatpush1.msra.mxu0 0.0
      %2663 = vmatprep.subr.mxu0 0.0
      %2664 = vmatpush1.msra.mxu0 0.0
      %2665 = vmatprep.subr.mxu0 0.0
      %2666 = vmatpush1.msra.mxu0 0.0
      %2667 = vmatprep.subr.mxu0 0.0
      %2668 = vmatpush1.msra.mxu0 0.0
      %2669 = vmatprep.subr.mxu0 0.0
      %2670 = vmatpush1.msra.mxu0 0.0
      %2671 = vmatprep.subr.mxu0 0.0
      %2672 = vmatpush1.msra.mxu0 0.0
      %2673 = vmatprep.subr.mxu0 0.0
      %2674 = vmatpush1.msra.mxu0 0.0
      %2675 = vmatprep.mubr.f32.mxu0 0.0
      %2676 = vmatmul.mubr.f32.gmra.mrb[0].mxu0 %v2606
      %v2677 = vpop.f32.mrb[0].mxu0
      %v2678 = vadd.f32 0.0, %v2677
      %v2679 = vpop.f32.mrb[0].mxu0
      %2680 = vdwg.mxu0
      %v2681 = vadd.f32 %v2598, %v2678
      %v2682 = vld [vmem:[%s2601 + $0x1] sm:$0xff]
      %v2683 = vld [vmem:[%s416] sm:$0xff]
      %v2684 = vld [vmem:[%s416 + $0x8] sm:$0xf]
      %v2686 = vsel %vm179, %v2682, 0
      %v2689 = vsel %vm183, %v2684, 0
      %2691 = vmatprep.subr.mxu0 0.0
      %2692 = vmatpush1.msra.mxu0 %v2683
      %2693 = vmatprep.subr.mxu0 0.0
      %2694 = vmatpush1.msra.mxu0 %v2689
      %2695 = vmatprep.subr.mxu0 0.0
      %2696 = vmatpush1.msra.mxu0 0.0
      %2697 = vmatprep.subr.mxu0 0.0
      %2698 = vmatpush1.msra.mxu0 0.0
      %2699 = vmatprep.subr.mxu0 0.0
      %2700 = vmatpush1.msra.mxu0 0.0
      %2701 = vmatprep.subr.mxu0 0.0
      %2702 = vmatpush1.msra.mxu0 0.0
      %2703 = vmatprep.subr.mxu0 0.0
      %2704 = vmatpush1.msra.mxu0 0.0
      %2705 = vmatprep.subr.mxu0 0.0
      %2706 = vmatpush1.msra.mxu0 0.0
      %2707 = vmatprep.subr.mxu0 0.0
      %2708 = vmatpush1.msra.mxu0 0.0
      %2709 = vmatprep.subr.mxu0 0.0
      %2710 = vmatpush1.msra.mxu0 0.0
      %2711 = vmatprep.subr.mxu0 0.0
      %2712 = vmatpush1.msra.mxu0 0.0
      %2713 = vmatprep.subr.mxu0 0.0
      %2714 = vmatpush1.msra.mxu0 0.0
      %2715 = vmatprep.subr.mxu0 0.0
      %2716 = vmatpush1.msra.mxu0 0.0
      %2717 = vmatprep.subr.mxu0 0.0
      %2718 = vmatpush1.msra.mxu0 0.0
      %2719 = vmatprep.subr.mxu0 0.0
      %2720 = vmatpush1.msra.mxu0 0.0
      %2721 = vmatprep.subr.mxu0 0.0
      %2722 = vmatpush1.msra.mxu0 0.0
      %2723 = vmatprep.subr.mxu0 0.0
      %2724 = vmatpush1.msra.mxu0 0.0
      %2725 = vmatprep.subr.mxu0 0.0
      %2726 = vmatpush1.msra.mxu0 0.0
      %2727 = vmatprep.subr.mxu0 0.0
      %2728 = vmatpush1.msra.mxu0 0.0
      %2729 = vmatprep.subr.mxu0 0.0
      %2730 = vmatpush1.msra.mxu0 0.0
      %2731 = vmatprep.subr.mxu0 0.0
      %2732 = vmatpush1.msra.mxu0 0.0
      %2733 = vmatprep.subr.mxu0 0.0
      %2734 = vmatpush1.msra.mxu0 0.0
      %2735 = vmatprep.subr.mxu0 0.0
      %2736 = vmatpush1.msra.mxu0 0.0
      %2737 = vmatprep.subr.mxu0 0.0
      %2738 = vmatpush1.msra.mxu0 0.0
      %2739 = vmatprep.subr.mxu0 0.0
      %2740 = vmatpush1.msra.mxu0 0.0
      %2741 = vmatprep.subr.mxu0 0.0
      %2742 = vmatpush1.msra.mxu0 0.0
      %2743 = vmatprep.subr.mxu0 0.0
      %2744 = vmatpush1.msra.mxu0 0.0
      %2745 = vmatprep.subr.mxu0 0.0
      %2746 = vmatpush1.msra.mxu0 0.0
      %2747 = vmatprep.subr.mxu0 0.0
      %2748 = vmatpush1.msra.mxu0 0.0
      %2749 = vmatprep.subr.mxu0 0.0
      %2750 = vmatpush1.msra.mxu0 0.0
      %2751 = vmatprep.subr.mxu0 0.0
      %2752 = vmatpush1.msra.mxu0 0.0
      %2753 = vmatprep.subr.mxu0 0.0
      %2754 = vmatpush1.msra.mxu0 0.0
      %2755 = vmatprep.mubr.f32.mxu0 0.0
      %2756 = vmatmul.mubr.f32.gmra.mrb[0].mxu0 %v2686
      %v2757 = vpop.f32.mrb[0].mxu0
      %v2758 = vadd.f32 0.0, %v2757
      %v2759 = vpop.f32.mrb[0].mxu0
      %2760 = vdwg.mxu0
      %v2761 = vadd.f32 %v2681, %v2758
      %v2762 = vadd.f32 %v2761, %v500
      %v2763 = vmax.f32 %v2762, 0.0
      %s2764 = scalar_lea.vmem %s170, 56
      %2765 = vst [vmem:[%s2764] sm:$0xff] %v2763
      %p2766 = scmp.lt.s32.totalorder %s14, 1
      %s2767 = scalar_select %p2766, %s14, 1
      %s2768 = smul.addr %s2767, 8
      %s2769 = smul.addr %s2768, 8
      %s2770 = scalar_lea.vmem %s3, %s2769
      // Predicated region
      $region33: #{backbone_forward.2} parent=31 // pred_check
        %p2771 = pneg %p100
      $region34: #{backbone_forward.2} parent=31 // pred_check_branch
        %2773 = sbr.rel (%p2771) target = $region36
      $region35: #{backbone_forward.2} parent=31 // pred_region
        _
      $region36: #{backbone_forward.2} parent=31 // pred_fallthru
        _
    $region32: #{backbone_forward.2} parent=5 // pred_fallthru
      _
    %p2774 = scmp.le.s32.totalorder 2, %s9
    // Predicated region
    $region37: #{backbone_forward.2} parent=5 // pred_check
      %p2775 = pneg %p2774
    $region38: #{backbone_forward.2} parent=5 // pred_check_branch
      %2777 = sbr.rel (%p2775) target = $region40
    $region39: #{backbone_forward.2} parent=5 // pred_region
      %s2778 = ssub.s32 %s9, 2
      // Predicated region
      $region41: #{backbone_forward.2} parent=39 // pred_check
        %p2779 = pneg %p106
      $region42: #{backbone_forward.2} parent=39 // pred_check_branch
        %2781 = sbr.rel (%p2779) target = $region44
      $region43: #{backbone_forward.2} parent=39 // pred_region
        %p2782 = scmp.lt.s32.totalorder %s15, 1
        %s2783 = scalar_select %p2782, %s15, 1
        %s2784 = smul.addr %s2783, 8
        %s2785 = smul.addr %s2784, 8
        %s2786 = scalar_lea.vmem %s3, %s2785
      $region44: #{backbone_forward.2} parent=39 // pred_fallthru
        _
    $region40: #{backbone_forward.2} parent=5 // pred_fallthru
      _
  $region6: #{backbone_forward.2} parent=0 // loop_footer
    %s13 = sadd.s32 1, %s9
  $region7: #{backbone_forward.2} parent=0 // loop_footer_branch
    %8 = sbr.rel target = $region3
  $region8: #{backbone_forward.2} parent=0 // loop_exit
    _

// kernel: backbone_forward.3
$region0: #{backbone_forward.3}
  #allocation0 [shape = 'u32[]', space=smem, size = 0x4, offset = 0x4, fixed_abs, tag = 'smem constant byte address 0x4 - core index']
  #allocation1 [shape = 'u32[144,128]{1,0:T(1,128)}', space=vmem, size = 0x12000, scoped, tag = 'internal scratch']
  %s0 = inlined_call_operand.vmem [shape: f32[2,5,5,512], index: 0, kind: input, shape index: {}]
  %s1 = inlined_call_operand.vmem [shape: f32[4,512,128], index: 1, kind: input, shape index: {}]
  %s2 = inlined_call_operand.vmem [shape: f32[1,128], index: 2, kind: input, shape index: {}]
  %s3 = inlined_call_operand.vmem [shape: f32[128,128], index: 3, kind: input, shape index: {}]
  %s4 = inlined_call_operand.vmem [shape: f32[1,128], index: 4, kind: input, shape index: {}]
  %s5 = inlined_call_operand.hbm [shape: f32[2,1,128], index: 5, kind: output, shape index: {}]
  %s6 = sld [smem:[#allocation0]]
  $region53: #{backbone_forward.3} parent=0
    _
  %s8 = ssub.s32 1, %s6
  %s9 = scalar_select 0, %s8, %s6
  $region1: #{backbone_forward.3} parent=0
    #allocation2 [shape = 'u8[1024]{0}', space=vmem, size = 0x400, scoped, tag = 'output window, operand 0']
    #allocation3 [shape = 's32[2]{0}', space=sflag, size = 0x8, scoped, tag = 'scoped memory for backbone_forward.3']
    %10 = vsyncpa [#allocation3], 0
    %s11 = scalar_lea.sflag [#allocation3], 1
    %12 = vsyncpa %s11, 0
    loop: start=0, step=1, limit=4
    $region2: #{backbone_forward.3} parent=1 // loop_pre_header
      _
    $region3: #{backbone_forward.3} parent=1 // loop_header
      %s14 = sphi 0, %s18
      %p15 = scmp.ge.s32.totalorder %s14, 4
      %s24 = sphi 0, %s26
      %s27 = sphi 0, %s24
      %s28 = sphi 0, %s27
      %s44 = sphi 0, %s28
      %s48 = sphi 0, %s48
      %s50 = sphi 0, %s48
      %s51 = sphi 0, %s50
      %s65 = sphi 0, %s51
      %s69 = sphi 0, %s69
      %s71 = sphi 0, %s69
      %s72 = sphi 0, %s71
      %s86 = sphi 0, %s72
      %s90 = sphi 0, %s90
      %s92 = sphi 0, %s90
      %s93 = sphi 0, %s92
      %s107 = sphi 0, %s93
      %s111 = sphi 0, %s111
      %s113 = sphi 0, %s111
      %s114 = sphi 0, %s113
      %s128 = sphi 0, %s114
      %s134 = sphi 0, %s136
      %s137 = sphi 0, %s134
      %s138 = sphi 0, %s137
      %s154 = sphi 0, %s138
    $region4: #{backbone_forward.3} parent=1 // loop_header_branch
      %17 = sbr.rel (%p15) target = $region8
    $region5: #{backbone_forward.3} parent=1 // loop_body
      %s19 = ssub.s32 %s14, 1
      %s20 = ssub.s32 %s14, 2
      %s21 = sadd.s32 %s14, 1
      %s22 = ssub.s32 %s14, %s21
      %p23 = scmp.eq.s32.totalorder %s22, 0
      %s25 = sadd.s32 %s24, 1
      %s26 = scalar_select %p23, %s24, %s25
      %p29 = pneg %p23
      %p30 = scmp.eq.s32.totalorder %s14, 1
      %p31 = por %p29, %p30
      %p32 = scmp.ne.s32.totalorder %s24, %s27
      %p33 = scmp.eq.s32.totalorder %s14, 0
      %p34 = por %p32, %p33
      %p35 = scmp.ne.s32.totalorder %s24, %s27
      %p36 = scmp.eq.s32.totalorder %s19, 1
      %p37 = por %p35, %p36
      %p38 = scmp.ne.s32.totalorder %s27, %s28
      %p39 = scmp.eq.s32.totalorder %s19, 0
      %p40 = por %p38, %p39
      %p41 = scmp.ne.s32.totalorder %s27, %s28
      %p42 = scmp.eq.s32.totalorder %s20, 1
      %p43 = por %p41, %p42
      %p45 = scmp.ne.s32.totalorder %s28, %s44
      %p46 = scmp.eq.s32.totalorder %s20, 0
      %p47 = por %p45, %p46
      %s49 = sadd.s32 %s48, 1
      %p52 = scmp.eq.s32.totalorder %s14, 1
      %p53 = scmp.ne.s32.totalorder %s48, %s50
      %p54 = scmp.eq.s32.totalorder %s14, 0
      %p55 = por %p53, %p54
      %p56 = scmp.ne.s32.totalorder %s48, %s50
      %p57 = scmp.eq.s32.totalorder %s19, 1
      %p58 = por %p56, %p57
      %p59 = scmp.ne.s32.totalorder %s50, %s51
      %p60 = scmp.eq.s32.totalorder %s19, 0
      %p61 = por %p59, %p60
      %p62 = scmp.ne.s32.totalorder %s50, %s51
      %p63 = scmp.eq.s32.totalorder %s20, 1
      %p64 = por %p62, %p63
      %p66 = scmp.ne.s32.totalorder %s51, %s65
      %p67 = scmp.eq.s32.totalorder %s20, 0
      %p68 = por %p66, %p67
      %s70 = sadd.s32 %s69, 1
      %p73 = scmp.eq.s32.totalorder %s14, 1
      %p74 = scmp.ne.s32.totalorder %s69, %s71
      %p75 = scmp.eq.s32.totalorder %s14, 0
      %p76 = por %p74, %p75
      %p77 = scmp.ne.s32.totalorder %s69, %s71
      %p78 = scmp.eq.s32.totalorder %s19, 1
      %p79 = por %p77, %p78
      %p80 = scmp.ne.s32.totalorder %s71, %s72
      %p81 = scmp.eq.s32.totalorder %s19, 0
      %p82 = por %p80, %p81
      %p83 = scmp.ne.s32.totalorder %s71, %s72
      %p84 = scmp.eq.s32.totalorder %s20, 1
      %p85 = por %p83, %p84
      %p87 = scmp.ne.s32.totalorder %s72, %s86
      %p88 = scmp.eq.s32.totalorder %s20, 0
      %p89 = por %p87, %p88
      %s91 = sadd.s32 %s90, 1
      %p94 = scmp.eq.s32.totalorder %s14, 1
      %p95 = scmp.ne.s32.totalorder %s90, %s92
      %p96 = scmp.eq.s32.totalorder %s14, 0
      %p97 = por %p95, %p96
      %p98 = scmp.ne.s32.totalorder %s90, %s92
      %p99 = scmp.eq.s32.totalorder %s19, 1
      %p100 = por %p98, %p99
      %p101 = scmp.ne.s32.totalorder %s92, %s93
      %p102 = scmp.eq.s32.totalorder %s19, 0
      %p103 = por %p101, %p102
      %p104 = scmp.ne.s32.totalorder %s92, %s93
      %p105 = scmp.eq.s32.totalorder %s20, 1
      %p106 = por %p104, %p105
      %p108 = scmp.ne.s32.totalorder %s93, %s107
      %p109 = scmp.eq.s32.totalorder %s20, 0
      %p110 = por %p108, %p109
      %s112 = sadd.s32 %s111, 1
      %p115 = scmp.eq.s32.totalorder %s14, 1
      %p116 = scmp.ne.s32.totalorder %s111, %s113
      %p117 = scmp.eq.s32.totalorder %s14, 0
      %p118 = por %p116, %p117
      %p119 = scmp.ne.s32.totalorder %s111, %s113
      %p120 = scmp.eq.s32.totalorder %s19, 1
      %p121 = por %p119, %p120
      %p122 = scmp.ne.s32.totalorder %s113, %s114
      %p123 = scmp.eq.s32.totalorder %s19, 0
      %p124 = por %p122, %p123
      %p125 = scmp.ne.s32.totalorder %s113, %s114
      %p126 = scmp.eq.s32.totalorder %s20, 1
      %p127 = por %p125, %p126
      %p129 = scmp.ne.s32.totalorder %s114, %s128
      %p130 = scmp.eq.s32.totalorder %s20, 0
      %p131 = por %p129, %p130
      %s132 = ssub.s32 %s14, %s21
      %p133 = scmp.eq.s32.totalorder %s132, 0
      %s135 = sadd.s32 %s134, 1
      %s136 = scalar_select %p133, %s134, %s135
      %p139 = pneg %p133
      %p140 = scmp.eq.s32.totalorder %s14, 1
      %p141 = por %p139, %p140
      %p142 = scmp.ne.s32.totalorder %s134, %s137
      %p143 = scmp.eq.s32.totalorder %s14, 0
      %p144 = por %p142, %p143
      %p145 = scmp.ne.s32.totalorder %s134, %s137
      %p146 = scmp.eq.s32.totalorder %s19, 1
      %p147 = por %p145, %p146
      %p148 = scmp.ne.s32.totalorder %s137, %s138
      %p149 = scmp.eq.s32.totalorder %s19, 0
      %p150 = por %p148, %p149
      %p151 = scmp.ne.s32.totalorder %s137, %s138
      %p152 = scmp.eq.s32.totalorder %s20, 1
      %p153 = por %p151, %p152
      %p155 = scmp.ne.s32.totalorder %s138, %s154
      %p156 = scmp.eq.s32.totalorder %s20, 0
      %p157 = por %p155, %p156
      %p158 = scmp.le.s32.totalorder 1, %s14
      %p159 = scmp.lt.s32.totalorder %s14, 3
      %p160 = pnand %p158, %p159
      %p161 = pneg %p160
      // Predicated region
      $region9: #{backbone_forward.3} parent=5 // pred_check
        _
      $region10: #{backbone_forward.3} parent=5 // pred_check_branch
        %163 = sbr.rel (%p160) target = $region12
      $region11: #{backbone_forward.3} parent=5 // pred_region
        %s164 = ssub.s32 %s14, 1
        // Predicated region
        $region13: #{backbone_forward.3} parent=11 // pred_check
          %p165 = pneg %p61
        $region14: #{backbone_forward.3} parent=11 // pred_check_branch
          %167 = sbr.rel (%p165) target = $region16
        $region15: #{backbone_forward.3} parent=11 // pred_region
          _
        $region16: #{backbone_forward.3} parent=11 // pred_fallthru
          _
        // Predicated region
        $region17: #{backbone_forward.3} parent=11 // pred_check
          %p168 = pneg %p82
        $region18: #{backbone_forward.3} parent=11 // pred_check_branch
          %170 = sbr.rel (%p168) target = $region20
        $region19: #{backbone_forward.3} parent=11 // pred_region
          _
        $region20: #{backbone_forward.3} parent=11 // pred_fallthru
          _
        // Predicated region
        $region21: #{backbone_forward.3} parent=11 // pred_check
          %p171 = pneg %p103
        $region22: #{backbone_forward.3} parent=11 // pred_check_branch
          %173 = sbr.rel (%p171) target = $region24
        $region23: #{backbone_forward.3} parent=11 // pred_region
          _
        $region24: #{backbone_forward.3} parent=11 // pred_fallthru
          _
        // Predicated region
        $region25: #{backbone_forward.3} parent=11 // pred_check
          %p174 = pneg %p124
        $region26: #{backbone_forward.3} parent=11 // pred_check_branch
          %176 = sbr.rel (%p174) target = $region28
        $region27: #{backbone_forward.3} parent=11 // pred_region
          _
        $region28: #{backbone_forward.3} parent=11 // pred_fallthru
          _
      $region12: #{backbone_forward.3} parent=5 // pred_fallthru
        _
      %p177 = scmp.lt.s32.totalorder %s14, 2
      // Predicated region
      $region29: #{backbone_forward.3} parent=5 // pred_check
        %p178 = pneg %p177
      $region30: #{backbone_forward.3} parent=5 // pred_check_branch
        %180 = sbr.rel (%p178) target = $region32
      $region31: #{backbone_forward.3} parent=5 // pred_region
        // Predicated region
        $region33: #{backbone_forward.3} parent=31 // pred_check
          %p181 = pneg %p34
        $region34: #{backbone_forward.3} parent=31 // pred_check_branch
          %183 = sbr.rel (%p181) target = $region36
        $region35: #{backbone_forward.3} parent=31 // pred_region
          %p184 = scmp.lt.s32.totalorder %s14, 1
          %s185 = scalar_select %p184, %s14, 1
          %s186 = smul.addr %s185, 20
          %s187 = smul.addr %s186, 8
          %s188 = scalar_lea.vmem %s0, %s187
        $region36: #{backbone_forward.3} parent=31 // pred_fallthru
          _
      $region32: #{backbone_forward.3} parent=5 // pred_fallthru
        _
      %p189 = scmp.le.s32.totalorder 1, %s14
      %p190 = scmp.lt.s32.totalorder %s14, 3
      %p191 = pnand %p189, %p190
      %p192 = pneg %p191
      // Predicated region
      $region37: #{backbone_forward.3} parent=5 // pred_check
        _
      $region38: #{backbone_forward.3} parent=5 // pred_check_branch
        %194 = sbr.rel (%p191) target = $region40
      $region39: #{backbone_forward.3} parent=5 // pred_region
        %s195 = ssub.s32 %s14, 1
        %p196 = scmp.lt.s32.totalorder %s19, 1
        %s197 = scalar_select %p196, %s19, 1
        %s198 = smul.addr %s197, 20
        %s199 = smul.addr %s198, 8
        %s200 = scalar_lea.vmem %s0, %s199
        %p201 = pneg %p40
        %p202 = pneg %p37
        %p203 = pneg %p61
        %p204 = pneg %p58
        %p205 = pneg %p82
        %p206 = pneg %p79
        %p207 = pneg %p103
        %p208 = pneg %p100
        %p209 = pneg %p124
        %p210 = pneg %p121
        %p211 = pneg %p150
        %p212 = pneg %p147
        %s213 = sand.u32 %s137, 1
        %s214 = scalar_lea.sflag [#allocation3], %s213
        %s215 = sand.u32 %s137, 1
        %s216 = scalar_lea.vmem [#allocation2], %s215
        %p217 = scmp.lt.s32.totalorder %s19, 1
        %s218 = scalar_select %p217, %s19, 1
        %s219 = smul.addr %s218, 20
        %s220 = smul.addr %s219, 8
        %s221 = scalar_lea.vmem %s0, %s220
        %v222 = vld [vmem:[%s2] sm:$0x1]
        %v223 = vld [vmem:[%s221] sm:$0xf]
        %v224 = vld [vmem:[%s221 + $0x8] sm:$0xf]
        %v225 = vld [vmem:[%s221 + $0x10] sm:$0xf]
        %v226 = vld [vmem:[%s221 + $0x18] sm:$0xf]
        %v227 = vld [vmem:[%s1] sm:$0xff]
        %v228 = vld [vmem:[%s1 + $0x8] sm:$0xff]
        %v229 = vld [vmem:[%s1 + $0x10] sm:$0xff]
        %v230 = vld [vmem:[%s1 + $0x18] sm:$0xff]
        %v231 = vld [vmem:[%s1 + $0x20] sm:$0xff]
        %v232 = vld [vmem:[%s1 + $0x28] sm:$0xff]
        %v233 = vld [vmem:[%s1 + $0x30] sm:$0xff]
        %v234 = vld [vmem:[%s1 + $0x38] sm:$0xff]
        %v235 = vld [vmem:[%s1 + $0x40] sm:$0xff]
        %v236 = vld [vmem:[%s1 + $0x48] sm:$0xff]
        %v237 = vld [vmem:[%s1 + $0x50] sm:$0xff]
        %v238 = vld [vmem:[%s1 + $0x58] sm:$0xff]
        %v239 = vld [vmem:[%s1 + $0x60] sm:$0xff]
        %v240 = vld [vmem:[%s1 + $0x68] sm:$0xff]
        %v241 = vld [vmem:[%s1 + $0x70] sm:$0xff]
        %v242 = vld [vmem:[%s1 + $0x78] sm:$0xff]
        %v243 = vld [vmem:[%s1 + $0x80] sm:$0xff]
        %v244 = vld [vmem:[%s1 + $0x88] sm:$0xff]
        %v245 = vld [vmem:[%s1 + $0x90] sm:$0xff]
        %v246 = vld [vmem:[%s1 + $0x98] sm:$0xff]
        %v247 = vld [vmem:[%s1 + $0xa0] sm:$0xff]
        %v248 = vld [vmem:[%s1 + $0xa8] sm:$0xff]
        %v249 = vld [vmem:[%s1 + $0xb0] sm:$0xff]
        %v250 = vld [vmem:[%s1 + $0xb8] sm:$0xff]
        %v251 = vld [vmem:[%s1 + $0xc0] sm:$0xff]
        %v252 = vld [vmem:[%s1 + $0xc8] sm:$0xff]
        %v253 = vld [vmem:[%s1 + $0xd0] sm:$0xff]
        %v254 = vld [vmem:[%s1 + $0xd8] sm:$0xff]
        %v255 = vld [vmem:[%s1 + $0xe0] sm:$0xff]
        %v256 = vld [vmem:[%s1 + $0xe8] sm:$0xff]
        %v257 = vld [vmem:[%s1 + $0xf0] sm:$0xff]
        %v258 = vld [vmem:[%s1 + $0xf8] sm:$0xff]
        %v259 = vld [vmem:[%s1 + $0x100] sm:$0xff]
        %v260 = vld [vmem:[%s1 + $0x108] sm:$0xff]
        %v261 = vld [vmem:[%s1 + $0x110] sm:$0xff]
        %v262 = vld [vmem:[%s1 + $0x118] sm:$0xff]
        %v263 = vld [vmem:[%s1 + $0x120] sm:$0xff]
        %v264 = vld [vmem:[%s1 + $0x128] sm:$0xff]
        %v265 = vld [vmem:[%s1 + $0x130] sm:$0xff]
        %v266 = vld [vmem:[%s1 + $0x138] sm:$0xff]
        %v267 = vld [vmem:[%s1 + $0x140] sm:$0xff]
        %v268 = vld [vmem:[%s1 + $0x148] sm:$0xff]
        %v269 = vld [vmem:[%s1 + $0x150] sm:$0xff]
        %v270 = vld [vmem:[%s1 + $0x158] sm:$0xff]
        %v271 = vld [vmem:[%s1 + $0x160] sm:$0xff]
        %v272 = vld [vmem:[%s1 + $0x168] sm:$0xff]
        %v273 = vld [vmem:[%s1 + $0x170] sm:$0xff]
        %v274 = vld [vmem:[%s1 + $0x178] sm:$0xff]
        %v275 = vld [vmem:[%s1 + $0x180] sm:$0xff]
        %v276 = vld [vmem:[%s1 + $0x188] sm:$0xff]
        %v277 = vld [vmem:[%s1 + $0x190] sm:$0xff]
        %v278 = vld [vmem:[%s1 + $0x198] sm:$0xff]
        %v279 = vld [vmem:[%s1 + $0x1a0] sm:$0xff]
        %v280 = vld [vmem:[%s1 + $0x1a8] sm:$0xff]
        %v281 = vld [vmem:[%s1 + $0x1b0] sm:$0xff]
        %v282 = vld [vmem:[%s1 + $0x1b8] sm:$0xff]
        %v283 = vld [vmem:[%s1 + $0x1c0] sm:$0xff]
        %v284 = vld [vmem:[%s1 + $0x1c8] sm:$0xff]
        %v285 = vld [vmem:[%s1 + $0x1d0] sm:$0xff]
        %v286 = vld [vmem:[%s1 + $0x1d8] sm:$0xff]
        %v287 = vld [vmem:[%s1 + $0x1e0] sm:$0xff]
        %v288 = vld [vmem:[%s1 + $0x1e8] sm:$0xff]
        %v289 = vld [vmem:[%s1 + $0x1f0] sm:$0xff]
        %v290 = vld [vmem:[%s1 + $0x1f8] sm:$0xff]
        %v291 = vld [vmem:[%s221] sm:$0x1e]
        %v292 = vld [vmem:[%s221 + $0x8] sm:$0x1e]
        %v293 = vld [vmem:[%s221 + $0x10] sm:$0x1e]
        %v294 = vld [vmem:[%s221 + $0x18] sm:$0x1e]
        %s295 = scalar_lea.vmem %s1, 512
        %v296 = vld [vmem:[%s295] sm:$0xff]
        %v297 = vld [vmem:[%s295 + $0x8] sm:$0xff]
        %v298 = vld [vmem:[%s295 + $0x10] sm:$0xff]
        %v299 = vld [vmem:[%s295 + $0x18] sm:$0xff]
        %v300 = vld [vmem:[%s295 + $0x20] sm:$0xff]
        %v301 = vld [vmem:[%s295 + $0x28] sm:$0xff]
        %v302 = vld [vmem:[%s295 + $0x30] sm:$0xff]
        %v303 = vld [vmem:[%s295 + $0x38] sm:$0xff]
        %v304 = vld [vmem:[%s295 + $0x40] sm:$0xff]
        %v305 = vld [vmem:[%s295 + $0x48] sm:$0xff]
        %v306 = vld [vmem:[%s295 + $0x50] sm:$0xff]
        %v307 = vld [vmem:[%s295 + $0x58] sm:$0xff]
        %v308 = vld [vmem:[%s295 + $0x60] sm:$0xff]
        %v309 = vld [vmem:[%s295 + $0x68] sm:$0xff]
        %v310 = vld [vmem:[%s295 + $0x70] sm:$0xff]
        %v311 = vld [vmem:[%s295 + $0x78] sm:$0xff]
        %v312 = vld [vmem:[%s295 + $0x80] sm:$0xff]
        %v313 = vld [vmem:[%s295 + $0x88] sm:$0xff]
        %v314 = vld [vmem:[%s295 + $0x90] sm:$0xff]
        %v315 = vld [vmem:[%s295 + $0x98] sm:$0xff]
        %v316 = vld [vmem:[%s295 + $0xa0] sm:$0xff]
        %v317 = vld [vmem:[%s295 + $0xa8] sm:$0xff]
        %v318 = vld [vmem:[%s295 + $0xb0] sm:$0xff]
        %v319 = vld [vmem:[%s295 + $0xb8] sm:$0xff]
        %v320 = vld [vmem:[%s295 + $0xc0] sm:$0xff]
        %v321 = vld [vmem:[%s295 + $0xc8] sm:$0xff]
        %v322 = vld [vmem:[%s295 + $0xd0] sm:$0xff]
        %v323 = vld [vmem:[%s295 + $0xd8] sm:$0xff]
        %v324 = vld [vmem:[%s295 + $0xe0] sm:$0xff]
        %v325 = vld [vmem:[%s295 + $0xe8] sm:$0xff]
        %v326 = vld [vmem:[%s295 + $0xf0] sm:$0xff]
        %v327 = vld [vmem:[%s295 + $0xf8] sm:$0xff]
        %v328 = vld [vmem:[%s295 + $0x100] sm:$0xff]
        %v329 = vld [vmem:[%s295 + $0x108] sm:$0xff]
        %v330 = vld [vmem:[%s295 + $0x110] sm:$0xff]
        %v331 = vld [vmem:[%s295 + $0x118] sm:$0xff]
        %v332 = vld [vmem:[%s295 + $0x120] sm:$0xff]
        %v333 = vld [vmem:[%s295 + $0x128] sm:$0xff]
        %v334 = vld [vmem:[%s295 + $0x130] sm:$0xff]
        %v335 = vld [vmem:[%s295 + $0x138] sm:$0xff]
        %v336 = vld [vmem:[%s295 + $0x140] sm:$0xff]
        %v337 = vld [vmem:[%s295 + $0x148] sm:$0xff]
        %v338 = vld [vmem:[%s295 + $0x150] sm:$0xff]
        %v339 = vld [vmem:[%s295 + $0x158] sm:$0xff]
        %v340 = vld [vmem:[%s295 + $0x160] sm:$0xff]
        %v341 = vld [vmem:[%s295 + $0x168] sm:$0xff]
        %v342 = vld [vmem:[%s295 + $0x170] sm:$0xff]
        %v343 = vld [vmem:[%s295 + $0x178] sm:$0xff]
        %v344 = vld [vmem:[%s295 + $0x180] sm:$0xff]
        %v345 = vld [vmem:[%s295 + $0x188] sm:$0xff]
        %v346 = vld [vmem:[%s295 + $0x190] sm:$0xff]
        %v347 = vld [vmem:[%s295 + $0x198] sm:$0xff]
        %v348 = vld [vmem:[%s295 + $0x1a0] sm:$0xff]
        %v349 = vld [vmem:[%s295 + $0x1a8] sm:$0xff]
        %v350 = vld [vmem:[%s295 + $0x1b0] sm:$0xff]
        %v351 = vld [vmem:[%s295 + $0x1b8] sm:$0xff]
        %v352 = vld [vmem:[%s295 + $0x1c0] sm:$0xff]
        %v353 = vld [vmem:[%s295 + $0x1c8] sm:$0xff]
        %v354 = vld [vmem:[%s295 + $0x1d0] sm:$0xff]
        %v355 = vld [vmem:[%s295 + $0x1d8] sm:$0xff]
        %v356 = vld [vmem:[%s295 + $0x1e0] sm:$0xff]
        %v357 = vld [vmem:[%s295 + $0x1e8] sm:$0xff]
        %v358 = vld [vmem:[%s295 + $0x1f0] sm:$0xff]
        %v359 = vld [vmem:[%s295 + $0x1f8] sm:$0xff]
        %v364 = vrot.slane %v291, 1
        %v365 = vrot.slane %v292, 1
        %v366 = vrot.slane %v293, 1
        %v367 = vrot.slane %v294, 1
        %372 = vmatprep.subr.mxu0 0.0
        %373 = vmatpush1.msra.mxu0 %v296
        %374 = vmatprep.subr.mxu0 0.0
        %375 = vmatpush1.msra.mxu0 %v297
        %376 = vmatprep.subr.mxu0 0.0
        %377 = vmatpush1.msra.mxu0 %v298
        %378 = vmatprep.subr.mxu0 0.0
        %379 = vmatpush1.msra.mxu0 %v299
        %380 = vmatprep.subr.mxu0 0.0
        %381 = vmatpush1.msra.mxu0 %v300
        %382 = vmatprep.subr.mxu0 0.0
        %383 = vmatpush1.msra.mxu0 %v301
        %384 = vmatprep.subr.mxu0 0.0
        %385 = vmatpush1.msra.mxu0 %v302
        %386 = vmatprep.subr.mxu0 0.0
        %387 = vmatpush1.msra.mxu0 %v303
        %388 = vmatprep.subr.mxu0 0.0
        %389 = vmatpush1.msra.mxu0 %v304
        %390 = vmatprep.subr.mxu0 0.0
        %391 = vmatpush1.msra.mxu0 %v305
        %392 = vmatprep.subr.mxu0 0.0
        %393 = vmatpush1.msra.mxu0 %v306
        %394 = vmatprep.subr.mxu0 0.0
        %395 = vmatpush1.msra.mxu0 %v307
        %396 = vmatprep.subr.mxu0 0.0
        %397 = vmatpush1.msra.mxu0 %v308
        %398 = vmatprep.subr.mxu0 0.0
        %399 = vmatpush1.msra.mxu0 %v309
        %400 = vmatprep.subr.mxu0 0.0
        %401 = vmatpush1.msra.mxu0 %v310
        %402 = vmatprep.subr.mxu0 0.0
        %403 = vmatpush1.msra.mxu0 %v311
        %404 = vmatprep.subr.mxu0 0.0
        %405 = vmatpush1.msra.mxu0 %v312
        %406 = vmatprep.subr.mxu0 0.0
        %407 = vmatpush1.msra.mxu0 %v313
        %408 = vmatprep.subr.mxu0 0.0
        %409 = vmatpush1.msra.mxu0 %v314
        %410 = vmatprep.subr.mxu0 0.0
        %411 = vmatpush1.msra.mxu0 %v315
        %412 = vmatprep.subr.mxu0 0.0
        %413 = vmatpush1.msra.mxu0 %v316
        %414 = vmatprep.subr.mxu0 0.0
        %415 = vmatpush1.msra.mxu0 %v317
        %416 = vmatprep.subr.mxu0 0.0
        %417 = vmatpush1.msra.mxu0 %v318
        %418 = vmatprep.subr.mxu0 0.0
        %419 = vmatpush1.msra.mxu0 %v319
        %420 = vmatprep.subr.mxu0 0.0
        %421 = vmatpush1.msra.mxu0 %v320
        %422 = vmatprep.subr.mxu0 0.0
        %423 = vmatpush1.msra.mxu0 %v321
        %424 = vmatprep.subr.mxu0 0.0
        %425 = vmatpush1.msra.mxu0 %v322
        %426 = vmatprep.subr.mxu0 0.0
        %427 = vmatpush1.msra.mxu0 %v323
        %428 = vmatprep.subr.mxu0 0.0
        %429 = vmatpush1.msra.mxu0 %v324
        %430 = vmatprep.subr.mxu0 0.0
        %431 = vmatpush1.msra.mxu0 %v325
        %432 = vmatprep.subr.mxu0 0.0
        %433 = vmatpush1.msra.mxu0 %v326
        %434 = vmatprep.subr.mxu0 0.0
        %435 = vmatpush1.msra.mxu0 %v327
        %436 = vmatprep.mubr.f32.mxu0 %v365
        %437 = vmatmul.mubr.f32.gmra.mrb[0].mxu0 %v364
        %v438 = vpop.f32.mrb[0].mxu0
        %v439 = vadd.f32 0.0, %v438
        %v440 = vpop.f32.mrb[0].mxu0
        %441 = vdwg.mxu0
        %442 = vmatprep.subr.mxu0 0.0
        %443 = vmatpush1.msra.mxu0 %v328
        %444 = vmatprep.subr.mxu0 0.0
        %445 = vmatpush1.msra.mxu0 %v329
        %446 = vmatprep.subr.mxu0 0.0
        %447 = vmatpush1.msra.mxu0 %v330
        %448 = vmatprep.subr.mxu0 0.0
        %449 = vmatpush1.msra.mxu0 %v331
        %450 = vmatprep.subr.mxu0 0.0
        %451 = vmatpush1.msra.mxu0 %v332
        %452 = vmatprep.subr.mxu0 0.0
        %453 = vmatpush1.msra.mxu0 %v333
        %454 = vmatprep.subr.mxu0 0.0
        %455 = vmatpush1.msra.mxu0 %v334
        %456 = vmatprep.subr.mxu0 0.0
        %457 = vmatpush1.msra.mxu0 %v335
        %458 = vmatprep.subr.mxu0 0.0
        %459 = vmatpush1.msra.mxu0 %v336
        %460 = vmatprep.subr.mxu0 0.0
        %461 = vmatpush1.msra.mxu0 %v337
        %462 = vmatprep.subr.mxu0 0.0
        %463 = vmatpush1.msra.mxu0 %v338
        %464 = vmatprep.subr.mxu0 0.0
        %465 = vmatpush1.msra.mxu0 %v339
        %466 = vmatprep.subr.mxu0 0.0
        %467 = vmatpush1.msra.mxu0 %v340
        %468 = vmatprep.subr.mxu0 0.0
        %469 = vmatpush1.msra.mxu0 %v341
        %470 = vmatprep.subr.mxu0 0.0
        %471 = vmatpush1.msra.mxu0 %v342
        %472 = vmatprep.subr.mxu0 0.0
        %473 = vmatpush1.msra.mxu0 %v343
        %474 = vmatprep.subr.mxu0 0.0
        %475 = vmatpush1.msra.mxu0 %v344
        %476 = vmatprep.subr.mxu0 0.0
        %477 = vmatpush1.msra.mxu0 %v345
        %478 = vmatprep.subr.mxu0 0.0
        %479 = vmatpush1.msra.mxu0 %v346
        %480 = vmatprep.subr.mxu0 0.0
        %481 = vmatpush1.msra.mxu0 %v347
        %482 = vmatprep.subr.mxu0 0.0
        %483 = vmatpush1.msra.mxu0 %v348
        %484 = vmatprep.subr.mxu0 0.0
        %485 = vmatpush1.msra.mxu0 %v349
        %486 = vmatprep.subr.mxu0 0.0
        %487 = vmatpush1.msra.mxu0 %v350
        %488 = vmatprep.subr.mxu0 0.0
        %489 = vmatpush1.msra.mxu0 %v351
        %490 = vmatprep.subr.mxu0 0.0
        %491 = vmatpush1.msra.mxu0 %v352
        %492 = vmatprep.subr.mxu0 0.0
        %493 = vmatpush1.msra.mxu0 %v353
        %494 = vmatprep.subr.mxu0 0.0
        %495 = vmatpush1.msra.mxu0 %v354
        %496 = vmatprep.subr.mxu0 0.0
        %497 = vmatpush1.msra.mxu0 %v355
        %498 = vmatprep.subr.mxu0 0.0
        %499 = vmatpush1.msra.mxu0 %v356
        %500 = vmatprep.subr.mxu0 0.0
        %501 = vmatpush1.msra.mxu0 %v357
        %502 = vmatprep.subr.mxu0 0.0
        %503 = vmatpush1.msra.mxu0 %v358
        %504 = vmatprep.subr.mxu0 0.0
        %505 = vmatpush1.msra.mxu0 %v359
        %506 = vmatprep.mubr.f32.mxu0 %v367
        %507 = vmatmul.mubr.f32.gmra.mrb[0].mxu0 %v366
        %v508 = vpop.f32.mrb[0].mxu0
        %v509 = vadd.f32 %v439, %v508
        %v510 = vpop.f32.mrb[0].mxu0
        %511 = vdwg.mxu0
        %512 = vmatprep.subr.mxu0 0.0
        %513 = vmatpush1.msra.mxu0 %v227
        %514 = vmatprep.subr.mxu0 0.0
        %515 = vmatpush1.msra.mxu0 %v228
        %516 = vmatprep.subr.mxu0 0.0
        %517 = vmatpush1.msra.mxu0 %v229
        %518 = vmatprep.subr.mxu0 0.0
        %519 = vmatpush1.msra.mxu0 %v230
        %520 = vmatprep.subr.mxu0 0.0
        %521 = vmatpush1.msra.mxu0 %v231
        %522 = vmatprep.subr.mxu0 0.0
        %523 = vmatpush1.msra.mxu0 %v232
        %524 = vmatprep.subr.mxu0 0.0
        %525 = vmatpush1.msra.mxu0 %v233
        %526 = vmatprep.subr.mxu0 0.0
        %527 = vmatpush1.msra.mxu0 %v234
        %528 = vmatprep.subr.mxu0 0.0
        %529 = vmatpush1.msra.mxu0 %v235
        %530 = vmatprep.subr.mxu0 0.0
        %531 = vmatpush1.msra.mxu0 %v236
        %532 = vmatprep.subr.mxu0 0.0
        %533 = vmatpush1.msra.mxu0 %v237
        %534 = vmatprep.subr.mxu0 0.0
        %535 = vmatpush1.msra.mxu0 %v238
        %536 = vmatprep.subr.mxu0 0.0
        %537 = vmatpush1.msra.mxu0 %v239
        %538 = vmatprep.subr.mxu0 0.0
        %539 = vmatpush1.msra.mxu0 %v240
        %540 = vmatprep.subr.mxu0 0.0
        %541 = vmatpush1.msra.mxu0 %v241
        %542 = vmatprep.subr.mxu0 0.0
        %543 = vmatpush1.msra.mxu0 %v242
        %544 = vmatprep.subr.mxu0 0.0
        %545 = vmatpush1.msra.mxu0 %v243
        %546 = vmatprep.subr.mxu0 0.0
        %547 = vmatpush1.msra.mxu0 %v244
        %548 = vmatprep.subr.mxu0 0.0
        %549 = vmatpush1.msra.mxu0 %v245
        %550 = vmatprep.subr.mxu0 0.0
        %551 = vmatpush1.msra.mxu0 %v246
        %552 = vmatprep.subr.mxu0 0.0
        %553 = vmatpush1.msra.mxu0 %v247
        %554 = vmatprep.subr.mxu0 0.0
        %555 = vmatpush1.msra.mxu0 %v248
        %556 = vmatprep.subr.mxu0 0.0
        %557 = vmatpush1.msra.mxu0 %v249
        %558 = vmatprep.subr.mxu0 0.0
        %559 = vmatpush1.msra.mxu0 %v250
        %560 = vmatprep.subr.mxu0 0.0
        %561 = vmatpush1.msra.mxu0 %v251
        %562 = vmatprep.subr.mxu0 0.0
        %563 = vmatpush1.msra.mxu0 %v252
        %564 = vmatprep.subr.mxu0 0.0
        %565 = vmatpush1.msra.mxu0 %v253
        %566 = vmatprep.subr.mxu0 0.0
        %567 = vmatpush1.msra.mxu0 %v254
        %568 = vmatprep.subr.mxu0 0.0
        %569 = vmatpush1.msra.mxu0 %v255
        %570 = vmatprep.subr.mxu0 0.0
        %571 = vmatpush1.msra.mxu0 %v256
        %572 = vmatprep.subr.mxu0 0.0
        %573 = vmatpush1.msra.mxu0 %v257
        %574 = vmatprep.subr.mxu0 0.0
        %575 = vmatpush1.msra.mxu0 %v258
        %576 = vmatprep.mubr.f32.mxu0 %v224
        %577 = vmatmul.mubr.f32.gmra.mrb[0].mxu0 %v223
        %v578 = vpop.f32.mrb[0].mxu0
        %v579 = vadd.f32 %v509, %v578
        %v580 = vpop.f32.mrb[0].mxu0
        %581 = vdwg.mxu0
        %582 = vmatprep.subr.mxu0 0.0
        %583 = vmatpush1.msra.mxu0 %v259
        %584 = vmatprep.subr.mxu0 0.0
        %585 = vmatpush1.msra.mxu0 %v260
        %586 = vmatprep.subr.mxu0 0.0
        %587 = vmatpush1.msra.mxu0 %v261
        %588 = vmatprep.subr.mxu0 0.0
        %589 = vmatpush1.msra.mxu0 %v262
        %590 = vmatprep.subr.mxu0 0.0
        %591 = vmatpush1.msra.mxu0 %v263
        %592 = vmatprep.subr.mxu0 0.0
        %593 = vmatpush1.msra.mxu0 %v264
        %594 = vmatprep.subr.mxu0 0.0
        %595 = vmatpush1.msra.mxu0 %v265
        %596 = vmatprep.subr.mxu0 0.0
        %597 = vmatpush1.msra.mxu0 %v266
        %598 = vmatprep.subr.mxu0 0.0
        %599 = vmatpush1.msra.mxu0 %v267
        %600 = vmatprep.subr.mxu0 0.0
        %601 = vmatpush1.msra.mxu0 %v268
        %602 = vmatprep.subr.mxu0 0.0
        %603 = vmatpush1.msra.mxu0 %v269
        %604 = vmatprep.subr.mxu0 0.0
        %605 = vmatpush1.msra.mxu0 %v270
        %606 = vmatprep.subr.mxu0 0.0
        %607 = vmatpush1.msra.mxu0 %v271
        %608 = vmatprep.subr.mxu0 0.0
        %609 = vmatpush1.msra.mxu0 %v272
        %610 = vmatprep.subr.mxu0 0.0
        %611 = vmatpush1.msra.mxu0 %v273
        %612 = vmatprep.subr.mxu0 0.0
        %613 = vmatpush1.msra.mxu0 %v274
        %614 = vmatprep.subr.mxu0 0.0
        %615 = vmatpush1.msra.mxu0 %v275
        %616 = vmatprep.subr.mxu0 0.0
        %617 = vmatpush1.msra.mxu0 %v276
        %618 = vmatprep.subr.mxu0 0.0
        %619 = vmatpush1.msra.mxu0 %v277
        %620 = vmatprep.subr.mxu0 0.0
        %621 = vmatpush1.msra.mxu0 %v278
        %622 = vmatprep.subr.mxu0 0.0
        %623 = vmatpush1.msra.mxu0 %v279
        %624 = vmatprep.subr.mxu0 0.0
        %625 = vmatpush1.msra.mxu0 %v280
        %626 = vmatprep.subr.mxu0 0.0
        %627 = vmatpush1.msra.mxu0 %v281
        %628 = vmatprep.subr.mxu0 0.0
        %629 = vmatpush1.msra.mxu0 %v282
        %630 = vmatprep.subr.mxu0 0.0
        %631 = vmatpush1.msra.mxu0 %v283
        %632 = vmatprep.subr.mxu0 0.0
        %633 = vmatpush1.msra.mxu0 %v284
        %634 = vmatprep.subr.mxu0 0.0
        %635 = vmatpush1.msra.mxu0 %v285
        %636 = vmatprep.subr.mxu0 0.0
        %637 = vmatpush1.msra.mxu0 %v286
        %638 = vmatprep.subr.mxu0 0.0
        %639 = vmatpush1.msra.mxu0 %v287
        %640 = vmatprep.subr.mxu0 0.0
        %641 = vmatpush1.msra.mxu0 %v288
        %642 = vmatprep.subr.mxu0 0.0
        %643 = vmatpush1.msra.mxu0 %v289
        %644 = vmatprep.subr.mxu0 0.0
        %645 = vmatpush1.msra.mxu0 %v290
        %646 = vmatprep.mubr.f32.mxu0 %v226
        %647 = vmatmul.mubr.f32.gmra.mrb[0].mxu0 %v225
        %v648 = vpop.f32.mrb[0].mxu0
        %v649 = vadd.f32 %v579, %v648
        %v650 = vpop.f32.mrb[0].mxu0
        %651 = vdwg.mxu0
        %s652 = scalar_lea.vmem %s221, 32
        %v653 = vld [vmem:[%s652] sm:$0xf]
        %v654 = vld [vmem:[%s652 + $0x8] sm:$0xf]
        %v655 = vld [vmem:[%s652 + $0x10] sm:$0xf]
        %v656 = vld [vmem:[%s652 + $0x18] sm:$0xf]
        %s657 = scalar_lea.vmem %s1, 1024
        %v658 = vld [vmem:[%s657] sm:$0xff]
        %v659 = vld [vmem:[%s657 + $0x8] sm:$0xff]
        %v660 = vld [vmem:[%s657 + $0x10] sm:$0xff]
        %v661 = vld [vmem:[%s657 + $0x18] sm:$0xff]
        %v662 = vld [vmem:[%s657 + $0x20] sm:$0xff]
        %v663 = vld [vmem:[%s657 + $0x28] sm:$0xff]
        %v664 = vld [vmem:[%s657 + $0x30] sm:$0xff]
        %v665 = vld [vmem:[%s657 + $0x38] sm:$0xff]
        %v666 = vld [vmem:[%s657 + $0x40] sm:$0xff]
        %v667 = vld [vmem:[%s657 + $0x48] sm:$0xff]
        %v668 = vld [vmem:[%s657 + $0x50] sm:$0xff]
        %v669 = vld [vmem:[%s657 + $0x58] sm:$0xff]
        %v670 = vld [vmem:[%s657 + $0x60] sm:$0xff]
        %v671 = vld [vmem:[%s657 + $0x68] sm:$0xff]
        %v672 = vld [vmem:[%s657 + $0x70] sm:$0xff]
        %v673 = vld [vmem:[%s657 + $0x78] sm:$0xff]
        %v674 = vld [vmem:[%s657 + $0x80] sm:$0xff]
        %v675 = vld [vmem:[%s657 + $0x88] sm:$0xff]
        %v676 = vld [vmem:[%s657 + $0x90] sm:$0xff]
        %v677 = vld [vmem:[%s657 + $0x98] sm:$0xff]
        %v678 = vld [vmem:[%s657 + $0xa0] sm:$0xff]
        %v679 = vld [vmem:[%s657 + $0xa8] sm:$0xff]
        %v680 = vld [vmem:[%s657 + $0xb0] sm:$0xff]
        %v681 = vld [vmem:[%s657 + $0xb8] sm:$0xff]
        %v682 = vld [vmem:[%s657 + $0xc0] sm:$0xff]
        %v683 = vld [vmem:[%s657 + $0xc8] sm:$0xff]
        %v684 = vld [vmem:[%s657 + $0xd0] sm:$0xff]
        %v685 = vld [vmem:[%s657 + $0xd8] sm:$0xff]
        %v686 = vld [vmem:[%s657 + $0xe0] sm:$0xff]
        %v687 = vld [vmem:[%s657 + $0xe8] sm:$0xff]
        %v688 = vld [vmem:[%s657 + $0xf0] sm:$0xff]
        %v689 = vld [vmem:[%s657 + $0xf8] sm:$0xff]
        %v690 = vld [vmem:[%s657 + $0x100] sm:$0xff]
        %v691 = vld [vmem:[%s657 + $0x108] sm:$0xff]
        %v692 = vld [vmem:[%s657 + $0x110] sm:$0xff]
        %v693 = vld [vmem:[%s657 + $0x118] sm:$0xff]
        %v694 = vld [vmem:[%s657 + $0x120] sm:$0xff]
        %v695 = vld [vmem:[%s657 + $0x128] sm:$0xff]
        %v696 = vld [vmem:[%s657 + $0x130] sm:$0xff]
        %v697 = vld [vmem:[%s657 + $0x138] sm:$0xff]
        %v698 = vld [vmem:[%s657 + $0x140] sm:$0xff]
        %v699 = vld [vmem:[%s657 + $0x148] sm:$0xff]
        %v700 = vld [vmem:[%s657 + $0x150] sm:$0xff]
        %v701 = vld [vmem:[%s657 + $0x158] sm:$0xff]
        %v702 = vld [vmem:[%s657 + $0x160] sm:$0xff]
        %v703 = vld [vmem:[%s657 + $0x168] sm:$0xff]
        %v704 = vld [vmem:[%s657 + $0x170] sm:$0xff]
        %v705 = vld [vmem:[%s657 + $0x178] sm:$0xff]
        %v706 = vld [vmem:[%s657 + $0x180] sm:$0xff]
        %v707 = vld [vmem:[%s657 + $0x188] sm:$0xff]
        %v708 = vld [vmem:[%s657 + $0x190] sm:$0xff]
        %v709 = vld [vmem:[%s657 + $0x198] sm:$0xff]
        %v710 = vld [vmem:[%s657 + $0x1a0] sm:$0xff]
        %v711 = vld [vmem:[%s657 + $0x1a8] sm:$0xff]
        %v712 = vld [vmem:[%s657 + $0x1b0] sm:$0xff]
        %v713 = vld [vmem:[%s657 + $0x1b8] sm:$0xff]
        %v714 = vld [vmem:[%s657 + $0x1c0] sm:$0xff]
        %v715 = vld [vmem:[%s657 + $0x1c8] sm:$0xff]
        %v716 = vld [vmem:[%s657 + $0x1d0] sm:$0xff]
        %v717 = vld [vmem:[%s657 + $0x1d8] sm:$0xff]
        %v718 = vld [vmem:[%s657 + $0x1e0] sm:$0xff]
        %v719 = vld [vmem:[%s657 + $0x1e8] sm:$0xff]
        %v720 = vld [vmem:[%s657 + $0x1f0] sm:$0xff]
        %v721 = vld [vmem:[%s657 + $0x1f8] sm:$0xff]
        %722 = vmatprep.subr.mxu0 0.0
        %723 = vmatpush1.msra.mxu0 %v658
        %724 = vmatprep.subr.mxu0 0.0
        %725 = vmatpush1.msra.mxu0 %v659
        %726 = vmatprep.subr.mxu0 0.0
        %727 = vmatpush1.msra.mxu0 %v660
        %728 = vmatprep.subr.mxu0 0.0
        %729 = vmatpush1.msra.mxu0 %v661
        %730 = vmatprep.subr.mxu0 0.0
        %731 = vmatpush1.msra.mxu0 %v662
        %732 = vmatprep.subr.mxu0 0.0
        %733 = vmatpush1.msra.mxu0 %v663
        %734 = vmatprep.subr.mxu0 0.0
        %735 = vmatpush1.msra.mxu0 %v664
        %736 = vmatprep.subr.mxu0 0.0
        %737 = vmatpush1.msra.mxu0 %v665
        %738 = vmatprep.subr.mxu0 0.0
        %739 = vmatpush1.msra.mxu0 %v666
        %740 = vmatprep.subr.mxu0 0.0
        %741 = vmatpush1.msra.mxu0 %v667
        %742 = vmatprep.subr.mxu0 0.0
        %743 = vmatpush1.msra.mxu0 %v668
        %744 = vmatprep.subr.mxu0 0.0
        %745 = vmatpush1.msra.mxu0 %v669
        %746 = vmatprep.subr.mxu0 0.0
        %747 = vmatpush1.msra.mxu0 %v670
        %748 = vmatprep.subr.mxu0 0.0
        %749 = vmatpush1.msra.mxu0 %v671
        %750 = vmatprep.subr.mxu0 0.0
        %751 = vmatpush1.msra.mxu0 %v672
        %752 = vmatprep.subr.mxu0 0.0
        %753 = vmatpush1.msra.mxu0 %v673
        %754 = vmatprep.subr.mxu0 0.0
        %755 = vmatpush1.msra.mxu0 %v674
        %756 = vmatprep.subr.mxu0 0.0
        %757 = vmatpush1.msra.mxu0 %v675
        %758 = vmatprep.subr.mxu0 0.0
        %759 = vmatpush1.msra.mxu0 %v676
        %760 = vmatprep.subr.mxu0 0.0
        %761 = vmatpush1.msra.mxu0 %v677
        %762 = vmatprep.subr.mxu0 0.0
        %763 = vmatpush1.msra.mxu0 %v678
        %764 = vmatprep.subr.mxu0 0.0
        %765 = vmatpush1.msra.mxu0 %v679
        %766 = vmatprep.subr.mxu0 0.0
        %767 = vmatpush1.msra.mxu0 %v680
        %768 = vmatprep.subr.mxu0 0.0
        %769 = vmatpush1.msra.mxu0 %v681
        %770 = vmatprep.subr.mxu0 0.0
        %771 = vmatpush1.msra.mxu0 %v682
        %772 = vmatprep.subr.mxu0 0.0
        %773 = vmatpush1.msra.mxu0 %v683
        %774 = vmatprep.subr.mxu0 0.0
        %775 = vmatpush1.msra.mxu0 %v684
        %776 = vmatprep.subr.mxu0 0.0
        %777 = vmatpush1.msra.mxu0 %v685
        %778 = vmatprep.subr.mxu0 0.0
        %779 = vmatpush1.msra.mxu0 %v686
        %780 = vmatprep.subr.mxu0 0.0
        %781 = vmatpush1.msra.mxu0 %v687
        %782 = vmatprep.subr.mxu0 0.0
        %783 = vmatpush1.msra.mxu0 %v688
        %784 = vmatprep.subr.mxu0 0.0
        %785 = vmatpush1.msra.mxu0 %v689
        %786 = vmatprep.mubr.f32.mxu0 %v654
        %787 = vmatmul.mubr.f32.gmra.mrb[0].mxu0 %v653
        %v788 = vpop.f32.mrb[0].mxu0
        %v789 = vadd.f32 0.0, %v788
        %v790 = vpop.f32.mrb[0].mxu0
        %791 = vdwg.mxu0
        %792 = vmatprep.subr.mxu0 0.0
        %793 = vmatpush1.msra.mxu0 %v690
        %794 = vmatprep.subr.mxu0 0.0
        %795 = vmatpush1.msra.mxu0 %v691
        %796 = vmatprep.subr.mxu0 0.0
        %797 = vmatpush1.msra.mxu0 %v692
        %798 = vmatprep.subr.mxu0 0.0
        %799 = vmatpush1.msra.mxu0 %v693
        %800 = vmatprep.subr.mxu0 0.0
        %801 = vmatpush1.msra.mxu0 %v694
        %802 = vmatprep.subr.mxu0 0.0
        %803 = vmatpush1.msra.mxu0 %v695
        %804 = vmatprep.subr.mxu0 0.0
        %805 = vmatpush1.msra.mxu0 %v696
        %806 = vmatprep.subr.mxu0 0.0
        %807 = vmatpush1.msra.mxu0 %v697
        %808 = vmatprep.subr.mxu0 0.0
        %809 = vmatpush1.msra.mxu0 %v698
        %810 = vmatprep.subr.mxu0 0.0
        %811 = vmatpush1.msra.mxu0 %v699
        %812 = vmatprep.subr.mxu0 0.0
        %813 = vmatpush1.msra.mxu0 %v700
        %814 = vmatprep.subr.mxu0 0.0
        %815 = vmatpush1.msra.mxu0 %v701
        %816 = vmatprep.subr.mxu0 0.0
        %817 = vmatpush1.msra.mxu0 %v702
        %818 = vmatprep.subr.mxu0 0.0
        %819 = vmatpush1.msra.mxu0 %v703
        %820 = vmatprep.subr.mxu0 0.0
        %821 = vmatpush1.msra.mxu0 %v704
        %822 = vmatprep.subr.mxu0 0.0
        %823 = vmatpush1.msra.mxu0 %v705
        %824 = vmatprep.subr.mxu0 0.0
        %825 = vmatpush1.msra.mxu0 %v706
        %826 = vmatprep.subr.mxu0 0.0
        %827 = vmatpush1.msra.mxu0 %v707
        %828 = vmatprep.subr.mxu0 0.0
        %829 = vmatpush1.msra.mxu0 %v708
        %830 = vmatprep.subr.mxu0 0.0
        %831 = vmatpush1.msra.mxu0 %v709
        %832 = vmatprep.subr.mxu0 0.0
        %833 = vmatpush1.msra.mxu0 %v710
        %834 = vmatprep.subr.mxu0 0.0
        %835 = vmatpush1.msra.mxu0 %v711
        %836 = vmatprep.subr.mxu0 0.0
        %837 = vmatpush1.msra.mxu0 %v712
        %838 = vmatprep.subr.mxu0 0.0
        %839 = vmatpush1.msra.mxu0 %v713
        %840 = vmatprep.subr.mxu0 0.0
        %841 = vmatpush1.msra.mxu0 %v714
        %842 = vmatprep.subr.mxu0 0.0
        %843 = vmatpush1.msra.mxu0 %v715
        %844 = vmatprep.subr.mxu0 0.0
        %845 = vmatpush1.msra.mxu0 %v716
        %846 = vmatprep.subr.mxu0 0.0
        %847 = vmatpush1.msra.mxu0 %v717
        %848 = vmatprep.subr.mxu0 0.0
        %849 = vmatpush1.msra.mxu0 %v718
        %850 = vmatprep.subr.mxu0 0.0
        %851 = vmatpush1.msra.mxu0 %v719
        %852 = vmatprep.subr.mxu0 0.0
        %853 = vmatpush1.msra.mxu0 %v720
        %854 = vmatprep.subr.mxu0 0.0
        %855 = vmatpush1.msra.mxu0 %v721
        %856 = vmatprep.mubr.f32.mxu0 %v656
        %857 = vmatmul.mubr.f32.gmra.mrb[0].mxu0 %v655
        %v858 = vpop.f32.mrb[0].mxu0
        %v859 = vadd.f32 %v789, %v858
        %v860 = vpop.f32.mrb[0].mxu0
        %861 = vdwg.mxu0
        %v862 = vadd.f32 %v649, %v859
        %v863 = vld [vmem:[%s652] sm:$0x1e]
        %v864 = vld [vmem:[%s652 + $0x8] sm:$0x1e]
        %v865 = vld [vmem:[%s652 + $0x10] sm:$0x1e]
        %v866 = vld [vmem:[%s652 + $0x18] sm:$0x1e]
        %s867 = scalar_lea.vmem %s1, 1536
        %v868 = vld [vmem:[%s867] sm:$0xff]
        %v869 = vld [vmem:[%s867 + $0x8] sm:$0xff]
        %v870 = vld [vmem:[%s867 + $0x10] sm:$0xff]
        %v871 = vld [vmem:[%s867 + $0x18] sm:$0xff]
        %v872 = vld [vmem:[%s867 + $0x20] sm:$0xff]
        %v873 = vld [vmem:[%s867 + $0x28] sm:$0xff]
        %v874 = vld [vmem:[%s867 + $0x30] sm:$0xff]
        %v875 = vld [vmem:[%s867 + $0x38] sm:$0xff]
        %v876 = vld [vmem:[%s867 + $0x40] sm:$0xff]
        %v877 = vld [vmem:[%s867 + $0x48] sm:$0xff]
        %v878 = vld [vmem:[%s867 + $0x50] sm:$0xff]
        %v879 = vld [vmem:[%s867 + $0x58] sm:$0xff]
        %v880 = vld [vmem:[%s867 + $0x60] sm:$0xff]
        %v881 = vld [vmem:[%s867 + $0x68] sm:$0xff]
        %v882 = vld [vmem:[%s867 + $0x70] sm:$0xff]
        %v883 = vld [vmem:[%s867 + $0x78] sm:$0xff]
        %v884 = vld [vmem:[%s867 + $0x80] sm:$0xff]
        %v885 = vld [vmem:[%s867 + $0x88] sm:$0xff]
        %v886 = vld [vmem:[%s867 + $0x90] sm:$0xff]
        %v887 = vld [vmem:[%s867 + $0x98] sm:$0xff]
        %v888 = vld [vmem:[%s867 + $0xa0] sm:$0xff]
        %v889 = vld [vmem:[%s867 + $0xa8] sm:$0xff]
        %v890 = vld [vmem:[%s867 + $0xb0] sm:$0xff]
        %v891 = vld [vmem:[%s867 + $0xb8] sm:$0xff]
        %v892 = vld [vmem:[%s867 + $0xc0] sm:$0xff]
        %v893 = vld [vmem:[%s867 + $0xc8] sm:$0xff]
        %v894 = vld [vmem:[%s867 + $0xd0] sm:$0xff]
        %v895 = vld [vmem:[%s867 + $0xd8] sm:$0xff]
        %v896 = vld [vmem:[%s867 + $0xe0] sm:$0xff]
        %v897 = vld [vmem:[%s867 + $0xe8] sm:$0xff]
        %v898 = vld [vmem:[%s867 + $0xf0] sm:$0xff]
        %v899 = vld [vmem:[%s867 + $0xf8] sm:$0xff]
        %v900 = vld [vmem:[%s867 + $0x100] sm:$0xff]
        %v901 = vld [vmem:[%s867 + $0x108] sm:$0xff]
        %v902 = vld [vmem:[%s867 + $0x110] sm:$0xff]
        %v903 = vld [vmem:[%s867 + $0x118] sm:$0xff]
        %v904 = vld [vmem:[%s867 + $0x120] sm:$0xff]
        %v905 = vld [vmem:[%s867 + $0x128] sm:$0xff]
        %v906 = vld [vmem:[%s867 + $0x130] sm:$0xff]
        %v907 = vld [vmem:[%s867 + $0x138] sm:$0xff]
        %v908 = vld [vmem:[%s867 + $0x140] sm:$0xff]
        %v909 = vld [vmem:[%s867 + $0x148] sm:$0xff]
        %v910 = vld [vmem:[%s867 + $0x150] sm:$0xff]
        %v911 = vld [vmem:[%s867 + $0x158] sm:$0xff]
        %v912 = vld [vmem:[%s867 + $0x160] sm:$0xff]
        %v913 = vld [vmem:[%s867 + $0x168] sm:$0xff]
        %v914 = vld [vmem:[%s867 + $0x170] sm:$0xff]
        %v915 = vld [vmem:[%s867 + $0x178] sm:$0xff]
        %v916 = vld [vmem:[%s867 + $0x180] sm:$0xff]
        %v917 = vld [vmem:[%s867 + $0x188] sm:$0xff]
        %v918 = vld [vmem:[%s867 + $0x190] sm:$0xff]
        %v919 = vld [vmem:[%s867 + $0x198] sm:$0xff]
        %v920 = vld [vmem:[%s867 + $0x1a0] sm:$0xff]
        %v921 = vld [vmem:[%s867 + $0x1a8] sm:$0xff]
        %v922 = vld [vmem:[%s867 + $0x1b0] sm:$0xff]
        %v923 = vld [vmem:[%s867 + $0x1b8] sm:$0xff]
        %v924 = vld [vmem:[%s867 + $0x1c0] sm:$0xff]
        %v925 = vld [vmem:[%s867 + $0x1c8] sm:$0xff]
        %v926 = vld [vmem:[%s867 + $0x1d0] sm:$0xff]
        %v927 = vld [vmem:[%s867 + $0x1d8] sm:$0xff]
        %v928 = vld [vmem:[%s867 + $0x1e0] sm:$0xff]
        %v929 = vld [vmem:[%s867 + $0x1e8] sm:$0xff]
        %v930 = vld [vmem:[%s867 + $0x1f0] sm:$0xff]
        %v931 = vld [vmem:[%s867 + $0x1f8] sm:$0xff]
        %v936 = vrot.slane %v863, 1
        %v937 = vrot.slane %v864, 1
        %v938 = vrot.slane %v865, 1
        %v939 = vrot.slane %v866, 1
        %944 = vmatprep.subr.mxu0 0.0
        %945 = vmatpush1.msra.mxu0 %v868
        %946 = vmatprep.subr.mxu0 0.0
        %947 = vmatpush1.msra.mxu0 %v869
        %948 = vmatprep.subr.mxu0 0.0
        %949 = vmatpush1.msra.mxu0 %v870
        %950 = vmatprep.subr.mxu0 0.0
        %951 = vmatpush1.msra.mxu0 %v871
        %952 = vmatprep.subr.mxu0 0.0
        %953 = vmatpush1.msra.mxu0 %v872
        %954 = vmatprep.subr.mxu0 0.0
        %955 = vmatpush1.msra.mxu0 %v873
        %956 = vmatprep.subr.mxu0 0.0
        %957 = vmatpush1.msra.mxu0 %v874
        %958 = vmatprep.subr.mxu0 0.0
        %959 = vmatpush1.msra.mxu0 %v875
        %960 = vmatprep.subr.mxu0 0.0
        %961 = vmatpush1.msra.mxu0 %v876
        %962 = vmatprep.subr.mxu0 0.0
        %963 = vmatpush1.msra.mxu0 %v877
        %964 = vmatprep.subr.mxu0 0.0
        %965 = vmatpush1.msra.mxu0 %v878
        %966 = vmatprep.subr.mxu0 0.0
        %967 = vmatpush1.msra.mxu0 %v879
        %968 = vmatprep.subr.mxu0 0.0
        %969 = vmatpush1.msra.mxu0 %v880
        %970 = vmatprep.subr.mxu0 0.0
        %971 = vmatpush1.msra.mxu0 %v881
        %972 = vmatprep.subr.mxu0 0.0
        %973 = vmatpush1.msra.mxu0 %v882
        %974 = vmatprep.subr.mxu0 0.0
        %975 = vmatpush1.msra.mxu0 %v883
        %976 = vmatprep.subr.mxu0 0.0
        %977 = vmatpush1.msra.mxu0 %v884
        %978 = vmatprep.subr.mxu0 0.0
        %979 = vmatpush1.msra.mxu0 %v885
        %980 = vmatprep.subr.mxu0 0.0
        %981 = vmatpush1.msra.mxu0 %v886
        %982 = vmatprep.subr.mxu0 0.0
        %983 = vmatpush1.msra.mxu0 %v887
        %984 = vmatprep.subr.mxu0 0.0
        %985 = vmatpush1.msra.mxu0 %v888
        %986 = vmatprep.subr.mxu0 0.0
        %987 = vmatpush1.msra.mxu0 %v889
        %988 = vmatprep.subr.mxu0 0.0
        %989 = vmatpush1.msra.mxu0 %v890
        %990 = vmatprep.subr.mxu0 0.0
        %991 = vmatpush1.msra.mxu0 %v891
        %992 = vmatprep.subr.mxu0 0.0
        %993 = vmatpush1.msra.mxu0 %v892
        %994 = vmatprep.subr.mxu0 0.0
        %995 = vmatpush1.msra.mxu0 %v893
        %996 = vmatprep.subr.mxu0 0.0
        %997 = vmatpush1.msra.mxu0 %v894
        %998 = vmatprep.subr.mxu0 0.0
        %999 = vmatpush1.msra.mxu0 %v895
        %1000 = vmatprep.subr.mxu0 0.0
        %1001 = vmatpush1.msra.mxu0 %v896
        %1002 = vmatprep.subr.mxu0 0.0
        %1003 = vmatpush1.msra.mxu0 %v897
        %1004 = vmatprep.subr.mxu0 0.0
        %1005 = vmatpush1.msra.mxu0 %v898
        %1006 = vmatprep.subr.mxu0 0.0
        %1007 = vmatpush1.msra.mxu0 %v899
        %1008 = vmatprep.mubr.f32.mxu0 %v937
        %1009 = vmatmul.mubr.f32.gmra.mrb[0].mxu0 %v936
        %v1010 = vpop.f32.mrb[0].mxu0
        %v1011 = vadd.f32 0.0, %v1010
        %v1012 = vpop.f32.mrb[0].mxu0
        %1013 = vdwg.mxu0
        %1014 = vmatprep.subr.mxu0 0.0
        %1015 = vmatpush1.msra.mxu0 %v900
        %1016 = vmatprep.subr.mxu0 0.0
        %1017 = vmatpush1.msra.mxu0 %v901
        %1018 = vmatprep.subr.mxu0 0.0
        %1019 = vmatpush1.msra.mxu0 %v902
        %1020 = vmatprep.subr.mxu0 0.0
        %1021 = vmatpush1.msra.mxu0 %v903
        %1022 = vmatprep.subr.mxu0 0.0
        %1023 = vmatpush1.msra.mxu0 %v904
        %1024 = vmatprep.subr.mxu0 0.0
        %1025 = vmatpush1.msra.mxu0 %v905
        %1026 = vmatprep.subr.mxu0 0.0
        %1027 = vmatpush1.msra.mxu0 %v906
        %1028 = vmatprep.subr.mxu0 0.0
        %1029 = vmatpush1.msra.mxu0 %v907
        %1030 = vmatprep.subr.mxu0 0.0
        %1031 = vmatpush1.msra.mxu0 %v908
        %1032 = vmatprep.subr.mxu0 0.0
        %1033 = vmatpush1.msra.mxu0 %v909
        %1034 = vmatprep.subr.mxu0 0.0
        %1035 = vmatpush1.msra.mxu0 %v910
        %1036 = vmatprep.subr.mxu0 0.0
        %1037 = vmatpush1.msra.mxu0 %v911
        %1038 = vmatprep.subr.mxu0 0.0
        %1039 = vmatpush1.msra.mxu0 %v912
        %1040 = vmatprep.subr.mxu0 0.0
        %1041 = vmatpush1.msra.mxu0 %v913
        %1042 = vmatprep.subr.mxu0 0.0
        %1043 = vmatpush1.msra.mxu0 %v914
        %1044 = vmatprep.subr.mxu0 0.0
        %1045 = vmatpush1.msra.mxu0 %v915
        %1046 = vmatprep.subr.mxu0 0.0
        %1047 = vmatpush1.msra.mxu0 %v916
        %1048 = vmatprep.subr.mxu0 0.0
        %1049 = vmatpush1.msra.mxu0 %v917
        %1050 = vmatprep.subr.mxu0 0.0
        %1051 = vmatpush1.msra.mxu0 %v918
        %1052 = vmatprep.subr.mxu0 0.0
        %1053 = vmatpush1.msra.mxu0 %v919
        %1054 = vmatprep.subr.mxu0 0.0
        %1055 = vmatpush1.msra.mxu0 %v920
        %1056 = vmatprep.subr.mxu0 0.0
        %1057 = vmatpush1.msra.mxu0 %v921
        %1058 = vmatprep.subr.mxu0 0.0
        %1059 = vmatpush1.msra.mxu0 %v922
        %1060 = vmatprep.subr.mxu0 0.0
        %1061 = vmatpush1.msra.mxu0 %v923
        %1062 = vmatprep.subr.mxu0 0.0
        %1063 = vmatpush1.msra.mxu0 %v924
        %1064 = vmatprep.subr.mxu0 0.0
        %1065 = vmatpush1.msra.mxu0 %v925
        %1066 = vmatprep.subr.mxu0 0.0
        %1067 = vmatpush1.msra.mxu0 %v926
        %1068 = vmatprep.subr.mxu0 0.0
        %1069 = vmatpush1.msra.mxu0 %v927
        %1070 = vmatprep.subr.mxu0 0.0
        %1071 = vmatpush1.msra.mxu0 %v928
        %1072 = vmatprep.subr.mxu0 0.0
        %1073 = vmatpush1.msra.mxu0 %v929
        %1074 = vmatprep.subr.mxu0 0.0
        %1075 = vmatpush1.msra.mxu0 %v930
        %1076 = vmatprep.subr.mxu0 0.0
        %1077 = vmatpush1.msra.mxu0 %v931
        %1078 = vmatprep.mubr.f32.mxu0 %v939
        %1079 = vmatmul.mubr.f32.gmra.mrb[0].mxu0 %v938
        %v1080 = vpop.f32.mrb[0].mxu0
        %v1081 = vadd.f32 %v1011, %v1080
        %v1082 = vpop.f32.mrb[0].mxu0
        %1083 = vdwg.mxu0
        %v1084 = vadd.f32 %v862, %v1081
        %v1086 = vlaneseq
        %v1087 = vshrl.u32 %v1086, 7
        %v1088 = vsub.s32 0, %v1087
        %v1089 = vrot.slane %v222, %v1088
        %v1091 = vadd.f32 %v1084, %v1089
        %v1092 = vmax.f32 %v1091, 0.0
        %vm1093 = vcmask 1043456
        %v1094 = vsel %vm1093, %v1092, 0.0
        %v1095 = vrot.slane %v1094, 4
        %v1096 = vadd.f32 %v1094, %v1095
        %v1097 = vrot.slane %v1096, 2
        %v1098 = vadd.f32 %v1096, %v1097
        %v1099 = vrot.slane %v1098, 1
        %v1100 = vadd.f32 %v1098, %v1099
        %v1101 = vadd.f32 %v1100, 0.0
        %1102 = vmatprep.subr.mxu0 0.0
        %1103 = vmatpush1.msra.mxu0 %v296
        %1104 = vmatprep.subr.mxu0 0.0
        %1105 = vmatpush1.msra.mxu0 %v297
        %1106 = vmatprep.subr.mxu0 0.0
        %1107 = vmatpush1.msra.mxu0 %v298
        %1108 = vmatprep.subr.mxu0 0.0
        %1109 = vmatpush1.msra.mxu0 %v299
        %1110 = vmatprep.subr.mxu0 0.0
        %1111 = vmatpush1.msra.mxu0 %v300
        %1112 = vmatprep.subr.mxu0 0.0
        %1113 = vmatpush1.msra.mxu0 %v301
        %1114 = vmatprep.subr.mxu0 0.0
        %1115 = vmatpush1.msra.mxu0 %v302
        %1116 = vmatprep.subr.mxu0 0.0
        %1117 = vmatpush1.msra.mxu0 %v303
        %1118 = vmatprep.subr.mxu0 0.0
        %1119 = vmatpush1.msra.mxu0 %v304
        %1120 = vmatprep.subr.mxu0 0.0
        %1121 = vmatpush1.msra.mxu0 %v305
        %1122 = vmatprep.subr.mxu0 0.0
        %1123 = vmatpush1.msra.mxu0 %v306
        %1124 = vmatprep.subr.mxu0 0.0
        %1125 = vmatpush1.msra.mxu0 %v307
        %1126 = vmatprep.subr.mxu0 0.0
        %1127 = vmatpush1.msra.mxu0 %v308
        %1128 = vmatprep.subr.mxu0 0.0
        %1129 = vmatpush1.msra.mxu0 %v309
        %1130 = vmatprep.subr.mxu0 0.0
        %1131 = vmatpush1.msra.mxu0 %v310
        %1132 = vmatprep.subr.mxu0 0.0
        %1133 = vmatpush1.msra.mxu0 %v311
        %1134 = vmatprep.subr.mxu0 0.0
        %1135 = vmatpush1.msra.mxu0 %v312
        %1136 = vmatprep.subr.mxu0 0.0
        %1137 = vmatpush1.msra.mxu0 %v313
        %1138 = vmatprep.subr.mxu0 0.0
        %1139 = vmatpush1.msra.mxu0 %v314
        %1140 = vmatprep.subr.mxu0 0.0
        %1141 = vmatpush1.msra.mxu0 %v315
        %1142 = vmatprep.subr.mxu0 0.0
        %1143 = vmatpush1.msra.mxu0 %v316
        %1144 = vmatprep.subr.mxu0 0.0
        %1145 = vmatpush1.msra.mxu0 %v317
        %1146 = vmatprep.subr.mxu0 0.0
        %1147 = vmatpush1.msra.mxu0 %v318
        %1148 = vmatprep.subr.mxu0 0.0
        %1149 = vmatpush1.msra.mxu0 %v319
        %1150 = vmatprep.subr.mxu0 0.0
        %1151 = vmatpush1.msra.mxu0 %v320
        %1152 = vmatprep.subr.mxu0 0.0
        %1153 = vmatpush1.msra.mxu0 %v321
        %1154 = vmatprep.subr.mxu0 0.0
        %1155 = vmatpush1.msra.mxu0 %v322
        %1156 = vmatprep.subr.mxu0 0.0
        %1157 = vmatpush1.msra.mxu0 %v323
        %1158 = vmatprep.subr.mxu0 0.0
        %1159 = vmatpush1.msra.mxu0 %v324
        %1160 = vmatprep.subr.mxu0 0.0
        %1161 = vmatpush1.msra.mxu0 %v325
        %1162 = vmatprep.subr.mxu0 0.0
        %1163 = vmatpush1.msra.mxu0 %v326
        %1164 = vmatprep.subr.mxu0 0.0
        %1165 = vmatpush1.msra.mxu0 %v327
        %1166 = vmatprep.mubr.f32.mxu0 %v937
        %1167 = vmatmul.mubr.f32.gmra.mrb[0].mxu0 %v936
        %v1168 = vpop.f32.mrb[0].mxu0
        %v1169 = vadd.f32 0.0, %v1168
        %v1170 = vpop.f32.mrb[0].mxu0
        %1171 = vdwg.mxu0
        %1172 = vmatprep.subr.mxu0 0.0
        %1173 = vmatpush1.msra.mxu0 %v328
        %1174 = vmatprep.subr.mxu0 0.0
        %1175 = vmatpush1.msra.mxu0 %v329
        %1176 = vmatprep.subr.mxu0 0.0
        %1177 = vmatpush1.msra.mxu0 %v330
        %1178 = vmatprep.subr.mxu0 0.0
        %1179 = vmatpush1.msra.mxu0 %v331
        %1180 = vmatprep.subr.mxu0 0.0
        %1181 = vmatpush1.msra.mxu0 %v332
        %1182 = vmatprep.subr.mxu0 0.0
        %1183 = vmatpush1.msra.mxu0 %v333
        %1184 = vmatprep.subr.mxu0 0.0
        %1185 = vmatpush1.msra.mxu0 %v334
        %1186 = vmatprep.subr.mxu0 0.0
        %1187 = vmatpush1.msra.mxu0 %v335
        %1188 = vmatprep.subr.mxu0 0.0
        %1189 = vmatpush1.msra.mxu0 %v336
        %1190 = vmatprep.subr.mxu0 0.0
        %1191 = vmatpush1.msra.mxu0 %v337
        %1192 = vmatprep.subr.mxu0 0.0
        %1193 = vmatpush1.msra.mxu0 %v338
        %1194 = vmatprep.subr.mxu0 0.0
        %1195 = vmatpush1.msra.mxu0 %v339
        %1196 = vmatprep.subr.mxu0 0.0
        %1197 = vmatpush1.msra.mxu0 %v340
        %1198 = vmatprep.subr.mxu0 0.0
        %1199 = vmatpush1.msra.mxu0 %v341
        %1200 = vmatprep.subr.mxu0 0.0
        %1201 = vmatpush1.msra.mxu0 %v342
        %1202 = vmatprep.subr.mxu0 0.0
        %1203 = vmatpush1.msra.mxu0 %v343
        %1204 = vmatprep.subr.mxu0 0.0
        %1205 = vmatpush1.msra.mxu0 %v344
        %1206 = vmatprep.subr.mxu0 0.0
        %1207 = vmatpush1.msra.mxu0 %v345
        %1208 = vmatprep.subr.mxu0 0.0
        %1209 = vmatpush1.msra.mxu0 %v346
        %1210 = vmatprep.subr.mxu0 0.0
        %1211 = vmatpush1.msra.mxu0 %v347
        %1212 = vmatprep.subr.mxu0 0.0
        %1213 = vmatpush1.msra.mxu0 %v348
        %1214 = vmatprep.subr.mxu0 0.0
        %1215 = vmatpush1.msra.mxu0 %v349
        %1216 = vmatprep.subr.mxu0 0.0
        %1217 = vmatpush1.msra.mxu0 %v350
        %1218 = vmatprep.subr.mxu0 0.0
        %1219 = vmatpush1.msra.mxu0 %v351
        %1220 = vmatprep.subr.mxu0 0.0
        %1221 = vmatpush1.msra.mxu0 %v352
        %1222 = vmatprep.subr.mxu0 0.0
        %1223 = vmatpush1.msra.mxu0 %v353
        %1224 = vmatprep.subr.mxu0 0.0
        %1225 = vmatpush1.msra.mxu0 %v354
        %1226 = vmatprep.subr.mxu0 0.0
        %1227 = vmatpush1.msra.mxu0 %v355
        %1228 = vmatprep.subr.mxu0 0.0
        %1229 = vmatpush1.msra.mxu0 %v356
        %1230 = vmatprep.subr.mxu0 0.0
        %1231 = vmatpush1.msra.mxu0 %v357
        %1232 = vmatprep.subr.mxu0 0.0
        %1233 = vmatpush1.msra.mxu0 %v358
        %1234 = vmatprep.subr.mxu0 0.0
        %1235 = vmatpush1.msra.mxu0 %v359
        %1236 = vmatprep.mubr.f32.mxu0 %v939
        %1237 = vmatmul.mubr.f32.gmra.mrb[0].mxu0 %v938
        %v1238 = vpop.f32.mrb[0].mxu0
        %v1239 = vadd.f32 %v1169, %v1238
        %v1240 = vpop.f32.mrb[0].mxu0
        %1241 = vdwg.mxu0
        %1242 = vmatprep.subr.mxu0 0.0
        %1243 = vmatpush1.msra.mxu0 %v227
        %1244 = vmatprep.subr.mxu0 0.0
        %1245 = vmatpush1.msra.mxu0 %v228
        %1246 = vmatprep.subr.mxu0 0.0
        %1247 = vmatpush1.msra.mxu0 %v229
        %1248 = vmatprep.subr.mxu0 0.0
        %1249 = vmatpush1.msra.mxu0 %v230
        %1250 = vmatprep.subr.mxu0 0.0
        %1251 = vmatpush1.msra.mxu0 %v231
        %1252 = vmatprep.subr.mxu0 0.0
        %1253 = vmatpush1.msra.mxu0 %v232
        %1254 = vmatprep.subr.mxu0 0.0
        %1255 = vmatpush1.msra.mxu0 %v233
        %1256 = vmatprep.subr.mxu0 0.0
        %1257 = vmatpush1.msra.mxu0 %v234
        %1258 = vmatprep.subr.mxu0 0.0
        %1259 = vmatpush1.msra.mxu0 %v235
        %1260 = vmatprep.subr.mxu0 0.0
        %1261 = vmatpush1.msra.mxu0 %v236
        %1262 = vmatprep.subr.mxu0 0.0
        %1263 = vmatpush1.msra.mxu0 %v237
        %1264 = vmatprep.subr.mxu0 0.0
        %1265 = vmatpush1.msra.mxu0 %v238
        %1266 = vmatprep.subr.mxu0 0.0
        %1267 = vmatpush1.msra.mxu0 %v239
        %1268 = vmatprep.subr.mxu0 0.0
        %1269 = vmatpush1.msra.mxu0 %v240
        %1270 = vmatprep.subr.mxu0 0.0
        %1271 = vmatpush1.msra.mxu0 %v241
        %1272 = vmatprep.subr.mxu0 0.0
        %1273 = vmatpush1.msra.mxu0 %v242
        %1274 = vmatprep.subr.mxu0 0.0
        %1275 = vmatpush1.msra.mxu0 %v243
        %1276 = vmatprep.subr.mxu0 0.0
        %1277 = vmatpush1.msra.mxu0 %v244
        %1278 = vmatprep.subr.mxu0 0.0
        %1279 = vmatpush1.msra.mxu0 %v245
        %1280 = vmatprep.subr.mxu0 0.0
        %1281 = vmatpush1.msra.mxu0 %v246
        %1282 = vmatprep.subr.mxu0 0.0
        %1283 = vmatpush1.msra.mxu0 %v247
        %1284 = vmatprep.subr.mxu0 0.0
        %1285 = vmatpush1.msra.mxu0 %v248
        %1286 = vmatprep.subr.mxu0 0.0
        %1287 = vmatpush1.msra.mxu0 %v249
        %1288 = vmatprep.subr.mxu0 0.0
        %1289 = vmatpush1.msra.mxu0 %v250
        %1290 = vmatprep.subr.mxu0 0.0
        %1291 = vmatpush1.msra.mxu0 %v251
        %1292 = vmatprep.subr.mxu0 0.0
        %1293 = vmatpush1.msra.mxu0 %v252
        %1294 = vmatprep.subr.mxu0 0.0
        %1295 = vmatpush1.msra.mxu0 %v253
        %1296 = vmatprep.subr.mxu0 0.0
        %1297 = vmatpush1.msra.mxu0 %v254
        %1298 = vmatprep.subr.mxu0 0.0
        %1299 = vmatpush1.msra.mxu0 %v255
        %1300 = vmatprep.subr.mxu0 0.0
        %1301 = vmatpush1.msra.mxu0 %v256
        %1302 = vmatprep.subr.mxu0 0.0
        %1303 = vmatpush1.msra.mxu0 %v257
        %1304 = vmatprep.subr.mxu0 0.0
        %1305 = vmatpush1.msra.mxu0 %v258
        %1306 = vmatprep.mubr.f32.mxu0 %v654
        %1307 = vmatmul.mubr.f32.gmra.mrb[0].mxu0 %v653
        %v1308 = vpop.f32.mrb[0].mxu0
        %v1309 = vadd.f32 %v1239, %v1308
        %v1310 = vpop.f32.mrb[0].mxu0
        %1311 = vdwg.mxu0
        %1312 = vmatprep.subr.mxu0 0.0
        %1313 = vmatpush1.msra.mxu0 %v259
        %1314 = vmatprep.subr.mxu0 0.0
        %1315 = vmatpush1.msra.mxu0 %v260
        %1316 = vmatprep.subr.mxu0 0.0
        %1317 = vmatpush1.msra.mxu0 %v261
        %1318 = vmatprep.subr.mxu0 0.0
        %1319 = vmatpush1.msra.mxu0 %v262
        %1320 = vmatprep.subr.mxu0 0.0
        %1321 = vmatpush1.msra.mxu0 %v263
        %1322 = vmatprep.subr.mxu0 0.0
        %1323 = vmatpush1.msra.mxu0 %v264
        %1324 = vmatprep.subr.mxu0 0.0
        %1325 = vmatpush1.msra.mxu0 %v265
        %1326 = vmatprep.subr.mxu0 0.0
        %1327 = vmatpush1.msra.mxu0 %v266
        %1328 = vmatprep.subr.mxu0 0.0
        %1329 = vmatpush1.msra.mxu0 %v267
        %1330 = vmatprep.subr.mxu0 0.0
        %1331 = vmatpush1.msra.mxu0 %v268
        %1332 = vmatprep.subr.mxu0 0.0
        %1333 = vmatpush1.msra.mxu0 %v269
        %1334 = vmatprep.subr.mxu0 0.0
        %1335 = vmatpush1.msra.mxu0 %v270
        %1336 = vmatprep.subr.mxu0 0.0
        %1337 = vmatpush1.msra.mxu0 %v271
        %1338 = vmatprep.subr.mxu0 0.0
        %1339 = vmatpush1.msra.mxu0 %v272
        %1340 = vmatprep.subr.mxu0 0.0
        %1341 = vmatpush1.msra.mxu0 %v273
        %1342 = vmatprep.subr.mxu0 0.0
        %1343 = vmatpush1.msra.mxu0 %v274
        %1344 = vmatprep.subr.mxu0 0.0
        %1345 = vmatpush1.msra.mxu0 %v275
        %1346 = vmatprep.subr.mxu0 0.0
        %1347 = vmatpush1.msra.mxu0 %v276
        %1348 = vmatprep.subr.mxu0 0.0
        %1349 = vmatpush1.msra.mxu0 %v277
        %1350 = vmatprep.subr.mxu0 0.0
        %1351 = vmatpush1.msra.mxu0 %v278
        %1352 = vmatprep.subr.mxu0 0.0
        %1353 = vmatpush1.msra.mxu0 %v279
        %1354 = vmatprep.subr.mxu0 0.0
        %1355 = vmatpush1.msra.mxu0 %v280
        %1356 = vmatprep.subr.mxu0 0.0
        %1357 = vmatpush1.msra.mxu0 %v281
        %1358 = vmatprep.subr.mxu0 0.0
        %1359 = vmatpush1.msra.mxu0 %v282
        %1360 = vmatprep.subr.mxu0 0.0
        %1361 = vmatpush1.msra.mxu0 %v283
        %1362 = vmatprep.subr.mxu0 0.0
        %1363 = vmatpush1.msra.mxu0 %v284
        %1364 = vmatprep.subr.mxu0 0.0
        %1365 = vmatpush1.msra.mxu0 %v285
        %1366 = vmatprep.subr.mxu0 0.0
        %1367 = vmatpush1.msra.mxu0 %v286
        %1368 = vmatprep.subr.mxu0 0.0
        %1369 = vmatpush1.msra.mxu0 %v287
        %1370 = vmatprep.subr.mxu0 0.0
        %1371 = vmatpush1.msra.mxu0 %v288
        %1372 = vmatprep.subr.mxu0 0.0
        %1373 = vmatpush1.msra.mxu0 %v289
        %1374 = vmatprep.subr.mxu0 0.0
        %1375 = vmatpush1.msra.mxu0 %v290
        %1376 = vmatprep.mubr.f32.mxu0 %v656
        %1377 = vmatmul.mubr.f32.gmra.mrb[0].mxu0 %v655
        %v1378 = vpop.f32.mrb[0].mxu0
        %v1379 = vadd.f32 %v1309, %v1378
        %v1380 = vpop.f32.mrb[0].mxu0
        %1381 = vdwg.mxu0
        %s1382 = scalar_lea.vmem %s221, 64
        %v1383 = vld [vmem:[%s1382] sm:$0xf]
        %v1384 = vld [vmem:[%s1382 + $0x8] sm:$0xf]
        %v1385 = vld [vmem:[%s1382 + $0x10] sm:$0xf]
        %v1386 = vld [vmem:[%s1382 + $0x18] sm:$0xf]
        %1387 = vmatprep.subr.mxu0 0.0
        %1388 = vmatpush1.msra.mxu0 %v658
        %1389 = vmatprep.subr.mxu0 0.0
        %1390 = vmatpush1.msra.mxu0 %v659
        %1391 = vmatprep.subr.mxu0 0.0
        %1392 = vmatpush1.msra.mxu0 %v660
        %1393 = vmatprep.subr.mxu0 0.0
        %1394 = vmatpush1.msra.mxu0 %v661
        %1395 = vmatprep.subr.mxu0 0.0
        %1396 = vmatpush1.msra.mxu0 %v662
        %1397 = vmatprep.subr.mxu0 0.0
        %1398 = vmatpush1.msra.mxu0 %v663
        %1399 = vmatprep.subr.mxu0 0.0
        %1400 = vmatpush1.msra.mxu0 %v664
        %1401 = vmatprep.subr.mxu0 0.0
        %1402 = vmatpush1.msra.mxu0 %v665
        %1403 = vmatprep.subr.mxu0 0.0
        %1404 = vmatpush1.msra.mxu0 %v666
        %1405 = vmatprep.subr.mxu0 0.0
        %1406 = vmatpush1.msra.mxu0 %v667
        %1407 = vmatprep.subr.mxu0 0.0
        %1408 = vmatpush1.msra.mxu0 %v668
        %1409 = vmatprep.subr.mxu0 0.0
        %1410 = vmatpush1.msra.mxu0 %v669
        %1411 = vmatprep.subr.mxu0 0.0
        %1412 = vmatpush1.msra.mxu0 %v670
        %1413 = vmatprep.subr.mxu0 0.0
        %1414 = vmatpush1.msra.mxu0 %v671
        %1415 = vmatprep.subr.mxu0 0.0
        %1416 = vmatpush1.msra.mxu0 %v672
        %1417 = vmatprep.subr.mxu0 0.0
        %1418 = vmatpush1.msra.mxu0 %v673
        %1419 = vmatprep.subr.mxu0 0.0
        %1420 = vmatpush1.msra.mxu0 %v674
        %1421 = vmatprep.subr.mxu0 0.0
        %1422 = vmatpush1.msra.mxu0 %v675
        %1423 = vmatprep.subr.mxu0 0.0
        %1424 = vmatpush1.msra.mxu0 %v676
        %1425 = vmatprep.subr.mxu0 0.0
        %1426 = vmatpush1.msra.mxu0 %v677
        %1427 = vmatprep.subr.mxu0 0.0
        %1428 = vmatpush1.msra.mxu0 %v678
        %1429 = vmatprep.subr.mxu0 0.0
        %1430 = vmatpush1.msra.mxu0 %v679
        %1431 = vmatprep.subr.mxu0 0.0
        %1432 = vmatpush1.msra.mxu0 %v680
        %1433 = vmatprep.subr.mxu0 0.0
        %1434 = vmatpush1.msra.mxu0 %v681
        %1435 = vmatprep.subr.mxu0 0.0
        %1436 = vmatpush1.msra.mxu0 %v682
        %1437 = vmatprep.subr.mxu0 0.0
        %1438 = vmatpush1.msra.mxu0 %v683
        %1439 = vmatprep.subr.mxu0 0.0
        %1440 = vmatpush1.msra.mxu0 %v684
        %1441 = vmatprep.subr.mxu0 0.0
        %1442 = vmatpush1.msra.mxu0 %v685
        %1443 = vmatprep.subr.mxu0 0.0
        %1444 = vmatpush1.msra.mxu0 %v686
        %1445 = vmatprep.subr.mxu0 0.0
        %1446 = vmatpush1.msra.mxu0 %v687
        %1447 = vmatprep.subr.mxu0 0.0
        %1448 = vmatpush1.msra.mxu0 %v688
        %1449 = vmatprep.subr.mxu0 0.0
        %1450 = vmatpush1.msra.mxu0 %v689
        %1451 = vmatprep.mubr.f32.mxu0 %v1384
        %1452 = vmatmul.mubr.f32.gmra.mrb[0].mxu0 %v1383
        %v1453 = vpop.f32.mrb[0].mxu0
        %v1454 = vadd.f32 0.0, %v1453
        %v1455 = vpop.f32.mrb[0].mxu0
        %1456 = vdwg.mxu0
        %1457 = vmatprep.subr.mxu0 0.0
        %1458 = vmatpush1.msra.mxu0 %v690
        %1459 = vmatprep.subr.mxu0 0.0
        %1460 = vmatpush1.msra.mxu0 %v691
        %1461 = vmatprep.subr.mxu0 0.0
        %1462 = vmatpush1.msra.mxu0 %v692
        %1463 = vmatprep.subr.mxu0 0.0
        %1464 = vmatpush1.msra.mxu0 %v693
        %1465 = vmatprep.subr.mxu0 0.0
        %1466 = vmatpush1.msra.mxu0 %v694
        %1467 = vmatprep.subr.mxu0 0.0
        %1468 = vmatpush1.msra.mxu0 %v695
        %1469 = vmatprep.subr.mxu0 0.0
        %1470 = vmatpush1.msra.mxu0 %v696
        %1471 = vmatprep.subr.mxu0 0.0
        %1472 = vmatpush1.msra.mxu0 %v697
        %1473 = vmatprep.subr.mxu0 0.0
        %1474 = vmatpush1.msra.mxu0 %v698
        %1475 = vmatprep.subr.mxu0 0.0
        %1476 = vmatpush1.msra.mxu0 %v699
        %1477 = vmatprep.subr.mxu0 0.0
        %1478 = vmatpush1.msra.mxu0 %v700
        %1479 = vmatprep.subr.mxu0 0.0
        %1480 = vmatpush1.msra.mxu0 %v701
        %1481 = vmatprep.subr.mxu0 0.0
        %1482 = vmatpush1.msra.mxu0 %v702
        %1483 = vmatprep.subr.mxu0 0.0
        %1484 = vmatpush1.msra.mxu0 %v703
        %1485 = vmatprep.subr.mxu0 0.0
        %1486 = vmatpush1.msra.mxu0 %v704
        %1487 = vmatprep.subr.mxu0 0.0
        %1488 = vmatpush1.msra.mxu0 %v705
        %1489 = vmatprep.subr.mxu0 0.0
        %1490 = vmatpush1.msra.mxu0 %v706
        %1491 = vmatprep.subr.mxu0 0.0
        %1492 = vmatpush1.msra.mxu0 %v707
        %1493 = vmatprep.subr.mxu0 0.0
        %1494 = vmatpush1.msra.mxu0 %v708
        %1495 = vmatprep.subr.mxu0 0.0
        %1496 = vmatpush1.msra.mxu0 %v709
        %1497 = vmatprep.subr.mxu0 0.0
        %1498 = vmatpush1.msra.mxu0 %v710
        %1499 = vmatprep.subr.mxu0 0.0
        %1500 = vmatpush1.msra.mxu0 %v711
        %1501 = vmatprep.subr.mxu0 0.0
        %1502 = vmatpush1.msra.mxu0 %v712
        %1503 = vmatprep.subr.mxu0 0.0
        %1504 = vmatpush1.msra.mxu0 %v713
        %1505 = vmatprep.subr.mxu0 0.0
        %1506 = vmatpush1.msra.mxu0 %v714
        %1507 = vmatprep.subr.mxu0 0.0
        %1508 = vmatpush1.msra.mxu0 %v715
        %1509 = vmatprep.subr.mxu0 0.0
        %1510 = vmatpush1.msra.mxu0 %v716
        %1511 = vmatprep.subr.mxu0 0.0
        %1512 = vmatpush1.msra.mxu0 %v717
        %1513 = vmatprep.subr.mxu0 0.0
        %1514 = vmatpush1.msra.mxu0 %v718
        %1515 = vmatprep.subr.mxu0 0.0
        %1516 = vmatpush1.msra.mxu0 %v719
        %1517 = vmatprep.subr.mxu0 0.0
        %1518 = vmatpush1.msra.mxu0 %v720
        %1519 = vmatprep.subr.mxu0 0.0
        %1520 = vmatpush1.msra.mxu0 %v721
        %1521 = vmatprep.mubr.f32.mxu0 %v1386
        %1522 = vmatmul.mubr.f32.gmra.mrb[0].mxu0 %v1385
        %v1523 = vpop.f32.mrb[0].mxu0
        %v1524 = vadd.f32 %v1454, %v1523
        %v1525 = vpop.f32.mrb[0].mxu0
        %1526 = vdwg.mxu0
        %v1527 = vadd.f32 %v1379, %v1524
        %v1528 = vld [vmem:[%s1382] sm:$0x1e]
        %v1529 = vld [vmem:[%s1382 + $0x8] sm:$0x1e]
        %v1530 = vld [vmem:[%s1382 + $0x10] sm:$0x1e]
        %v1531 = vld [vmem:[%s1382 + $0x18] sm:$0x1e]
        %v1536 = vrot.slane %v1528, 1
        %v1537 = vrot.slane %v1529, 1
        %v1538 = vrot.slane %v1530, 1
        %v1539 = vrot.slane %v1531, 1
        %1544 = vmatprep.subr.mxu0 0.0
        %1545 = vmatpush1.msra.mxu0 %v868
        %1546 = vmatprep.subr.mxu0 0.0
        %1547 = vmatpush1.msra.mxu0 %v869
        %1548 = vmatprep.subr.mxu0 0.0
        %1549 = vmatpush1.msra.mxu0 %v870
        %1550 = vmatprep.subr.mxu0 0.0
        %1551 = vmatpush1.msra.mxu0 %v871
        %1552 = vmatprep.subr.mxu0 0.0
        %1553 = vmatpush1.msra.mxu0 %v872
        %1554 = vmatprep.subr.mxu0 0.0
        %1555 = vmatpush1.msra.mxu0 %v873
        %1556 = vmatprep.subr.mxu0 0.0
        %1557 = vmatpush1.msra.mxu0 %v874
        %1558 = vmatprep.subr.mxu0 0.0
        %1559 = vmatpush1.msra.mxu0 %v875
        %1560 = vmatprep.subr.mxu0 0.0
        %1561 = vmatpush1.msra.mxu0 %v876
        %1562 = vmatprep.subr.mxu0 0.0
        %1563 = vmatpush1.msra.mxu0 %v877
        %1564 = vmatprep.subr.mxu0 0.0
        %1565 = vmatpush1.msra.mxu0 %v878
        %1566 = vmatprep.subr.mxu0 0.0
        %1567 = vmatpush1.msra.mxu0 %v879
        %1568 = vmatprep.subr.mxu0 0.0
        %1569 = vmatpush1.msra.mxu0 %v880
        %1570 = vmatprep.subr.mxu0 0.0
        %1571 = vmatpush1.msra.mxu0 %v881
        %1572 = vmatprep.subr.mxu0 0.0
        %1573 = vmatpush1.msra.mxu0 %v882
        %1574 = vmatprep.subr.mxu0 0.0
        %1575 = vmatpush1.msra.mxu0 %v883
        %1576 = vmatprep.subr.mxu0 0.0
        %1577 = vmatpush1.msra.mxu0 %v884
        %1578 = vmatprep.subr.mxu0 0.0
        %1579 = vmatpush1.msra.mxu0 %v885
        %1580 = vmatprep.subr.mxu0 0.0
        %1581 = vmatpush1.msra.mxu0 %v886
        %1582 = vmatprep.subr.mxu0 0.0
        %1583 = vmatpush1.msra.mxu0 %v887
        %1584 = vmatprep.subr.mxu0 0.0
        %1585 = vmatpush1.msra.mxu0 %v888
        %1586 = vmatprep.subr.mxu0 0.0
        %1587 = vmatpush1.msra.mxu0 %v889
        %1588 = vmatprep.subr.mxu0 0.0
        %1589 = vmatpush1.msra.mxu0 %v890
        %1590 = vmatprep.subr.mxu0 0.0
        %1591 = vmatpush1.msra.mxu0 %v891
        %1592 = vmatprep.subr.mxu0 0.0
        %1593 = vmatpush1.msra.mxu0 %v892
        %1594 = vmatprep.subr.mxu0 0.0
        %1595 = vmatpush1.msra.mxu0 %v893
        %1596 = vmatprep.subr.mxu0 0.0
        %1597 = vmatpush1.msra.mxu0 %v894
        %1598 = vmatprep.subr.mxu0 0.0
        %1599 = vmatpush1.msra.mxu0 %v895
        %1600 = vmatprep.subr.mxu0 0.0
        %1601 = vmatpush1.msra.mxu0 %v896
        %1602 = vmatprep.subr.mxu0 0.0
        %1603 = vmatpush1.msra.mxu0 %v897
        %1604 = vmatprep.subr.mxu0 0.0
        %1605 = vmatpush1.msra.mxu0 %v898
        %1606 = vmatprep.subr.mxu0 0.0
        %1607 = vmatpush1.msra.mxu0 %v899
        %1608 = vmatprep.mubr.f32.mxu0 %v1537
        %1609 = vmatmul.mubr.f32.gmra.mrb[0].mxu0 %v1536
        %v1610 = vpop.f32.mrb[0].mxu0
        %v1611 = vadd.f32 0.0, %v1610
        %v1612 = vpop.f32.mrb[0].mxu0
        %1613 = vdwg.mxu0
        %1614 = vmatprep.subr.mxu0 0.0
        %1615 = vmatpush1.msra.mxu0 %v900
        %1616 = vmatprep.subr.mxu0 0.0
        %1617 = vmatpush1.msra.mxu0 %v901
        %1618 = vmatprep.subr.mxu0 0.0
        %1619 = vmatpush1.msra.mxu0 %v902
        %1620 = vmatprep.subr.mxu0 0.0
        %1621 = vmatpush1.msra.mxu0 %v903
        %1622 = vmatprep.subr.mxu0 0.0
        %1623 = vmatpush1.msra.mxu0 %v904
        %1624 = vmatprep.subr.mxu0 0.0
        %1625 = vmatpush1.msra.mxu0 %v905
        %1626 = vmatprep.subr.mxu0 0.0
        %1627 = vmatpush1.msra.mxu0 %v906
        %1628 = vmatprep.subr.mxu0 0.0
        %1629 = vmatpush1.msra.mxu0 %v907
        %1630 = vmatprep.subr.mxu0 0.0
        %1631 = vmatpush1.msra.mxu0 %v908
        %1632 = vmatprep.subr.mxu0 0.0
        %1633 = vmatpush1.msra.mxu0 %v909
        %1634 = vmatprep.subr.mxu0 0.0
        %1635 = vmatpush1.msra.mxu0 %v910
        %1636 = vmatprep.subr.mxu0 0.0
        %1637 = vmatpush1.msra.mxu0 %v911
        %1638 = vmatprep.subr.mxu0 0.0
        %1639 = vmatpush1.msra.mxu0 %v912
        %1640 = vmatprep.subr.mxu0 0.0
        %1641 = vmatpush1.msra.mxu0 %v913
        %1642 = vmatprep.subr.mxu0 0.0
        %1643 = vmatpush1.msra.mxu0 %v914
        %1644 = vmatprep.subr.mxu0 0.0
        %1645 = vmatpush1.msra.mxu0 %v915
        %1646 = vmatprep.subr.mxu0 0.0
        %1647 = vmatpush1.msra.mxu0 %v916
        %1648 = vmatprep.subr.mxu0 0.0
        %1649 = vmatpush1.msra.mxu0 %v917
        %1650 = vmatprep.subr.mxu0 0.0
        %1651 = vmatpush1.msra.mxu0 %v918
        %1652 = vmatprep.subr.mxu0 0.0
        %1653 = vmatpush1.msra.mxu0 %v919
        %1654 = vmatprep.subr.mxu0 0.0
        %1655 = vmatpush1.msra.mxu0 %v920
        %1656 = vmatprep.subr.mxu0 0.0
        %1657 = vmatpush1.msra.mxu0 %v921
        %1658 = vmatprep.subr.mxu0 0.0
        %1659 = vmatpush1.msra.mxu0 %v922
        %1660 = vmatprep.subr.mxu0 0.0
        %1661 = vmatpush1.msra.mxu0 %v923
        %1662 = vmatprep.subr.mxu0 0.0
        %1663 = vmatpush1.msra.mxu0 %v924
        %1664 = vmatprep.subr.mxu0 0.0
        %1665 = vmatpush1.msra.mxu0 %v925
        %1666 = vmatprep.subr.mxu0 0.0
        %1667 = vmatpush1.msra.mxu0 %v926
        %1668 = vmatprep.subr.mxu0 0.0
        %1669 = vmatpush1.msra.mxu0 %v927
        %1670 = vmatprep.subr.mxu0 0.0
        %1671 = vmatpush1.msra.mxu0 %v928
        %1672 = vmatprep.subr.mxu0 0.0
        %1673 = vmatpush1.msra.mxu0 %v929
        %1674 = vmatprep.subr.mxu0 0.0
        %1675 = vmatpush1.msra.mxu0 %v930
        %1676 = vmatprep.subr.mxu0 0.0
        %1677 = vmatpush1.msra.mxu0 %v931
        %1678 = vmatprep.mubr.f32.mxu0 %v1539
        %1679 = vmatmul.mubr.f32.gmra.mrb[0].mxu0 %v1538
        %v1680 = vpop.f32.mrb[0].mxu0
        %v1681 = vadd.f32 %v1611, %v1680
        %v1682 = vpop.f32.mrb[0].mxu0
        %1683 = vdwg.mxu0
        %v1684 = vadd.f32 %v1527, %v1681
        %v1685 = vadd.f32 %v1684, %v1089
        %v1686 = vmax.f32 %v1685, 0.0
        %v1687 = vsel %vm1093, %v1686, 0.0
        %v1688 = vrot.slane %v1687, 4
        %v1689 = vadd.f32 %v1687, %v1688
        %v1690 = vrot.slane %v1689, 2
        %v1691 = vadd.f32 %v1689, %v1690
        %v1692 = vrot.slane %v1691, 1
        %v1693 = vadd.f32 %v1691, %v1692
        %v1694 = vadd.f32 %v1101, %v1693
        %1695 = vmatprep.subr.mxu0 0.0
        %1696 = vmatpush1.msra.mxu0 %v296
        %1697 = vmatprep.subr.mxu0 0.0
        %1698 = vmatpush1.msra.mxu0 %v297
        %1699 = vmatprep.subr.mxu0 0.0
        %1700 = vmatpush1.msra.mxu0 %v298
        %1701 = vmatprep.subr.mxu0 0.0
        %1702 = vmatpush1.msra.mxu0 %v299
        %1703 = vmatprep.subr.mxu0 0.0
        %1704 = vmatpush1.msra.mxu0 %v300
        %1705 = vmatprep.subr.mxu0 0.0
        %1706 = vmatpush1.msra.mxu0 %v301
        %1707 = vmatprep.subr.mxu0 0.0
        %1708 = vmatpush1.msra.mxu0 %v302
        %1709 = vmatprep.subr.mxu0 0.0
        %1710 = vmatpush1.msra.mxu0 %v303
        %1711 = vmatprep.subr.mxu0 0.0
        %1712 = vmatpush1.msra.mxu0 %v304
        %1713 = vmatprep.subr.mxu0 0.0
        %1714 = vmatpush1.msra.mxu0 %v305
        %1715 = vmatprep.subr.mxu0 0.0
        %1716 = vmatpush1.msra.mxu0 %v306
        %1717 = vmatprep.subr.mxu0 0.0
        %1718 = vmatpush1.msra.mxu0 %v307
        %1719 = vmatprep.subr.mxu0 0.0
        %1720 = vmatpush1.msra.mxu0 %v308
        %1721 = vmatprep.subr.mxu0 0.0
        %1722 = vmatpush1.msra.mxu0 %v309
        %1723 = vmatprep.subr.mxu0 0.0
        %1724 = vmatpush1.msra.mxu0 %v310
        %1725 = vmatprep.subr.mxu0 0.0
        %1726 = vmatpush1.msra.mxu0 %v311
        %1727 = vmatprep.subr.mxu0 0.0
        %1728 = vmatpush1.msra.mxu0 %v312
        %1729 = vmatprep.subr.mxu0 0.0
        %1730 = vmatpush1.msra.mxu0 %v313
        %1731 = vmatprep.subr.mxu0 0.0
        %1732 = vmatpush1.msra.mxu0 %v314
        %1733 = vmatprep.subr.mxu0 0.0
        %1734 = vmatpush1.msra.mxu0 %v315
        %1735 = vmatprep.subr.mxu0 0.0
        %1736 = vmatpush1.msra.mxu0 %v316
        %1737 = vmatprep.subr.mxu0 0.0
        %1738 = vmatpush1.msra.mxu0 %v317
        %1739 = vmatprep.subr.mxu0 0.0
        %1740 = vmatpush1.msra.mxu0 %v318
        %1741 = vmatprep.subr.mxu0 0.0
        %1742 = vmatpush1.msra.mxu0 %v319
        %1743 = vmatprep.subr.mxu0 0.0
        %1744 = vmatpush1.msra.mxu0 %v320
        %1745 = vmatprep.subr.mxu0 0.0
        %1746 = vmatpush1.msra.mxu0 %v321
        %1747 = vmatprep.subr.mxu0 0.0
        %1748 = vmatpush1.msra.mxu0 %v322
        %1749 = vmatprep.subr.mxu0 0.0
        %1750 = vmatpush1.msra.mxu0 %v323
        %1751 = vmatprep.subr.mxu0 0.0
        %1752 = vmatpush1.msra.mxu0 %v324
        %1753 = vmatprep.subr.mxu0 0.0
        %1754 = vmatpush1.msra.mxu0 %v325
        %1755 = vmatprep.subr.mxu0 0.0
        %1756 = vmatpush1.msra.mxu0 %v326
        %1757 = vmatprep.subr.mxu0 0.0
        %1758 = vmatpush1.msra.mxu0 %v327
        %1759 = vmatprep.mubr.f32.mxu0 %v1537
        %1760 = vmatmul.mubr.f32.gmra.mrb[0].mxu0 %v1536
        %v1761 = vpop.f32.mrb[0].mxu0
        %v1762 = vadd.f32 0.0, %v1761
        %v1763 = vpop.f32.mrb[0].mxu0
        %1764 = vdwg.mxu0
        %1765 = vmatprep.subr.mxu0 0.0
        %1766 = vmatpush1.msra.mxu0 %v328
        %1767 = vmatprep.subr.mxu0 0.0
        %1768 = vmatpush1.msra.mxu0 %v329
        %1769 = vmatprep.subr.mxu0 0.0
        %1770 = vmatpush1.msra.mxu0 %v330
        %1771 = vmatprep.subr.mxu0 0.0
        %1772 = vmatpush1.msra.mxu0 %v331
        %1773 = vmatprep.subr.mxu0 0.0
        %1774 = vmatpush1.msra.mxu0 %v332
        %1775 = vmatprep.subr.mxu0 0.0
        %1776 = vmatpush1.msra.mxu0 %v333
        %1777 = vmatprep.subr.mxu0 0.0
        %1778 = vmatpush1.msra.mxu0 %v334
        %1779 = vmatprep.subr.mxu0 0.0
        %1780 = vmatpush1.msra.mxu0 %v335
        %1781 = vmatprep.subr.mxu0 0.0
        %1782 = vmatpush1.msra.mxu0 %v336
        %1783 = vmatprep.subr.mxu0 0.0
        %1784 = vmatpush1.msra.mxu0 %v337
        %1785 = vmatprep.subr.mxu0 0.0
        %1786 = vmatpush1.msra.mxu0 %v338
        %1787 = vmatprep.subr.mxu0 0.0
        %1788 = vmatpush1.msra.mxu0 %v339
        %1789 = vmatprep.subr.mxu0 0.0
        %1790 = vmatpush1.msra.mxu0 %v340
        %1791 = vmatprep.subr.mxu0 0.0
        %1792 = vmatpush1.msra.mxu0 %v341
        %1793 = vmatprep.subr.mxu0 0.0
        %1794 = vmatpush1.msra.mxu0 %v342
        %1795 = vmatprep.subr.mxu0 0.0
        %1796 = vmatpush1.msra.mxu0 %v343
        %1797 = vmatprep.subr.mxu0 0.0
        %1798 = vmatpush1.msra.mxu0 %v344
        %1799 = vmatprep.subr.mxu0 0.0
        %1800 = vmatpush1.msra.mxu0 %v345
        %1801 = vmatprep.subr.mxu0 0.0
        %1802 = vmatpush1.msra.mxu0 %v346
        %1803 = vmatprep.subr.mxu0 0.0
        %1804 = vmatpush1.msra.mxu0 %v347
        %1805 = vmatprep.subr.mxu0 0.0
        %1806 = vmatpush1.msra.mxu0 %v348
        %1807 = vmatprep.subr.mxu0 0.0
        %1808 = vmatpush1.msra.mxu0 %v349
        %1809 = vmatprep.subr.mxu0 0.0
        %1810 = vmatpush1.msra.mxu0 %v350
        %1811 = vmatprep.subr.mxu0 0.0
        %1812 = vmatpush1.msra.mxu0 %v351
        %1813 = vmatprep.subr.mxu0 0.0
        %1814 = vmatpush1.msra.mxu0 %v352
        %1815 = vmatprep.subr.mxu0 0.0
        %1816 = vmatpush1.msra.mxu0 %v353
        %1817 = vmatprep.subr.mxu0 0.0
        %1818 = vmatpush1.msra.mxu0 %v354
        %1819 = vmatprep.subr.mxu0 0.0
        %1820 = vmatpush1.msra.mxu0 %v355
        %1821 = vmatprep.subr.mxu0 0.0
        %1822 = vmatpush1.msra.mxu0 %v356
        %1823 = vmatprep.subr.mxu0 0.0
        %1824 = vmatpush1.msra.mxu0 %v357
        %1825 = vmatprep.subr.mxu0 0.0
        %1826 = vmatpush1.msra.mxu0 %v358
        %1827 = vmatprep.subr.mxu0 0.0
        %1828 = vmatpush1.msra.mxu0 %v359
        %1829 = vmatprep.mubr.f32.mxu0 %v1539
        %1830 = vmatmul.mubr.f32.gmra.mrb[0].mxu0 %v1538
        %v1831 = vpop.f32.mrb[0].mxu0
        %v1832 = vadd.f32 %v1762, %v1831
        %v1833 = vpop.f32.mrb[0].mxu0
        %1834 = vdwg.mxu0
        %1835 = vmatprep.subr.mxu0 0.0
        %1836 = vmatpush1.msra.mxu0 %v227
        %1837 = vmatprep.subr.mxu0 0.0
        %1838 = vmatpush1.msra.mxu0 %v228
        %1839 = vmatprep.subr.mxu0 0.0
        %1840 = vmatpush1.msra.mxu0 %v229
        %1841 = vmatprep.subr.mxu0 0.0
        %1842 = vmatpush1.msra.mxu0 %v230
        %1843 = vmatprep.subr.mxu0 0.0
        %1844 = vmatpush1.msra.mxu0 %v231
        %1845 = vmatprep.subr.mxu0 0.0
        %1846 = vmatpush1.msra.mxu0 %v232
        %1847 = vmatprep.subr.mxu0 0.0
        %1848 = vmatpush1.msra.mxu0 %v233
        %1849 = vmatprep.subr.mxu0 0.0
        %1850 = vmatpush1.msra.mxu0 %v234
        %1851 = vmatprep.subr.mxu0 0.0
        %1852 = vmatpush1.msra.mxu0 %v235
        %1853 = vmatprep.subr.mxu0 0.0
        %1854 = vmatpush1.msra.mxu0 %v236
        %1855 = vmatprep.subr.mxu0 0.0
        %1856 = vmatpush1.msra.mxu0 %v237
        %1857 = vmatprep.subr.mxu0 0.0
        %1858 = vmatpush1.msra.mxu0 %v238
        %1859 = vmatprep.subr.mxu0 0.0
        %1860 = vmatpush1.msra.mxu0 %v239
        %1861 = vmatprep.subr.mxu0 0.0
        %1862 = vmatpush1.msra.mxu0 %v240
        %1863 = vmatprep.subr.mxu0 0.0
        %1864 = vmatpush1.msra.mxu0 %v241
        %1865 = vmatprep.subr.mxu0 0.0
        %1866 = vmatpush1.msra.mxu0 %v242
        %1867 = vmatprep.subr.mxu0 0.0
        %1868 = vmatpush1.msra.mxu0 %v243
        %1869 = vmatprep.subr.mxu0 0.0
        %1870 = vmatpush1.msra.mxu0 %v244
        %1871 = vmatprep.subr.mxu0 0.0
        %1872 = vmatpush1.msra.mxu0 %v245
        %1873 = vmatprep.subr.mxu0 0.0
        %1874 = vmatpush1.msra.mxu0 %v246
        %1875 = vmatprep.subr.mxu0 0.0
        %1876 = vmatpush1.msra.mxu0 %v247
        %1877 = vmatprep.subr.mxu0 0.0
        %1878 = vmatpush1.msra.mxu0 %v248
        %1879 = vmatprep.subr.mxu0 0.0
        %1880 = vmatpush1.msra.mxu0 %v249
        %1881 = vmatprep.subr.mxu0 0.0
        %1882 = vmatpush1.msra.mxu0 %v250
        %1883 = vmatprep.subr.mxu0 0.0
        %1884 = vmatpush1.msra.mxu0 %v251
        %1885 = vmatprep.subr.mxu0 0.0
        %1886 = vmatpush1.msra.mxu0 %v252
        %1887 = vmatprep.subr.mxu0 0.0
        %1888 = vmatpush1.msra.mxu0 %v253
        %1889 = vmatprep.subr.mxu0 0.0
        %1890 = vmatpush1.msra.mxu0 %v254
        %1891 = vmatprep.subr.mxu0 0.0
        %1892 = vmatpush1.msra.mxu0 %v255
        %1893 = vmatprep.subr.mxu0 0.0
        %1894 = vmatpush1.msra.mxu0 %v256
        %1895 = vmatprep.subr.mxu0 0.0
        %1896 = vmatpush1.msra.mxu0 %v257
        %1897 = vmatprep.subr.mxu0 0.0
        %1898 = vmatpush1.msra.mxu0 %v258
        %1899 = vmatprep.mubr.f32.mxu0 %v1384
        %1900 = vmatmul.mubr.f32.gmra.mrb[0].mxu0 %v1383
        %v1901 = vpop.f32.mrb[0].mxu0
        %v1902 = vadd.f32 %v1832, %v1901
        %v1903 = vpop.f32.mrb[0].mxu0
        %1904 = vdwg.mxu0
        %1905 = vmatprep.subr.mxu0 0.0
        %1906 = vmatpush1.msra.mxu0 %v259
        %1907 = vmatprep.subr.mxu0 0.0
        %1908 = vmatpush1.msra.mxu0 %v260
        %1909 = vmatprep.subr.mxu0 0.0
        %1910 = vmatpush1.msra.mxu0 %v261
        %1911 = vmatprep.subr.mxu0 0.0
        %1912 = vmatpush1.msra.mxu0 %v262
        %1913 = vmatprep.subr.mxu0 0.0
        %1914 = vmatpush1.msra.mxu0 %v263
        %1915 = vmatprep.subr.mxu0 0.0
        %1916 = vmatpush1.msra.mxu0 %v264
        %1917 = vmatprep.subr.mxu0 0.0
        %1918 = vmatpush1.msra.mxu0 %v265
        %1919 = vmatprep.subr.mxu0 0.0
        %1920 = vmatpush1.msra.mxu0 %v266
        %1921 = vmatprep.subr.mxu0 0.0
        %1922 = vmatpush1.msra.mxu0 %v267
        %1923 = vmatprep.subr.mxu0 0.0
        %1924 = vmatpush1.msra.mxu0 %v268
        %1925 = vmatprep.subr.mxu0 0.0
        %1926 = vmatpush1.msra.mxu0 %v269
        %1927 = vmatprep.subr.mxu0 0.0
        %1928 = vmatpush1.msra.mxu0 %v270
        %1929 = vmatprep.subr.mxu0 0.0
        %1930 = vmatpush1.msra.mxu0 %v271
        %1931 = vmatprep.subr.mxu0 0.0
        %1932 = vmatpush1.msra.mxu0 %v272
        %1933 = vmatprep.subr.mxu0 0.0
        %1934 = vmatpush1.msra.mxu0 %v273
        %1935 = vmatprep.subr.mxu0 0.0
        %1936 = vmatpush1.msra.mxu0 %v274
        %1937 = vmatprep.subr.mxu0 0.0
        %1938 = vmatpush1.msra.mxu0 %v275
        %1939 = vmatprep.subr.mxu0 0.0
        %1940 = vmatpush1.msra.mxu0 %v276
        %1941 = vmatprep.subr.mxu0 0.0
        %1942 = vmatpush1.msra.mxu0 %v277
        %1943 = vmatprep.subr.mxu0 0.0
        %1944 = vmatpush1.msra.mxu0 %v278
        %1945 = vmatprep.subr.mxu0 0.0
        %1946 = vmatpush1.msra.mxu0 %v279
        %1947 = vmatprep.subr.mxu0 0.0
        %1948 = vmatpush1.msra.mxu0 %v280
        %1949 = vmatprep.subr.mxu0 0.0
        %1950 = vmatpush1.msra.mxu0 %v281
        %1951 = vmatprep.subr.mxu0 0.0
        %1952 = vmatpush1.msra.mxu0 %v282
        %1953 = vmatprep.subr.mxu0 0.0
        %1954 = vmatpush1.msra.mxu0 %v283
        %1955 = vmatprep.subr.mxu0 0.0
        %1956 = vmatpush1.msra.mxu0 %v284
        %1957 = vmatprep.subr.mxu0 0.0
        %1958 = vmatpush1.msra.mxu0 %v285
        %1959 = vmatprep.subr.mxu0 0.0
        %1960 = vmatpush1.msra.mxu0 %v286
        %1961 = vmatprep.subr.mxu0 0.0
        %1962 = vmatpush1.msra.mxu0 %v287
        %1963 = vmatprep.subr.mxu0 0.0
        %1964 = vmatpush1.msra.mxu0 %v288
        %1965 = vmatprep.subr.mxu0 0.0
        %1966 = vmatpush1.msra.mxu0 %v289
        %1967 = vmatprep.subr.mxu0 0.0
        %1968 = vmatpush1.msra.mxu0 %v290
        %1969 = vmatprep.mubr.f32.mxu0 %v1386
        %1970 = vmatmul.mubr.f32.gmra.mrb[0].mxu0 %v1385
        %v1971 = vpop.f32.mrb[0].mxu0
        %v1972 = vadd.f32 %v1902, %v1971
        %v1973 = vpop.f32.mrb[0].mxu0
        %1974 = vdwg.mxu0
        %s1975 = scalar_lea.vmem %s221, 96
        %v1976 = vld [vmem:[%s1975] sm:$0xf]
        %v1977 = vld [vmem:[%s1975 + $0x8] sm:$0xf]
        %v1978 = vld [vmem:[%s1975 + $0x10] sm:$0xf]
        %v1979 = vld [vmem:[%s1975 + $0x18] sm:$0xf]
        %1980 = vmatprep.subr.mxu0 0.0
        %1981 = vmatpush1.msra.mxu0 %v658
        %1982 = vmatprep.subr.mxu0 0.0
        %1983 = vmatpush1.msra.mxu0 %v659
        %1984 = vmatprep.subr.mxu0 0.0
        %1985 = vmatpush1.msra.mxu0 %v660
        %1986 = vmatprep.subr.mxu0 0.0
        %1987 = vmatpush1.msra.mxu0 %v661
        %1988 = vmatprep.subr.mxu0 0.0
        %1989 = vmatpush1.msra.mxu0 %v662
        %1990 = vmatprep.subr.mxu0 0.0
        %1991 = vmatpush1.msra.mxu0 %v663
        %1992 = vmatprep.subr.mxu0 0.0
        %1993 = vmatpush1.msra.mxu0 %v664
        %1994 = vmatprep.subr.mxu0 0.0
        %1995 = vmatpush1.msra.mxu0 %v665
        %1996 = vmatprep.subr.mxu0 0.0
        %1997 = vmatpush1.msra.mxu0 %v666
        %1998 = vmatprep.subr.mxu0 0.0
        %1999 = vmatpush1.msra.mxu0 %v667
        %2000 = vmatprep.subr.mxu0 0.0
        %2001 = vmatpush1.msra.mxu0 %v668
        %2002 = vmatprep.subr.mxu0 0.0
        %2003 = vmatpush1.msra.mxu0 %v669
        %2004 = vmatprep.subr.mxu0 0.0
        %2005 = vmatpush1.msra.mxu0 %v670
        %2006 = vmatprep.subr.mxu0 0.0
        %2007 = vmatpush1.msra.mxu0 %v671
        %2008 = vmatprep.subr.mxu0 0.0
        %2009 = vmatpush1.msra.mxu0 %v672
        %2010 = vmatprep.subr.mxu0 0.0
        %2011 = vmatpush1.msra.mxu0 %v673
        %2012 = vmatprep.subr.mxu0 0.0
        %2013 = vmatpush1.msra.mxu0 %v674
        %2014 = vmatprep.subr.mxu0 0.0
        %2015 = vmatpush1.msra.mxu0 %v675
        %2016 = vmatprep.subr.mxu0 0.0
        %2017 = vmatpush1.msra.mxu0 %v676
        %2018 = vmatprep.subr.mxu0 0.0
        %2019 = vmatpush1.msra.mxu0 %v677
        %2020 = vmatprep.subr.mxu0 0.0
        %2021 = vmatpush1.msra.mxu0 %v678
        %2022 = vmatprep.subr.mxu0 0.0
        %2023 = vmatpush1.msra.mxu0 %v679
        %2024 = vmatprep.subr.mxu0 0.0
        %2025 = vmatpush1.msra.mxu0 %v680
        %2026 = vmatprep.subr.mxu0 0.0
        %2027 = vmatpush1.msra.mxu0 %v681
        %2028 = vmatprep.subr.mxu0 0.0
        %2029 = vmatpush1.msra.mxu0 %v682
        %2030 = vmatprep.subr.mxu0 0.0
        %2031 = vmatpush1.msra.mxu0 %v683
        %2032 = vmatprep.subr.mxu0 0.0
        %2033 = vmatpush1.msra.mxu0 %v684
        %2034 = vmatprep.subr.mxu0 0.0
        %2035 = vmatpush1.msra.mxu0 %v685
        %2036 = vmatprep.subr.mxu0 0.0
        %2037 = vmatpush1.msra.mxu0 %v686
        %2038 = vmatprep.subr.mxu0 0.0
        %2039 = vmatpush1.msra.mxu0 %v687
        %2040 = vmatprep.subr.mxu0 0.0
        %2041 = vmatpush1.msra.mxu0 %v688
        %2042 = vmatprep.subr.mxu0 0.0
        %2043 = vmatpush1.msra.mxu0 %v689
        %2044 = vmatprep.mubr.f32.mxu0 %v1977
        %2045 = vmatmul.mubr.f32.gmra.mrb[0].mxu0 %v1976
        %v2046 = vpop.f32.mrb[0].mxu0
        %v2047 = vadd.f32 0.0, %v2046
        %v2048 = vpop.f32.mrb[0].mxu0
        %2049 = vdwg.mxu0
        %2050 = vmatprep.subr.mxu0 0.0
        %2051 = vmatpush1.msra.mxu0 %v690
        %2052 = vmatprep.subr.mxu0 0.0
        %2053 = vmatpush1.msra.mxu0 %v691
        %2054 = vmatprep.subr.mxu0 0.0
        %2055 = vmatpush1.msra.mxu0 %v692
        %2056 = vmatprep.subr.mxu0 0.0
        %2057 = vmatpush1.msra.mxu0 %v693
        %2058 = vmatprep.subr.mxu0 0.0
        %2059 = vmatpush1.msra.mxu0 %v694
        %2060 = vmatprep.subr.mxu0 0.0
        %2061 = vmatpush1.msra.mxu0 %v695
        %2062 = vmatprep.subr.mxu0 0.0
        %2063 = vmatpush1.msra.mxu0 %v696
        %2064 = vmatprep.subr.mxu0 0.0
        %2065 = vmatpush1.msra.mxu0 %v697
        %2066 = vmatprep.subr.mxu0 0.0
        %2067 = vmatpush1.msra.mxu0 %v698
        %2068 = vmatprep.subr.mxu0 0.0
        %2069 = vmatpush1.msra.mxu0 %v699
        %2070 = vmatprep.subr.mxu0 0.0
        %2071 = vmatpush1.msra.mxu0 %v700
        %2072 = vmatprep.subr.mxu0 0.0
        %2073 = vmatpush1.msra.mxu0 %v701
        %2074 = vmatprep.subr.mxu0 0.0
        %2075 = vmatpush1.msra.mxu0 %v702
        %2076 = vmatprep.subr.mxu0 0.0
        %2077 = vmatpush1.msra.mxu0 %v703
        %2078 = vmatprep.subr.mxu0 0.0
        %2079 = vmatpush1.msra.mxu0 %v704
        %2080 = vmatprep.subr.mxu0 0.0
        %2081 = vmatpush1.msra.mxu0 %v705
        %2082 = vmatprep.subr.mxu0 0.0
        %2083 = vmatpush1.msra.mxu0 %v706
        %2084 = vmatprep.subr.mxu0 0.0
        %2085 = vmatpush1.msra.mxu0 %v707
        %2086 = vmatprep.subr.mxu0 0.0
        %2087 = vmatpush1.msra.mxu0 %v708
        %2088 = vmatprep.subr.mxu0 0.0
        %2089 = vmatpush1.msra.mxu0 %v709
        %2090 = vmatprep.subr.mxu0 0.0
        %2091 = vmatpush1.msra.mxu0 %v710
        %2092 = vmatprep.subr.mxu0 0.0
        %2093 = vmatpush1.msra.mxu0 %v711
        %2094 = vmatprep.subr.mxu0 0.0
        %2095 = vmatpush1.msra.mxu0 %v712
        %2096 = vmatprep.subr.mxu0 0.0
        %2097 = vmatpush1.msra.mxu0 %v713
        %2098 = vmatprep.subr.mxu0 0.0
        %2099 = vmatpush1.msra.mxu0 %v714
        %2100 = vmatprep.subr.mxu0 0.0
        %2101 = vmatpush1.msra.mxu0 %v715
        %2102 = vmatprep.subr.mxu0 0.0
        %2103 = vmatpush1.msra.mxu0 %v716
        %2104 = vmatprep.subr.mxu0 0.0
        %2105 = vmatpush1.msra.mxu0 %v717
        %2106 = vmatprep.subr.mxu0 0.0
        %2107 = vmatpush1.msra.mxu0 %v718
        %2108 = vmatprep.subr.mxu0 0.0
        %2109 = vmatpush1.msra.mxu0 %v719
        %2110 = vmatprep.subr.mxu0 0.0
        %2111 = vmatpush1.msra.mxu0 %v720
        %2112 = vmatprep.subr.mxu0 0.0
        %2113 = vmatpush1.msra.mxu0 %v721
        %2114 = vmatprep.mubr.f32.mxu0 %v1979
        %2115 = vmatmul.mubr.f32.gmra.mrb[0].mxu0 %v1978
        %v2116 = vpop.f32.mrb[0].mxu0
        %v2117 = vadd.f32 %v2047, %v2116
        %v2118 = vpop.f32.mrb[0].mxu0
        %2119 = vdwg.mxu0
        %v2120 = vadd.f32 %v1972, %v2117
        %v2121 = vld [vmem:[%s1975] sm:$0x1e]
        %v2122 = vld [vmem:[%s1975 + $0x8] sm:$0x1e]
        %v2123 = vld [vmem:[%s1975 + $0x10] sm:$0x1e]
        %v2124 = vld [vmem:[%s1975 + $0x18] sm:$0x1e]
        %v2129 = vrot.slane %v2121, 1
        %v2130 = vrot.slane %v2122, 1
        %v2131 = vrot.slane %v2123, 1
        %v2132 = vrot.slane %v2124, 1
        %2137 = vmatprep.subr.mxu0 0.0
        %2138 = vmatpush1.msra.mxu0 %v868
        %2139 = vmatprep.subr.mxu0 0.0
        %2140 = vmatpush1.msra.mxu0 %v869
        %2141 = vmatprep.subr.mxu0 0.0
        %2142 = vmatpush1.msra.mxu0 %v870
        %2143 = vmatprep.subr.mxu0 0.0
        %2144 = vmatpush1.msra.mxu0 %v871
        %2145 = vmatprep.subr.mxu0 0.0
        %2146 = vmatpush1.msra.mxu0 %v872
        %2147 = vmatprep.subr.mxu0 0.0
        %2148 = vmatpush1.msra.mxu0 %v873
        %2149 = vmatprep.subr.mxu0 0.0
        %2150 = vmatpush1.msra.mxu0 %v874
        %2151 = vmatprep.subr.mxu0 0.0
        %2152 = vmatpush1.msra.mxu0 %v875
        %2153 = vmatprep.subr.mxu0 0.0
        %2154 = vmatpush1.msra.mxu0 %v876
        %2155 = vmatprep.subr.mxu0 0.0
        %2156 = vmatpush1.msra.mxu0 %v877
        %2157 = vmatprep.subr.mxu0 0.0
        %2158 = vmatpush1.msra.mxu0 %v878
        %2159 = vmatprep.subr.mxu0 0.0
        %2160 = vmatpush1.msra.mxu0 %v879
        %2161 = vmatprep.subr.mxu0 0.0
        %2162 = vmatpush1.msra.mxu0 %v880
        %2163 = vmatprep.subr.mxu0 0.0
        %2164 = vmatpush1.msra.mxu0 %v881
        %2165 = vmatprep.subr.mxu0 0.0
        %2166 = vmatpush1.msra.mxu0 %v882
        %2167 = vmatprep.subr.mxu0 0.0
        %2168 = vmatpush1.msra.mxu0 %v883
        %2169 = vmatprep.subr.mxu0 0.0
        %2170 = vmatpush1.msra.mxu0 %v884
        %2171 = vmatprep.subr.mxu0 0.0
        %2172 = vmatpush1.msra.mxu0 %v885
        %2173 = vmatprep.subr.mxu0 0.0
        %2174 = vmatpush1.msra.mxu0 %v886
        %2175 = vmatprep.subr.mxu0 0.0
        %2176 = vmatpush1.msra.mxu0 %v887
        %2177 = vmatprep.subr.mxu0 0.0
        %2178 = vmatpush1.msra.mxu0 %v888
        %2179 = vmatprep.subr.mxu0 0.0
        %2180 = vmatpush1.msra.mxu0 %v889
        %2181 = vmatprep.subr.mxu0 0.0
        %2182 = vmatpush1.msra.mxu0 %v890
        %2183 = vmatprep.subr.mxu0 0.0
        %2184 = vmatpush1.msra.mxu0 %v891
        %2185 = vmatprep.subr.mxu0 0.0
        %2186 = vmatpush1.msra.mxu0 %v892
        %2187 = vmatprep.subr.mxu0 0.0
        %2188 = vmatpush1.msra.mxu0 %v893
        %2189 = vmatprep.subr.mxu0 0.0
        %2190 = vmatpush1.msra.mxu0 %v894
        %2191 = vmatprep.subr.mxu0 0.0
        %2192 = vmatpush1.msra.mxu0 %v895
        %2193 = vmatprep.subr.mxu0 0.0
        %2194 = vmatpush1.msra.mxu0 %v896
        %2195 = vmatprep.subr.mxu0 0.0
        %2196 = vmatpush1.msra.mxu0 %v897
        %2197 = vmatprep.subr.mxu0 0.0
        %2198 = vmatpush1.msra.mxu0 %v898
        %2199 = vmatprep.subr.mxu0 0.0
        %2200 = vmatpush1.msra.mxu0 %v899
        %2201 = vmatprep.mubr.f32.mxu0 %v2130
        %2202 = vmatmul.mubr.f32.gmra.mrb[0].mxu0 %v2129
        %v2203 = vpop.f32.mrb[0].mxu0
        %v2204 = vadd.f32 0.0, %v2203
        %v2205 = vpop.f32.mrb[0].mxu0
        %2206 = vdwg.mxu0
        %2207 = vmatprep.subr.mxu0 0.0
        %2208 = vmatpush1.msra.mxu0 %v900
        %2209 = vmatprep.subr.mxu0 0.0
        %2210 = vmatpush1.msra.mxu0 %v901
        %2211 = vmatprep.subr.mxu0 0.0
        %2212 = vmatpush1.msra.mxu0 %v902
        %2213 = vmatprep.subr.mxu0 0.0
        %2214 = vmatpush1.msra.mxu0 %v903
        %2215 = vmatprep.subr.mxu0 0.0
        %2216 = vmatpush1.msra.mxu0 %v904
        %2217 = vmatprep.subr.mxu0 0.0
        %2218 = vmatpush1.msra.mxu0 %v905
        %2219 = vmatprep.subr.mxu0 0.0
        %2220 = vmatpush1.msra.mxu0 %v906
        %2221 = vmatprep.subr.mxu0 0.0
        %2222 = vmatpush1.msra.mxu0 %v907
        %2223 = vmatprep.subr.mxu0 0.0
        %2224 = vmatpush1.msra.mxu0 %v908
        %2225 = vmatprep.subr.mxu0 0.0
        %2226 = vmatpush1.msra.mxu0 %v909
        %2227 = vmatprep.subr.mxu0 0.0
        %2228 = vmatpush1.msra.mxu0 %v910
        %2229 = vmatprep.subr.mxu0 0.0
        %2230 = vmatpush1.msra.mxu0 %v911
        %2231 = vmatprep.subr.mxu0 0.0
        %2232 = vmatpush1.msra.mxu0 %v912
        %2233 = vmatprep.subr.mxu0 0.0
        %2234 = vmatpush1.msra.mxu0 %v913
        %2235 = vmatprep.subr.mxu0 0.0
        %2236 = vmatpush1.msra.mxu0 %v914
        %2237 = vmatprep.subr.mxu0 0.0
        %2238 = vmatpush1.msra.mxu0 %v915
        %2239 = vmatprep.subr.mxu0 0.0
        %2240 = vmatpush1.msra.mxu0 %v916
        %2241 = vmatprep.subr.mxu0 0.0
        %2242 = vmatpush1.msra.mxu0 %v917
        %2243 = vmatprep.subr.mxu0 0.0
        %2244 = vmatpush1.msra.mxu0 %v918
        %2245 = vmatprep.subr.mxu0 0.0
        %2246 = vmatpush1.msra.mxu0 %v919
        %2247 = vmatprep.subr.mxu0 0.0
        %2248 = vmatpush1.msra.mxu0 %v920
        %2249 = vmatprep.subr.mxu0 0.0
        %2250 = vmatpush1.msra.mxu0 %v921
        %2251 = vmatprep.subr.mxu0 0.0
        %2252 = vmatpush1.msra.mxu0 %v922
        %2253 = vmatprep.subr.mxu0 0.0
        %2254 = vmatpush1.msra.mxu0 %v923
        %2255 = vmatprep.subr.mxu0 0.0
        %2256 = vmatpush1.msra.mxu0 %v924
        %2257 = vmatprep.subr.mxu0 0.0
        %2258 = vmatpush1.msra.mxu0 %v925
        %2259 = vmatprep.subr.mxu0 0.0
        %2260 = vmatpush1.msra.mxu0 %v926
        %2261 = vmatprep.subr.mxu0 0.0
        %2262 = vmatpush1.msra.mxu0 %v927
        %2263 = vmatprep.subr.mxu0 0.0
        %2264 = vmatpush1.msra.mxu0 %v928
        %2265 = vmatprep.subr.mxu0 0.0
        %2266 = vmatpush1.msra.mxu0 %v929
        %2267 = vmatprep.subr.mxu0 0.0
        %2268 = vmatpush1.msra.mxu0 %v930
        %2269 = vmatprep.subr.mxu0 0.0
        %2270 = vmatpush1.msra.mxu0 %v931
        %2271 = vmatprep.mubr.f32.mxu0 %v2132
        %2272 = vmatmul.mubr.f32.gmra.mrb[0].mxu0 %v2131
        %v2273 = vpop.f32.mrb[0].mxu0
        %v2274 = vadd.f32 %v2204, %v2273
        %v2275 = vpop.f32.mrb[0].mxu0
        %2276 = vdwg.mxu0
        %v2277 = vadd.f32 %v2120, %v2274
        %v2278 = vadd.f32 %v2277, %v1089
        %v2279 = vmax.f32 %v2278, 0.0
        %v2280 = vsel %vm1093, %v2279, 0.0
        %v2281 = vrot.slane %v2280, 4
        %v2282 = vadd.f32 %v2280, %v2281
        %v2283 = vrot.slane %v2282, 2
        %v2284 = vadd.f32 %v2282, %v2283
        %v2285 = vrot.slane %v2284, 1
        %v2286 = vadd.f32 %v2284, %v2285
        %v2287 = vadd.f32 %v1694, %v2286
        %2288 = vmatprep.subr.mxu0 0.0
        %2289 = vmatpush1.msra.mxu0 %v296
        %2290 = vmatprep.subr.mxu0 0.0
        %2291 = vmatpush1.msra.mxu0 %v297
        %2292 = vmatprep.subr.mxu0 0.0
        %2293 = vmatpush1.msra.mxu0 %v298
        %2294 = vmatprep.subr.mxu0 0.0
        %2295 = vmatpush1.msra.mxu0 %v299
        %2296 = vmatprep.subr.mxu0 0.0
        %2297 = vmatpush1.msra.mxu0 %v300
        %2298 = vmatprep.subr.mxu0 0.0
        %2299 = vmatpush1.msra.mxu0 %v301
        %2300 = vmatprep.subr.mxu0 0.0
        %2301 = vmatpush1.msra.mxu0 %v302
        %2302 = vmatprep.subr.mxu0 0.0
        %2303 = vmatpush1.msra.mxu0 %v303
        %2304 = vmatprep.subr.mxu0 0.0
        %2305 = vmatpush1.msra.mxu0 %v304
        %2306 = vmatprep.subr.mxu0 0.0
        %2307 = vmatpush1.msra.mxu0 %v305
        %2308 = vmatprep.subr.mxu0 0.0
        %2309 = vmatpush1.msra.mxu0 %v306
        %2310 = vmatprep.subr.mxu0 0.0
        %2311 = vmatpush1.msra.mxu0 %v307
        %2312 = vmatprep.subr.mxu0 0.0
        %2313 = vmatpush1.msra.mxu0 %v308
        %2314 = vmatprep.subr.mxu0 0.0
        %2315 = vmatpush1.msra.mxu0 %v309
        %2316 = vmatprep.subr.mxu0 0.0
        %2317 = vmatpush1.msra.mxu0 %v310
        %2318 = vmatprep.subr.mxu0 0.0
        %2319 = vmatpush1.msra.mxu0 %v311
        %2320 = vmatprep.subr.mxu0 0.0
        %2321 = vmatpush1.msra.mxu0 %v312
        %2322 = vmatprep.subr.mxu0 0.0
        %2323 = vmatpush1.msra.mxu0 %v313
        %2324 = vmatprep.subr.mxu0 0.0
        %2325 = vmatpush1.msra.mxu0 %v314
        %2326 = vmatprep.subr.mxu0 0.0
        %2327 = vmatpush1.msra.mxu0 %v315
        %2328 = vmatprep.subr.mxu0 0.0
        %2329 = vmatpush1.msra.mxu0 %v316
        %2330 = vmatprep.subr.mxu0 0.0
        %2331 = vmatpush1.msra.mxu0 %v317
        %2332 = vmatprep.subr.mxu0 0.0
        %2333 = vmatpush1.msra.mxu0 %v318
        %2334 = vmatprep.subr.mxu0 0.0
        %2335 = vmatpush1.msra.mxu0 %v319
        %2336 = vmatprep.subr.mxu0 0.0
        %2337 = vmatpush1.msra.mxu0 %v320
        %2338 = vmatprep.subr.mxu0 0.0
        %2339 = vmatpush1.msra.mxu0 %v321
        %2340 = vmatprep.subr.mxu0 0.0
        %2341 = vmatpush1.msra.mxu0 %v322
        %2342 = vmatprep.subr.mxu0 0.0
        %2343 = vmatpush1.msra.mxu0 %v323
        %2344 = vmatprep.subr.mxu0 0.0
        %2345 = vmatpush1.msra.mxu0 %v324
        %2346 = vmatprep.subr.mxu0 0.0
        %2347 = vmatpush1.msra.mxu0 %v325
        %2348 = vmatprep.subr.mxu0 0.0
        %2349 = vmatpush1.msra.mxu0 %v326
        %2350 = vmatprep.subr.mxu0 0.0
        %2351 = vmatpush1.msra.mxu0 %v327
        %2352 = vmatprep.mubr.f32.mxu0 %v2130
        %2353 = vmatmul.mubr.f32.gmra.mrb[0].mxu0 %v2129
        %v2354 = vpop.f32.mrb[0].mxu0
        %v2355 = vadd.f32 0.0, %v2354
        %v2356 = vpop.f32.mrb[0].mxu0
        %2357 = vdwg.mxu0
        %2358 = vmatprep.subr.mxu0 0.0
        %2359 = vmatpush1.msra.mxu0 %v328
        %2360 = vmatprep.subr.mxu0 0.0
        %2361 = vmatpush1.msra.mxu0 %v329
        %2362 = vmatprep.subr.mxu0 0.0
        %2363 = vmatpush1.msra.mxu0 %v330
        %2364 = vmatprep.subr.mxu0 0.0
        %2365 = vmatpush1.msra.mxu0 %v331
        %2366 = vmatprep.subr.mxu0 0.0
        %2367 = vmatpush1.msra.mxu0 %v332
        %2368 = vmatprep.subr.mxu0 0.0
        %2369 = vmatpush1.msra.mxu0 %v333
        %2370 = vmatprep.subr.mxu0 0.0
        %2371 = vmatpush1.msra.mxu0 %v334
        %2372 = vmatprep.subr.mxu0 0.0
        %2373 = vmatpush1.msra.mxu0 %v335
        %2374 = vmatprep.subr.mxu0 0.0
        %2375 = vmatpush1.msra.mxu0 %v336
        %2376 = vmatprep.subr.mxu0 0.0
        %2377 = vmatpush1.msra.mxu0 %v337
        %2378 = vmatprep.subr.mxu0 0.0
        %2379 = vmatpush1.msra.mxu0 %v338
        %2380 = vmatprep.subr.mxu0 0.0
        %2381 = vmatpush1.msra.mxu0 %v339
        %2382 = vmatprep.subr.mxu0 0.0
        %2383 = vmatpush1.msra.mxu0 %v340
        %2384 = vmatprep.subr.mxu0 0.0
        %2385 = vmatpush1.msra.mxu0 %v341
        %2386 = vmatprep.subr.mxu0 0.0
        %2387 = vmatpush1.msra.mxu0 %v342
        %2388 = vmatprep.subr.mxu0 0.0
        %2389 = vmatpush1.msra.mxu0 %v343
        %2390 = vmatprep.subr.mxu0 0.0
        %2391 = vmatpush1.msra.mxu0 %v344
        %2392 = vmatprep.subr.mxu0 0.0
        %2393 = vmatpush1.msra.mxu0 %v345
        %2394 = vmatprep.subr.mxu0 0.0
        %2395 = vmatpush1.msra.mxu0 %v346
        %2396 = vmatprep.subr.mxu0 0.0
        %2397 = vmatpush1.msra.mxu0 %v347
        %2398 = vmatprep.subr.mxu0 0.0
        %2399 = vmatpush1.msra.mxu0 %v348
        %2400 = vmatprep.subr.mxu0 0.0
        %2401 = vmatpush1.msra.mxu0 %v349
        %2402 = vmatprep.subr.mxu0 0.0
        %2403 = vmatpush1.msra.mxu0 %v350
        %2404 = vmatprep.subr.mxu0 0.0
        %2405 = vmatpush1.msra.mxu0 %v351
        %2406 = vmatprep.subr.mxu0 0.0
        %2407 = vmatpush1.msra.mxu0 %v352
        %2408 = vmatprep.subr.mxu0 0.0
        %2409 = vmatpush1.msra.mxu0 %v353
        %2410 = vmatprep.subr.mxu0 0.0
        %2411 = vmatpush1.msra.mxu0 %v354
        %2412 = vmatprep.subr.mxu0 0.0
        %2413 = vmatpush1.msra.mxu0 %v355
        %2414 = vmatprep.subr.mxu0 0.0
        %2415 = vmatpush1.msra.mxu0 %v356
        %2416 = vmatprep.subr.mxu0 0.0
        %2417 = vmatpush1.msra.mxu0 %v357
        %2418 = vmatprep.subr.mxu0 0.0
        %2419 = vmatpush1.msra.mxu0 %v358
        %2420 = vmatprep.subr.mxu0 0.0
        %2421 = vmatpush1.msra.mxu0 %v359
        %2422 = vmatprep.mubr.f32.mxu0 %v2132
        %2423 = vmatmul.mubr.f32.gmra.mrb[0].mxu0 %v2131
        %v2424 = vpop.f32.mrb[0].mxu0
        %v2425 = vadd.f32 %v2355, %v2424
        %v2426 = vpop.f32.mrb[0].mxu0
        %2427 = vdwg.mxu0
        %2428 = vmatprep.subr.mxu0 0.0
        %2429 = vmatpush1.msra.mxu0 %v227
        %2430 = vmatprep.subr.mxu0 0.0
        %2431 = vmatpush1.msra.mxu0 %v228
        %2432 = vmatprep.subr.mxu0 0.0
        %2433 = vmatpush1.msra.mxu0 %v229
        %2434 = vmatprep.subr.mxu0 0.0
        %2435 = vmatpush1.msra.mxu0 %v230
        %2436 = vmatprep.subr.mxu0 0.0
        %2437 = vmatpush1.msra.mxu0 %v231
        %2438 = vmatprep.subr.mxu0 0.0
        %2439 = vmatpush1.msra.mxu0 %v232
        %2440 = vmatprep.subr.mxu0 0.0
        %2441 = vmatpush1.msra.mxu0 %v233
        %2442 = vmatprep.subr.mxu0 0.0
        %2443 = vmatpush1.msra.mxu0 %v234
        %2444 = vmatprep.subr.mxu0 0.0
        %2445 = vmatpush1.msra.mxu0 %v235
        %2446 = vmatprep.subr.mxu0 0.0
        %2447 = vmatpush1.msra.mxu0 %v236
        %2448 = vmatprep.subr.mxu0 0.0
        %2449 = vmatpush1.msra.mxu0 %v237
        %2450 = vmatprep.subr.mxu0 0.0
        %2451 = vmatpush1.msra.mxu0 %v238
        %2452 = vmatprep.subr.mxu0 0.0
        %2453 = vmatpush1.msra.mxu0 %v239
        %2454 = vmatprep.subr.mxu0 0.0
        %2455 = vmatpush1.msra.mxu0 %v240
        %2456 = vmatprep.subr.mxu0 0.0
        %2457 = vmatpush1.msra.mxu0 %v241
        %2458 = vmatprep.subr.mxu0 0.0
        %2459 = vmatpush1.msra.mxu0 %v242
        %2460 = vmatprep.subr.mxu0 0.0
        %2461 = vmatpush1.msra.mxu0 %v243
        %2462 = vmatprep.subr.mxu0 0.0
        %2463 = vmatpush1.msra.mxu0 %v244
        %2464 = vmatprep.subr.mxu0 0.0
        %2465 = vmatpush1.msra.mxu0 %v245
        %2466 = vmatprep.subr.mxu0 0.0
        %2467 = vmatpush1.msra.mxu0 %v246
        %2468 = vmatprep.subr.mxu0 0.0
        %2469 = vmatpush1.msra.mxu0 %v247
        %2470 = vmatprep.subr.mxu0 0.0
        %2471 = vmatpush1.msra.mxu0 %v248
        %2472 = vmatprep.subr.mxu0 0.0
        %2473 = vmatpush1.msra.mxu0 %v249
        %2474 = vmatprep.subr.mxu0 0.0
        %2475 = vmatpush1.msra.mxu0 %v250
        %2476 = vmatprep.subr.mxu0 0.0
        %2477 = vmatpush1.msra.mxu0 %v251
        %2478 = vmatprep.subr.mxu0 0.0
        %2479 = vmatpush1.msra.mxu0 %v252
        %2480 = vmatprep.subr.mxu0 0.0
        %2481 = vmatpush1.msra.mxu0 %v253
        %2482 = vmatprep.subr.mxu0 0.0
        %2483 = vmatpush1.msra.mxu0 %v254
        %2484 = vmatprep.subr.mxu0 0.0
        %2485 = vmatpush1.msra.mxu0 %v255
        %2486 = vmatprep.subr.mxu0 0.0
        %2487 = vmatpush1.msra.mxu0 %v256
        %2488 = vmatprep.subr.mxu0 0.0
        %2489 = vmatpush1.msra.mxu0 %v257
        %2490 = vmatprep.subr.mxu0 0.0
        %2491 = vmatpush1.msra.mxu0 %v258
        %2492 = vmatprep.mubr.f32.mxu0 %v1977
        %2493 = vmatmul.mubr.f32.gmra.mrb[0].mxu0 %v1976
        %v2494 = vpop.f32.mrb[0].mxu0
        %v2495 = vadd.f32 %v2425, %v2494
        %v2496 = vpop.f32.mrb[0].mxu0
        %2497 = vdwg.mxu0
        %2498 = vmatprep.subr.mxu0 0.0
        %2499 = vmatpush1.msra.mxu0 %v259
        %2500 = vmatprep.subr.mxu0 0.0
        %2501 = vmatpush1.msra.mxu0 %v260
        %2502 = vmatprep.subr.mxu0 0.0
        %2503 = vmatpush1.msra.mxu0 %v261
        %2504 = vmatprep.subr.mxu0 0.0
        %2505 = vmatpush1.msra.mxu0 %v262
        %2506 = vmatprep.subr.mxu0 0.0
        %2507 = vmatpush1.msra.mxu0 %v263
        %2508 = vmatprep.subr.mxu0 0.0
        %2509 = vmatpush1.msra.mxu0 %v264
        %2510 = vmatprep.subr.mxu0 0.0
        %2511 = vmatpush1.msra.mxu0 %v265
        %2512 = vmatprep.subr.mxu0 0.0
        %2513 = vmatpush1.msra.mxu0 %v266
        %2514 = vmatprep.subr.mxu0 0.0
        %2515 = vmatpush1.msra.mxu0 %v267
        %2516 = vmatprep.subr.mxu0 0.0
        %2517 = vmatpush1.msra.mxu0 %v268
        %2518 = vmatprep.subr.mxu0 0.0
        %2519 = vmatpush1.msra.mxu0 %v269
        %2520 = vmatprep.subr.mxu0 0.0
        %2521 = vmatpush1.msra.mxu0 %v270
        %2522 = vmatprep.subr.mxu0 0.0
        %2523 = vmatpush1.msra.mxu0 %v271
        %2524 = vmatprep.subr.mxu0 0.0
        %2525 = vmatpush1.msra.mxu0 %v272
        %2526 = vmatprep.subr.mxu0 0.0
        %2527 = vmatpush1.msra.mxu0 %v273
        %2528 = vmatprep.subr.mxu0 0.0
        %2529 = vmatpush1.msra.mxu0 %v274
        %2530 = vmatprep.subr.mxu0 0.0
        %2531 = vmatpush1.msra.mxu0 %v275
        %2532 = vmatprep.subr.mxu0 0.0
        %2533 = vmatpush1.msra.mxu0 %v276
        %2534 = vmatprep.subr.mxu0 0.0
        %2535 = vmatpush1.msra.mxu0 %v277
        %2536 = vmatprep.subr.mxu0 0.0
        %2537 = vmatpush1.msra.mxu0 %v278
        %2538 = vmatprep.subr.mxu0 0.0
        %2539 = vmatpush1.msra.mxu0 %v279
        %2540 = vmatprep.subr.mxu0 0.0
        %2541 = vmatpush1.msra.mxu0 %v280
        %2542 = vmatprep.subr.mxu0 0.0
        %2543 = vmatpush1.msra.mxu0 %v281
        %2544 = vmatprep.subr.mxu0 0.0
        %2545 = vmatpush1.msra.mxu0 %v282
        %2546 = vmatprep.subr.mxu0 0.0
        %2547 = vmatpush1.msra.mxu0 %v283
        %2548 = vmatprep.subr.mxu0 0.0
        %2549 = vmatpush1.msra.mxu0 %v284
        %2550 = vmatprep.subr.mxu0 0.0
        %2551 = vmatpush1.msra.mxu0 %v285
        %2552 = vmatprep.subr.mxu0 0.0
        %2553 = vmatpush1.msra.mxu0 %v286
        %2554 = vmatprep.subr.mxu0 0.0
        %2555 = vmatpush1.msra.mxu0 %v287
        %2556 = vmatprep.subr.mxu0 0.0
        %2557 = vmatpush1.msra.mxu0 %v288
        %2558 = vmatprep.subr.mxu0 0.0
        %2559 = vmatpush1.msra.mxu0 %v289
        %2560 = vmatprep.subr.mxu0 0.0
        %2561 = vmatpush1.msra.mxu0 %v290
        %2562 = vmatprep.mubr.f32.mxu0 %v1979
        %2563 = vmatmul.mubr.f32.gmra.mrb[0].mxu0 %v1978
        %v2564 = vpop.f32.mrb[0].mxu0
        %v2565 = vadd.f32 %v2495, %v2564
        %v2566 = vpop.f32.mrb[0].mxu0
        %2567 = vdwg.mxu0
        %s2568 = scalar_lea.vmem %s221, 128
        %v2569 = vld [vmem:[%s2568] sm:$0xf]
        %v2570 = vld [vmem:[%s2568 + $0x8] sm:$0xf]
        %v2571 = vld [vmem:[%s2568 + $0x10] sm:$0xf]
        %v2572 = vld [vmem:[%s2568 + $0x18] sm:$0xf]
        %2573 = vmatprep.subr.mxu0 0.0
        %2574 = vmatpush1.msra.mxu0 %v658
        %2575 = vmatprep.subr.mxu0 0.0
        %2576 = vmatpush1.msra.mxu0 %v659
        %2577 = vmatprep.subr.mxu0 0.0
        %2578 = vmatpush1.msra.mxu0 %v660
        %2579 = vmatprep.subr.mxu0 0.0
        %2580 = vmatpush1.msra.mxu0 %v661
        %2581 = vmatprep.subr.mxu0 0.0
        %2582 = vmatpush1.msra.mxu0 %v662
        %2583 = vmatprep.subr.mxu0 0.0
        %2584 = vmatpush1.msra.mxu0 %v663
        %2585 = vmatprep.subr.mxu0 0.0
        %2586 = vmatpush1.msra.mxu0 %v664
        %2587 = vmatprep.subr.mxu0 0.0
        %2588 = vmatpush1.msra.mxu0 %v665
        %2589 = vmatprep.subr.mxu0 0.0
        %2590 = vmatpush1.msra.mxu0 %v666
        %2591 = vmatprep.subr.mxu0 0.0
        %2592 = vmatpush1.msra.mxu0 %v667
        %2593 = vmatprep.subr.mxu0 0.0
        %2594 = vmatpush1.msra.mxu0 %v668
        %2595 = vmatprep.subr.mxu0 0.0
        %2596 = vmatpush1.msra.mxu0 %v669
        %2597 = vmatprep.subr.mxu0 0.0
        %2598 = vmatpush1.msra.mxu0 %v670
        %2599 = vmatprep.subr.mxu0 0.0
        %2600 = vmatpush1.msra.mxu0 %v671
        %2601 = vmatprep.subr.mxu0 0.0
        %2602 = vmatpush1.msra.mxu0 %v672
        %2603 = vmatprep.subr.mxu0 0.0
        %2604 = vmatpush1.msra.mxu0 %v673
        %2605 = vmatprep.subr.mxu0 0.0
        %2606 = vmatpush1.msra.mxu0 %v674
        %2607 = vmatprep.subr.mxu0 0.0
        %2608 = vmatpush1.msra.mxu0 %v675
        %2609 = vmatprep.subr.mxu0 0.0
        %2610 = vmatpush1.msra.mxu0 %v676
        %2611 = vmatprep.subr.mxu0 0.0
        %2612 = vmatpush1.msra.mxu0 %v677
        %2613 = vmatprep.subr.mxu0 0.0
        %2614 = vmatpush1.msra.mxu0 %v678
        %2615 = vmatprep.subr.mxu0 0.0
        %2616 = vmatpush1.msra.mxu0 %v679
        %2617 = vmatprep.subr.mxu0 0.0
        %2618 = vmatpush1.msra.mxu0 %v680
        %2619 = vmatprep.subr.mxu0 0.0
        %2620 = vmatpush1.msra.mxu0 %v681
        %2621 = vmatprep.subr.mxu0 0.0
        %2622 = vmatpush1.msra.mxu0 %v682
        %2623 = vmatprep.subr.mxu0 0.0
        %2624 = vmatpush1.msra.mxu0 %v683
        %2625 = vmatprep.subr.mxu0 0.0
        %2626 = vmatpush1.msra.mxu0 %v684
        %2627 = vmatprep.subr.mxu0 0.0
        %2628 = vmatpush1.msra.mxu0 %v685
        %2629 = vmatprep.subr.mxu0 0.0
        %2630 = vmatpush1.msra.mxu0 %v686
        %2631 = vmatprep.subr.mxu0 0.0
        %2632 = vmatpush1.msra.mxu0 %v687
        %2633 = vmatprep.subr.mxu0 0.0
        %2634 = vmatpush1.msra.mxu0 %v688
        %2635 = vmatprep.subr.mxu0 0.0
        %2636 = vmatpush1.msra.mxu0 %v689
        %2637 = vmatprep.mubr.f32.mxu0 %v2570
        %2638 = vmatmul.mubr.f32.gmra.mrb[0].mxu0 %v2569
        %v2639 = vpop.f32.mrb[0].mxu0
        %v2640 = vadd.f32 0.0, %v2639
        %v2641 = vpop.f32.mrb[0].mxu0
        %2642 = vdwg.mxu0
        %2643 = vmatprep.subr.mxu0 0.0
        %2644 = vmatpush1.msra.mxu0 %v690
        %2645 = vmatprep.subr.mxu0 0.0
        %2646 = vmatpush1.msra.mxu0 %v691
        %2647 = vmatprep.subr.mxu0 0.0
        %2648 = vmatpush1.msra.mxu0 %v692
        %2649 = vmatprep.subr.mxu0 0.0
        %2650 = vmatpush1.msra.mxu0 %v693
        %2651 = vmatprep.subr.mxu0 0.0
        %2652 = vmatpush1.msra.mxu0 %v694
        %2653 = vmatprep.subr.mxu0 0.0
        %2654 = vmatpush1.msra.mxu0 %v695
        %2655 = vmatprep.subr.mxu0 0.0
        %2656 = vmatpush1.msra.mxu0 %v696
        %2657 = vmatprep.subr.mxu0 0.0
        %2658 = vmatpush1.msra.mxu0 %v697
        %2659 = vmatprep.subr.mxu0 0.0
        %2660 = vmatpush1.msra.mxu0 %v698
        %2661 = vmatprep.subr.mxu0 0.0
        %2662 = vmatpush1.msra.mxu0 %v699
        %2663 = vmatprep.subr.mxu0 0.0
        %2664 = vmatpush1.msra.mxu0 %v700
        %2665 = vmatprep.subr.mxu0 0.0
        %2666 = vmatpush1.msra.mxu0 %v701
        %2667 = vmatprep.subr.mxu0 0.0
        %2668 = vmatpush1.msra.mxu0 %v702
        %2669 = vmatprep.subr.mxu0 0.0
        %2670 = vmatpush1.msra.mxu0 %v703
        %2671 = vmatprep.subr.mxu0 0.0
        %2672 = vmatpush1.msra.mxu0 %v704
        %2673 = vmatprep.subr.mxu0 0.0
        %2674 = vmatpush1.msra.mxu0 %v705
        %2675 = vmatprep.subr.mxu0 0.0
        %2676 = vmatpush1.msra.mxu0 %v706
        %2677 = vmatprep.subr.mxu0 0.0
        %2678 = vmatpush1.msra.mxu0 %v707
        %2679 = vmatprep.subr.mxu0 0.0
        %2680 = vmatpush1.msra.mxu0 %v708
        %2681 = vmatprep.subr.mxu0 0.0
        %2682 = vmatpush1.msra.mxu0 %v709
        %2683 = vmatprep.subr.mxu0 0.0
        %2684 = vmatpush1.msra.mxu0 %v710
        %2685 = vmatprep.subr.mxu0 0.0
        %2686 = vmatpush1.msra.mxu0 %v711
        %2687 = vmatprep.subr.mxu0 0.0
        %2688 = vmatpush1.msra.mxu0 %v712
        %2689 = vmatprep.subr.mxu0 0.0
        %2690 = vmatpush1.msra.mxu0 %v713
        %2691 = vmatprep.subr.mxu0 0.0
        %2692 = vmatpush1.msra.mxu0 %v714
        %2693 = vmatprep.subr.mxu0 0.0
        %2694 = vmatpush1.msra.mxu0 %v715
        %2695 = vmatprep.subr.mxu0 0.0
        %2696 = vmatpush1.msra.mxu0 %v716
        %2697 = vmatprep.subr.mxu0 0.0
        %2698 = vmatpush1.msra.mxu0 %v717
        %2699 = vmatprep.subr.mxu0 0.0
        %2700 = vmatpush1.msra.mxu0 %v718
        %2701 = vmatprep.subr.mxu0 0.0
        %2702 = vmatpush1.msra.mxu0 %v719
        %2703 = vmatprep.subr.mxu0 0.0
        %2704 = vmatpush1.msra.mxu0 %v720
        %2705 = vmatprep.subr.mxu0 0.0
        %2706 = vmatpush1.msra.mxu0 %v721
        %2707 = vmatprep.mubr.f32.mxu0 %v2572
        %2708 = vmatmul.mubr.f32.gmra.mrb[0].mxu0 %v2571
        %v2709 = vpop.f32.mrb[0].mxu0
        %v2710 = vadd.f32 %v2640, %v2709
        %v2711 = vpop.f32.mrb[0].mxu0
        %2712 = vdwg.mxu0
        %v2713 = vadd.f32 %v2565, %v2710
        %v2714 = vld [vmem:[%s2568] sm:$0x1e]
        %v2715 = vld [vmem:[%s2568 + $0x8] sm:$0x1e]
        %v2716 = vld [vmem:[%s2568 + $0x10] sm:$0x1e]
        %v2717 = vld [vmem:[%s2568 + $0x18] sm:$0x1e]
        %v2722 = vrot.slane %v2714, 1
        %v2723 = vrot.slane %v2715, 1
        %v2724 = vrot.slane %v2716, 1
        %v2725 = vrot.slane %v2717, 1
        %2730 = vmatprep.subr.mxu0 0.0
        %2731 = vmatpush1.msra.mxu0 %v868
        %2732 = vmatprep.subr.mxu0 0.0
        %2733 = vmatpush1.msra.mxu0 %v869
        %2734 = vmatprep.subr.mxu0 0.0
        %2735 = vmatpush1.msra.mxu0 %v870
        %2736 = vmatprep.subr.mxu0 0.0
        %2737 = vmatpush1.msra.mxu0 %v871
        %2738 = vmatprep.subr.mxu0 0.0
        %2739 = vmatpush1.msra.mxu0 %v872
        %2740 = vmatprep.subr.mxu0 0.0
        %2741 = vmatpush1.msra.mxu0 %v873
        %2742 = vmatprep.subr.mxu0 0.0
        %2743 = vmatpush1.msra.mxu0 %v874
        %2744 = vmatprep.subr.mxu0 0.0
        %2745 = vmatpush1.msra.mxu0 %v875
        %2746 = vmatprep.subr.mxu0 0.0
        %2747 = vmatpush1.msra.mxu0 %v876
        %2748 = vmatprep.subr.mxu0 0.0
        %2749 = vmatpush1.msra.mxu0 %v877
        %2750 = vmatprep.subr.mxu0 0.0
        %2751 = vmatpush1.msra.mxu0 %v878
        %2752 = vmatprep.subr.mxu0 0.0
        %2753 = vmatpush1.msra.mxu0 %v879
        %2754 = vmatprep.subr.mxu0 0.0
        %2755 = vmatpush1.msra.mxu0 %v880
        %2756 = vmatprep.subr.mxu0 0.0
        %2757 = vmatpush1.msra.mxu0 %v881
        %2758 = vmatprep.subr.mxu0 0.0
        %2759 = vmatpush1.msra.mxu0 %v882
        %2760 = vmatprep.subr.mxu0 0.0
        %2761 = vmatpush1.msra.mxu0 %v883
        %2762 = vmatprep.subr.mxu0 0.0
        %2763 = vmatpush1.msra.mxu0 %v884
        %2764 = vmatprep.subr.mxu0 0.0
        %2765 = vmatpush1.msra.mxu0 %v885
        %2766 = vmatprep.subr.mxu0 0.0
        %2767 = vmatpush1.msra.mxu0 %v886
        %2768 = vmatprep.subr.mxu0 0.0
        %2769 = vmatpush1.msra.mxu0 %v887
        %2770 = vmatprep.subr.mxu0 0.0
        %2771 = vmatpush1.msra.mxu0 %v888
        %2772 = vmatprep.subr.mxu0 0.0
        %2773 = vmatpush1.msra.mxu0 %v889
        %2774 = vmatprep.subr.mxu0 0.0
        %2775 = vmatpush1.msra.mxu0 %v890
        %2776 = vmatprep.subr.mxu0 0.0
        %2777 = vmatpush1.msra.mxu0 %v891
        %2778 = vmatprep.subr.mxu0 0.0
        %2779 = vmatpush1.msra.mxu0 %v892
        %2780 = vmatprep.subr.mxu0 0.0
        %2781 = vmatpush1.msra.mxu0 %v893
        %2782 = vmatprep.subr.mxu0 0.0
        %2783 = vmatpush1.msra.mxu0 %v894
        %2784 = vmatprep.subr.mxu0 0.0
        %2785 = vmatpush1.msra.mxu0 %v895
        %2786 = vmatprep.subr.mxu0 0.0
        %2787 = vmatpush1.msra.mxu0 %v896
        %2788 = vmatprep.subr.mxu0 0.0
        %2789 = vmatpush1.msra.mxu0 %v897
        %2790 = vmatprep.subr.mxu0 0.0
        %2791 = vmatpush1.msra.mxu0 %v898
        %2792 = vmatprep.subr.mxu0 0.0
        %2793 = vmatpush1.msra.mxu0 %v899
        %2794 = vmatprep.mubr.f32.mxu0 %v2723
        %2795 = vmatmul.mubr.f32.gmra.mrb[0].mxu0 %v2722
        %v2796 = vpop.f32.mrb[0].mxu0
        %v2797 = vadd.f32 0.0, %v2796
        %v2798 = vpop.f32.mrb[0].mxu0
        %2799 = vdwg.mxu0
        %2800 = vmatprep.subr.mxu0 0.0
        %2801 = vmatpush1.msra.mxu0 %v900
        %2802 = vmatprep.subr.mxu0 0.0
        %2803 = vmatpush1.msra.mxu0 %v901
        %2804 = vmatprep.subr.mxu0 0.0
        %2805 = vmatpush1.msra.mxu0 %v902
        %2806 = vmatprep.subr.mxu0 0.0
        %2807 = vmatpush1.msra.mxu0 %v903
        %2808 = vmatprep.subr.mxu0 0.0
        %2809 = vmatpush1.msra.mxu0 %v904
        %2810 = vmatprep.subr.mxu0 0.0
        %2811 = vmatpush1.msra.mxu0 %v905
        %2812 = vmatprep.subr.mxu0 0.0
        %2813 = vmatpush1.msra.mxu0 %v906
        %2814 = vmatprep.subr.mxu0 0.0
        %2815 = vmatpush1.msra.mxu0 %v907
        %2816 = vmatprep.subr.mxu0 0.0
        %2817 = vmatpush1.msra.mxu0 %v908
        %2818 = vmatprep.subr.mxu0 0.0
        %2819 = vmatpush1.msra.mxu0 %v909
        %2820 = vmatprep.subr.mxu0 0.0
        %2821 = vmatpush1.msra.mxu0 %v910
        %2822 = vmatprep.subr.mxu0 0.0
        %2823 = vmatpush1.msra.mxu0 %v911
        %2824 = vmatprep.subr.mxu0 0.0
        %2825 = vmatpush1.msra.mxu0 %v912
        %2826 = vmatprep.subr.mxu0 0.0
        %2827 = vmatpush1.msra.mxu0 %v913
        %2828 = vmatprep.subr.mxu0 0.0
        %2829 = vmatpush1.msra.mxu0 %v914
        %2830 = vmatprep.subr.mxu0 0.0
        %2831 = vmatpush1.msra.mxu0 %v915
        %2832 = vmatprep.subr.mxu0 0.0
        %2833 = vmatpush1.msra.mxu0 %v916
        %2834 = vmatprep.subr.mxu0 0.0
        %2835 = vmatpush1.msra.mxu0 %v917
        %2836 = vmatprep.subr.mxu0 0.0
        %2837 = vmatpush1.msra.mxu0 %v918
        %2838 = vmatprep.subr.mxu0 0.0
        %2839 = vmatpush1.msra.mxu0 %v919
        %2840 = vmatprep.subr.mxu0 0.0
        %2841 = vmatpush1.msra.mxu0 %v920
        %2842 = vmatprep.subr.mxu0 0.0
        %2843 = vmatpush1.msra.mxu0 %v921
        %2844 = vmatprep.subr.mxu0 0.0
        %2845 = vmatpush1.msra.mxu0 %v922
        %2846 = vmatprep.subr.mxu0 0.0
        %2847 = vmatpush1.msra.mxu0 %v923
        %2848 = vmatprep.subr.mxu0 0.0
        %2849 = vmatpush1.msra.mxu0 %v924
        %2850 = vmatprep.subr.mxu0 0.0
        %2851 = vmatpush1.msra.mxu0 %v925
        %2852 = vmatprep.subr.mxu0 0.0
        %2853 = vmatpush1.msra.mxu0 %v926
        %2854 = vmatprep.subr.mxu0 0.0
        %2855 = vmatpush1.msra.mxu0 %v927
        %2856 = vmatprep.subr.mxu0 0.0
        %2857 = vmatpush1.msra.mxu0 %v928
        %2858 = vmatprep.subr.mxu0 0.0
        %2859 = vmatpush1.msra.mxu0 %v929
        %2860 = vmatprep.subr.mxu0 0.0
        %2861 = vmatpush1.msra.mxu0 %v930
        %2862 = vmatprep.subr.mxu0 0.0
        %2863 = vmatpush1.msra.mxu0 %v931
        %2864 = vmatprep.mubr.f32.mxu0 %v2725
        %2865 = vmatmul.mubr.f32.gmra.mrb[0].mxu0 %v2724
        %v2866 = vpop.f32.mrb[0].mxu0
        %v2867 = vadd.f32 %v2797, %v2866
        %v2868 = vpop.f32.mrb[0].mxu0
        %2869 = vdwg.mxu0
        %v2870 = vadd.f32 %v2713, %v2867
        %v2871 = vadd.f32 %v2870, %v1089
        %v2872 = vmax.f32 %v2871, 0.0
        %v2873 = vsel %vm1093, %v2872, 0.0
        %v2874 = vrot.slane %v2873, 4
        %v2875 = vadd.f32 %v2873, %v2874
        %v2876 = vrot.slane %v2875, 2
        %v2877 = vadd.f32 %v2875, %v2876
        %v2878 = vrot.slane %v2877, 1
        %v2879 = vadd.f32 %v2877, %v2878
        %v2880 = vadd.f32 %v2287, %v2879
        %v2881 = vmul.f32 %v2880, 0.0625
        %v2882 = vld [vmem:[%s3] sm:$0xff]
        %v2883 = vld [vmem:[%s3 + $0x8] sm:$0xff]
        %v2884 = vld [vmem:[%s3 + $0x10] sm:$0xff]
        %v2885 = vld [vmem:[%s3 + $0x18] sm:$0xff]
        %v2886 = vld [vmem:[%s3 + $0x20] sm:$0xff]
        %v2887 = vld [vmem:[%s3 + $0x28] sm:$0xff]
        %v2888 = vld [vmem:[%s3 + $0x30] sm:$0xff]
        %v2889 = vld [vmem:[%s3 + $0x38] sm:$0xff]
        %v2890 = vld [vmem:[%s3 + $0x40] sm:$0xff]
        %v2891 = vld [vmem:[%s3 + $0x48] sm:$0xff]
        %v2892 = vld [vmem:[%s3 + $0x50] sm:$0xff]
        %v2893 = vld [vmem:[%s3 + $0x58] sm:$0xff]
        %v2894 = vld [vmem:[%s3 + $0x60] sm:$0xff]
        %v2895 = vld [vmem:[%s3 + $0x68] sm:$0xff]
        %v2896 = vld [vmem:[%s3 + $0x70] sm:$0xff]
        %v2897 = vld [vmem:[%s3 + $0x78] sm:$0xff]
        %v2898 = vld [vmem:[%s4] sm:$0x1]
        %2899 = vmatprep.subr.mxu0 0.0
        %2900 = vmatpush1.msra.mxu0 %v2882
        %2901 = vmatprep.subr.mxu0 0.0
        %2902 = vmatpush1.msra.mxu0 %v2883
        %2903 = vmatprep.subr.mxu0 0.0
        %2904 = vmatpush1.msra.mxu0 %v2884
        %2905 = vmatprep.subr.mxu0 0.0
        %2906 = vmatpush1.msra.mxu0 %v2885
        %2907 = vmatprep.subr.mxu0 0.0
        %2908 = vmatpush1.msra.mxu0 %v2886
        %2909 = vmatprep.subr.mxu0 0.0
        %2910 = vmatpush1.msra.mxu0 %v2887
        %2911 = vmatprep.subr.mxu0 0.0
        %2912 = vmatpush1.msra.mxu0 %v2888
        %2913 = vmatprep.subr.mxu0 0.0
        %2914 = vmatpush1.msra.mxu0 %v2889
        %2915 = vmatprep.subr.mxu0 0.0
        %2916 = vmatpush1.msra.mxu0 %v2890
        %2917 = vmatprep.subr.mxu0 0.0
        %2918 = vmatpush1.msra.mxu0 %v2891
        %2919 = vmatprep.subr.mxu0 0.0
        %2920 = vmatpush1.msra.mxu0 %v2892
        %2921 = vmatprep.subr.mxu0 0.0
        %2922 = vmatpush1.msra.mxu0 %v2893
        %2923 = vmatprep.subr.mxu0 0.0
        %2924 = vmatpush1.msra.mxu0 %v2894
        %2925 = vmatprep.subr.mxu0 0.0
        %2926 = vmatpush1.msra.mxu0 %v2895
        %2927 = vmatprep.subr.mxu0 0.0
        %2928 = vmatpush1.msra.mxu0 %v2896
        %2929 = vmatprep.subr.mxu0 0.0
        %2930 = vmatpush1.msra.mxu0 %v2897
        %2931 = vmatprep.subr.mxu0 0.0
        %2932 = vmatpush1.msra.mxu0 0.0
        %2933 = vmatprep.subr.mxu0 0.0
        %2934 = vmatpush1.msra.mxu0 0.0
        %2935 = vmatprep.subr.mxu0 0.0
        %2936 = vmatpush1.msra.mxu0 0.0
        %2937 = vmatprep.subr.mxu0 0.0
        %2938 = vmatpush1.msra.mxu0 0.0
        %2939 = vmatprep.subr.mxu0 0.0
        %2940 = vmatpush1.msra.mxu0 0.0
        %2941 = vmatprep.subr.mxu0 0.0
        %2942 = vmatpush1.msra.mxu0 0.0
        %2943 = vmatprep.subr.mxu0 0.0
        %2944 = vmatpush1.msra.mxu0 0.0
        %2945 = vmatprep.subr.mxu0 0.0
        %2946 = vmatpush1.msra.mxu0 0.0
        %2947 = vmatprep.subr.mxu0 0.0
        %2948 = vmatpush1.msra.mxu0 0.0
        %2949 = vmatprep.subr.mxu0 0.0
        %2950 = vmatpush1.msra.mxu0 0.0
        %2951 = vmatprep.subr.mxu0 0.0
        %2952 = vmatpush1.msra.mxu0 0.0
        %2953 = vmatprep.subr.mxu0 0.0
        %2954 = vmatpush1.msra.mxu0 0.0
        %2955 = vmatprep.subr.mxu0 0.0
        %2956 = vmatpush1.msra.mxu0 0.0
        %2957 = vmatprep.subr.mxu0 0.0
        %2958 = vmatpush1.msra.mxu0 0.0
        %2959 = vmatprep.subr.mxu0 0.0
        %2960 = vmatpush1.msra.mxu0 0.0
        %2961 = vmatprep.subr.mxu0 0.0
        %2962 = vmatpush1.msra.mxu0 0.0
        %2963 = vmatprep.mubr.f32.mxu0 0.0
        %2964 = vmatmul.mubr.f32.gmra.mrb[0].mxu0 %v2881
        %v2965 = vpop.f32.mrb[0].mxu0
        %v2966 = vadd.f32 %v2898, %v2965
        %v2967 = vpop.f32.mrb[0].mxu0
        %2968 = vdwg.mxu0
        %2969 = vst [vmem:[%s216] sm:$0x1] %v2966
        %s2970 = sand.u32 %s137, 1
        %s2971 = scalar_lea.sflag [#allocation3], %s2970
        %s2972 = sand.u32 %s137, 1
        %s2973 = scalar_lea.vmem [#allocation2], %s2972
        // Predicated region
        $region41: #{backbone_forward.3} parent=39 // pred_check
          %p2974 = pneg %p147
        $region42: #{backbone_forward.3} parent=39 // pred_check_branch
          %2976 = sbr.rel (%p2974) target = $region44
        $region43: #{backbone_forward.3} parent=39 // pred_region
          %s2978 = ssub.s32 16, 16
          %2979 = vsyncadd %s2971, %s2978
          %s2980 = smul.addr %s19, 16
          %s2981 = scalar_lea.hbm %s5, %s2980
          %s2983 = sshll.u32 %s2973, 4
          %s2984 = int_to_ptr.vmem [resolvable:$true] %s2983
          %2986 = dma.vmem_to_hbm [thread:$0]  %s2984, 16, %s2981, %s2971
        $region44: #{backbone_forward.3} parent=39 // pred_fallthru
          _
      $region40: #{backbone_forward.3} parent=5 // pred_fallthru
        _
      %p2987 = scmp.le.s32.totalorder 2, %s14
      // Predicated region
      $region45: #{backbone_forward.3} parent=5 // pred_check
        %p2988 = pneg %p2987
      $region46: #{backbone_forward.3} parent=5 // pred_check_branch
        %2990 = sbr.rel (%p2988) target = $region48
      $region47: #{backbone_forward.3} parent=5 // pred_region
        %s2991 = ssub.s32 %s14, 2
        // Predicated region
        $region49: #{backbone_forward.3} parent=47 // pred_check
          %p2992 = pneg %p153
        $region50: #{backbone_forward.3} parent=47 // pred_check_branch
          %2994 = sbr.rel (%p2992) target = $region52
        $region51: #{backbone_forward.3} parent=47 // pred_region
          %s2995 = sand.u32 %s138, 1
          %s2996 = scalar_lea.sflag [#allocation3], %s2995
          %s2997 = sand.u32 %s138, 1
          %s2998 = scalar_lea.vmem [#allocation2], %s2997
          %2999 = dma.done %s2996, 16
        $region52: #{backbone_forward.3} parent=47 // pred_fallthru
          _
      $region48: #{backbone_forward.3} parent=5 // pred_fallthru
        _
    $region6: #{backbone_forward.3} parent=1 // loop_footer
      %s18 = sadd.s32 1, %s14
    $region7: #{backbone_forward.3} parent=1 // loop_footer_branch
      %13 = sbr.rel target = $region3
    $region8: #{backbone_forward.3} parent=1 // loop_exit
      _
    %3000 = vsyncpa [#allocation3], 1
    %s3001 = scalar_lea.sflag [#allocation3], 1
    %3002 = vsyncpa %s3001, 1

</llo_original>
